<compile_context>
chip_gen: v7x
topology: tpu7x:2x2x1
jax: 0.10.0
libtpu: 0.0.40
codegen_flags: <defaults>
</compile_context>

<pallas_src>
import numpy as np

import jax
import jax.numpy as jnp
from jax.experimental import pallas as pl
from jax.experimental.pallas import tpu as pltpu


# ----------------------------------------------------------------------------
# Parameter-only preprocessing: conv -> dense matrix (block-Toeplitz),
# optionally with the 2x2 max-pool grouping folded into the column ordering.
# ----------------------------------------------------------------------------
def _conv_as_matrix(w, H, W, fuse_pool):
    """w: (C_out, C_in, KH, KW) numpy.  Returns (M, chan_of_col).

    (x_flat @ M) reproduces the 'same'-padded stride-1 cross-correlation,
    where x_flat is the CHW flatten of the (C_in, H, W) input.
    Column ordering:
      fuse_pool=False: (c_out, i, j)                    -> CHW flatten of output
      fuse_pool=True : (g, c_out, i_out, j_out), g=di*2+dj over the 2x2 pool
                       window; max over the 4 contiguous g-slabs yields the
                       pooled output in CHW order.
    """
    C_out, C_in, KH, KW = w.shape
    ph, pw = KH // 2, KW // 2
    if fuse_pool:
        Ho, Wo = H // 2, W // 2
        G, CO, IO, JO = np.meshgrid(np.arange(4), np.arange(C_out),
                                    np.arange(Ho), np.arange(Wo), indexing="ij")
        I = 2 * IO + G // 2
        J = 2 * JO + G % 2
    else:
        CO, I, J = np.meshgrid(np.arange(C_out), np.arange(H), np.arange(W),
                               indexing="ij")
    CO, I, J = CO.ravel(), I.ravel(), J.ravel()
    n_cols = CO.size
    cols = np.arange(n_cols)
    M = np.zeros((C_in * H * W, n_cols), dtype=np.float32)
    for ci in range(C_in):
        for kh in range(KH):
            for kw in range(KW):
                hi = I + kh - ph
                wi = J + kw - pw
                ok = (hi >= 0) & (hi < H) & (wi >= 0) & (wi < W)
                rows = (ci * H + hi[ok]) * W + wi[ok]
                M[rows, cols[ok]] = w[CO[ok], ci, kh, kw]
    return M, CO


def build_flat_params(raw, n_pad=128, compute_dtype=jnp.bfloat16):
    """raw: dict of conv/linear weights (PyTorch layout).  Returns flattened
    matmul-form parameters for the Pallas kernel.  The folded matrices are
    stored directly in `compute_dtype` (bf16/f32) so no per-call casting of
    megabytes of parameters is needed; biases stay f32 (f32 epilogue)."""
    cd = jnp.dtype(compute_dtype)

    M1, c1 = _conv_as_matrix(np.asarray(raw["w1"]), 16, 8, fuse_pool=True)   # (128, 2048)
    M2, c2 = _conv_as_matrix(np.asarray(raw["w2"]), 8, 4, fuse_pool=False)   # (512, 512)
    M3, c3 = _conv_as_matrix(np.asarray(raw["w3"]), 8, 4, fuse_pool=False)
    M4, c4 = _conv_as_matrix(np.asarray(raw["w4"]), 8, 4, fuse_pool=False)
    M5, c5 = _conv_as_matrix(np.asarray(raw["w5"]), 8, 4, fuse_pool=True)    # (512, 1024)

    n_classes = int(raw["wout"].shape[0])
    wout = np.zeros((M5.shape[1] // 4, n_pad), np.float32)                   # (256, 128)
    wout[:, :n_classes] = np.asarray(raw["wout"]).T
    bout = np.zeros((1, n_pad), np.float32)
    bout[0, :n_classes] = np.asarray(raw["bout"])

    def bfull(b, chan):
        return jnp.asarray(np.asarray(b)[chan][None, :].astype(np.float32))

    flat = {
        "m1": jnp.asarray(M1, cd), "b1": bfull(raw["b1"], c1),
        "m2": jnp.asarray(M2, cd), "b2": bfull(raw["b2"], c2),
        "m3": jnp.asarray(M3, cd), "b3": bfull(raw["b3"], c3),
        "m4": jnp.asarray(M4, cd), "b4": bfull(raw["b4"], c4),
        "m5": jnp.asarray(M5, cd), "b5": bfull(raw["b5"], c5),
        "wout": jnp.asarray(wout, cd), "bout": jnp.asarray(bout),
        "n_classes": n_classes,
    }
    return flat


# ----------------------------------------------------------------------------
# Pallas kernel: the whole CNN forward for one batch tile.
# ----------------------------------------------------------------------------
def _cnn_kernel(x_ref, m1_ref, b1_ref, m2_ref, b2_ref, m3_ref, b3_ref,
                m4_ref, b4_ref, m5_ref, b5_ref, wo_ref, bo_ref, o_ref):
    f32 = jnp.float32
    cd = m1_ref.dtype  # compute dtype (bf16 or f32); accumulation is always f32

    def dense_relu(h, m, b):
        # MXU matmul with f32 accumulation; bias added in f32.
        z = jnp.dot(h, m, preferred_element_type=f32) + b
        return jnp.maximum(z, 0.0)

    def dense_relu_pool(h, m_ref, b_ref):
        # Columns of m are ordered (pool_tap, c_out, h_out, w_out): process one
        # 128-aligned tap slab at a time (4 matmuls of N/4) with a running max.
        # Peak f32 intermediate is (tm, N/4) instead of (tm, N); same FLOPs.
        q = m_ref.shape[1] // 4
        out = dense_relu(h, m_ref[:, 0:q], b_ref[:, 0:q])
        for g in range(1, 4):
            sl = slice(g * q, (g + 1) * q)
            out = jnp.maximum(out, dense_relu(h, m_ref[:, sl], b_ref[:, sl]))
        return out

    h = x_ref[...]                                                # (tm, 128)
    h = dense_relu_pool(h, m1_ref, b1_ref).astype(cd)             # layer1+pool -> (tm, 512)
    h = dense_relu(h, m2_ref[...], b2_ref[...]).astype(cd)        # layer2      -> (tm, 512)
    h = dense_relu(h, m3_ref[...], b3_ref[...]).astype(cd)        # layer3
    h = dense_relu(h, m4_ref[...], b4_ref[...]).astype(cd)        # layer4
    h = dense_relu_pool(h, m5_ref, b5_ref).astype(cd)             # layer5+pool -> (tm, 256)
    logits = jnp.dot(h, wo_ref[...], preferred_element_type=f32) + bo_ref[...]
    o_ref[...] = logits.astype(o_ref.dtype)                       # (tm, 128) lane-dense store


def _round_up(x, m):
    return ((x + m - 1) // m) * m


# Flipped off at runtime if this Pallas build rejects single-buffered
# (pl.Buffered(1)) resident parameter blocks.
_SINGLE_BUFFER_WEIGHTS = True


def cnn_forward(x, flat, *, block_batch=None):
    """x: (B, 128) (or any (B, ...) with 128 elements/row, mirroring x.view)."""
    global _SINGLE_BUFFER_WEIGHTS

    cd = jnp.dtype(flat["m1"].dtype)
    B = x.shape[0]
    K = flat["m1"].shape[0]            # 128 = 1*16*8
    n_pad = flat["wout"].shape[1]      # 128 (lane-padded classes)
    n_classes = flat["n_classes"]

    # Sublane multiple for clean vreg packing of the batch axis.
    sub = 8 if cd.itemsize >= 4 else (16 if cd.itemsize == 2 else 32)
    # Dtype-aware default tile: 256-512 rows amortizes the ~0.35us/step grid
    # overhead and keeps the 256-deep v6e/v7x MXU streaming.
    if block_batch is None:
        block_batch = 512 if cd.itemsize <= 2 else 256

    x2 = x.reshape(B, -1).astype(cd)

    B_r = _round_up(B, sub)
    tm = _round_up(min(block_batch, B_r), sub)
    # Guarantee >= 2 grid steps when the batch allows it, so the "parallel"
    # batch axis actually shards across both v7x TensorCores.
    if tm >= B_r and B_r >= 2 * sub:
        tm = _round_up(-(-B_r // 2), sub)
    Bp = _round_up(B, tm)
    if Bp != B:
        x2 = jnp.pad(x2, ((0, Bp - B), (0, 0)))

    m1, m2, m3, m4, m5, wo = (flat[k] for k in ("m1", "m2", "m3", "m4", "m5", "wout"))
    b1, b2, b3, b4, b5, bo = (flat[k] for k in ("b1", "b2", "b3", "b4", "b5", "bout"))
    operands = (x2, m1, b1, m2, b2, m3, b3, m4, b4, m5, b5, wo, bo)

    flops = 2 * Bp * sum(int(m.shape[0]) * int(m.shape[1])
                         for m in (m1, m2, m3, m4, m5, wo))
    bytes_accessed = (sum(int(a.size) * a.dtype.itemsize for a in operands)
                      + Bp * n_pad * 4)

    def call(single_buffer_weights):
        def resident(a):  # weights/biases: constant index_map -> stay in VMEM
            if single_buffer_weights:
                return pl.BlockSpec(a.shape, lambda i: (0, 0),
                                    pipeline_mode=pl.Buffered(1))
            return pl.BlockSpec(a.shape, lambda i: (0, 0))

        return pl.pallas_call(
            _cnn_kernel,
            out_shape=jax.ShapeDtypeStruct((Bp, n_pad), jnp.float32),
            grid_spec=pltpu.PrefetchScalarGridSpec(
                num_scalar_prefetch=0,
                grid=(Bp // tm,),
                in_specs=[pl.BlockSpec((tm, K), lambda i: (i, 0))]
                         + [resident(a) for a in operands[1:]],
                out_specs=pl.BlockSpec((tm, n_pad), lambda i: (i, 0)),
            ),
            compiler_params=pltpu.CompilerParams(
                dimension_semantics=("parallel",),
                # Explicit scoped-VMEM headroom (large tm) while staying well
                # inside v7x's 64 MiB physical VMEM.
                vmem_limit_bytes=48 * 1024 * 1024,
            ),
            cost_estimate=pl.CostEstimate(flops=flops, transcendentals=0,
                                          bytes_accessed=bytes_accessed),
        )(*operands)

    if _SINGLE_BUFFER_WEIGHTS:
        try:
            out = call(True)
        except Exception:
            _SINGLE_BUFFER_WEIGHTS = False
            out = call(False)
    else:
        out = call(False)

    return out[:B, :n_classes]


# ----------------------------------------------------------------------------
# Pure-JAX reference (ground-truth CNN semantics) for verification only.
# ----------------------------------------------------------------------------
def cnn_reference(x, raw):
    def conv(h, w, b):
        p = w.shape[-1] // 2
        y = jax.lax.conv_general_dilated(
            h, w, window_strides=(1, 1), padding=[(p, p), (p, p)],
            dimension_numbers=("NCHW", "OIHW", "NCHW"),
            precision=jax.lax.Precision.HIGHEST)
        return y + b[None, :, None, None]

    def pool(h):
        return jax.lax.reduce_window(h, -jnp.inf, jax.lax.max,
                                     (1, 1, 2, 2), (1, 1, 2, 2), "VALID")

    h = x.reshape(x.shape[0], 1, 16, 8)
    h = pool(jnp.maximum(conv(h, raw["w1"], raw["b1"]), 0.0))
    h = jnp.maximum(conv(h, raw["w2"], raw["b2"]), 0.0)
    h = jnp.maximum(conv(h, raw["w3"], raw["b3"]), 0.0)
    h = jnp.maximum(conv(h, raw["w4"], raw["b4"]), 0.0)
    h = pool(jnp.maximum(conv(h, raw["w5"], raw["b5"]), 0.0))
    h = h.reshape(h.shape[0], -1)
    return jnp.dot(h, raw["wout"].T, precision=jax.lax.Precision.HIGHEST) + raw["bout"]


def init_raw_params(key, n_classes):
    ks = jax.random.split(key, 12)

    def conv_w(k, cout, cin, ksz):
        fan_in = cin * ksz * ksz
        return jax.random.normal(k, (cout, cin, ksz, ksz), jnp.float32) * np.sqrt(2.0 / fan_in)

    return {
        "w1": conv_w(ks[0], 16, 1, 5),  "b1": 0.01 * jax.random.normal(ks[1], (16,), jnp.float32),
        "w2": conv_w(ks[2], 16, 16, 5), "b2": 0.01 * jax.random.normal(ks[3], (16,), jnp.float32),
        "w3": conv_w(ks[4], 16, 16, 5), "b3": 0.01 * jax.random.normal(ks[5], (16,), jnp.float32),
        "w4": conv_w(ks[6], 16, 16, 5), "b4": 0.01 * jax.random.normal(ks[7], (16,), jnp.float32),
        "w5": conv_w(ks[8], 32, 16, 7), "b5": 0.01 * jax.random.normal(ks[9], (32,), jnp.float32),
        "wout": jax.random.normal(ks[10], (n_classes, 256), jnp.float32) / np.sqrt(256.0),
        "bout": 0.01 * jax.random.normal(ks[11], (n_classes,), jnp.float32),
    }


if __name__ == "__main__":
    n_classes = 10
    batch = 8

    key = jax.random.PRNGKey(0)
    raw = init_raw_params(key, n_classes)
    flat_f32 = build_flat_params(raw, n_pad=128, compute_dtype=jnp.float32)
    flat_bf16 = build_flat_params(raw, n_pad=128, compute_dtype=jnp.bfloat16)

    x = jax.random.normal(jax.random.fold_in(key, 123), (batch, 128), jnp.float32)

    ref = cnn_reference(x, raw)
    jax.block_until_ready(ref)

    # Check 1: f32 operands, single-tile grid.
    out_f32 = cnn_forward(x, flat_f32)
    jax.block_until_ready(out_f32)
    assert out_f32.shape == (batch, n_classes)
    assert jnp.allclose(out_f32, ref, atol=2e-2, rtol=2e-2), "f32 kernel mismatch"

    # Check 2: bf16 operands with f32 accumulation (v6e/v7x MXU fast path).
    out_bf16 = cnn_forward(x, flat_bf16)
    jax.block_until_ready(out_bf16)
    assert out_bf16.shape == (batch, n_classes)
    assert jnp.allclose(out_bf16, ref, atol=1.5e-1, rtol=1.5e-1), "bf16 kernel mismatch"

    # Check 3: non-multiple batch -> padding + >=2 grid steps (megacore path).
    x2 = jax.random.normal(jax.random.fold_in(key, 456), (40, 128), jnp.float32)
    ref2 = cnn_reference(x2, raw)
    out2 = cnn_forward(x2, flat_f32)
    jax.block_until_ready(out2)
    assert out2.shape == (40, n_classes)
    assert jnp.allclose(out2, ref2, atol=2e-2, rtol=2e-2), "multi-tile kernel mismatch"

    print("KERNEL_OK")
</pallas_src>

<mosaic_0001>
module attributes {stable_mosaic.version = 11 : i64} {
  func.func @_cnn_kernel(%arg0: i32, %arg1: memref<8x128xf32, #tpu.memory_space<vmem>>, %arg2: memref<128x2048xf32, #tpu.memory_space<vmem>>, %arg3: memref<1x2048xf32, #tpu.memory_space<vmem>>, %arg4: memref<512x512xf32, #tpu.memory_space<vmem>>, %arg5: memref<1x512xf32, #tpu.memory_space<vmem>>, %arg6: memref<512x512xf32, #tpu.memory_space<vmem>>, %arg7: memref<1x512xf32, #tpu.memory_space<vmem>>, %arg8: memref<512x512xf32, #tpu.memory_space<vmem>>, %arg9: memref<1x512xf32, #tpu.memory_space<vmem>>, %arg10: memref<512x1024xf32, #tpu.memory_space<vmem>>, %arg11: memref<1x1024xf32, #tpu.memory_space<vmem>>, %arg12: memref<256x128xf32, #tpu.memory_space<vmem>>, %arg13: memref<1x128xf32, #tpu.memory_space<vmem>>, %arg14: memref<8x128xf32, #tpu.memory_space<vmem>>) attributes {dimension_semantics = [#tpu.dimension_semantics<parallel>], iteration_bounds = array<i64: 1>, scalar_prefetch = 0 : i64, scratch_operands = 0 : i64, tpu.core_type = #tpu.core_type<tc>, window_params = [{transform_indices = @transform_0, window_bounds = array<i64: 8, 128>}, {pipeline_mode = #tpu.pipeline_mode<synchronous>, transform_indices = @transform_1, window_bounds = array<i64: 128, 2048>}, {pipeline_mode = #tpu.pipeline_mode<synchronous>, transform_indices = @transform_2, window_bounds = array<i64: 1, 2048>}, {pipeline_mode = #tpu.pipeline_mode<synchronous>, transform_indices = @transform_3, window_bounds = array<i64: 512, 512>}, {pipeline_mode = #tpu.pipeline_mode<synchronous>, transform_indices = @transform_4, window_bounds = array<i64: 1, 512>}, {pipeline_mode = #tpu.pipeline_mode<synchronous>, transform_indices = @transform_5, window_bounds = array<i64: 512, 512>}, {pipeline_mode = #tpu.pipeline_mode<synchronous>, transform_indices = @transform_6, window_bounds = array<i64: 1, 512>}, {pipeline_mode = #tpu.pipeline_mode<synchronous>, transform_indices = @transform_7, window_bounds = array<i64: 512, 512>}, {pipeline_mode = #tpu.pipeline_mode<synchronous>, transform_indices = @transform_8, window_bounds = array<i64: 1, 512>}, {pipeline_mode = #tpu.pipeline_mode<synchronous>, transform_indices = @transform_9, window_bounds = array<i64: 512, 1024>}, {pipeline_mode = #tpu.pipeline_mode<synchronous>, transform_indices = @transform_10, window_bounds = array<i64: 1, 1024>}, {pipeline_mode = #tpu.pipeline_mode<synchronous>, transform_indices = @transform_11, window_bounds = array<i64: 256, 128>}, {pipeline_mode = #tpu.pipeline_mode<synchronous>, transform_indices = @transform_12, window_bounds = array<i64: 1, 128>}, {transform_indices = @transform_13, window_bounds = array<i64: 8, 128>}]} {
    %c0 = arith.constant 0 : index
    %c0_0 = arith.constant 0 : index
    %0 = vector.load %arg1[%c0, %c0_0] : memref<8x128xf32, #tpu.memory_space<vmem>>, vector<8x128xf32>
    %c0_1 = arith.constant 0 : index
    %c0_2 = arith.constant 0 : index
    %1 = vector.load %arg2[%c0_1, %c0_2] : memref<128x2048xf32, #tpu.memory_space<vmem>>, vector<128x512xf32>
    %c0_3 = arith.constant 0 : index
    %c0_4 = arith.constant 0 : index
    %2 = vector.load %arg3[%c0_3, %c0_4] : memref<1x2048xf32, #tpu.memory_space<vmem>>, vector<1x512xf32>
    %cst = arith.constant dense<0.000000e+00> : vector<8x512xf32>
    %3 = tpu.matmul %0, %1, %cst {dimension_numbers = #tpu.dot_dimension_numbers<[1], [0], [0], [1], [0, 0, 1, 1], [], []>} : vector<8x128xf32>, vector<128x512xf32>, vector<8x512xf32> -> vector<8x512xf32>
    %4 = vector.broadcast %2 : vector<1x512xf32> to vector<8x512xf32>
    %5 = arith.addf %3, %4 : vector<8x512xf32>
    %cst_5 = arith.constant 0.000000e+00 : f32
    %6 = vector.broadcast %cst_5 : f32 to vector<8x512xf32>
    %7 = arith.maximumf %5, %6 : vector<8x512xf32>
    %c0_6 = arith.constant 0 : index
    %c512 = arith.constant 512 : index
    %8 = vector.load %arg2[%c0_6, %c512] : memref<128x2048xf32, #tpu.memory_space<vmem>>, vector<128x512xf32>
    %c0_7 = arith.constant 0 : index
    %c512_8 = arith.constant 512 : index
    %9 = vector.load %arg3[%c0_7, %c512_8] : memref<1x2048xf32, #tpu.memory_space<vmem>>, vector<1x512xf32>
    %cst_9 = arith.constant dense<0.000000e+00> : vector<8x512xf32>
    %10 = tpu.matmul %0, %8, %cst_9 {dimension_numbers = #tpu.dot_dimension_numbers<[1], [0], [0], [1], [0, 0, 1, 1], [], []>} : vector<8x128xf32>, vector<128x512xf32>, vector<8x512xf32> -> vector<8x512xf32>
    %11 = vector.broadcast %9 : vector<1x512xf32> to vector<8x512xf32>
    %12 = arith.addf %10, %11 : vector<8x512xf32>
    %cst_10 = arith.constant 0.000000e+00 : f32
    %13 = vector.broadcast %cst_10 : f32 to vector<8x512xf32>
    %14 = arith.maximumf %12, %13 : vector<8x512xf32>
    %15 = arith.maximumf %7, %14 : vector<8x512xf32>
    %c0_11 = arith.constant 0 : index
    %c1024 = arith.constant 1024 : index
    %16 = vector.load %arg2[%c0_11, %c1024] : memref<128x2048xf32, #tpu.memory_space<vmem>>, vector<128x512xf32>
    %c0_12 = arith.constant 0 : index
    %c1024_13 = arith.constant 1024 : index
    %17 = vector.load %arg3[%c0_12, %c1024_13] : memref<1x2048xf32, #tpu.memory_space<vmem>>, vector<1x512xf32>
    %cst_14 = arith.constant dense<0.000000e+00> : vector<8x512xf32>
    %18 = tpu.matmul %0, %16, %cst_14 {dimension_numbers = #tpu.dot_dimension_numbers<[1], [0], [0], [1], [0, 0, 1, 1], [], []>} : vector<8x128xf32>, vector<128x512xf32>, vector<8x512xf32> -> vector<8x512xf32>
    %19 = vector.broadcast %17 : vector<1x512xf32> to vector<8x512xf32>
    %20 = arith.addf %18, %19 : vector<8x512xf32>
    %cst_15 = arith.constant 0.000000e+00 : f32
    %21 = vector.broadcast %cst_15 : f32 to vector<8x512xf32>
    %22 = arith.maximumf %20, %21 : vector<8x512xf32>
    %23 = arith.maximumf %15, %22 : vector<8x512xf32>
    %c0_16 = arith.constant 0 : index
    %c1536 = arith.constant 1536 : index
    %24 = vector.load %arg2[%c0_16, %c1536] : memref<128x2048xf32, #tpu.memory_space<vmem>>, vector<128x512xf32>
    %c0_17 = arith.constant 0 : index
    %c1536_18 = arith.constant 1536 : index
    %25 = vector.load %arg3[%c0_17, %c1536_18] : memref<1x2048xf32, #tpu.memory_space<vmem>>, vector<1x512xf32>
    %cst_19 = arith.constant dense<0.000000e+00> : vector<8x512xf32>
    %26 = tpu.matmul %0, %24, %cst_19 {dimension_numbers = #tpu.dot_dimension_numbers<[1], [0], [0], [1], [0, 0, 1, 1], [], []>} : vector<8x128xf32>, vector<128x512xf32>, vector<8x512xf32> -> vector<8x512xf32>
    %27 = vector.broadcast %25 : vector<1x512xf32> to vector<8x512xf32>
    %28 = arith.addf %26, %27 : vector<8x512xf32>
    %cst_20 = arith.constant 0.000000e+00 : f32
    %29 = vector.broadcast %cst_20 : f32 to vector<8x512xf32>
    %30 = arith.maximumf %28, %29 : vector<8x512xf32>
    %31 = arith.maximumf %23, %30 : vector<8x512xf32>
    %c0_21 = arith.constant 0 : index
    %c0_22 = arith.constant 0 : index
    %32 = vector.load %arg4[%c0_21, %c0_22] : memref<512x512xf32, #tpu.memory_space<vmem>>, vector<512x512xf32>
    %c0_23 = arith.constant 0 : index
    %c0_24 = arith.constant 0 : index
    %33 = vector.load %arg5[%c0_23, %c0_24] : memref<1x512xf32, #tpu.memory_space<vmem>>, vector<1x512xf32>
    %cst_25 = arith.constant dense<0.000000e+00> : vector<8x512xf32>
    %34 = tpu.matmul %31, %32, %cst_25 {dimension_numbers = #tpu.dot_dimension_numbers<[1], [0], [0], [1], [0, 0, 1, 1], [], []>} : vector<8x512xf32>, vector<512x512xf32>, vector<8x512xf32> -> vector<8x512xf32>
    %35 = vector.broadcast %33 : vector<1x512xf32> to vector<8x512xf32>
    %36 = arith.addf %34, %35 : vector<8x512xf32>
    %cst_26 = arith.constant 0.000000e+00 : f32
    %37 = vector.broadcast %cst_26 : f32 to vector<8x512xf32>
    %38 = arith.maximumf %36, %37 : vector<8x512xf32>
    %c0_27 = arith.constant 0 : index
    %c0_28 = arith.constant 0 : index
    %39 = vector.load %arg6[%c0_27, %c0_28] : memref<512x512xf32, #tpu.memory_space<vmem>>, vector<512x512xf32>
    %c0_29 = arith.constant 0 : index
    %c0_30 = arith.constant 0 : index
    %40 = vector.load %arg7[%c0_29, %c0_30] : memref<1x512xf32, #tpu.memory_space<vmem>>, vector<1x512xf32>
    %cst_31 = arith.constant dense<0.000000e+00> : vector<8x512xf32>
    %41 = tpu.matmul %38, %39, %cst_31 {dimension_numbers = #tpu.dot_dimension_numbers<[1], [0], [0], [1], [0, 0, 1, 1], [], []>} : vector<8x512xf32>, vector<512x512xf32>, vector<8x512xf32> -> vector<8x512xf32>
    %42 = vector.broadcast %40 : vector<1x512xf32> to vector<8x512xf32>
    %43 = arith.addf %41, %42 : vector<8x512xf32>
    %cst_32 = arith.constant 0.000000e+00 : f32
    %44 = vector.broadcast %cst_32 : f32 to vector<8x512xf32>
    %45 = arith.maximumf %43, %44 : vector<8x512xf32>
    %c0_33 = arith.constant 0 : index
    %c0_34 = arith.constant 0 : index
    %46 = vector.load %arg8[%c0_33, %c0_34] : memref<512x512xf32, #tpu.memory_space<vmem>>, vector<512x512xf32>
    %c0_35 = arith.constant 0 : index
    %c0_36 = arith.constant 0 : index
    %47 = vector.load %arg9[%c0_35, %c0_36] : memref<1x512xf32, #tpu.memory_space<vmem>>, vector<1x512xf32>
    %cst_37 = arith.constant dense<0.000000e+00> : vector<8x512xf32>
    %48 = tpu.matmul %45, %46, %cst_37 {dimension_numbers = #tpu.dot_dimension_numbers<[1], [0], [0], [1], [0, 0, 1, 1], [], []>} : vector<8x512xf32>, vector<512x512xf32>, vector<8x512xf32> -> vector<8x512xf32>
    %49 = vector.broadcast %47 : vector<1x512xf32> to vector<8x512xf32>
    %50 = arith.addf %48, %49 : vector<8x512xf32>
    %cst_38 = arith.constant 0.000000e+00 : f32
    %51 = vector.broadcast %cst_38 : f32 to vector<8x512xf32>
    %52 = arith.maximumf %50, %51 : vector<8x512xf32>
    %c0_39 = arith.constant 0 : index
    %c0_40 = arith.constant 0 : index
    %53 = vector.load %arg10[%c0_39, %c0_40] : memref<512x1024xf32, #tpu.memory_space<vmem>>, vector<512x256xf32>
    %c0_41 = arith.constant 0 : index
    %c0_42 = arith.constant 0 : index
    %54 = vector.load %arg11[%c0_41, %c0_42] : memref<1x1024xf32, #tpu.memory_space<vmem>>, vector<1x256xf32>
    %cst_43 = arith.constant dense<0.000000e+00> : vector<8x256xf32>
    %55 = tpu.matmul %52, %53, %cst_43 {dimension_numbers = #tpu.dot_dimension_numbers<[1], [0], [0], [1], [0, 0, 1, 1], [], []>} : vector<8x512xf32>, vector<512x256xf32>, vector<8x256xf32> -> vector<8x256xf32>
    %56 = vector.broadcast %54 : vector<1x256xf32> to vector<8x256xf32>
    %57 = arith.addf %55, %56 : vector<8x256xf32>
    %cst_44 = arith.constant 0.000000e+00 : f32
    %58 = vector.broadcast %cst_44 : f32 to vector<8x256xf32>
    %59 = arith.maximumf %57, %58 : vector<8x256xf32>
    %c0_45 = arith.constant 0 : index
    %c256 = arith.constant 256 : index
    %60 = vector.load %arg10[%c0_45, %c256] : memref<512x1024xf32, #tpu.memory_space<vmem>>, vector<512x256xf32>
    %c0_46 = arith.constant 0 : index
    %c256_47 = arith.constant 256 : index
    %61 = vector.load %arg11[%c0_46, %c256_47] : memref<1x1024xf32, #tpu.memory_space<vmem>>, vector<1x256xf32>
    %cst_48 = arith.constant dense<0.000000e+00> : vector<8x256xf32>
    %62 = tpu.matmul %52, %60, %cst_48 {dimension_numbers = #tpu.dot_dimension_numbers<[1], [0], [0], [1], [0, 0, 1, 1], [], []>} : vector<8x512xf32>, vector<512x256xf32>, vector<8x256xf32> -> vector<8x256xf32>
    %63 = vector.broadcast %61 : vector<1x256xf32> to vector<8x256xf32>
    %64 = arith.addf %62, %63 : vector<8x256xf32>
    %cst_49 = arith.constant 0.000000e+00 : f32
    %65 = vector.broadcast %cst_49 : f32 to vector<8x256xf32>
    %66 = arith.maximumf %64, %65 : vector<8x256xf32>
    %67 = arith.maximumf %59, %66 : vector<8x256xf32>
    %c0_50 = arith.constant 0 : index
    %c512_51 = arith.constant 512 : index
    %68 = vector.load %arg10[%c0_50, %c512_51] : memref<512x1024xf32, #tpu.memory_space<vmem>>, vector<512x256xf32>
    %c0_52 = arith.constant 0 : index
    %c512_53 = arith.constant 512 : index
    %69 = vector.load %arg11[%c0_52, %c512_53] : memref<1x1024xf32, #tpu.memory_space<vmem>>, vector<1x256xf32>
    %cst_54 = arith.constant dense<0.000000e+00> : vector<8x256xf32>
    %70 = tpu.matmul %52, %68, %cst_54 {dimension_numbers = #tpu.dot_dimension_numbers<[1], [0], [0], [1], [0, 0, 1, 1], [], []>} : vector<8x512xf32>, vector<512x256xf32>, vector<8x256xf32> -> vector<8x256xf32>
    %71 = vector.broadcast %69 : vector<1x256xf32> to vector<8x256xf32>
    %72 = arith.addf %70, %71 : vector<8x256xf32>
    %cst_55 = arith.constant 0.000000e+00 : f32
    %73 = vector.broadcast %cst_55 : f32 to vector<8x256xf32>
    %74 = arith.maximumf %72, %73 : vector<8x256xf32>
    %75 = arith.maximumf %67, %74 : vector<8x256xf32>
    %c0_56 = arith.constant 0 : index
    %c768 = arith.constant 768 : index
    %76 = vector.load %arg10[%c0_56, %c768] : memref<512x1024xf32, #tpu.memory_space<vmem>>, vector<512x256xf32>
    %c0_57 = arith.constant 0 : index
    %c768_58 = arith.constant 768 : index
    %77 = vector.load %arg11[%c0_57, %c768_58] : memref<1x1024xf32, #tpu.memory_space<vmem>>, vector<1x256xf32>
    %cst_59 = arith.constant dense<0.000000e+00> : vector<8x256xf32>
    %78 = tpu.matmul %52, %76, %cst_59 {dimension_numbers = #tpu.dot_dimension_numbers<[1], [0], [0], [1], [0, 0, 1, 1], [], []>} : vector<8x512xf32>, vector<512x256xf32>, vector<8x256xf32> -> vector<8x256xf32>
    %79 = vector.broadcast %77 : vector<1x256xf32> to vector<8x256xf32>
    %80 = arith.addf %78, %79 : vector<8x256xf32>
    %cst_60 = arith.constant 0.000000e+00 : f32
    %81 = vector.broadcast %cst_60 : f32 to vector<8x256xf32>
    %82 = arith.maximumf %80, %81 : vector<8x256xf32>
    %83 = arith.maximumf %75, %82 : vector<8x256xf32>
    %c0_61 = arith.constant 0 : index
    %c0_62 = arith.constant 0 : index
    %84 = vector.load %arg12[%c0_61, %c0_62] : memref<256x128xf32, #tpu.memory_space<vmem>>, vector<256x128xf32>
    %cst_63 = arith.constant dense<0.000000e+00> : vector<8x128xf32>
    %85 = tpu.matmul %83, %84, %cst_63 {dimension_numbers = #tpu.dot_dimension_numbers<[1], [0], [0], [1], [0, 0, 1, 1], [], []>} : vector<8x256xf32>, vector<256x128xf32>, vector<8x128xf32> -> vector<8x128xf32>
    %c0_64 = arith.constant 0 : index
    %c0_65 = arith.constant 0 : index
    %86 = vector.load %arg13[%c0_64, %c0_65] : memref<1x128xf32, #tpu.memory_space<vmem>>, vector<1x128xf32>
    %87 = vector.broadcast %86 : vector<1x128xf32> to vector<8x128xf32>
    %88 = arith.addf %85, %87 : vector<8x128xf32>
    %c0_66 = arith.constant 0 : index
    %c0_67 = arith.constant 0 : index
    %89 = vector.load %arg14[%c0_66, %c0_67] : memref<8x128xf32, #tpu.memory_space<vmem>>, vector<8x128xf32>
    tpu.vector_store %arg14[%c0_66, %c0_67], %88 {strides = array<i32>} : memref<8x128xf32, #tpu.memory_space<vmem>>, vector<8x128xf32>,
    return
  }
  func.func @transform_0(%arg0: i32) -> (i32, i32) {
    %c0_i32 = arith.constant 0 : i32
    %c0_i32_0 = arith.constant 0 : i32
    return %arg0, %c0_i32 : i32, i32
  }
  func.func @transform_1(%arg0: i32) -> (i32, i32) {
    %c0_i32 = arith.constant 0 : i32
    %c0_i32_0 = arith.constant 0 : i32
    %c0_i32_1 = arith.constant 0 : i32
    return %c0_i32, %c0_i32_0 : i32, i32
  }
  func.func @transform_2(%arg0: i32) -> (i32, i32) {
    %c0_i32 = arith.constant 0 : i32
    %c0_i32_0 = arith.constant 0 : i32
    %c0_i32_1 = arith.constant 0 : i32
    return %c0_i32, %c0_i32_0 : i32, i32
  }
  func.func @transform_3(%arg0: i32) -> (i32, i32) {
    %c0_i32 = arith.constant 0 : i32
    %c0_i32_0 = arith.constant 0 : i32
    %c0_i32_1 = arith.constant 0 : i32
    return %c0_i32, %c0_i32_0 : i32, i32
  }
  func.func @transform_4(%arg0: i32) -> (i32, i32) {
    %c0_i32 = arith.constant 0 : i32
    %c0_i32_0 = arith.constant 0 : i32
    %c0_i32_1 = arith.constant 0 : i32
    return %c0_i32, %c0_i32_0 : i32, i32
  }
  func.func @transform_5(%arg0: i32) -> (i32, i32) {
    %c0_i32 = arith.constant 0 : i32
    %c0_i32_0 = arith.constant 0 : i32
    %c0_i32_1 = arith.constant 0 : i32
    return %c0_i32, %c0_i32_0 : i32, i32
  }
  func.func @transform_6(%arg0: i32) -> (i32, i32) {
    %c0_i32 = arith.constant 0 : i32
    %c0_i32_0 = arith.constant 0 : i32
    %c0_i32_1 = arith.constant 0 : i32
    return %c0_i32, %c0_i32_0 : i32, i32
  }
  func.func @transform_7(%arg0: i32) -> (i32, i32) {
    %c0_i32 = arith.constant 0 : i32
    %c0_i32_0 = arith.constant 0 : i32
    %c0_i32_1 = arith.constant 0 : i32
    return %c0_i32, %c0_i32_0 : i32, i32
  }
  func.func @transform_8(%arg0: i32) -> (i32, i32) {
    %c0_i32 = arith.constant 0 : i32
    %c0_i32_0 = arith.constant 0 : i32
    %c0_i32_1 = arith.constant 0 : i32
    return %c0_i32, %c0_i32_0 : i32, i32
  }
  func.func @transform_9(%arg0: i32) -> (i32, i32) {
    %c0_i32 = arith.constant 0 : i32
    %c0_i32_0 = arith.constant 0 : i32
    %c0_i32_1 = arith.constant 0 : i32
    return %c0_i32, %c0_i32_0 : i32, i32
  }
  func.func @transform_10(%arg0: i32) -> (i32, i32) {
    %c0_i32 = arith.constant 0 : i32
    %c0_i32_0 = arith.constant 0 : i32
    %c0_i32_1 = arith.constant 0 : i32
    return %c0_i32, %c0_i32_0 : i32, i32
  }
  func.func @transform_11(%arg0: i32) -> (i32, i32) {
    %c0_i32 = arith.constant 0 : i32
    %c0_i32_0 = arith.constant 0 : i32
    %c0_i32_1 = arith.constant 0 : i32
    return %c0_i32, %c0_i32_0 : i32, i32
  }
  func.func @transform_12(%arg0: i32) -> (i32, i32) {
    %c0_i32 = arith.constant 0 : i32
    %c0_i32_0 = arith.constant 0 : i32
    %c0_i32_1 = arith.constant 0 : i32
    return %c0_i32, %c0_i32_0 : i32, i32
  }
  func.func @transform_13(%arg0: i32) -> (i32, i32) {
    %c0_i32 = arith.constant 0 : i32
    %c0_i32_0 = arith.constant 0 : i32
    return %arg0, %c0_i32 : i32, i32
  }
}

module attributes {stable_mosaic.version = 11 : i64} {
  func.func @_cnn_kernel(%arg0: i32, %arg1: memref<8x128xf32, #tpu.memory_space<vmem>>, %arg2: memref<128x2048xf32, #tpu.memory_space<vmem>>, %arg3: memref<1x2048xf32, #tpu.memory_space<vmem>>, %arg4: memref<512x512xf32, #tpu.memory_space<vmem>>, %arg5: memref<1x512xf32, #tpu.memory_space<vmem>>, %arg6: memref<512x512xf32, #tpu.memory_space<vmem>>, %arg7: memref<1x512xf32, #tpu.memory_space<vmem>>, %arg8: memref<512x512xf32, #tpu.memory_space<vmem>>, %arg9: memref<1x512xf32, #tpu.memory_space<vmem>>, %arg10: memref<512x1024xf32, #tpu.memory_space<vmem>>, %arg11: memref<1x1024xf32, #tpu.memory_space<vmem>>, %arg12: memref<256x128xf32, #tpu.memory_space<vmem>>, %arg13: memref<1x128xf32, #tpu.memory_space<vmem>>, %arg14: memref<8x128xf32, #tpu.memory_space<vmem>>) attributes {dimension_semantics = [#tpu.dimension_semantics<parallel>], iteration_bounds = array<i64: 1>, scalar_prefetch = 0 : i64, scratch_operands = 0 : i64, tpu.core_type = #tpu.core_type<tc>, window_params = [{transform_indices = @transform_0, window_bounds = array<i64: 8, 128>}, {pipeline_mode = #tpu.pipeline_mode<synchronous>, transform_indices = @transform_1, window_bounds = array<i64: 128, 2048>}, {pipeline_mode = #tpu.pipeline_mode<synchronous>, transform_indices = @transform_2, window_bounds = array<i64: 1, 2048>}, {pipeline_mode = #tpu.pipeline_mode<synchronous>, transform_indices = @transform_3, window_bounds = array<i64: 512, 512>}, {pipeline_mode = #tpu.pipeline_mode<synchronous>, transform_indices = @transform_4, window_bounds = array<i64: 1, 512>}, {pipeline_mode = #tpu.pipeline_mode<synchronous>, transform_indices = @transform_5, window_bounds = array<i64: 512, 512>}, {pipeline_mode = #tpu.pipeline_mode<synchronous>, transform_indices = @transform_6, window_bounds = array<i64: 1, 512>}, {pipeline_mode = #tpu.pipeline_mode<synchronous>, transform_indices = @transform_7, window_bounds = array<i64: 512, 512>}, {pipeline_mode = #tpu.pipeline_mode<synchronous>, transform_indices = @transform_8, window_bounds = array<i64: 1, 512>}, {pipeline_mode = #tpu.pipeline_mode<synchronous>, transform_indices = @transform_9, window_bounds = array<i64: 512, 1024>}, {pipeline_mode = #tpu.pipeline_mode<synchronous>, transform_indices = @transform_10, window_bounds = array<i64: 1, 1024>}, {pipeline_mode = #tpu.pipeline_mode<synchronous>, transform_indices = @transform_11, window_bounds = array<i64: 256, 128>}, {pipeline_mode = #tpu.pipeline_mode<synchronous>, transform_indices = @transform_12, window_bounds = array<i64: 1, 128>}, {transform_indices = @transform_13, window_bounds = array<i64: 8, 128>}]} {
    %c0 = arith.constant 0 : index
    %c0_0 = arith.constant 0 : index
    %0 = vector.load %arg1[%c0, %c0_0] : memref<8x128xf32, #tpu.memory_space<vmem>>, vector<8x128xf32>
    %c0_1 = arith.constant 0 : index
    %c0_2 = arith.constant 0 : index
    %1 = vector.load %arg2[%c0_1, %c0_2] : memref<128x2048xf32, #tpu.memory_space<vmem>>, vector<128x512xf32>
    %c0_3 = arith.constant 0 : index
    %c0_4 = arith.constant 0 : index
    %2 = vector.load %arg3[%c0_3, %c0_4] : memref<1x2048xf32, #tpu.memory_space<vmem>>, vector<1x512xf32>
    %cst = arith.constant dense<0.000000e+00> : vector<8x512xf32>
    %3 = tpu.matmul %0, %1, %cst {dimension_numbers = #tpu.dot_dimension_numbers<[1], [0], [0], [1], [0, 0, 1, 1], [], []>} : vector<8x128xf32>, vector<128x512xf32>, vector<8x512xf32> -> vector<8x512xf32>
    %4 = vector.broadcast %2 : vector<1x512xf32> to vector<8x512xf32>
    %5 = arith.addf %3, %4 : vector<8x512xf32>
    %cst_5 = arith.constant 0.000000e+00 : f32
    %6 = vector.broadcast %cst_5 : f32 to vector<8x512xf32>
    %7 = arith.maximumf %5, %6 : vector<8x512xf32>
    %c0_6 = arith.constant 0 : index
    %c512 = arith.constant 512 : index
    %8 = vector.load %arg2[%c0_6, %c512] : memref<128x2048xf32, #tpu.memory_space<vmem>>, vector<128x512xf32>
    %c0_7 = arith.constant 0 : index
    %c512_8 = arith.constant 512 : index
    %9 = vector.load %arg3[%c0_7, %c512_8] : memref<1x2048xf32, #tpu.memory_space<vmem>>, vector<1x512xf32>
    %cst_9 = arith.constant dense<0.000000e+00> : vector<8x512xf32>
    %10 = tpu.matmul %0, %8, %cst_9 {dimension_numbers = #tpu.dot_dimension_numbers<[1], [0], [0], [1], [0, 0, 1, 1], [], []>} : vector<8x128xf32>, vector<128x512xf32>, vector<8x512xf32> -> vector<8x512xf32>
    %11 = vector.broadcast %9 : vector<1x512xf32> to vector<8x512xf32>
    %12 = arith.addf %10, %11 : vector<8x512xf32>
    %cst_10 = arith.constant 0.000000e+00 : f32
    %13 = vector.broadcast %cst_10 : f32 to vector<8x512xf32>
    %14 = arith.maximumf %12, %13 : vector<8x512xf32>
    %15 = arith.maximumf %7, %14 : vector<8x512xf32>
    %c0_11 = arith.constant 0 : index
    %c1024 = arith.constant 1024 : index
    %16 = vector.load %arg2[%c0_11, %c1024] : memref<128x2048xf32, #tpu.memory_space<vmem>>, vector<128x512xf32>
    %c0_12 = arith.constant 0 : index
    %c1024_13 = arith.constant 1024 : index
    %17 = vector.load %arg3[%c0_12, %c1024_13] : memref<1x2048xf32, #tpu.memory_space<vmem>>, vector<1x512xf32>
    %cst_14 = arith.constant dense<0.000000e+00> : vector<8x512xf32>
    %18 = tpu.matmul %0, %16, %cst_14 {dimension_numbers = #tpu.dot_dimension_numbers<[1], [0], [0], [1], [0, 0, 1, 1], [], []>} : vector<8x128xf32>, vector<128x512xf32>, vector<8x512xf32> -> vector<8x512xf32>
    %19 = vector.broadcast %17 : vector<1x512xf32> to vector<8x512xf32>
    %20 = arith.addf %18, %19 : vector<8x512xf32>
    %cst_15 = arith.constant 0.000000e+00 : f32
    %21 = vector.broadcast %cst_15 : f32 to vector<8x512xf32>
    %22 = arith.maximumf %20, %21 : vector<8x512xf32>
    %23 = arith.maximumf %15, %22 : vector<8x512xf32>
    %c0_16 = arith.constant 0 : index
    %c1536 = arith.constant 1536 : index
    %24 = vector.load %arg2[%c0_16, %c1536] : memref<128x2048xf32, #tpu.memory_space<vmem>>, vector<128x512xf32>
    %c0_17 = arith.constant 0 : index
    %c1536_18 = arith.constant 1536 : index
    %25 = vector.load %arg3[%c0_17, %c1536_18] : memref<1x2048xf32, #tpu.memory_space<vmem>>, vector<1x512xf32>
    %cst_19 = arith.constant dense<0.000000e+00> : vector<8x512xf32>
    %26 = tpu.matmul %0, %24, %cst_19 {dimension_numbers = #tpu.dot_dimension_numbers<[1], [0], [0], [1], [0, 0, 1, 1], [], []>} : vector<8x128xf32>, vector<128x512xf32>, vector<8x512xf32> -> vector<8x512xf32>
    %27 = vector.broadcast %25 : vector<1x512xf32> to vector<8x512xf32>
    %28 = arith.addf %26, %27 : vector<8x512xf32>
    %cst_20 = arith.constant 0.000000e+00 : f32
    %29 = vector.broadcast %cst_20 : f32 to vector<8x512xf32>
    %30 = arith.maximumf %28, %29 : vector<8x512xf32>
    %31 = arith.maximumf %23, %30 : vector<8x512xf32>
    %c0_21 = arith.constant 0 : index
    %c0_22 = arith.constant 0 : index
    %32 = vector.load %arg4[%c0_21, %c0_22] : memref<512x512xf32, #tpu.memory_space<vmem>>, vector<512x512xf32>
    %c0_23 = arith.constant 0 : index
    %c0_24 = arith.constant 0 : index
    %33 = vector.load %arg5[%c0_23, %c0_24] : memref<1x512xf32, #tpu.memory_space<vmem>>, vector<1x512xf32>
    %cst_25 = arith.constant dense<0.000000e+00> : vector<8x512xf32>
    %34 = tpu.matmul %31, %32, %cst_25 {dimension_numbers = #tpu.dot_dimension_numbers<[1], [0], [0], [1], [0, 0, 1, 1], [], []>} : vector<8x512xf32>, vector<512x512xf32>, vector<8x512xf32> -> vector<8x512xf32>
    %35 = vector.broadcast %33 : vector<1x512xf32> to vector<8x512xf32>
    %36 = arith.addf %34, %35 : vector<8x512xf32>
    %cst_26 = arith.constant 0.000000e+00 : f32
    %37 = vector.broadcast %cst_26 : f32 to vector<8x512xf32>
    %38 = arith.maximumf %36, %37 : vector<8x512xf32>
    %c0_27 = arith.constant 0 : index
    %c0_28 = arith.constant 0 : index
    %39 = vector.load %arg6[%c0_27, %c0_28] : memref<512x512xf32, #tpu.memory_space<vmem>>, vector<512x512xf32>
    %c0_29 = arith.constant 0 : index
    %c0_30 = arith.constant 0 : index
    %40 = vector.load %arg7[%c0_29, %c0_30] : memref<1x512xf32, #tpu.memory_space<vmem>>, vector<1x512xf32>
    %cst_31 = arith.constant dense<0.000000e+00> : vector<8x512xf32>
    %41 = tpu.matmul %38, %39, %cst_31 {dimension_numbers = #tpu.dot_dimension_numbers<[1], [0], [0], [1], [0, 0, 1, 1], [], []>} : vector<8x512xf32>, vector<512x512xf32>, vector<8x512xf32> -> vector<8x512xf32>
    %42 = vector.broadcast %40 : vector<1x512xf32> to vector<8x512xf32>
    %43 = arith.addf %41, %42 : vector<8x512xf32>
    %cst_32 = arith.constant 0.000000e+00 : f32
    %44 = vector.broadcast %cst_32 : f32 to vector<8x512xf32>
    %45 = arith.maximumf %43, %44 : vector<8x512xf32>
    %c0_33 = arith.constant 0 : index
    %c0_34 = arith.constant 0 : index
    %46 = vector.load %arg8[%c0_33, %c0_34] : memref<512x512xf32, #tpu.memory_space<vmem>>, vector<512x512xf32>
    %c0_35 = arith.constant 0 : index
    %c0_36 = arith.constant 0 : index
    %47 = vector.load %arg9[%c0_35, %c0_36] : memref<1x512xf32, #tpu.memory_space<vmem>>, vector<1x512xf32>
    %cst_37 = arith.constant dense<0.000000e+00> : vector<8x512xf32>
    %48 = tpu.matmul %45, %46, %cst_37 {dimension_numbers = #tpu.dot_dimension_numbers<[1], [0], [0], [1], [0, 0, 1, 1], [], []>} : vector<8x512xf32>, vector<512x512xf32>, vector<8x512xf32> -> vector<8x512xf32>
    %49 = vector.broadcast %47 : vector<1x512xf32> to vector<8x512xf32>
    %50 = arith.addf %48, %49 : vector<8x512xf32>
    %cst_38 = arith.constant 0.000000e+00 : f32
    %51 = vector.broadcast %cst_38 : f32 to vector<8x512xf32>
    %52 = arith.maximumf %50, %51 : vector<8x512xf32>
    %c0_39 = arith.constant 0 : index
    %c0_40 = arith.constant 0 : index
    %53 = vector.load %arg10[%c0_39, %c0_40] : memref<512x1024xf32, #tpu.memory_space<vmem>>, vector<512x256xf32>
    %c0_41 = arith.constant 0 : index
    %c0_42 = arith.constant 0 : index
    %54 = vector.load %arg11[%c0_41, %c0_42] : memref<1x1024xf32, #tpu.memory_space<vmem>>, vector<1x256xf32>
    %cst_43 = arith.constant dense<0.000000e+00> : vector<8x256xf32>
    %55 = tpu.matmul %52, %53, %cst_43 {dimension_numbers = #tpu.dot_dimension_numbers<[1], [0], [0], [1], [0, 0, 1, 1], [], []>} : vector<8x512xf32>, vector<512x256xf32>, vector<8x256xf32> -> vector<8x256xf32>
    %56 = vector.broadcast %54 : vector<1x256xf32> to vector<8x256xf32>
    %57 = arith.addf %55, %56 : vector<8x256xf32>
    %cst_44 = arith.constant 0.000000e+00 : f32
    %58 = vector.broadcast %cst_44 : f32 to vector<8x256xf32>
    %59 = arith.maximumf %57, %58 : vector<8x256xf32>
    %c0_45 = arith.constant 0 : index
    %c256 = arith.constant 256 : index
    %60 = vector.load %arg10[%c0_45, %c256] : memref<512x1024xf32, #tpu.memory_space<vmem>>, vector<512x256xf32>
    %c0_46 = arith.constant 0 : index
    %c256_47 = arith.constant 256 : index
    %61 = vector.load %arg11[%c0_46, %c256_47] : memref<1x1024xf32, #tpu.memory_space<vmem>>, vector<1x256xf32>
    %cst_48 = arith.constant dense<0.000000e+00> : vector<8x256xf32>
    %62 = tpu.matmul %52, %60, %cst_48 {dimension_numbers = #tpu.dot_dimension_numbers<[1], [0], [0], [1], [0, 0, 1, 1], [], []>} : vector<8x512xf32>, vector<512x256xf32>, vector<8x256xf32> -> vector<8x256xf32>
    %63 = vector.broadcast %61 : vector<1x256xf32> to vector<8x256xf32>
    %64 = arith.addf %62, %63 : vector<8x256xf32>
    %cst_49 = arith.constant 0.000000e+00 : f32
    %65 = vector.broadcast %cst_49 : f32 to vector<8x256xf32>
    %66 = arith.maximumf %64, %65 : vector<8x256xf32>
    %67 = arith.maximumf %59, %66 : vector<8x256xf32>
    %c0_50 = arith.constant 0 : index
    %c512_51 = arith.constant 512 : index
    %68 = vector.load %arg10[%c0_50, %c512_51] : memref<512x1024xf32, #tpu.memory_space<vmem>>, vector<512x256xf32>
    %c0_52 = arith.constant 0 : index
    %c512_53 = arith.constant 512 : index
    %69 = vector.load %arg11[%c0_52, %c512_53] : memref<1x1024xf32, #tpu.memory_space<vmem>>, vector<1x256xf32>
    %cst_54 = arith.constant dense<0.000000e+00> : vector<8x256xf32>
    %70 = tpu.matmul %52, %68, %cst_54 {dimension_numbers = #tpu.dot_dimension_numbers<[1], [0], [0], [1], [0, 0, 1, 1], [], []>} : vector<8x512xf32>, vector<512x256xf32>, vector<8x256xf32> -> vector<8x256xf32>
    %71 = vector.broadcast %69 : vector<1x256xf32> to vector<8x256xf32>
    %72 = arith.addf %70, %71 : vector<8x256xf32>
    %cst_55 = arith.constant 0.000000e+00 : f32
    %73 = vector.broadcast %cst_55 : f32 to vector<8x256xf32>
    %74 = arith.maximumf %72, %73 : vector<8x256xf32>
    %75 = arith.maximumf %67, %74 : vector<8x256xf32>
    %c0_56 = arith.constant 0 : index
    %c768 = arith.constant 768 : index
    %76 = vector.load %arg10[%c0_56, %c768] : memref<512x1024xf32, #tpu.memory_space<vmem>>, vector<512x256xf32>
    %c0_57 = arith.constant 0 : index
    %c768_58 = arith.constant 768 : index
    %77 = vector.load %arg11[%c0_57, %c768_58] : memref<1x1024xf32, #tpu.memory_space<vmem>>, vector<1x256xf32>
    %cst_59 = arith.constant dense<0.000000e+00> : vector<8x256xf32>
    %78 = tpu.matmul %52, %76, %cst_59 {dimension_numbers = #tpu.dot_dimension_numbers<[1], [0], [0], [1], [0, 0, 1, 1], [], []>} : vector<8x512xf32>, vector<512x256xf32>, vector<8x256xf32> -> vector<8x256xf32>
    %79 = vector.broadcast %77 : vector<1x256xf32> to vector<8x256xf32>
    %80 = arith.addf %78, %79 : vector<8x256xf32>
    %cst_60 = arith.constant 0.000000e+00 : f32
    %81 = vector.broadcast %cst_60 : f32 to vector<8x256xf32>
    %82 = arith.maximumf %80, %81 : vector<8x256xf32>
    %83 = arith.maximumf %75, %82 : vector<8x256xf32>
    %c0_61 = arith.constant 0 : index
    %c0_62 = arith.constant 0 : index
    %84 = vector.load %arg12[%c0_61, %c0_62] : memref<256x128xf32, #tpu.memory_space<vmem>>, vector<256x128xf32>
    %cst_63 = arith.constant dense<0.000000e+00> : vector<8x128xf32>
    %85 = tpu.matmul %83, %84, %cst_63 {dimension_numbers = #tpu.dot_dimension_numbers<[1], [0], [0], [1], [0, 0, 1, 1], [], []>} : vector<8x256xf32>, vector<256x128xf32>, vector<8x128xf32> -> vector<8x128xf32>
    %c0_64 = arith.constant 0 : index
    %c0_65 = arith.constant 0 : index
    %86 = vector.load %arg13[%c0_64, %c0_65] : memref<1x128xf32, #tpu.memory_space<vmem>>, vector<1x128xf32>
    %87 = vector.broadcast %86 : vector<1x128xf32> to vector<8x128xf32>
    %88 = arith.addf %85, %87 : vector<8x128xf32>
    %c0_66 = arith.constant 0 : index
    %c0_67 = arith.constant 0 : index
    %89 = vector.load %arg14[%c0_66, %c0_67] : memref<8x128xf32, #tpu.memory_space<vmem>>, vector<8x128xf32>
    tpu.vector_store %arg14[%c0_66, %c0_67], %88 {strides = array<i32>} : memref<8x128xf32, #tpu.memory_space<vmem>>, vector<8x128xf32>,
    return
  }
  func.func @transform_0(%arg0: i32) -> (i32, i32) {
    %c0_i32 = arith.constant 0 : i32
    %c0_i32_0 = arith.constant 0 : i32
    return %arg0, %c0_i32 : i32, i32
  }
  func.func @transform_1(%arg0: i32) -> (i32, i32) {
    %c0_i32 = arith.constant 0 : i32
    %c0_i32_0 = arith.constant 0 : i32
    %c0_i32_1 = arith.constant 0 : i32
    return %c0_i32, %c0_i32_0 : i32, i32
  }
  func.func @transform_2(%arg0: i32) -> (i32, i32) {
    %c0_i32 = arith.constant 0 : i32
    %c0_i32_0 = arith.constant 0 : i32
    %c0_i32_1 = arith.constant 0 : i32
    return %c0_i32, %c0_i32_0 : i32, i32
  }
  func.func @transform_3(%arg0: i32) -> (i32, i32) {
    %c0_i32 = arith.constant 0 : i32
    %c0_i32_0 = arith.constant 0 : i32
    %c0_i32_1 = arith.constant 0 : i32
    return %c0_i32, %c0_i32_0 : i32, i32
  }
  func.func @transform_4(%arg0: i32) -> (i32, i32) {
    %c0_i32 = arith.constant 0 : i32
    %c0_i32_0 = arith.constant 0 : i32
    %c0_i32_1 = arith.constant 0 : i32
    return %c0_i32, %c0_i32_0 : i32, i32
  }
  func.func @transform_5(%arg0: i32) -> (i32, i32) {
    %c0_i32 = arith.constant 0 : i32
    %c0_i32_0 = arith.constant 0 : i32
    %c0_i32_1 = arith.constant 0 : i32
    return %c0_i32, %c0_i32_0 : i32, i32
  }
  func.func @transform_6(%arg0: i32) -> (i32, i32) {
    %c0_i32 = arith.constant 0 : i32
    %c0_i32_0 = arith.constant 0 : i32
    %c0_i32_1 = arith.constant 0 : i32
    return %c0_i32, %c0_i32_0 : i32, i32
  }
  func.func @transform_7(%arg0: i32) -> (i32, i32) {
    %c0_i32 = arith.constant 0 : i32
    %c0_i32_0 = arith.constant 0 : i32
    %c0_i32_1 = arith.constant 0 : i32
    return %c0_i32, %c0_i32_0 : i32, i32
  }
  func.func @transform_8(%arg0: i32) -> (i32, i32) {
    %c0_i32 = arith.constant 0 : i32
    %c0_i32_0 = arith.constant 0 : i32
    %c0_i32_1 = arith.constant 0 : i32
    return %c0_i32, %c0_i32_0 : i32, i32
  }
  func.func @transform_9(%arg0: i32) -> (i32, i32) {
    %c0_i32 = arith.constant 0 : i32
    %c0_i32_0 = arith.constant 0 : i32
    %c0_i32_1 = arith.constant 0 : i32
    return %c0_i32, %c0_i32_0 : i32, i32
  }
  func.func @transform_10(%arg0: i32) -> (i32, i32) {
    %c0_i32 = arith.constant 0 : i32
    %c0_i32_0 = arith.constant 0 : i32
    %c0_i32_1 = arith.constant 0 : i32
    return %c0_i32, %c0_i32_0 : i32, i32
  }
  func.func @transform_11(%arg0: i32) -> (i32, i32) {
    %c0_i32 = arith.constant 0 : i32
    %c0_i32_0 = arith.constant 0 : i32
    %c0_i32_1 = arith.constant 0 : i32
    return %c0_i32, %c0_i32_0 : i32, i32
  }
  func.func @transform_12(%arg0: i32) -> (i32, i32) {
    %c0_i32 = arith.constant 0 : i32
    %c0_i32_0 = arith.constant 0 : i32
    %c0_i32_1 = arith.constant 0 : i32
    return %c0_i32, %c0_i32_0 : i32, i32
  }
  func.func @transform_13(%arg0: i32) -> (i32, i32) {
    %c0_i32 = arith.constant 0 : i32
    %c0_i32_0 = arith.constant 0 : i32
    return %arg0, %c0_i32 : i32, i32
  }
}

</mosaic_0001>

<llo_original>
// kernel: tpu_custom_call.1
$region0: #{tpu_custom_call.1}
  #allocation0 [shape = 'u32[]', space=smem, size = 0x4, offset = 0x4, fixed_abs, tag = 'smem constant byte address 0x4 - core index']
  #allocation1 [shape = 'u32[144,128]{1,0:T(1,128)}', space=vmem, size = 0x12000, scoped, tag = 'internal scratch']
  %s0 = inlined_call_operand.hbm [shape: f32[8,128], index: 0, kind: input, shape index: {}]
  %s1 = inlined_call_operand.hbm [shape: f32[128,2048], index: 1, kind: input, shape index: {}]
  %s2 = inlined_call_operand.hbm [shape: f32[1,2048], index: 2, kind: input, shape index: {}]
  %s3 = inlined_call_operand.hbm [shape: f32[512,512], index: 3, kind: input, shape index: {}]
  %s4 = inlined_call_operand.hbm [shape: f32[1,512], index: 4, kind: input, shape index: {}]
  %s5 = inlined_call_operand.hbm [shape: f32[512,512], index: 5, kind: input, shape index: {}]
  %s6 = inlined_call_operand.hbm [shape: f32[1,512], index: 6, kind: input, shape index: {}]
  %s7 = inlined_call_operand.hbm [shape: f32[512,512], index: 7, kind: input, shape index: {}]
  %s8 = inlined_call_operand.hbm [shape: f32[1,512], index: 8, kind: input, shape index: {}]
  %s9 = inlined_call_operand.hbm [shape: f32[512,1024], index: 9, kind: input, shape index: {}]
  %s10 = inlined_call_operand.hbm [shape: f32[1,1024], index: 10, kind: input, shape index: {}]
  %s11 = inlined_call_operand.hbm [shape: f32[256,128], index: 11, kind: input, shape index: {}]
  %s12 = inlined_call_operand.hbm [shape: f32[1,128], index: 12, kind: input, shape index: {}]
  %s13 = inlined_call_operand.hbm [shape: f32[8,128], index: 13, kind: output, shape index: {}]
  %s14 = sld [smem:[#allocation0]]
  $region114: #{tpu_custom_call.1} parent=0
    _
  %s16 = ssub.s32 1, %s14
  %s17 = scalar_select 0, %s16, %s14
  $region1: #{tpu_custom_call.1} parent=0
    #allocation2 [shape = 'u8[4096]{0}', space=vmem, size = 0x1000, scoped, tag = 'input window, operand 0, single buffered']
    #allocation3 [shape = 's32[1]{0}', space=sflag, size = 0x4, scoped, tag = 'scoped memory for tpu_custom_call.1']
    #allocation4 [shape = 's32[1]{0}', space=sflag, size = 0x4, scoped, tag = 'scoped memory for tpu_custom_call.1']
    #allocation5 [shape = 'u8[1048576]{0}', space=vmem, size = 0x100000, scoped, tag = 'input window, operand 1, single buffered']
    #allocation6 [shape = 's32[1]{0}', space=sflag, size = 0x4, scoped, tag = 'scoped memory for tpu_custom_call.1']
    #allocation7 [shape = 'u8[8192]{0}', space=vmem, size = 0x2000, scoped, tag = 'input window, operand 2, single buffered']
    #allocation8 [shape = 'u8[1048576]{0}', space=vmem, size = 0x100000, scoped, tag = 'input window, operand 3, single buffered']
    #allocation9 [shape = 's32[1]{0}', space=sflag, size = 0x4, scoped, tag = 'scoped memory for tpu_custom_call.1']
    #allocation10 [shape = 'u8[2048]{0}', space=vmem, size = 0x800, scoped, tag = 'input window, operand 4, single buffered']
    #allocation11 [shape = 'u8[1048576]{0}', space=vmem, size = 0x100000, scoped, tag = 'input window, operand 5, single buffered']
    #allocation12 [shape = 's32[1]{0}', space=sflag, size = 0x4, scoped, tag = 'scoped memory for tpu_custom_call.1']
    #allocation13 [shape = 'u8[2048]{0}', space=vmem, size = 0x800, scoped, tag = 'input window, operand 6, single buffered']
    #allocation14 [shape = 'u8[1048576]{0}', space=vmem, size = 0x100000, scoped, tag = 'input window, operand 7, single buffered']
    #allocation15 [shape = 's32[1]{0}', space=sflag, size = 0x4, scoped, tag = 'scoped memory for tpu_custom_call.1']
    #allocation16 [shape = 'u8[2048]{0}', space=vmem, size = 0x800, scoped, tag = 'input window, operand 8, single buffered']
    #allocation17 [shape = 'u8[2097152]{0}', space=vmem, size = 0x200000, scoped, tag = 'input window, operand 9, single buffered']
    #allocation18 [shape = 's32[1]{0}', space=sflag, size = 0x4, scoped, tag = 'scoped memory for tpu_custom_call.1']
    #allocation19 [shape = 'u8[4096]{0}', space=vmem, size = 0x1000, scoped, tag = 'input window, operand 10, single buffered']
    #allocation20 [shape = 'u8[131072]{0}', space=vmem, size = 0x20000, scoped, tag = 'input window, operand 11, single buffered']
    #allocation21 [shape = 's32[1]{0}', space=sflag, size = 0x4, scoped, tag = 'scoped memory for tpu_custom_call.1']
    #allocation22 [shape = 'u8[512]{0}', space=vmem, size = 0x400, scoped, tag = 'input window, operand 12, single buffered']
    #allocation23 [shape = 'u8[4096]{0}', space=vmem, size = 0x1000, scoped, tag = 'output window, operand 0, single buffered']
    %18 = vsyncpa [#allocation3], 0
    %19 = vsyncpa [#allocation6], 0
    %20 = vsyncpa [#allocation9], 0
    %21 = vsyncpa [#allocation12], 0
    %22 = vsyncpa [#allocation15], 0
    %23 = vsyncpa [#allocation18], 0
    %24 = vsyncpa [#allocation21], 0
    %25 = vsyncpa [#allocation4], 0
    // Predicated region
    $region2: #{tpu_custom_call.1} parent=1 // pred_check
      _
    $region3: #{tpu_custom_call.1} parent=1 // pred_check_branch
      %27 = sbr.rel (0) target = $region5
    $region4: #{tpu_custom_call.1} parent=1 // pred_region
      %s29 = ssub.s32 128, 128
      %30 = vsyncadd [#allocation3], %s29
      %s32 = sshll.u32 [#allocation2], 4
      %s33 = int_to_ptr.vmem [resolvable:$true] %s32
      %35 = dma.hbm_to_vmem [thread:$0]  %s0, 128, %s33, [#allocation3]
    $region5: #{tpu_custom_call.1} parent=1 // pred_fallthru
      _
    // Predicated region
    $region6: #{tpu_custom_call.1} parent=1 // pred_check
      _
    $region7: #{tpu_custom_call.1} parent=1 // pred_check_branch
      %37 = sbr.rel (0) target = $region9
    $region8: #{tpu_custom_call.1} parent=1 // pred_region
      %s39 = ssub.s32 32768, 32768
      %40 = vsyncadd [#allocation6], %s39
      %s41 = sshll.u32 [#allocation5], 4
      %s42 = int_to_ptr.vmem [resolvable:$true] %s41
      %47 = dma.hbm_to_vmem [thread:$0]  %s1, 32768, %s42, [#allocation6], 2048, 2048, 128
    $region9: #{tpu_custom_call.1} parent=1 // pred_fallthru
      _
    // Predicated region
    $region10: #{tpu_custom_call.1} parent=1 // pred_check
      _
    $region11: #{tpu_custom_call.1} parent=1 // pred_check_branch
      %49 = sbr.rel (0) target = $region13
    $region12: #{tpu_custom_call.1} parent=1 // pred_region
      %s51 = ssub.s32 256, 256
      %52 = vsyncadd [#allocation6], %s51
      %s54 = sshll.u32 [#allocation7], 4
      %s55 = int_to_ptr.vmem [resolvable:$true] %s54
      %57 = dma.hbm_to_vmem [thread:$0]  %s2, 256, %s55, [#allocation6]
    $region13: #{tpu_custom_call.1} parent=1 // pred_fallthru
      _
    // Predicated region
    $region14: #{tpu_custom_call.1} parent=1 // pred_check
      _
    $region15: #{tpu_custom_call.1} parent=1 // pred_check_branch
      %59 = sbr.rel (0) target = $region17
    $region16: #{tpu_custom_call.1} parent=1 // pred_region
      %s61 = ssub.s32 32768, 32768
      %62 = vsyncadd [#allocation9], %s61
      %s63 = sshll.u32 [#allocation8], 4
      %s64 = int_to_ptr.vmem [resolvable:$true] %s63
      %69 = dma.hbm_to_vmem [thread:$0]  %s3, 32768, %s64, [#allocation9], 512, 512, 32
    $region17: #{tpu_custom_call.1} parent=1 // pred_fallthru
      _
    // Predicated region
    $region18: #{tpu_custom_call.1} parent=1 // pred_check
      _
    $region19: #{tpu_custom_call.1} parent=1 // pred_check_branch
      %71 = sbr.rel (0) target = $region21
    $region20: #{tpu_custom_call.1} parent=1 // pred_region
      %s73 = ssub.s32 64, 64
      %74 = vsyncadd [#allocation9], %s73
      %s76 = sshll.u32 [#allocation10], 4
      %s77 = int_to_ptr.vmem [resolvable:$true] %s76
      %79 = dma.hbm_to_vmem [thread:$0]  %s4, 64, %s77, [#allocation9]
    $region21: #{tpu_custom_call.1} parent=1 // pred_fallthru
      _
    // Predicated region
    $region22: #{tpu_custom_call.1} parent=1 // pred_check
      _
    $region23: #{tpu_custom_call.1} parent=1 // pred_check_branch
      %81 = sbr.rel (0) target = $region25
    $region24: #{tpu_custom_call.1} parent=1 // pred_region
      %s83 = ssub.s32 32768, 32768
      %84 = vsyncadd [#allocation12], %s83
      %s85 = sshll.u32 [#allocation11], 4
      %s86 = int_to_ptr.vmem [resolvable:$true] %s85
      %91 = dma.hbm_to_vmem [thread:$0]  %s5, 32768, %s86, [#allocation12], 512, 512, 32
    $region25: #{tpu_custom_call.1} parent=1 // pred_fallthru
      _
    // Predicated region
    $region26: #{tpu_custom_call.1} parent=1 // pred_check
      _
    $region27: #{tpu_custom_call.1} parent=1 // pred_check_branch
      %93 = sbr.rel (0) target = $region29
    $region28: #{tpu_custom_call.1} parent=1 // pred_region
      %s95 = ssub.s32 64, 64
      %96 = vsyncadd [#allocation12], %s95
      %s98 = sshll.u32 [#allocation13], 4
      %s99 = int_to_ptr.vmem [resolvable:$true] %s98
      %101 = dma.hbm_to_vmem [thread:$0]  %s6, 64, %s99, [#allocation12]
    $region29: #{tpu_custom_call.1} parent=1 // pred_fallthru
      _
    // Predicated region
    $region30: #{tpu_custom_call.1} parent=1 // pred_check
      _
    $region31: #{tpu_custom_call.1} parent=1 // pred_check_branch
      %103 = sbr.rel (0) target = $region33
    $region32: #{tpu_custom_call.1} parent=1 // pred_region
      %s105 = ssub.s32 32768, 32768
      %106 = vsyncadd [#allocation15], %s105
      %s107 = sshll.u32 [#allocation14], 4
      %s108 = int_to_ptr.vmem [resolvable:$true] %s107
      %113 = dma.hbm_to_vmem [thread:$0]  %s7, 32768, %s108, [#allocation15], 512, 512, 32
    $region33: #{tpu_custom_call.1} parent=1 // pred_fallthru
      _
    // Predicated region
    $region34: #{tpu_custom_call.1} parent=1 // pred_check
      _
    $region35: #{tpu_custom_call.1} parent=1 // pred_check_branch
      %115 = sbr.rel (0) target = $region37
    $region36: #{tpu_custom_call.1} parent=1 // pred_region
      %s117 = ssub.s32 64, 64
      %118 = vsyncadd [#allocation15], %s117
      %s120 = sshll.u32 [#allocation16], 4
      %s121 = int_to_ptr.vmem [resolvable:$true] %s120
      %123 = dma.hbm_to_vmem [thread:$0]  %s8, 64, %s121, [#allocation15]
    $region37: #{tpu_custom_call.1} parent=1 // pred_fallthru
      _
    // Predicated region
    $region38: #{tpu_custom_call.1} parent=1 // pred_check
      _
    $region39: #{tpu_custom_call.1} parent=1 // pred_check_branch
      %125 = sbr.rel (0) target = $region41
    $region40: #{tpu_custom_call.1} parent=1 // pred_region
      %s127 = ssub.s32 65536, 65536
      %128 = vsyncadd [#allocation18], %s127
      %s129 = sshll.u32 [#allocation17], 4
      %s130 = int_to_ptr.vmem [resolvable:$true] %s129
      %135 = dma.hbm_to_vmem [thread:$0]  %s9, 65536, %s130, [#allocation18], 1024, 1024, 64
    $region41: #{tpu_custom_call.1} parent=1 // pred_fallthru
      _
    // Predicated region
    $region42: #{tpu_custom_call.1} parent=1 // pred_check
      _
    $region43: #{tpu_custom_call.1} parent=1 // pred_check_branch
      %137 = sbr.rel (0) target = $region45
    $region44: #{tpu_custom_call.1} parent=1 // pred_region
      %s139 = ssub.s32 128, 128
      %140 = vsyncadd [#allocation18], %s139
      %s142 = sshll.u32 [#allocation19], 4
      %s143 = int_to_ptr.vmem [resolvable:$true] %s142
      %145 = dma.hbm_to_vmem [thread:$0]  %s10, 128, %s143, [#allocation18]
    $region45: #{tpu_custom_call.1} parent=1 // pred_fallthru
      _
    // Predicated region
    $region46: #{tpu_custom_call.1} parent=1 // pred_check
      _
    $region47: #{tpu_custom_call.1} parent=1 // pred_check_branch
      %147 = sbr.rel (0) target = $region49
    $region48: #{tpu_custom_call.1} parent=1 // pred_region
      %s149 = ssub.s32 4096, 4096
      %150 = vsyncadd [#allocation21], %s149
      %s151 = sshll.u32 [#allocation20], 4
      %s152 = int_to_ptr.vmem [resolvable:$true] %s151
      %157 = dma.hbm_to_vmem [thread:$0]  %s11, 4096, %s152, [#allocation21], 128, 128, 8
    $region49: #{tpu_custom_call.1} parent=1 // pred_fallthru
      _
    // Predicated region
    $region50: #{tpu_custom_call.1} parent=1 // pred_check
      _
    $region51: #{tpu_custom_call.1} parent=1 // pred_check_branch
      %159 = sbr.rel (0) target = $region53
    $region52: #{tpu_custom_call.1} parent=1 // pred_region
      %s161 = ssub.s32 16, 16
      %162 = vsyncadd [#allocation21], %s161
      %s164 = sshll.u32 [#allocation22], 4
      %s165 = int_to_ptr.vmem [resolvable:$true] %s164
      %167 = dma.hbm_to_vmem [thread:$0]  %s12, 16, %s165, [#allocation21]
    $region53: #{tpu_custom_call.1} parent=1 // pred_fallthru
      _
    // Predicated region
    $region54: #{tpu_custom_call.1} parent=1 // pred_check
      _
    $region55: #{tpu_custom_call.1} parent=1 // pred_check_branch
      %169 = sbr.rel (0) target = $region57
    $region56: #{tpu_custom_call.1} parent=1 // pred_region
      %170 = dma.done [#allocation3], 128
    $region57: #{tpu_custom_call.1} parent=1 // pred_fallthru
      _
    // Predicated region
    $region58: #{tpu_custom_call.1} parent=1 // pred_check
      _
    $region59: #{tpu_custom_call.1} parent=1 // pred_check_branch
      %172 = sbr.rel (0) target = $region61
    $region60: #{tpu_custom_call.1} parent=1 // pred_region
      %173 = dma.done [#allocation6], 32768
    $region61: #{tpu_custom_call.1} parent=1 // pred_fallthru
      _
    // Predicated region
    $region62: #{tpu_custom_call.1} parent=1 // pred_check
      _
    $region63: #{tpu_custom_call.1} parent=1 // pred_check_branch
      %175 = sbr.rel (0) target = $region65
    $region64: #{tpu_custom_call.1} parent=1 // pred_region
      %176 = dma.done [#allocation6], 256
    $region65: #{tpu_custom_call.1} parent=1 // pred_fallthru
      _
    // Predicated region
    $region66: #{tpu_custom_call.1} parent=1 // pred_check
      _
    $region67: #{tpu_custom_call.1} parent=1 // pred_check_branch
      %178 = sbr.rel (0) target = $region69
    $region68: #{tpu_custom_call.1} parent=1 // pred_region
      %179 = dma.done [#allocation9], 32768
    $region69: #{tpu_custom_call.1} parent=1 // pred_fallthru
      _
    // Predicated region
    $region70: #{tpu_custom_call.1} parent=1 // pred_check
      _
    $region71: #{tpu_custom_call.1} parent=1 // pred_check_branch
      %181 = sbr.rel (0) target = $region73
    $region72: #{tpu_custom_call.1} parent=1 // pred_region
      %182 = dma.done [#allocation9], 64
    $region73: #{tpu_custom_call.1} parent=1 // pred_fallthru
      _
    // Predicated region
    $region74: #{tpu_custom_call.1} parent=1 // pred_check
      _
    $region75: #{tpu_custom_call.1} parent=1 // pred_check_branch
      %184 = sbr.rel (0) target = $region77
    $region76: #{tpu_custom_call.1} parent=1 // pred_region
      %185 = dma.done [#allocation12], 32768
    $region77: #{tpu_custom_call.1} parent=1 // pred_fallthru
      _
    // Predicated region
    $region78: #{tpu_custom_call.1} parent=1 // pred_check
      _
    $region79: #{tpu_custom_call.1} parent=1 // pred_check_branch
      %187 = sbr.rel (0) target = $region81
    $region80: #{tpu_custom_call.1} parent=1 // pred_region
      %188 = dma.done [#allocation12], 64
    $region81: #{tpu_custom_call.1} parent=1 // pred_fallthru
      _
    // Predicated region
    $region82: #{tpu_custom_call.1} parent=1 // pred_check
      _
    $region83: #{tpu_custom_call.1} parent=1 // pred_check_branch
      %190 = sbr.rel (0) target = $region85
    $region84: #{tpu_custom_call.1} parent=1 // pred_region
      %191 = dma.done [#allocation15], 32768
    $region85: #{tpu_custom_call.1} parent=1 // pred_fallthru
      _
    // Predicated region
    $region86: #{tpu_custom_call.1} parent=1 // pred_check
      _
    $region87: #{tpu_custom_call.1} parent=1 // pred_check_branch
      %193 = sbr.rel (0) target = $region89
    $region88: #{tpu_custom_call.1} parent=1 // pred_region
      %194 = dma.done [#allocation15], 64
    $region89: #{tpu_custom_call.1} parent=1 // pred_fallthru
      _
    // Predicated region
    $region90: #{tpu_custom_call.1} parent=1 // pred_check
      _
    $region91: #{tpu_custom_call.1} parent=1 // pred_check_branch
      %196 = sbr.rel (0) target = $region93
    $region92: #{tpu_custom_call.1} parent=1 // pred_region
      %197 = dma.done [#allocation18], 65536
    $region93: #{tpu_custom_call.1} parent=1 // pred_fallthru
      _
    // Predicated region
    $region94: #{tpu_custom_call.1} parent=1 // pred_check
      _
    $region95: #{tpu_custom_call.1} parent=1 // pred_check_branch
      %199 = sbr.rel (0) target = $region97
    $region96: #{tpu_custom_call.1} parent=1 // pred_region
      %200 = dma.done [#allocation18], 128
    $region97: #{tpu_custom_call.1} parent=1 // pred_fallthru
      _
    // Predicated region
    $region98: #{tpu_custom_call.1} parent=1 // pred_check
      _
    $region99: #{tpu_custom_call.1} parent=1 // pred_check_branch
      %202 = sbr.rel (0) target = $region101
    $region100: #{tpu_custom_call.1} parent=1 // pred_region
      %203 = dma.done [#allocation21], 4096
    $region101: #{tpu_custom_call.1} parent=1 // pred_fallthru
      _
    // Predicated region
    $region102: #{tpu_custom_call.1} parent=1 // pred_check
      _
    $region103: #{tpu_custom_call.1} parent=1 // pred_check_branch
      %205 = sbr.rel (0) target = $region105
    $region104: #{tpu_custom_call.1} parent=1 // pred_region
      %206 = dma.done [#allocation21], 16
    $region105: #{tpu_custom_call.1} parent=1 // pred_fallthru
      _
    %v207 = vld [vmem:[#allocation2] sm:$0xff]
    %v208 = vld [vmem:[#allocation5] sm:$0xff]
    %v209 = vld [vmem:[#allocation5 + $0x8] sm:$0xff]
    %v210 = vld [vmem:[#allocation5 + $0x10] sm:$0xff]
    %v211 = vld [vmem:[#allocation5 + $0x18] sm:$0xff]
    %v212 = vld [vmem:[#allocation5 + $0x80] sm:$0xff]
    %v213 = vld [vmem:[#allocation5 + $0x88] sm:$0xff]
    %v214 = vld [vmem:[#allocation5 + $0x90] sm:$0xff]
    %v215 = vld [vmem:[#allocation5 + $0x98] sm:$0xff]
    %v216 = vld [vmem:[#allocation5 + $0x100] sm:$0xff]
    %v217 = vld [vmem:[#allocation5 + $0x108] sm:$0xff]
    %v218 = vld [vmem:[#allocation5 + $0x110] sm:$0xff]
    %v219 = vld [vmem:[#allocation5 + $0x118] sm:$0xff]
    %v220 = vld [vmem:[#allocation5 + $0x180] sm:$0xff]
    %v221 = vld [vmem:[#allocation5 + $0x188] sm:$0xff]
    %v222 = vld [vmem:[#allocation5 + $0x190] sm:$0xff]
    %v223 = vld [vmem:[#allocation5 + $0x198] sm:$0xff]
    %v224 = vld [vmem:[#allocation5 + $0x200] sm:$0xff]
    %v225 = vld [vmem:[#allocation5 + $0x208] sm:$0xff]
    %v226 = vld [vmem:[#allocation5 + $0x210] sm:$0xff]
    %v227 = vld [vmem:[#allocation5 + $0x218] sm:$0xff]
    %v228 = vld [vmem:[#allocation5 + $0x280] sm:$0xff]
    %v229 = vld [vmem:[#allocation5 + $0x288] sm:$0xff]
    %v230 = vld [vmem:[#allocation5 + $0x290] sm:$0xff]
    %v231 = vld [vmem:[#allocation5 + $0x298] sm:$0xff]
    %v232 = vld [vmem:[#allocation5 + $0x300] sm:$0xff]
    %v233 = vld [vmem:[#allocation5 + $0x308] sm:$0xff]
    %v234 = vld [vmem:[#allocation5 + $0x310] sm:$0xff]
    %v235 = vld [vmem:[#allocation5 + $0x318] sm:$0xff]
    %v236 = vld [vmem:[#allocation5 + $0x380] sm:$0xff]
    %v237 = vld [vmem:[#allocation5 + $0x388] sm:$0xff]
    %v238 = vld [vmem:[#allocation5 + $0x390] sm:$0xff]
    %v239 = vld [vmem:[#allocation5 + $0x398] sm:$0xff]
    %v240 = vld [vmem:[#allocation5 + $0x400] sm:$0xff]
    %v241 = vld [vmem:[#allocation5 + $0x408] sm:$0xff]
    %v242 = vld [vmem:[#allocation5 + $0x410] sm:$0xff]
    %v243 = vld [vmem:[#allocation5 + $0x418] sm:$0xff]
    %v244 = vld [vmem:[#allocation5 + $0x480] sm:$0xff]
    %v245 = vld [vmem:[#allocation5 + $0x488] sm:$0xff]
    %v246 = vld [vmem:[#allocation5 + $0x490] sm:$0xff]
    %v247 = vld [vmem:[#allocation5 + $0x498] sm:$0xff]
    %v248 = vld [vmem:[#allocation5 + $0x500] sm:$0xff]
    %v249 = vld [vmem:[#allocation5 + $0x508] sm:$0xff]
    %v250 = vld [vmem:[#allocation5 + $0x510] sm:$0xff]
    %v251 = vld [vmem:[#allocation5 + $0x518] sm:$0xff]
    %v252 = vld [vmem:[#allocation5 + $0x580] sm:$0xff]
    %v253 = vld [vmem:[#allocation5 + $0x588] sm:$0xff]
    %v254 = vld [vmem:[#allocation5 + $0x590] sm:$0xff]
    %v255 = vld [vmem:[#allocation5 + $0x598] sm:$0xff]
    %v256 = vld [vmem:[#allocation5 + $0x600] sm:$0xff]
    %v257 = vld [vmem:[#allocation5 + $0x608] sm:$0xff]
    %v258 = vld [vmem:[#allocation5 + $0x610] sm:$0xff]
    %v259 = vld [vmem:[#allocation5 + $0x618] sm:$0xff]
    %v260 = vld [vmem:[#allocation5 + $0x680] sm:$0xff]
    %v261 = vld [vmem:[#allocation5 + $0x688] sm:$0xff]
    %v262 = vld [vmem:[#allocation5 + $0x690] sm:$0xff]
    %v263 = vld [vmem:[#allocation5 + $0x698] sm:$0xff]
    %v264 = vld [vmem:[#allocation5 + $0x700] sm:$0xff]
    %v265 = vld [vmem:[#allocation5 + $0x708] sm:$0xff]
    %v266 = vld [vmem:[#allocation5 + $0x710] sm:$0xff]
    %v267 = vld [vmem:[#allocation5 + $0x718] sm:$0xff]
    %v268 = vld [vmem:[#allocation5 + $0x780] sm:$0xff]
    %v269 = vld [vmem:[#allocation5 + $0x788] sm:$0xff]
    %v270 = vld [vmem:[#allocation5 + $0x790] sm:$0xff]
    %v271 = vld [vmem:[#allocation5 + $0x798] sm:$0xff]
    %v272 = vld [vmem:[#allocation7] sm:$0xf]
    %v274 = vlaneseq
    %v275 = vshrl.u32 %v274, 7
    %v276 = vsub.s32 0, %v275
    %v277 = vrot.slane %v272, %v276
    %v278 = vlaneseq
    %v279 = vshrl.u32 %v278, 7
    %v280 = vsub.s32 1, %v279
    %v281 = vrot.slane %v272, %v280
    %v282 = vlaneseq
    %v283 = vshrl.u32 %v282, 7
    %v284 = vsub.s32 2, %v283
    %v285 = vrot.slane %v272, %v284
    %v286 = vlaneseq
    %v287 = vshrl.u32 %v286, 7
    %v288 = vsub.s32 3, %v287
    %v289 = vrot.slane %v272, %v288
    %294 = vmatprep.subr.mxu0 %v209
    %295 = vmatpush1.msra.mxu0 %v208
    %296 = vmatprep.subr.mxu0 %v213
    %297 = vmatpush1.msra.mxu0 %v212
    %298 = vmatprep.subr.mxu0 %v217
    %299 = vmatpush1.msra.mxu0 %v216
    %300 = vmatprep.subr.mxu0 %v221
    %301 = vmatpush1.msra.mxu0 %v220
    %302 = vmatprep.subr.mxu0 %v225
    %303 = vmatpush1.msra.mxu0 %v224
    %304 = vmatprep.subr.mxu0 %v229
    %305 = vmatpush1.msra.mxu0 %v228
    %306 = vmatprep.subr.mxu0 %v233
    %307 = vmatpush1.msra.mxu0 %v232
    %308 = vmatprep.subr.mxu0 %v237
    %309 = vmatpush1.msra.mxu0 %v236
    %310 = vmatprep.subr.mxu0 %v241
    %311 = vmatpush1.msra.mxu0 %v240
    %312 = vmatprep.subr.mxu0 %v245
    %313 = vmatpush1.msra.mxu0 %v244
    %314 = vmatprep.subr.mxu0 %v249
    %315 = vmatpush1.msra.mxu0 %v248
    %316 = vmatprep.subr.mxu0 %v253
    %317 = vmatpush1.msra.mxu0 %v252
    %318 = vmatprep.subr.mxu0 %v257
    %319 = vmatpush1.msra.mxu0 %v256
    %320 = vmatprep.subr.mxu0 %v261
    %321 = vmatpush1.msra.mxu0 %v260
    %322 = vmatprep.subr.mxu0 %v265
    %323 = vmatpush1.msra.mxu0 %v264
    %324 = vmatprep.subr.mxu0 %v269
    %325 = vmatpush1.msra.mxu0 %v268
    %326 = vmatprep.subr.mxu0 0.0
    %327 = vmatpush1.msra.mxu0 0.0
    %328 = vmatprep.subr.mxu0 0.0
    %329 = vmatpush1.msra.mxu0 0.0
    %330 = vmatprep.subr.mxu0 0.0
    %331 = vmatpush1.msra.mxu0 0.0
    %332 = vmatprep.subr.mxu0 0.0
    %333 = vmatpush1.msra.mxu0 0.0
    %334 = vmatprep.subr.mxu0 0.0
    %335 = vmatpush1.msra.mxu0 0.0
    %336 = vmatprep.subr.mxu0 0.0
    %337 = vmatpush1.msra.mxu0 0.0
    %338 = vmatprep.subr.mxu0 0.0
    %339 = vmatpush1.msra.mxu0 0.0
    %340 = vmatprep.subr.mxu0 0.0
    %341 = vmatpush1.msra.mxu0 0.0
    %342 = vmatprep.subr.mxu0 0.0
    %343 = vmatpush1.msra.mxu0 0.0
    %344 = vmatprep.subr.mxu0 0.0
    %345 = vmatpush1.msra.mxu0 0.0
    %346 = vmatprep.subr.mxu0 0.0
    %347 = vmatpush1.msra.mxu0 0.0
    %348 = vmatprep.subr.mxu0 0.0
    %349 = vmatpush1.msra.mxu0 0.0
    %350 = vmatprep.subr.mxu0 0.0
    %351 = vmatpush1.msra.mxu0 0.0
    %352 = vmatprep.subr.mxu0 0.0
    %353 = vmatpush1.msra.mxu0 0.0
    %354 = vmatprep.subr.mxu0 0.0
    %355 = vmatpush1.msra.mxu0 0.0
    %356 = vmatprep.subr.mxu0 0.0
    %357 = vmatpush1.msra.mxu0 0.0
    %358 = vmatprep.mubr.f32.mxu0 0.0
    %359 = vmatmul.mubr.f32.gmra.mrb[0].mxu0 %v207
    %v360 = vpop.f32.mrb[0].mxu0
    %v361 = vadd.f32 %v277, %v360
    %v362 = vpop.f32.mrb[0].mxu0
    %v363 = vadd.f32 %v281, %v362
    %364 = vdwg.mxu0
    %365 = vmatprep.subr.mxu0 %v211
    %366 = vmatpush1.msra.mxu0 %v210
    %367 = vmatprep.subr.mxu0 %v215
    %368 = vmatpush1.msra.mxu0 %v214
    %369 = vmatprep.subr.mxu0 %v219
    %370 = vmatpush1.msra.mxu0 %v218
    %371 = vmatprep.subr.mxu0 %v223
    %372 = vmatpush1.msra.mxu0 %v222
    %373 = vmatprep.subr.mxu0 %v227
    %374 = vmatpush1.msra.mxu0 %v226
    %375 = vmatprep.subr.mxu0 %v231
    %376 = vmatpush1.msra.mxu0 %v230
    %377 = vmatprep.subr.mxu0 %v235
    %378 = vmatpush1.msra.mxu0 %v234
    %379 = vmatprep.subr.mxu0 %v239
    %380 = vmatpush1.msra.mxu0 %v238
    %381 = vmatprep.subr.mxu0 %v243
    %382 = vmatpush1.msra.mxu0 %v242
    %383 = vmatprep.subr.mxu0 %v247
    %384 = vmatpush1.msra.mxu0 %v246
    %385 = vmatprep.subr.mxu0 %v251
    %386 = vmatpush1.msra.mxu0 %v250
    %387 = vmatprep.subr.mxu0 %v255
    %388 = vmatpush1.msra.mxu0 %v254
    %389 = vmatprep.subr.mxu0 %v259
    %390 = vmatpush1.msra.mxu0 %v258
    %391 = vmatprep.subr.mxu0 %v263
    %392 = vmatpush1.msra.mxu0 %v262
    %393 = vmatprep.subr.mxu0 %v267
    %394 = vmatpush1.msra.mxu0 %v266
    %395 = vmatprep.subr.mxu0 %v271
    %396 = vmatpush1.msra.mxu0 %v270
    %397 = vmatprep.subr.mxu0 0.0
    %398 = vmatpush1.msra.mxu0 0.0
    %399 = vmatprep.subr.mxu0 0.0
    %400 = vmatpush1.msra.mxu0 0.0
    %401 = vmatprep.subr.mxu0 0.0
    %402 = vmatpush1.msra.mxu0 0.0
    %403 = vmatprep.subr.mxu0 0.0
    %404 = vmatpush1.msra.mxu0 0.0
    %405 = vmatprep.subr.mxu0 0.0
    %406 = vmatpush1.msra.mxu0 0.0
    %407 = vmatprep.subr.mxu0 0.0
    %408 = vmatpush1.msra.mxu0 0.0
    %409 = vmatprep.subr.mxu0 0.0
    %410 = vmatpush1.msra.mxu0 0.0
    %411 = vmatprep.subr.mxu0 0.0
    %412 = vmatpush1.msra.mxu0 0.0
    %413 = vmatprep.subr.mxu0 0.0
    %414 = vmatpush1.msra.mxu0 0.0
    %415 = vmatprep.subr.mxu0 0.0
    %416 = vmatpush1.msra.mxu0 0.0
    %417 = vmatprep.subr.mxu0 0.0
    %418 = vmatpush1.msra.mxu0 0.0
    %419 = vmatprep.subr.mxu0 0.0
    %420 = vmatpush1.msra.mxu0 0.0
    %421 = vmatprep.subr.mxu0 0.0
    %422 = vmatpush1.msra.mxu0 0.0
    %423 = vmatprep.subr.mxu0 0.0
    %424 = vmatpush1.msra.mxu0 0.0
    %425 = vmatprep.subr.mxu0 0.0
    %426 = vmatpush1.msra.mxu0 0.0
    %427 = vmatprep.subr.mxu0 0.0
    %428 = vmatpush1.msra.mxu0 0.0
    %429 = vmatprep.mubr.f32.mxu0 0.0
    %430 = vmatmul.mubr.f32.gmra.mrb[0].mxu0 %v207
    %v431 = vpop.f32.mrb[0].mxu0
    %v432 = vadd.f32 %v285, %v431
    %v433 = vpop.f32.mrb[0].mxu0
    %v434 = vadd.f32 %v289, %v433
    %435 = vdwg.mxu0
    %v436 = vmax.f32 %v361, 0.0
    %v437 = vmax.f32 %v363, 0.0
    %v438 = vmax.f32 %v432, 0.0
    %v439 = vmax.f32 %v434, 0.0
    %v440 = vld [vmem:[#allocation5 + $0x20] sm:$0xff]
    %v441 = vld [vmem:[#allocation5 + $0x28] sm:$0xff]
    %v442 = vld [vmem:[#allocation5 + $0x30] sm:$0xff]
    %v443 = vld [vmem:[#allocation5 + $0x38] sm:$0xff]
    %v444 = vld [vmem:[#allocation5 + $0xa0] sm:$0xff]
    %v445 = vld [vmem:[#allocation5 + $0xa8] sm:$0xff]
    %v446 = vld [vmem:[#allocation5 + $0xb0] sm:$0xff]
    %v447 = vld [vmem:[#allocation5 + $0xb8] sm:$0xff]
    %v448 = vld [vmem:[#allocation5 + $0x120] sm:$0xff]
    %v449 = vld [vmem:[#allocation5 + $0x128] sm:$0xff]
    %v450 = vld [vmem:[#allocation5 + $0x130] sm:$0xff]
    %v451 = vld [vmem:[#allocation5 + $0x138] sm:$0xff]
    %v452 = vld [vmem:[#allocation5 + $0x1a0] sm:$0xff]
    %v453 = vld [vmem:[#allocation5 + $0x1a8] sm:$0xff]
    %v454 = vld [vmem:[#allocation5 + $0x1b0] sm:$0xff]
    %v455 = vld [vmem:[#allocation5 + $0x1b8] sm:$0xff]
    %v456 = vld [vmem:[#allocation5 + $0x220] sm:$0xff]
    %v457 = vld [vmem:[#allocation5 + $0x228] sm:$0xff]
    %v458 = vld [vmem:[#allocation5 + $0x230] sm:$0xff]
    %v459 = vld [vmem:[#allocation5 + $0x238] sm:$0xff]
    %v460 = vld [vmem:[#allocation5 + $0x2a0] sm:$0xff]
    %v461 = vld [vmem:[#allocation5 + $0x2a8] sm:$0xff]
    %v462 = vld [vmem:[#allocation5 + $0x2b0] sm:$0xff]
    %v463 = vld [vmem:[#allocation5 + $0x2b8] sm:$0xff]
    %v464 = vld [vmem:[#allocation5 + $0x320] sm:$0xff]
    %v465 = vld [vmem:[#allocation5 + $0x328] sm:$0xff]
    %v466 = vld [vmem:[#allocation5 + $0x330] sm:$0xff]
    %v467 = vld [vmem:[#allocation5 + $0x338] sm:$0xff]
    %v468 = vld [vmem:[#allocation5 + $0x3a0] sm:$0xff]
    %v469 = vld [vmem:[#allocation5 + $0x3a8] sm:$0xff]
    %v470 = vld [vmem:[#allocation5 + $0x3b0] sm:$0xff]
    %v471 = vld [vmem:[#allocation5 + $0x3b8] sm:$0xff]
    %v472 = vld [vmem:[#allocation5 + $0x420] sm:$0xff]
    %v473 = vld [vmem:[#allocation5 + $0x428] sm:$0xff]
    %v474 = vld [vmem:[#allocation5 + $0x430] sm:$0xff]
    %v475 = vld [vmem:[#allocation5 + $0x438] sm:$0xff]
    %v476 = vld [vmem:[#allocation5 + $0x4a0] sm:$0xff]
    %v477 = vld [vmem:[#allocation5 + $0x4a8] sm:$0xff]
    %v478 = vld [vmem:[#allocation5 + $0x4b0] sm:$0xff]
    %v479 = vld [vmem:[#allocation5 + $0x4b8] sm:$0xff]
    %v480 = vld [vmem:[#allocation5 + $0x520] sm:$0xff]
    %v481 = vld [vmem:[#allocation5 + $0x528] sm:$0xff]
    %v482 = vld [vmem:[#allocation5 + $0x530] sm:$0xff]
    %v483 = vld [vmem:[#allocation5 + $0x538] sm:$0xff]
    %v484 = vld [vmem:[#allocation5 + $0x5a0] sm:$0xff]
    %v485 = vld [vmem:[#allocation5 + $0x5a8] sm:$0xff]
    %v486 = vld [vmem:[#allocation5 + $0x5b0] sm:$0xff]
    %v487 = vld [vmem:[#allocation5 + $0x5b8] sm:$0xff]
    %v488 = vld [vmem:[#allocation5 + $0x620] sm:$0xff]
    %v489 = vld [vmem:[#allocation5 + $0x628] sm:$0xff]
    %v490 = vld [vmem:[#allocation5 + $0x630] sm:$0xff]
    %v491 = vld [vmem:[#allocation5 + $0x638] sm:$0xff]
    %v492 = vld [vmem:[#allocation5 + $0x6a0] sm:$0xff]
    %v493 = vld [vmem:[#allocation5 + $0x6a8] sm:$0xff]
    %v494 = vld [vmem:[#allocation5 + $0x6b0] sm:$0xff]
    %v495 = vld [vmem:[#allocation5 + $0x6b8] sm:$0xff]
    %v496 = vld [vmem:[#allocation5 + $0x720] sm:$0xff]
    %v497 = vld [vmem:[#allocation5 + $0x728] sm:$0xff]
    %v498 = vld [vmem:[#allocation5 + $0x730] sm:$0xff]
    %v499 = vld [vmem:[#allocation5 + $0x738] sm:$0xff]
    %v500 = vld [vmem:[#allocation5 + $0x7a0] sm:$0xff]
    %v501 = vld [vmem:[#allocation5 + $0x7a8] sm:$0xff]
    %v502 = vld [vmem:[#allocation5 + $0x7b0] sm:$0xff]
    %v503 = vld [vmem:[#allocation5 + $0x7b8] sm:$0xff]
    %v504 = vld [vmem:[#allocation7 + $0x4] sm:$0xf]
    %v506 = vlaneseq
    %v507 = vshrl.u32 %v506, 7
    %v508 = vsub.s32 0, %v507
    %v509 = vrot.slane %v504, %v508
    %v510 = vlaneseq
    %v511 = vshrl.u32 %v510, 7
    %v512 = vsub.s32 1, %v511
    %v513 = vrot.slane %v504, %v512
    %v514 = vlaneseq
    %v515 = vshrl.u32 %v514, 7
    %v516 = vsub.s32 2, %v515
    %v517 = vrot.slane %v504, %v516
    %v518 = vlaneseq
    %v519 = vshrl.u32 %v518, 7
    %v520 = vsub.s32 3, %v519
    %v521 = vrot.slane %v504, %v520
    %526 = vmatprep.subr.mxu0 %v441
    %527 = vmatpush1.msra.mxu0 %v440
    %528 = vmatprep.subr.mxu0 %v445
    %529 = vmatpush1.msra.mxu0 %v444
    %530 = vmatprep.subr.mxu0 %v449
    %531 = vmatpush1.msra.mxu0 %v448
    %532 = vmatprep.subr.mxu0 %v453
    %533 = vmatpush1.msra.mxu0 %v452
    %534 = vmatprep.subr.mxu0 %v457
    %535 = vmatpush1.msra.mxu0 %v456
    %536 = vmatprep.subr.mxu0 %v461
    %537 = vmatpush1.msra.mxu0 %v460
    %538 = vmatprep.subr.mxu0 %v465
    %539 = vmatpush1.msra.mxu0 %v464
    %540 = vmatprep.subr.mxu0 %v469
    %541 = vmatpush1.msra.mxu0 %v468
    %542 = vmatprep.subr.mxu0 %v473
    %543 = vmatpush1.msra.mxu0 %v472
    %544 = vmatprep.subr.mxu0 %v477
    %545 = vmatpush1.msra.mxu0 %v476
    %546 = vmatprep.subr.mxu0 %v481
    %547 = vmatpush1.msra.mxu0 %v480
    %548 = vmatprep.subr.mxu0 %v485
    %549 = vmatpush1.msra.mxu0 %v484
    %550 = vmatprep.subr.mxu0 %v489
    %551 = vmatpush1.msra.mxu0 %v488
    %552 = vmatprep.subr.mxu0 %v493
    %553 = vmatpush1.msra.mxu0 %v492
    %554 = vmatprep.subr.mxu0 %v497
    %555 = vmatpush1.msra.mxu0 %v496
    %556 = vmatprep.subr.mxu0 %v501
    %557 = vmatpush1.msra.mxu0 %v500
    %558 = vmatprep.subr.mxu0 0.0
    %559 = vmatpush1.msra.mxu0 0.0
    %560 = vmatprep.subr.mxu0 0.0
    %561 = vmatpush1.msra.mxu0 0.0
    %562 = vmatprep.subr.mxu0 0.0
    %563 = vmatpush1.msra.mxu0 0.0
    %564 = vmatprep.subr.mxu0 0.0
    %565 = vmatpush1.msra.mxu0 0.0
    %566 = vmatprep.subr.mxu0 0.0
    %567 = vmatpush1.msra.mxu0 0.0
    %568 = vmatprep.subr.mxu0 0.0
    %569 = vmatpush1.msra.mxu0 0.0
    %570 = vmatprep.subr.mxu0 0.0
    %571 = vmatpush1.msra.mxu0 0.0
    %572 = vmatprep.subr.mxu0 0.0
    %573 = vmatpush1.msra.mxu0 0.0
    %574 = vmatprep.subr.mxu0 0.0
    %575 = vmatpush1.msra.mxu0 0.0
    %576 = vmatprep.subr.mxu0 0.0
    %577 = vmatpush1.msra.mxu0 0.0
    %578 = vmatprep.subr.mxu0 0.0
    %579 = vmatpush1.msra.mxu0 0.0
    %580 = vmatprep.subr.mxu0 0.0
    %581 = vmatpush1.msra.mxu0 0.0
    %582 = vmatprep.subr.mxu0 0.0
    %583 = vmatpush1.msra.mxu0 0.0
    %584 = vmatprep.subr.mxu0 0.0
    %585 = vmatpush1.msra.mxu0 0.0
    %586 = vmatprep.subr.mxu0 0.0
    %587 = vmatpush1.msra.mxu0 0.0
    %588 = vmatprep.subr.mxu0 0.0
    %589 = vmatpush1.msra.mxu0 0.0
    %590 = vmatprep.mubr.f32.mxu0 0.0
    %591 = vmatmul.mubr.f32.gmra.mrb[0].mxu0 %v207
    %v592 = vpop.f32.mrb[0].mxu0
    %v593 = vadd.f32 %v509, %v592
    %v594 = vpop.f32.mrb[0].mxu0
    %v595 = vadd.f32 %v513, %v594
    %596 = vdwg.mxu0
    %597 = vmatprep.subr.mxu0 %v443
    %598 = vmatpush1.msra.mxu0 %v442
    %599 = vmatprep.subr.mxu0 %v447
    %600 = vmatpush1.msra.mxu0 %v446
    %601 = vmatprep.subr.mxu0 %v451
    %602 = vmatpush1.msra.mxu0 %v450
    %603 = vmatprep.subr.mxu0 %v455
    %604 = vmatpush1.msra.mxu0 %v454
    %605 = vmatprep.subr.mxu0 %v459
    %606 = vmatpush1.msra.mxu0 %v458
    %607 = vmatprep.subr.mxu0 %v463
    %608 = vmatpush1.msra.mxu0 %v462
    %609 = vmatprep.subr.mxu0 %v467
    %610 = vmatpush1.msra.mxu0 %v466
    %611 = vmatprep.subr.mxu0 %v471
    %612 = vmatpush1.msra.mxu0 %v470
    %613 = vmatprep.subr.mxu0 %v475
    %614 = vmatpush1.msra.mxu0 %v474
    %615 = vmatprep.subr.mxu0 %v479
    %616 = vmatpush1.msra.mxu0 %v478
    %617 = vmatprep.subr.mxu0 %v483
    %618 = vmatpush1.msra.mxu0 %v482
    %619 = vmatprep.subr.mxu0 %v487
    %620 = vmatpush1.msra.mxu0 %v486
    %621 = vmatprep.subr.mxu0 %v491
    %622 = vmatpush1.msra.mxu0 %v490
    %623 = vmatprep.subr.mxu0 %v495
    %624 = vmatpush1.msra.mxu0 %v494
    %625 = vmatprep.subr.mxu0 %v499
    %626 = vmatpush1.msra.mxu0 %v498
    %627 = vmatprep.subr.mxu0 %v503
    %628 = vmatpush1.msra.mxu0 %v502
    %629 = vmatprep.subr.mxu0 0.0
    %630 = vmatpush1.msra.mxu0 0.0
    %631 = vmatprep.subr.mxu0 0.0
    %632 = vmatpush1.msra.mxu0 0.0
    %633 = vmatprep.subr.mxu0 0.0
    %634 = vmatpush1.msra.mxu0 0.0
    %635 = vmatprep.subr.mxu0 0.0
    %636 = vmatpush1.msra.mxu0 0.0
    %637 = vmatprep.subr.mxu0 0.0
    %638 = vmatpush1.msra.mxu0 0.0
    %639 = vmatprep.subr.mxu0 0.0
    %640 = vmatpush1.msra.mxu0 0.0
    %641 = vmatprep.subr.mxu0 0.0
    %642 = vmatpush1.msra.mxu0 0.0
    %643 = vmatprep.subr.mxu0 0.0
    %644 = vmatpush1.msra.mxu0 0.0
    %645 = vmatprep.subr.mxu0 0.0
    %646 = vmatpush1.msra.mxu0 0.0
    %647 = vmatprep.subr.mxu0 0.0
    %648 = vmatpush1.msra.mxu0 0.0
    %649 = vmatprep.subr.mxu0 0.0
    %650 = vmatpush1.msra.mxu0 0.0
    %651 = vmatprep.subr.mxu0 0.0
    %652 = vmatpush1.msra.mxu0 0.0
    %653 = vmatprep.subr.mxu0 0.0
    %654 = vmatpush1.msra.mxu0 0.0
    %655 = vmatprep.subr.mxu0 0.0
    %656 = vmatpush1.msra.mxu0 0.0
    %657 = vmatprep.subr.mxu0 0.0
    %658 = vmatpush1.msra.mxu0 0.0
    %659 = vmatprep.subr.mxu0 0.0
    %660 = vmatpush1.msra.mxu0 0.0
    %661 = vmatprep.mubr.f32.mxu0 0.0
    %662 = vmatmul.mubr.f32.gmra.mrb[0].mxu0 %v207
    %v663 = vpop.f32.mrb[0].mxu0
    %v664 = vadd.f32 %v517, %v663
    %v665 = vpop.f32.mrb[0].mxu0
    %v666 = vadd.f32 %v521, %v665
    %667 = vdwg.mxu0
    %v668 = vmax.f32 %v593, 0.0
    %v669 = vmax.f32 %v595, 0.0
    %v670 = vmax.f32 %v664, 0.0
    %v671 = vmax.f32 %v666, 0.0
    %v672 = vmax.f32 %v436, %v668
    %v673 = vmax.f32 %v437, %v669
    %v674 = vmax.f32 %v438, %v670
    %v675 = vmax.f32 %v439, %v671
    %v676 = vld [vmem:[#allocation5 + $0x40] sm:$0xff]
    %v677 = vld [vmem:[#allocation5 + $0x48] sm:$0xff]
    %v678 = vld [vmem:[#allocation5 + $0x50] sm:$0xff]
    %v679 = vld [vmem:[#allocation5 + $0x58] sm:$0xff]
    %v680 = vld [vmem:[#allocation5 + $0xc0] sm:$0xff]
    %v681 = vld [vmem:[#allocation5 + $0xc8] sm:$0xff]
    %v682 = vld [vmem:[#allocation5 + $0xd0] sm:$0xff]
    %v683 = vld [vmem:[#allocation5 + $0xd8] sm:$0xff]
    %v684 = vld [vmem:[#allocation5 + $0x140] sm:$0xff]
    %v685 = vld [vmem:[#allocation5 + $0x148] sm:$0xff]
    %v686 = vld [vmem:[#allocation5 + $0x150] sm:$0xff]
    %v687 = vld [vmem:[#allocation5 + $0x158] sm:$0xff]
    %v688 = vld [vmem:[#allocation5 + $0x1c0] sm:$0xff]
    %v689 = vld [vmem:[#allocation5 + $0x1c8] sm:$0xff]
    %v690 = vld [vmem:[#allocation5 + $0x1d0] sm:$0xff]
    %v691 = vld [vmem:[#allocation5 + $0x1d8] sm:$0xff]
    %v692 = vld [vmem:[#allocation5 + $0x240] sm:$0xff]
    %v693 = vld [vmem:[#allocation5 + $0x248] sm:$0xff]
    %v694 = vld [vmem:[#allocation5 + $0x250] sm:$0xff]
    %v695 = vld [vmem:[#allocation5 + $0x258] sm:$0xff]
    %v696 = vld [vmem:[#allocation5 + $0x2c0] sm:$0xff]
    %v697 = vld [vmem:[#allocation5 + $0x2c8] sm:$0xff]
    %v698 = vld [vmem:[#allocation5 + $0x2d0] sm:$0xff]
    %v699 = vld [vmem:[#allocation5 + $0x2d8] sm:$0xff]
    %v700 = vld [vmem:[#allocation5 + $0x340] sm:$0xff]
    %v701 = vld [vmem:[#allocation5 + $0x348] sm:$0xff]
    %v702 = vld [vmem:[#allocation5 + $0x350] sm:$0xff]
    %v703 = vld [vmem:[#allocation5 + $0x358] sm:$0xff]
    %v704 = vld [vmem:[#allocation5 + $0x3c0] sm:$0xff]
    %v705 = vld [vmem:[#allocation5 + $0x3c8] sm:$0xff]
    %v706 = vld [vmem:[#allocation5 + $0x3d0] sm:$0xff]
    %v707 = vld [vmem:[#allocation5 + $0x3d8] sm:$0xff]
    %v708 = vld [vmem:[#allocation5 + $0x440] sm:$0xff]
    %v709 = vld [vmem:[#allocation5 + $0x448] sm:$0xff]
    %v710 = vld [vmem:[#allocation5 + $0x450] sm:$0xff]
    %v711 = vld [vmem:[#allocation5 + $0x458] sm:$0xff]
    %v712 = vld [vmem:[#allocation5 + $0x4c0] sm:$0xff]
    %v713 = vld [vmem:[#allocation5 + $0x4c8] sm:$0xff]
    %v714 = vld [vmem:[#allocation5 + $0x4d0] sm:$0xff]
    %v715 = vld [vmem:[#allocation5 + $0x4d8] sm:$0xff]
    %v716 = vld [vmem:[#allocation5 + $0x540] sm:$0xff]
    %v717 = vld [vmem:[#allocation5 + $0x548] sm:$0xff]
    %v718 = vld [vmem:[#allocation5 + $0x550] sm:$0xff]
    %v719 = vld [vmem:[#allocation5 + $0x558] sm:$0xff]
    %v720 = vld [vmem:[#allocation5 + $0x5c0] sm:$0xff]
    %v721 = vld [vmem:[#allocation5 + $0x5c8] sm:$0xff]
    %v722 = vld [vmem:[#allocation5 + $0x5d0] sm:$0xff]
    %v723 = vld [vmem:[#allocation5 + $0x5d8] sm:$0xff]
    %v724 = vld [vmem:[#allocation5 + $0x640] sm:$0xff]
    %v725 = vld [vmem:[#allocation5 + $0x648] sm:$0xff]
    %v726 = vld [vmem:[#allocation5 + $0x650] sm:$0xff]
    %v727 = vld [vmem:[#allocation5 + $0x658] sm:$0xff]
    %v728 = vld [vmem:[#allocation5 + $0x6c0] sm:$0xff]
    %v729 = vld [vmem:[#allocation5 + $0x6c8] sm:$0xff]
    %v730 = vld [vmem:[#allocation5 + $0x6d0] sm:$0xff]
    %v731 = vld [vmem:[#allocation5 + $0x6d8] sm:$0xff]
    %v732 = vld [vmem:[#allocation5 + $0x740] sm:$0xff]
    %v733 = vld [vmem:[#allocation5 + $0x748] sm:$0xff]
    %v734 = vld [vmem:[#allocation5 + $0x750] sm:$0xff]
    %v735 = vld [vmem:[#allocation5 + $0x758] sm:$0xff]
    %v736 = vld [vmem:[#allocation5 + $0x7c0] sm:$0xff]
    %v737 = vld [vmem:[#allocation5 + $0x7c8] sm:$0xff]
    %v738 = vld [vmem:[#allocation5 + $0x7d0] sm:$0xff]
    %v739 = vld [vmem:[#allocation5 + $0x7d8] sm:$0xff]
    %v740 = vld [vmem:[#allocation7 + $0x8] sm:$0xf]
    %v742 = vlaneseq
    %v743 = vshrl.u32 %v742, 7
    %v744 = vsub.s32 0, %v743
    %v745 = vrot.slane %v740, %v744
    %v746 = vlaneseq
    %v747 = vshrl.u32 %v746, 7
    %v748 = vsub.s32 1, %v747
    %v749 = vrot.slane %v740, %v748
    %v750 = vlaneseq
    %v751 = vshrl.u32 %v750, 7
    %v752 = vsub.s32 2, %v751
    %v753 = vrot.slane %v740, %v752
    %v754 = vlaneseq
    %v755 = vshrl.u32 %v754, 7
    %v756 = vsub.s32 3, %v755
    %v757 = vrot.slane %v740, %v756
    %762 = vmatprep.subr.mxu0 %v677
    %763 = vmatpush1.msra.mxu0 %v676
    %764 = vmatprep.subr.mxu0 %v681
    %765 = vmatpush1.msra.mxu0 %v680
    %766 = vmatprep.subr.mxu0 %v685
    %767 = vmatpush1.msra.mxu0 %v684
    %768 = vmatprep.subr.mxu0 %v689
    %769 = vmatpush1.msra.mxu0 %v688
    %770 = vmatprep.subr.mxu0 %v693
    %771 = vmatpush1.msra.mxu0 %v692
    %772 = vmatprep.subr.mxu0 %v697
    %773 = vmatpush1.msra.mxu0 %v696
    %774 = vmatprep.subr.mxu0 %v701
    %775 = vmatpush1.msra.mxu0 %v700
    %776 = vmatprep.subr.mxu0 %v705
    %777 = vmatpush1.msra.mxu0 %v704
    %778 = vmatprep.subr.mxu0 %v709
    %779 = vmatpush1.msra.mxu0 %v708
    %780 = vmatprep.subr.mxu0 %v713
    %781 = vmatpush1.msra.mxu0 %v712
    %782 = vmatprep.subr.mxu0 %v717
    %783 = vmatpush1.msra.mxu0 %v716
    %784 = vmatprep.subr.mxu0 %v721
    %785 = vmatpush1.msra.mxu0 %v720
    %786 = vmatprep.subr.mxu0 %v725
    %787 = vmatpush1.msra.mxu0 %v724
    %788 = vmatprep.subr.mxu0 %v729
    %789 = vmatpush1.msra.mxu0 %v728
    %790 = vmatprep.subr.mxu0 %v733
    %791 = vmatpush1.msra.mxu0 %v732
    %792 = vmatprep.subr.mxu0 %v737
    %793 = vmatpush1.msra.mxu0 %v736
    %794 = vmatprep.subr.mxu0 0.0
    %795 = vmatpush1.msra.mxu0 0.0
    %796 = vmatprep.subr.mxu0 0.0
    %797 = vmatpush1.msra.mxu0 0.0
    %798 = vmatprep.subr.mxu0 0.0
    %799 = vmatpush1.msra.mxu0 0.0
    %800 = vmatprep.subr.mxu0 0.0
    %801 = vmatpush1.msra.mxu0 0.0
    %802 = vmatprep.subr.mxu0 0.0
    %803 = vmatpush1.msra.mxu0 0.0
    %804 = vmatprep.subr.mxu0 0.0
    %805 = vmatpush1.msra.mxu0 0.0
    %806 = vmatprep.subr.mxu0 0.0
    %807 = vmatpush1.msra.mxu0 0.0
    %808 = vmatprep.subr.mxu0 0.0
    %809 = vmatpush1.msra.mxu0 0.0
    %810 = vmatprep.subr.mxu0 0.0
    %811 = vmatpush1.msra.mxu0 0.0
    %812 = vmatprep.subr.mxu0 0.0
    %813 = vmatpush1.msra.mxu0 0.0
    %814 = vmatprep.subr.mxu0 0.0
    %815 = vmatpush1.msra.mxu0 0.0
    %816 = vmatprep.subr.mxu0 0.0
    %817 = vmatpush1.msra.mxu0 0.0
    %818 = vmatprep.subr.mxu0 0.0
    %819 = vmatpush1.msra.mxu0 0.0
    %820 = vmatprep.subr.mxu0 0.0
    %821 = vmatpush1.msra.mxu0 0.0
    %822 = vmatprep.subr.mxu0 0.0
    %823 = vmatpush1.msra.mxu0 0.0
    %824 = vmatprep.subr.mxu0 0.0
    %825 = vmatpush1.msra.mxu0 0.0
    %826 = vmatprep.mubr.f32.mxu0 0.0
    %827 = vmatmul.mubr.f32.gmra.mrb[0].mxu0 %v207
    %v828 = vpop.f32.mrb[0].mxu0
    %v829 = vadd.f32 %v745, %v828
    %v830 = vpop.f32.mrb[0].mxu0
    %v831 = vadd.f32 %v749, %v830
    %832 = vdwg.mxu0
    %833 = vmatprep.subr.mxu0 %v679
    %834 = vmatpush1.msra.mxu0 %v678
    %835 = vmatprep.subr.mxu0 %v683
    %836 = vmatpush1.msra.mxu0 %v682
    %837 = vmatprep.subr.mxu0 %v687
    %838 = vmatpush1.msra.mxu0 %v686
    %839 = vmatprep.subr.mxu0 %v691
    %840 = vmatpush1.msra.mxu0 %v690
    %841 = vmatprep.subr.mxu0 %v695
    %842 = vmatpush1.msra.mxu0 %v694
    %843 = vmatprep.subr.mxu0 %v699
    %844 = vmatpush1.msra.mxu0 %v698
    %845 = vmatprep.subr.mxu0 %v703
    %846 = vmatpush1.msra.mxu0 %v702
    %847 = vmatprep.subr.mxu0 %v707
    %848 = vmatpush1.msra.mxu0 %v706
    %849 = vmatprep.subr.mxu0 %v711
    %850 = vmatpush1.msra.mxu0 %v710
    %851 = vmatprep.subr.mxu0 %v715
    %852 = vmatpush1.msra.mxu0 %v714
    %853 = vmatprep.subr.mxu0 %v719
    %854 = vmatpush1.msra.mxu0 %v718
    %855 = vmatprep.subr.mxu0 %v723
    %856 = vmatpush1.msra.mxu0 %v722
    %857 = vmatprep.subr.mxu0 %v727
    %858 = vmatpush1.msra.mxu0 %v726
    %859 = vmatprep.subr.mxu0 %v731
    %860 = vmatpush1.msra.mxu0 %v730
    %861 = vmatprep.subr.mxu0 %v735
    %862 = vmatpush1.msra.mxu0 %v734
    %863 = vmatprep.subr.mxu0 %v739
    %864 = vmatpush1.msra.mxu0 %v738
    %865 = vmatprep.subr.mxu0 0.0
    %866 = vmatpush1.msra.mxu0 0.0
    %867 = vmatprep.subr.mxu0 0.0
    %868 = vmatpush1.msra.mxu0 0.0
    %869 = vmatprep.subr.mxu0 0.0
    %870 = vmatpush1.msra.mxu0 0.0
    %871 = vmatprep.subr.mxu0 0.0
    %872 = vmatpush1.msra.mxu0 0.0
    %873 = vmatprep.subr.mxu0 0.0
    %874 = vmatpush1.msra.mxu0 0.0
    %875 = vmatprep.subr.mxu0 0.0
    %876 = vmatpush1.msra.mxu0 0.0
    %877 = vmatprep.subr.mxu0 0.0
    %878 = vmatpush1.msra.mxu0 0.0
    %879 = vmatprep.subr.mxu0 0.0
    %880 = vmatpush1.msra.mxu0 0.0
    %881 = vmatprep.subr.mxu0 0.0
    %882 = vmatpush1.msra.mxu0 0.0
    %883 = vmatprep.subr.mxu0 0.0
    %884 = vmatpush1.msra.mxu0 0.0
    %885 = vmatprep.subr.mxu0 0.0
    %886 = vmatpush1.msra.mxu0 0.0
    %887 = vmatprep.subr.mxu0 0.0
    %888 = vmatpush1.msra.mxu0 0.0
    %889 = vmatprep.subr.mxu0 0.0
    %890 = vmatpush1.msra.mxu0 0.0
    %891 = vmatprep.subr.mxu0 0.0
    %892 = vmatpush1.msra.mxu0 0.0
    %893 = vmatprep.subr.mxu0 0.0
    %894 = vmatpush1.msra.mxu0 0.0
    %895 = vmatprep.subr.mxu0 0.0
    %896 = vmatpush1.msra.mxu0 0.0
    %897 = vmatprep.mubr.f32.mxu0 0.0
    %898 = vmatmul.mubr.f32.gmra.mrb[0].mxu0 %v207
    %v899 = vpop.f32.mrb[0].mxu0
    %v900 = vadd.f32 %v753, %v899
    %v901 = vpop.f32.mrb[0].mxu0
    %v902 = vadd.f32 %v757, %v901
    %903 = vdwg.mxu0
    %v904 = vmax.f32 %v829, 0.0
    %v905 = vmax.f32 %v831, 0.0
    %v906 = vmax.f32 %v900, 0.0
    %v907 = vmax.f32 %v902, 0.0
    %v908 = vmax.f32 %v672, %v904
    %v909 = vmax.f32 %v673, %v905
    %v910 = vmax.f32 %v674, %v906
    %v911 = vmax.f32 %v675, %v907
    %v912 = vld [vmem:[#allocation5 + $0x60] sm:$0xff]
    %v913 = vld [vmem:[#allocation5 + $0x68] sm:$0xff]
    %v914 = vld [vmem:[#allocation5 + $0x70] sm:$0xff]
    %v915 = vld [vmem:[#allocation5 + $0x78] sm:$0xff]
    %v916 = vld [vmem:[#allocation5 + $0xe0] sm:$0xff]
    %v917 = vld [vmem:[#allocation5 + $0xe8] sm:$0xff]
    %v918 = vld [vmem:[#allocation5 + $0xf0] sm:$0xff]
    %v919 = vld [vmem:[#allocation5 + $0xf8] sm:$0xff]
    %v920 = vld [vmem:[#allocation5 + $0x160] sm:$0xff]
    %v921 = vld [vmem:[#allocation5 + $0x168] sm:$0xff]
    %v922 = vld [vmem:[#allocation5 + $0x170] sm:$0xff]
    %v923 = vld [vmem:[#allocation5 + $0x178] sm:$0xff]
    %v924 = vld [vmem:[#allocation5 + $0x1e0] sm:$0xff]
    %v925 = vld [vmem:[#allocation5 + $0x1e8] sm:$0xff]
    %v926 = vld [vmem:[#allocation5 + $0x1f0] sm:$0xff]
    %v927 = vld [vmem:[#allocation5 + $0x1f8] sm:$0xff]
    %v928 = vld [vmem:[#allocation5 + $0x260] sm:$0xff]
    %v929 = vld [vmem:[#allocation5 + $0x268] sm:$0xff]
    %v930 = vld [vmem:[#allocation5 + $0x270] sm:$0xff]
    %v931 = vld [vmem:[#allocation5 + $0x278] sm:$0xff]
    %v932 = vld [vmem:[#allocation5 + $0x2e0] sm:$0xff]
    %v933 = vld [vmem:[#allocation5 + $0x2e8] sm:$0xff]
    %v934 = vld [vmem:[#allocation5 + $0x2f0] sm:$0xff]
    %v935 = vld [vmem:[#allocation5 + $0x2f8] sm:$0xff]
    %v936 = vld [vmem:[#allocation5 + $0x360] sm:$0xff]
    %v937 = vld [vmem:[#allocation5 + $0x368] sm:$0xff]
    %v938 = vld [vmem:[#allocation5 + $0x370] sm:$0xff]
    %v939 = vld [vmem:[#allocation5 + $0x378] sm:$0xff]
    %v940 = vld [vmem:[#allocation5 + $0x3e0] sm:$0xff]
    %v941 = vld [vmem:[#allocation5 + $0x3e8] sm:$0xff]
    %v942 = vld [vmem:[#allocation5 + $0x3f0] sm:$0xff]
    %v943 = vld [vmem:[#allocation5 + $0x3f8] sm:$0xff]
    %v944 = vld [vmem:[#allocation5 + $0x460] sm:$0xff]
    %v945 = vld [vmem:[#allocation5 + $0x468] sm:$0xff]
    %v946 = vld [vmem:[#allocation5 + $0x470] sm:$0xff]
    %v947 = vld [vmem:[#allocation5 + $0x478] sm:$0xff]
    %v948 = vld [vmem:[#allocation5 + $0x4e0] sm:$0xff]
    %v949 = vld [vmem:[#allocation5 + $0x4e8] sm:$0xff]
    %v950 = vld [vmem:[#allocation5 + $0x4f0] sm:$0xff]
    %v951 = vld [vmem:[#allocation5 + $0x4f8] sm:$0xff]
    %v952 = vld [vmem:[#allocation5 + $0x560] sm:$0xff]
    %v953 = vld [vmem:[#allocation5 + $0x568] sm:$0xff]
    %v954 = vld [vmem:[#allocation5 + $0x570] sm:$0xff]
    %v955 = vld [vmem:[#allocation5 + $0x578] sm:$0xff]
    %v956 = vld [vmem:[#allocation5 + $0x5e0] sm:$0xff]
    %v957 = vld [vmem:[#allocation5 + $0x5e8] sm:$0xff]
    %v958 = vld [vmem:[#allocation5 + $0x5f0] sm:$0xff]
    %v959 = vld [vmem:[#allocation5 + $0x5f8] sm:$0xff]
    %v960 = vld [vmem:[#allocation5 + $0x660] sm:$0xff]
    %v961 = vld [vmem:[#allocation5 + $0x668] sm:$0xff]
    %v962 = vld [vmem:[#allocation5 + $0x670] sm:$0xff]
    %v963 = vld [vmem:[#allocation5 + $0x678] sm:$0xff]
    %v964 = vld [vmem:[#allocation5 + $0x6e0] sm:$0xff]
    %v965 = vld [vmem:[#allocation5 + $0x6e8] sm:$0xff]
    %v966 = vld [vmem:[#allocation5 + $0x6f0] sm:$0xff]
    %v967 = vld [vmem:[#allocation5 + $0x6f8] sm:$0xff]
    %v968 = vld [vmem:[#allocation5 + $0x760] sm:$0xff]
    %v969 = vld [vmem:[#allocation5 + $0x768] sm:$0xff]
    %v970 = vld [vmem:[#allocation5 + $0x770] sm:$0xff]
    %v971 = vld [vmem:[#allocation5 + $0x778] sm:$0xff]
    %v972 = vld [vmem:[#allocation5 + $0x7e0] sm:$0xff]
    %v973 = vld [vmem:[#allocation5 + $0x7e8] sm:$0xff]
    %v974 = vld [vmem:[#allocation5 + $0x7f0] sm:$0xff]
    %v975 = vld [vmem:[#allocation5 + $0x7f8] sm:$0xff]
    %v976 = vld [vmem:[#allocation7 + $0xc] sm:$0xf]
    %v978 = vlaneseq
    %v979 = vshrl.u32 %v978, 7
    %v980 = vsub.s32 0, %v979
    %v981 = vrot.slane %v976, %v980
    %v982 = vlaneseq
    %v983 = vshrl.u32 %v982, 7
    %v984 = vsub.s32 1, %v983
    %v985 = vrot.slane %v976, %v984
    %v986 = vlaneseq
    %v987 = vshrl.u32 %v986, 7
    %v988 = vsub.s32 2, %v987
    %v989 = vrot.slane %v976, %v988
    %v990 = vlaneseq
    %v991 = vshrl.u32 %v990, 7
    %v992 = vsub.s32 3, %v991
    %v993 = vrot.slane %v976, %v992
    %998 = vmatprep.subr.mxu0 %v913
    %999 = vmatpush1.msra.mxu0 %v912
    %1000 = vmatprep.subr.mxu0 %v917
    %1001 = vmatpush1.msra.mxu0 %v916
    %1002 = vmatprep.subr.mxu0 %v921
    %1003 = vmatpush1.msra.mxu0 %v920
    %1004 = vmatprep.subr.mxu0 %v925
    %1005 = vmatpush1.msra.mxu0 %v924
    %1006 = vmatprep.subr.mxu0 %v929
    %1007 = vmatpush1.msra.mxu0 %v928
    %1008 = vmatprep.subr.mxu0 %v933
    %1009 = vmatpush1.msra.mxu0 %v932
    %1010 = vmatprep.subr.mxu0 %v937
    %1011 = vmatpush1.msra.mxu0 %v936
    %1012 = vmatprep.subr.mxu0 %v941
    %1013 = vmatpush1.msra.mxu0 %v940
    %1014 = vmatprep.subr.mxu0 %v945
    %1015 = vmatpush1.msra.mxu0 %v944
    %1016 = vmatprep.subr.mxu0 %v949
    %1017 = vmatpush1.msra.mxu0 %v948
    %1018 = vmatprep.subr.mxu0 %v953
    %1019 = vmatpush1.msra.mxu0 %v952
    %1020 = vmatprep.subr.mxu0 %v957
    %1021 = vmatpush1.msra.mxu0 %v956
    %1022 = vmatprep.subr.mxu0 %v961
    %1023 = vmatpush1.msra.mxu0 %v960
    %1024 = vmatprep.subr.mxu0 %v965
    %1025 = vmatpush1.msra.mxu0 %v964
    %1026 = vmatprep.subr.mxu0 %v969
    %1027 = vmatpush1.msra.mxu0 %v968
    %1028 = vmatprep.subr.mxu0 %v973
    %1029 = vmatpush1.msra.mxu0 %v972
    %1030 = vmatprep.subr.mxu0 0.0
    %1031 = vmatpush1.msra.mxu0 0.0
    %1032 = vmatprep.subr.mxu0 0.0
    %1033 = vmatpush1.msra.mxu0 0.0
    %1034 = vmatprep.subr.mxu0 0.0
    %1035 = vmatpush1.msra.mxu0 0.0
    %1036 = vmatprep.subr.mxu0 0.0
    %1037 = vmatpush1.msra.mxu0 0.0
    %1038 = vmatprep.subr.mxu0 0.0
    %1039 = vmatpush1.msra.mxu0 0.0
    %1040 = vmatprep.subr.mxu0 0.0
    %1041 = vmatpush1.msra.mxu0 0.0
    %1042 = vmatprep.subr.mxu0 0.0
    %1043 = vmatpush1.msra.mxu0 0.0
    %1044 = vmatprep.subr.mxu0 0.0
    %1045 = vmatpush1.msra.mxu0 0.0
    %1046 = vmatprep.subr.mxu0 0.0
    %1047 = vmatpush1.msra.mxu0 0.0
    %1048 = vmatprep.subr.mxu0 0.0
    %1049 = vmatpush1.msra.mxu0 0.0
    %1050 = vmatprep.subr.mxu0 0.0
    %1051 = vmatpush1.msra.mxu0 0.0
    %1052 = vmatprep.subr.mxu0 0.0
    %1053 = vmatpush1.msra.mxu0 0.0
    %1054 = vmatprep.subr.mxu0 0.0
    %1055 = vmatpush1.msra.mxu0 0.0
    %1056 = vmatprep.subr.mxu0 0.0
    %1057 = vmatpush1.msra.mxu0 0.0
    %1058 = vmatprep.subr.mxu0 0.0
    %1059 = vmatpush1.msra.mxu0 0.0
    %1060 = vmatprep.subr.mxu0 0.0
    %1061 = vmatpush1.msra.mxu0 0.0
    %1062 = vmatprep.mubr.f32.mxu0 0.0
    %1063 = vmatmul.mubr.f32.gmra.mrb[0].mxu0 %v207
    %v1064 = vpop.f32.mrb[0].mxu0
    %v1065 = vadd.f32 %v981, %v1064
    %v1066 = vpop.f32.mrb[0].mxu0
    %v1067 = vadd.f32 %v985, %v1066
    %1068 = vdwg.mxu0
    %1069 = vmatprep.subr.mxu0 %v915
    %1070 = vmatpush1.msra.mxu0 %v914
    %1071 = vmatprep.subr.mxu0 %v919
    %1072 = vmatpush1.msra.mxu0 %v918
    %1073 = vmatprep.subr.mxu0 %v923
    %1074 = vmatpush1.msra.mxu0 %v922
    %1075 = vmatprep.subr.mxu0 %v927
    %1076 = vmatpush1.msra.mxu0 %v926
    %1077 = vmatprep.subr.mxu0 %v931
    %1078 = vmatpush1.msra.mxu0 %v930
    %1079 = vmatprep.subr.mxu0 %v935
    %1080 = vmatpush1.msra.mxu0 %v934
    %1081 = vmatprep.subr.mxu0 %v939
    %1082 = vmatpush1.msra.mxu0 %v938
    %1083 = vmatprep.subr.mxu0 %v943
    %1084 = vmatpush1.msra.mxu0 %v942
    %1085 = vmatprep.subr.mxu0 %v947
    %1086 = vmatpush1.msra.mxu0 %v946
    %1087 = vmatprep.subr.mxu0 %v951
    %1088 = vmatpush1.msra.mxu0 %v950
    %1089 = vmatprep.subr.mxu0 %v955
    %1090 = vmatpush1.msra.mxu0 %v954
    %1091 = vmatprep.subr.mxu0 %v959
    %1092 = vmatpush1.msra.mxu0 %v958
    %1093 = vmatprep.subr.mxu0 %v963
    %1094 = vmatpush1.msra.mxu0 %v962
    %1095 = vmatprep.subr.mxu0 %v967
    %1096 = vmatpush1.msra.mxu0 %v966
    %1097 = vmatprep.subr.mxu0 %v971
    %1098 = vmatpush1.msra.mxu0 %v970
    %1099 = vmatprep.subr.mxu0 %v975
    %1100 = vmatpush1.msra.mxu0 %v974
    %1101 = vmatprep.subr.mxu0 0.0
    %1102 = vmatpush1.msra.mxu0 0.0
    %1103 = vmatprep.subr.mxu0 0.0
    %1104 = vmatpush1.msra.mxu0 0.0
    %1105 = vmatprep.subr.mxu0 0.0
    %1106 = vmatpush1.msra.mxu0 0.0
    %1107 = vmatprep.subr.mxu0 0.0
    %1108 = vmatpush1.msra.mxu0 0.0
    %1109 = vmatprep.subr.mxu0 0.0
    %1110 = vmatpush1.msra.mxu0 0.0
    %1111 = vmatprep.subr.mxu0 0.0
    %1112 = vmatpush1.msra.mxu0 0.0
    %1113 = vmatprep.subr.mxu0 0.0
    %1114 = vmatpush1.msra.mxu0 0.0
    %1115 = vmatprep.subr.mxu0 0.0
    %1116 = vmatpush1.msra.mxu0 0.0
    %1117 = vmatprep.subr.mxu0 0.0
    %1118 = vmatpush1.msra.mxu0 0.0
    %1119 = vmatprep.subr.mxu0 0.0
    %1120 = vmatpush1.msra.mxu0 0.0
    %1121 = vmatprep.subr.mxu0 0.0
    %1122 = vmatpush1.msra.mxu0 0.0
    %1123 = vmatprep.subr.mxu0 0.0
    %1124 = vmatpush1.msra.mxu0 0.0
    %1125 = vmatprep.subr.mxu0 0.0
    %1126 = vmatpush1.msra.mxu0 0.0
    %1127 = vmatprep.subr.mxu0 0.0
    %1128 = vmatpush1.msra.mxu0 0.0
    %1129 = vmatprep.subr.mxu0 0.0
    %1130 = vmatpush1.msra.mxu0 0.0
    %1131 = vmatprep.subr.mxu0 0.0
    %1132 = vmatpush1.msra.mxu0 0.0
    %1133 = vmatprep.mubr.f32.mxu0 0.0
    %1134 = vmatmul.mubr.f32.gmra.mrb[0].mxu0 %v207
    %v1135 = vpop.f32.mrb[0].mxu0
    %v1136 = vadd.f32 %v989, %v1135
    %v1137 = vpop.f32.mrb[0].mxu0
    %v1138 = vadd.f32 %v993, %v1137
    %1139 = vdwg.mxu0
    %v1140 = vmax.f32 %v1065, 0.0
    %v1141 = vmax.f32 %v1067, 0.0
    %v1142 = vmax.f32 %v1136, 0.0
    %v1143 = vmax.f32 %v1138, 0.0
    %v1144 = vmax.f32 %v908, %v1140
    %v1145 = vmax.f32 %v909, %v1141
    %v1146 = vmax.f32 %v910, %v1142
    %v1147 = vmax.f32 %v911, %v1143
    %v1148 = vld [vmem:[#allocation8] sm:$0xff]
    %v1149 = vld [vmem:[#allocation8 + $0x8] sm:$0xff]
    %v1150 = vld [vmem:[#allocation8 + $0x10] sm:$0xff]
    %v1151 = vld [vmem:[#allocation8 + $0x18] sm:$0xff]
    %v1152 = vld [vmem:[#allocation8 + $0x20] sm:$0xff]
    %v1153 = vld [vmem:[#allocation8 + $0x28] sm:$0xff]
    %v1154 = vld [vmem:[#allocation8 + $0x30] sm:$0xff]
    %v1155 = vld [vmem:[#allocation8 + $0x38] sm:$0xff]
    %v1156 = vld [vmem:[#allocation8 + $0x40] sm:$0xff]
    %v1157 = vld [vmem:[#allocation8 + $0x48] sm:$0xff]
    %v1158 = vld [vmem:[#allocation8 + $0x50] sm:$0xff]
    %v1159 = vld [vmem:[#allocation8 + $0x58] sm:$0xff]
    %v1160 = vld [vmem:[#allocation8 + $0x60] sm:$0xff]
    %v1161 = vld [vmem:[#allocation8 + $0x68] sm:$0xff]
    %v1162 = vld [vmem:[#allocation8 + $0x70] sm:$0xff]
    %v1163 = vld [vmem:[#allocation8 + $0x78] sm:$0xff]
    %v1164 = vld [vmem:[#allocation8 + $0x80] sm:$0xff]
    %v1165 = vld [vmem:[#allocation8 + $0x88] sm:$0xff]
    %v1166 = vld [vmem:[#allocation8 + $0x90] sm:$0xff]
    %v1167 = vld [vmem:[#allocation8 + $0x98] sm:$0xff]
    %v1168 = vld [vmem:[#allocation8 + $0xa0] sm:$0xff]
    %v1169 = vld [vmem:[#allocation8 + $0xa8] sm:$0xff]
    %v1170 = vld [vmem:[#allocation8 + $0xb0] sm:$0xff]
    %v1171 = vld [vmem:[#allocation8 + $0xb8] sm:$0xff]
    %v1172 = vld [vmem:[#allocation8 + $0xc0] sm:$0xff]
    %v1173 = vld [vmem:[#allocation8 + $0xc8] sm:$0xff]
    %v1174 = vld [vmem:[#allocation8 + $0xd0] sm:$0xff]
    %v1175 = vld [vmem:[#allocation8 + $0xd8] sm:$0xff]
    %v1176 = vld [vmem:[#allocation8 + $0xe0] sm:$0xff]
    %v1177 = vld [vmem:[#allocation8 + $0xe8] sm:$0xff]
    %v1178 = vld [vmem:[#allocation8 + $0xf0] sm:$0xff]
    %v1179 = vld [vmem:[#allocation8 + $0xf8] sm:$0xff]
    %v1180 = vld [vmem:[#allocation8 + $0x100] sm:$0xff]
    %v1181 = vld [vmem:[#allocation8 + $0x108] sm:$0xff]
    %v1182 = vld [vmem:[#allocation8 + $0x110] sm:$0xff]
    %v1183 = vld [vmem:[#allocation8 + $0x118] sm:$0xff]
    %v1184 = vld [vmem:[#allocation8 + $0x120] sm:$0xff]
    %v1185 = vld [vmem:[#allocation8 + $0x128] sm:$0xff]
    %v1186 = vld [vmem:[#allocation8 + $0x130] sm:$0xff]
    %v1187 = vld [vmem:[#allocation8 + $0x138] sm:$0xff]
    %v1188 = vld [vmem:[#allocation8 + $0x140] sm:$0xff]
    %v1189 = vld [vmem:[#allocation8 + $0x148] sm:$0xff]
    %v1190 = vld [vmem:[#allocation8 + $0x150] sm:$0xff]
    %v1191 = vld [vmem:[#allocation8 + $0x158] sm:$0xff]
    %v1192 = vld [vmem:[#allocation8 + $0x160] sm:$0xff]
    %v1193 = vld [vmem:[#allocation8 + $0x168] sm:$0xff]
    %v1194 = vld [vmem:[#allocation8 + $0x170] sm:$0xff]
    %v1195 = vld [vmem:[#allocation8 + $0x178] sm:$0xff]
    %v1196 = vld [vmem:[#allocation8 + $0x180] sm:$0xff]
    %v1197 = vld [vmem:[#allocation8 + $0x188] sm:$0xff]
    %v1198 = vld [vmem:[#allocation8 + $0x190] sm:$0xff]
    %v1199 = vld [vmem:[#allocation8 + $0x198] sm:$0xff]
    %v1200 = vld [vmem:[#allocation8 + $0x1a0] sm:$0xff]
    %v1201 = vld [vmem:[#allocation8 + $0x1a8] sm:$0xff]
    %v1202 = vld [vmem:[#allocation8 + $0x1b0] sm:$0xff]
    %v1203 = vld [vmem:[#allocation8 + $0x1b8] sm:$0xff]
    %v1204 = vld [vmem:[#allocation8 + $0x1c0] sm:$0xff]
    %v1205 = vld [vmem:[#allocation8 + $0x1c8] sm:$0xff]
    %v1206 = vld [vmem:[#allocation8 + $0x1d0] sm:$0xff]
    %v1207 = vld [vmem:[#allocation8 + $0x1d8] sm:$0xff]
    %v1208 = vld [vmem:[#allocation8 + $0x1e0] sm:$0xff]
    %v1209 = vld [vmem:[#allocation8 + $0x1e8] sm:$0xff]
    %v1210 = vld [vmem:[#allocation8 + $0x1f0] sm:$0xff]
    %v1211 = vld [vmem:[#allocation8 + $0x1f8] sm:$0xff]
    %v1212 = vld [vmem:[#allocation8 + $0x200] sm:$0xff]
    %v1213 = vld [vmem:[#allocation8 + $0x208] sm:$0xff]
    %v1214 = vld [vmem:[#allocation8 + $0x210] sm:$0xff]
    %v1215 = vld [vmem:[#allocation8 + $0x218] sm:$0xff]
    %v1216 = vld [vmem:[#allocation8 + $0x220] sm:$0xff]
    %v1217 = vld [vmem:[#allocation8 + $0x228] sm:$0xff]
    %v1218 = vld [vmem:[#allocation8 + $0x230] sm:$0xff]
    %v1219 = vld [vmem:[#allocation8 + $0x238] sm:$0xff]
    %v1220 = vld [vmem:[#allocation8 + $0x240] sm:$0xff]
    %v1221 = vld [vmem:[#allocation8 + $0x248] sm:$0xff]
    %v1222 = vld [vmem:[#allocation8 + $0x250] sm:$0xff]
    %v1223 = vld [vmem:[#allocation8 + $0x258] sm:$0xff]
    %v1224 = vld [vmem:[#allocation8 + $0x260] sm:$0xff]
    %v1225 = vld [vmem:[#allocation8 + $0x268] sm:$0xff]
    %v1226 = vld [vmem:[#allocation8 + $0x270] sm:$0xff]
    %v1227 = vld [vmem:[#allocation8 + $0x278] sm:$0xff]
    %v1228 = vld [vmem:[#allocation8 + $0x280] sm:$0xff]
    %v1229 = vld [vmem:[#allocation8 + $0x288] sm:$0xff]
    %v1230 = vld [vmem:[#allocation8 + $0x290] sm:$0xff]
    %v1231 = vld [vmem:[#allocation8 + $0x298] sm:$0xff]
    %v1232 = vld [vmem:[#allocation8 + $0x2a0] sm:$0xff]
    %v1233 = vld [vmem:[#allocation8 + $0x2a8] sm:$0xff]
    %v1234 = vld [vmem:[#allocation8 + $0x2b0] sm:$0xff]
    %v1235 = vld [vmem:[#allocation8 + $0x2b8] sm:$0xff]
    %v1236 = vld [vmem:[#allocation8 + $0x2c0] sm:$0xff]
    %v1237 = vld [vmem:[#allocation8 + $0x2c8] sm:$0xff]
    %v1238 = vld [vmem:[#allocation8 + $0x2d0] sm:$0xff]
    %v1239 = vld [vmem:[#allocation8 + $0x2d8] sm:$0xff]
    %v1240 = vld [vmem:[#allocation8 + $0x2e0] sm:$0xff]
    %v1241 = vld [vmem:[#allocation8 + $0x2e8] sm:$0xff]
    %v1242 = vld [vmem:[#allocation8 + $0x2f0] sm:$0xff]
    %v1243 = vld [vmem:[#allocation8 + $0x2f8] sm:$0xff]
    %v1244 = vld [vmem:[#allocation8 + $0x300] sm:$0xff]
    %v1245 = vld [vmem:[#allocation8 + $0x308] sm:$0xff]
    %v1246 = vld [vmem:[#allocation8 + $0x310] sm:$0xff]
    %v1247 = vld [vmem:[#allocation8 + $0x318] sm:$0xff]
    %v1248 = vld [vmem:[#allocation8 + $0x320] sm:$0xff]
    %v1249 = vld [vmem:[#allocation8 + $0x328] sm:$0xff]
    %v1250 = vld [vmem:[#allocation8 + $0x330] sm:$0xff]
    %v1251 = vld [vmem:[#allocation8 + $0x338] sm:$0xff]
    %v1252 = vld [vmem:[#allocation8 + $0x340] sm:$0xff]
    %v1253 = vld [vmem:[#allocation8 + $0x348] sm:$0xff]
    %v1254 = vld [vmem:[#allocation8 + $0x350] sm:$0xff]
    %v1255 = vld [vmem:[#allocation8 + $0x358] sm:$0xff]
    %v1256 = vld [vmem:[#allocation8 + $0x360] sm:$0xff]
    %v1257 = vld [vmem:[#allocation8 + $0x368] sm:$0xff]
    %v1258 = vld [vmem:[#allocation8 + $0x370] sm:$0xff]
    %v1259 = vld [vmem:[#allocation8 + $0x378] sm:$0xff]
    %v1260 = vld [vmem:[#allocation8 + $0x380] sm:$0xff]
    %v1261 = vld [vmem:[#allocation8 + $0x388] sm:$0xff]
    %v1262 = vld [vmem:[#allocation8 + $0x390] sm:$0xff]
    %v1263 = vld [vmem:[#allocation8 + $0x398] sm:$0xff]
    %v1264 = vld [vmem:[#allocation8 + $0x3a0] sm:$0xff]
    %v1265 = vld [vmem:[#allocation8 + $0x3a8] sm:$0xff]
    %v1266 = vld [vmem:[#allocation8 + $0x3b0] sm:$0xff]
    %v1267 = vld [vmem:[#allocation8 + $0x3b8] sm:$0xff]
    %v1268 = vld [vmem:[#allocation8 + $0x3c0] sm:$0xff]
    %v1269 = vld [vmem:[#allocation8 + $0x3c8] sm:$0xff]
    %v1270 = vld [vmem:[#allocation8 + $0x3d0] sm:$0xff]
    %v1271 = vld [vmem:[#allocation8 + $0x3d8] sm:$0xff]
    %v1272 = vld [vmem:[#allocation8 + $0x3e0] sm:$0xff]
    %v1273 = vld [vmem:[#allocation8 + $0x3e8] sm:$0xff]
    %v1274 = vld [vmem:[#allocation8 + $0x3f0] sm:$0xff]
    %v1275 = vld [vmem:[#allocation8 + $0x3f8] sm:$0xff]
    %v1276 = vld [vmem:[#allocation8 + $0x400] sm:$0xff]
    %v1277 = vld [vmem:[#allocation8 + $0x408] sm:$0xff]
    %v1278 = vld [vmem:[#allocation8 + $0x410] sm:$0xff]
    %v1279 = vld [vmem:[#allocation8 + $0x418] sm:$0xff]
    %v1280 = vld [vmem:[#allocation8 + $0x420] sm:$0xff]
    %v1281 = vld [vmem:[#allocation8 + $0x428] sm:$0xff]
    %v1282 = vld [vmem:[#allocation8 + $0x430] sm:$0xff]
    %v1283 = vld [vmem:[#allocation8 + $0x438] sm:$0xff]
    %v1284 = vld [vmem:[#allocation8 + $0x440] sm:$0xff]
    %v1285 = vld [vmem:[#allocation8 + $0x448] sm:$0xff]
    %v1286 = vld [vmem:[#allocation8 + $0x450] sm:$0xff]
    %v1287 = vld [vmem:[#allocation8 + $0x458] sm:$0xff]
    %v1288 = vld [vmem:[#allocation8 + $0x460] sm:$0xff]
    %v1289 = vld [vmem:[#allocation8 + $0x468] sm:$0xff]
    %v1290 = vld [vmem:[#allocation8 + $0x470] sm:$0xff]
    %v1291 = vld [vmem:[#allocation8 + $0x478] sm:$0xff]
    %v1292 = vld [vmem:[#allocation8 + $0x480] sm:$0xff]
    %v1293 = vld [vmem:[#allocation8 + $0x488] sm:$0xff]
    %v1294 = vld [vmem:[#allocation8 + $0x490] sm:$0xff]
    %v1295 = vld [vmem:[#allocation8 + $0x498] sm:$0xff]
    %v1296 = vld [vmem:[#allocation8 + $0x4a0] sm:$0xff]
    %v1297 = vld [vmem:[#allocation8 + $0x4a8] sm:$0xff]
    %v1298 = vld [vmem:[#allocation8 + $0x4b0] sm:$0xff]
    %v1299 = vld [vmem:[#allocation8 + $0x4b8] sm:$0xff]
    %v1300 = vld [vmem:[#allocation8 + $0x4c0] sm:$0xff]
    %v1301 = vld [vmem:[#allocation8 + $0x4c8] sm:$0xff]
    %v1302 = vld [vmem:[#allocation8 + $0x4d0] sm:$0xff]
    %v1303 = vld [vmem:[#allocation8 + $0x4d8] sm:$0xff]
    %v1304 = vld [vmem:[#allocation8 + $0x4e0] sm:$0xff]
    %v1305 = vld [vmem:[#allocation8 + $0x4e8] sm:$0xff]
    %v1306 = vld [vmem:[#allocation8 + $0x4f0] sm:$0xff]
    %v1307 = vld [vmem:[#allocation8 + $0x4f8] sm:$0xff]
    %v1308 = vld [vmem:[#allocation8 + $0x500] sm:$0xff]
    %v1309 = vld [vmem:[#allocation8 + $0x508] sm:$0xff]
    %v1310 = vld [vmem:[#allocation8 + $0x510] sm:$0xff]
    %v1311 = vld [vmem:[#allocation8 + $0x518] sm:$0xff]
    %v1312 = vld [vmem:[#allocation8 + $0x520] sm:$0xff]
    %v1313 = vld [vmem:[#allocation8 + $0x528] sm:$0xff]
    %v1314 = vld [vmem:[#allocation8 + $0x530] sm:$0xff]
    %v1315 = vld [vmem:[#allocation8 + $0x538] sm:$0xff]
    %v1316 = vld [vmem:[#allocation8 + $0x540] sm:$0xff]
    %v1317 = vld [vmem:[#allocation8 + $0x548] sm:$0xff]
    %v1318 = vld [vmem:[#allocation8 + $0x550] sm:$0xff]
    %v1319 = vld [vmem:[#allocation8 + $0x558] sm:$0xff]
    %v1320 = vld [vmem:[#allocation8 + $0x560] sm:$0xff]
    %v1321 = vld [vmem:[#allocation8 + $0x568] sm:$0xff]
    %v1322 = vld [vmem:[#allocation8 + $0x570] sm:$0xff]
    %v1323 = vld [vmem:[#allocation8 + $0x578] sm:$0xff]
    %v1324 = vld [vmem:[#allocation8 + $0x580] sm:$0xff]
    %v1325 = vld [vmem:[#allocation8 + $0x588] sm:$0xff]
    %v1326 = vld [vmem:[#allocation8 + $0x590] sm:$0xff]
    %v1327 = vld [vmem:[#allocation8 + $0x598] sm:$0xff]
    %v1328 = vld [vmem:[#allocation8 + $0x5a0] sm:$0xff]
    %v1329 = vld [vmem:[#allocation8 + $0x5a8] sm:$0xff]
    %v1330 = vld [vmem:[#allocation8 + $0x5b0] sm:$0xff]
    %v1331 = vld [vmem:[#allocation8 + $0x5b8] sm:$0xff]
    %v1332 = vld [vmem:[#allocation8 + $0x5c0] sm:$0xff]
    %v1333 = vld [vmem:[#allocation8 + $0x5c8] sm:$0xff]
    %v1334 = vld [vmem:[#allocation8 + $0x5d0] sm:$0xff]
    %v1335 = vld [vmem:[#allocation8 + $0x5d8] sm:$0xff]
    %v1336 = vld [vmem:[#allocation8 + $0x5e0] sm:$0xff]
    %v1337 = vld [vmem:[#allocation8 + $0x5e8] sm:$0xff]
    %v1338 = vld [vmem:[#allocation8 + $0x5f0] sm:$0xff]
    %v1339 = vld [vmem:[#allocation8 + $0x5f8] sm:$0xff]
    %v1340 = vld [vmem:[#allocation8 + $0x600] sm:$0xff]
    %v1341 = vld [vmem:[#allocation8 + $0x608] sm:$0xff]
    %v1342 = vld [vmem:[#allocation8 + $0x610] sm:$0xff]
    %v1343 = vld [vmem:[#allocation8 + $0x618] sm:$0xff]
    %v1344 = vld [vmem:[#allocation8 + $0x620] sm:$0xff]
    %v1345 = vld [vmem:[#allocation8 + $0x628] sm:$0xff]
    %v1346 = vld [vmem:[#allocation8 + $0x630] sm:$0xff]
    %v1347 = vld [vmem:[#allocation8 + $0x638] sm:$0xff]
    %v1348 = vld [vmem:[#allocation8 + $0x640] sm:$0xff]
    %v1349 = vld [vmem:[#allocation8 + $0x648] sm:$0xff]
    %v1350 = vld [vmem:[#allocation8 + $0x650] sm:$0xff]
    %v1351 = vld [vmem:[#allocation8 + $0x658] sm:$0xff]
    %v1352 = vld [vmem:[#allocation8 + $0x660] sm:$0xff]
    %v1353 = vld [vmem:[#allocation8 + $0x668] sm:$0xff]
    %v1354 = vld [vmem:[#allocation8 + $0x670] sm:$0xff]
    %v1355 = vld [vmem:[#allocation8 + $0x678] sm:$0xff]
    %v1356 = vld [vmem:[#allocation8 + $0x680] sm:$0xff]
    %v1357 = vld [vmem:[#allocation8 + $0x688] sm:$0xff]
    %v1358 = vld [vmem:[#allocation8 + $0x690] sm:$0xff]
    %v1359 = vld [vmem:[#allocation8 + $0x698] sm:$0xff]
    %v1360 = vld [vmem:[#allocation8 + $0x6a0] sm:$0xff]
    %v1361 = vld [vmem:[#allocation8 + $0x6a8] sm:$0xff]
    %v1362 = vld [vmem:[#allocation8 + $0x6b0] sm:$0xff]
    %v1363 = vld [vmem:[#allocation8 + $0x6b8] sm:$0xff]
    %v1364 = vld [vmem:[#allocation8 + $0x6c0] sm:$0xff]
    %v1365 = vld [vmem:[#allocation8 + $0x6c8] sm:$0xff]
    %v1366 = vld [vmem:[#allocation8 + $0x6d0] sm:$0xff]
    %v1367 = vld [vmem:[#allocation8 + $0x6d8] sm:$0xff]
    %v1368 = vld [vmem:[#allocation8 + $0x6e0] sm:$0xff]
    %v1369 = vld [vmem:[#allocation8 + $0x6e8] sm:$0xff]
    %v1370 = vld [vmem:[#allocation8 + $0x6f0] sm:$0xff]
    %v1371 = vld [vmem:[#allocation8 + $0x6f8] sm:$0xff]
    %v1372 = vld [vmem:[#allocation8 + $0x700] sm:$0xff]
    %v1373 = vld [vmem:[#allocation8 + $0x708] sm:$0xff]
    %v1374 = vld [vmem:[#allocation8 + $0x710] sm:$0xff]
    %v1375 = vld [vmem:[#allocation8 + $0x718] sm:$0xff]
    %v1376 = vld [vmem:[#allocation8 + $0x720] sm:$0xff]
    %v1377 = vld [vmem:[#allocation8 + $0x728] sm:$0xff]
    %v1378 = vld [vmem:[#allocation8 + $0x730] sm:$0xff]
    %v1379 = vld [vmem:[#allocation8 + $0x738] sm:$0xff]
    %v1380 = vld [vmem:[#allocation8 + $0x740] sm:$0xff]
    %v1381 = vld [vmem:[#allocation8 + $0x748] sm:$0xff]
    %v1382 = vld [vmem:[#allocation8 + $0x750] sm:$0xff]
    %v1383 = vld [vmem:[#allocation8 + $0x758] sm:$0xff]
    %v1384 = vld [vmem:[#allocation8 + $0x760] sm:$0xff]
    %v1385 = vld [vmem:[#allocation8 + $0x768] sm:$0xff]
    %v1386 = vld [vmem:[#allocation8 + $0x770] sm:$0xff]
    %v1387 = vld [vmem:[#allocation8 + $0x778] sm:$0xff]
    %v1388 = vld [vmem:[#allocation8 + $0x780] sm:$0xff]
    %v1389 = vld [vmem:[#allocation8 + $0x788] sm:$0xff]
    %v1390 = vld [vmem:[#allocation8 + $0x790] sm:$0xff]
    %v1391 = vld [vmem:[#allocation8 + $0x798] sm:$0xff]
    %v1392 = vld [vmem:[#allocation8 + $0x7a0] sm:$0xff]
    %v1393 = vld [vmem:[#allocation8 + $0x7a8] sm:$0xff]
    %v1394 = vld [vmem:[#allocation8 + $0x7b0] sm:$0xff]
    %v1395 = vld [vmem:[#allocation8 + $0x7b8] sm:$0xff]
    %v1396 = vld [vmem:[#allocation8 + $0x7c0] sm:$0xff]
    %v1397 = vld [vmem:[#allocation8 + $0x7c8] sm:$0xff]
    %v1398 = vld [vmem:[#allocation8 + $0x7d0] sm:$0xff]
    %v1399 = vld [vmem:[#allocation8 + $0x7d8] sm:$0xff]
    %v1400 = vld [vmem:[#allocation8 + $0x7e0] sm:$0xff]
    %v1401 = vld [vmem:[#allocation8 + $0x7e8] sm:$0xff]
    %v1402 = vld [vmem:[#allocation8 + $0x7f0] sm:$0xff]
    %v1403 = vld [vmem:[#allocation8 + $0x7f8] sm:$0xff]
    %v1404 = vld [vmem:[#allocation10] sm:$0xf]
    %v1406 = vlaneseq
    %v1407 = vshrl.u32 %v1406, 7
    %v1408 = vsub.s32 0, %v1407
    %v1409 = vrot.slane %v1404, %v1408
    %v1410 = vlaneseq
    %v1411 = vshrl.u32 %v1410, 7
    %v1412 = vsub.s32 1, %v1411
    %v1413 = vrot.slane %v1404, %v1412
    %v1414 = vlaneseq
    %v1415 = vshrl.u32 %v1414, 7
    %v1416 = vsub.s32 2, %v1415
    %v1417 = vrot.slane %v1404, %v1416
    %v1418 = vlaneseq
    %v1419 = vshrl.u32 %v1418, 7
    %v1420 = vsub.s32 3, %v1419
    %v1421 = vrot.slane %v1404, %v1420
    %1426 = vmatprep.subr.mxu0 %v1149
    %1427 = vmatpush1.msra.mxu0 %v1148
    %1428 = vmatprep.subr.mxu0 %v1153
    %1429 = vmatpush1.msra.mxu0 %v1152
    %1430 = vmatprep.subr.mxu0 %v1157
    %1431 = vmatpush1.msra.mxu0 %v1156
    %1432 = vmatprep.subr.mxu0 %v1161
    %1433 = vmatpush1.msra.mxu0 %v1160
    %1434 = vmatprep.subr.mxu0 %v1165
    %1435 = vmatpush1.msra.mxu0 %v1164
    %1436 = vmatprep.subr.mxu0 %v1169
    %1437 = vmatpush1.msra.mxu0 %v1168
    %1438 = vmatprep.subr.mxu0 %v1173
    %1439 = vmatpush1.msra.mxu0 %v1172
    %1440 = vmatprep.subr.mxu0 %v1177
    %1441 = vmatpush1.msra.mxu0 %v1176
    %1442 = vmatprep.subr.mxu0 %v1181
    %1443 = vmatpush1.msra.mxu0 %v1180
    %1444 = vmatprep.subr.mxu0 %v1185
    %1445 = vmatpush1.msra.mxu0 %v1184
    %1446 = vmatprep.subr.mxu0 %v1189
    %1447 = vmatpush1.msra.mxu0 %v1188
    %1448 = vmatprep.subr.mxu0 %v1193
    %1449 = vmatpush1.msra.mxu0 %v1192
    %1450 = vmatprep.subr.mxu0 %v1197
    %1451 = vmatpush1.msra.mxu0 %v1196
    %1452 = vmatprep.subr.mxu0 %v1201
    %1453 = vmatpush1.msra.mxu0 %v1200
    %1454 = vmatprep.subr.mxu0 %v1205
    %1455 = vmatpush1.msra.mxu0 %v1204
    %1456 = vmatprep.subr.mxu0 %v1209
    %1457 = vmatpush1.msra.mxu0 %v1208
    %1458 = vmatprep.subr.mxu0 %v1213
    %1459 = vmatpush1.msra.mxu0 %v1212
    %1460 = vmatprep.subr.mxu0 %v1217
    %1461 = vmatpush1.msra.mxu0 %v1216
    %1462 = vmatprep.subr.mxu0 %v1221
    %1463 = vmatpush1.msra.mxu0 %v1220
    %1464 = vmatprep.subr.mxu0 %v1225
    %1465 = vmatpush1.msra.mxu0 %v1224
    %1466 = vmatprep.subr.mxu0 %v1229
    %1467 = vmatpush1.msra.mxu0 %v1228
    %1468 = vmatprep.subr.mxu0 %v1233
    %1469 = vmatpush1.msra.mxu0 %v1232
    %1470 = vmatprep.subr.mxu0 %v1237
    %1471 = vmatpush1.msra.mxu0 %v1236
    %1472 = vmatprep.subr.mxu0 %v1241
    %1473 = vmatpush1.msra.mxu0 %v1240
    %1474 = vmatprep.subr.mxu0 %v1245
    %1475 = vmatpush1.msra.mxu0 %v1244
    %1476 = vmatprep.subr.mxu0 %v1249
    %1477 = vmatpush1.msra.mxu0 %v1248
    %1478 = vmatprep.subr.mxu0 %v1253
    %1479 = vmatpush1.msra.mxu0 %v1252
    %1480 = vmatprep.subr.mxu0 %v1257
    %1481 = vmatpush1.msra.mxu0 %v1256
    %1482 = vmatprep.subr.mxu0 %v1261
    %1483 = vmatpush1.msra.mxu0 %v1260
    %1484 = vmatprep.subr.mxu0 %v1265
    %1485 = vmatpush1.msra.mxu0 %v1264
    %1486 = vmatprep.subr.mxu0 %v1269
    %1487 = vmatpush1.msra.mxu0 %v1268
    %1488 = vmatprep.subr.mxu0 %v1273
    %1489 = vmatpush1.msra.mxu0 %v1272
    %1490 = vmatprep.mubr.f32.mxu0 %v1145
    %1491 = vmatmul.mubr.f32.gmra.mrb[0].mxu0 %v1144
    %v1492 = vpop.f32.mrb[0].mxu0
    %v1493 = vadd.f32 %v1409, %v1492
    %v1494 = vpop.f32.mrb[0].mxu0
    %v1495 = vadd.f32 %v1413, %v1494
    %1496 = vdwg.mxu0
    %1497 = vmatprep.subr.mxu0 %v1277
    %1498 = vmatpush1.msra.mxu0 %v1276
    %1499 = vmatprep.subr.mxu0 %v1281
    %1500 = vmatpush1.msra.mxu0 %v1280
    %1501 = vmatprep.subr.mxu0 %v1285
    %1502 = vmatpush1.msra.mxu0 %v1284
    %1503 = vmatprep.subr.mxu0 %v1289
    %1504 = vmatpush1.msra.mxu0 %v1288
    %1505 = vmatprep.subr.mxu0 %v1293
    %1506 = vmatpush1.msra.mxu0 %v1292
    %1507 = vmatprep.subr.mxu0 %v1297
    %1508 = vmatpush1.msra.mxu0 %v1296
    %1509 = vmatprep.subr.mxu0 %v1301
    %1510 = vmatpush1.msra.mxu0 %v1300
    %1511 = vmatprep.subr.mxu0 %v1305
    %1512 = vmatpush1.msra.mxu0 %v1304
    %1513 = vmatprep.subr.mxu0 %v1309
    %1514 = vmatpush1.msra.mxu0 %v1308
    %1515 = vmatprep.subr.mxu0 %v1313
    %1516 = vmatpush1.msra.mxu0 %v1312
    %1517 = vmatprep.subr.mxu0 %v1317
    %1518 = vmatpush1.msra.mxu0 %v1316
    %1519 = vmatprep.subr.mxu0 %v1321
    %1520 = vmatpush1.msra.mxu0 %v1320
    %1521 = vmatprep.subr.mxu0 %v1325
    %1522 = vmatpush1.msra.mxu0 %v1324
    %1523 = vmatprep.subr.mxu0 %v1329
    %1524 = vmatpush1.msra.mxu0 %v1328
    %1525 = vmatprep.subr.mxu0 %v1333
    %1526 = vmatpush1.msra.mxu0 %v1332
    %1527 = vmatprep.subr.mxu0 %v1337
    %1528 = vmatpush1.msra.mxu0 %v1336
    %1529 = vmatprep.subr.mxu0 %v1341
    %1530 = vmatpush1.msra.mxu0 %v1340
    %1531 = vmatprep.subr.mxu0 %v1345
    %1532 = vmatpush1.msra.mxu0 %v1344
    %1533 = vmatprep.subr.mxu0 %v1349
    %1534 = vmatpush1.msra.mxu0 %v1348
    %1535 = vmatprep.subr.mxu0 %v1353
    %1536 = vmatpush1.msra.mxu0 %v1352
    %1537 = vmatprep.subr.mxu0 %v1357
    %1538 = vmatpush1.msra.mxu0 %v1356
    %1539 = vmatprep.subr.mxu0 %v1361
    %1540 = vmatpush1.msra.mxu0 %v1360
    %1541 = vmatprep.subr.mxu0 %v1365
    %1542 = vmatpush1.msra.mxu0 %v1364
    %1543 = vmatprep.subr.mxu0 %v1369
    %1544 = vmatpush1.msra.mxu0 %v1368
    %1545 = vmatprep.subr.mxu0 %v1373
    %1546 = vmatpush1.msra.mxu0 %v1372
    %1547 = vmatprep.subr.mxu0 %v1377
    %1548 = vmatpush1.msra.mxu0 %v1376
    %1549 = vmatprep.subr.mxu0 %v1381
    %1550 = vmatpush1.msra.mxu0 %v1380
    %1551 = vmatprep.subr.mxu0 %v1385
    %1552 = vmatpush1.msra.mxu0 %v1384
    %1553 = vmatprep.subr.mxu0 %v1389
    %1554 = vmatpush1.msra.mxu0 %v1388
    %1555 = vmatprep.subr.mxu0 %v1393
    %1556 = vmatpush1.msra.mxu0 %v1392
    %1557 = vmatprep.subr.mxu0 %v1397
    %1558 = vmatpush1.msra.mxu0 %v1396
    %1559 = vmatprep.subr.mxu0 %v1401
    %1560 = vmatpush1.msra.mxu0 %v1400
    %1561 = vmatprep.mubr.f32.mxu0 %v1147
    %1562 = vmatmul.mubr.f32.gmra.mrb[0].mxu0 %v1146
    %v1563 = vpop.f32.mrb[0].mxu0
    %v1564 = vadd.f32 %v1493, %v1563
    %v1565 = vpop.f32.mrb[0].mxu0
    %v1566 = vadd.f32 %v1495, %v1565
    %1567 = vdwg.mxu0
    %1568 = vmatprep.subr.mxu0 %v1151
    %1569 = vmatpush1.msra.mxu0 %v1150
    %1570 = vmatprep.subr.mxu0 %v1155
    %1571 = vmatpush1.msra.mxu0 %v1154
    %1572 = vmatprep.subr.mxu0 %v1159
    %1573 = vmatpush1.msra.mxu0 %v1158
    %1574 = vmatprep.subr.mxu0 %v1163
    %1575 = vmatpush1.msra.mxu0 %v1162
    %1576 = vmatprep.subr.mxu0 %v1167
    %1577 = vmatpush1.msra.mxu0 %v1166
    %1578 = vmatprep.subr.mxu0 %v1171
    %1579 = vmatpush1.msra.mxu0 %v1170
    %1580 = vmatprep.subr.mxu0 %v1175
    %1581 = vmatpush1.msra.mxu0 %v1174
    %1582 = vmatprep.subr.mxu0 %v1179
    %1583 = vmatpush1.msra.mxu0 %v1178
    %1584 = vmatprep.subr.mxu0 %v1183
    %1585 = vmatpush1.msra.mxu0 %v1182
    %1586 = vmatprep.subr.mxu0 %v1187
    %1587 = vmatpush1.msra.mxu0 %v1186
    %1588 = vmatprep.subr.mxu0 %v1191
    %1589 = vmatpush1.msra.mxu0 %v1190
    %1590 = vmatprep.subr.mxu0 %v1195
    %1591 = vmatpush1.msra.mxu0 %v1194
    %1592 = vmatprep.subr.mxu0 %v1199
    %1593 = vmatpush1.msra.mxu0 %v1198
    %1594 = vmatprep.subr.mxu0 %v1203
    %1595 = vmatpush1.msra.mxu0 %v1202
    %1596 = vmatprep.subr.mxu0 %v1207
    %1597 = vmatpush1.msra.mxu0 %v1206
    %1598 = vmatprep.subr.mxu0 %v1211
    %1599 = vmatpush1.msra.mxu0 %v1210
    %1600 = vmatprep.subr.mxu0 %v1215
    %1601 = vmatpush1.msra.mxu0 %v1214
    %1602 = vmatprep.subr.mxu0 %v1219
    %1603 = vmatpush1.msra.mxu0 %v1218
    %1604 = vmatprep.subr.mxu0 %v1223
    %1605 = vmatpush1.msra.mxu0 %v1222
    %1606 = vmatprep.subr.mxu0 %v1227
    %1607 = vmatpush1.msra.mxu0 %v1226
    %1608 = vmatprep.subr.mxu0 %v1231
    %1609 = vmatpush1.msra.mxu0 %v1230
    %1610 = vmatprep.subr.mxu0 %v1235
    %1611 = vmatpush1.msra.mxu0 %v1234
    %1612 = vmatprep.subr.mxu0 %v1239
    %1613 = vmatpush1.msra.mxu0 %v1238
    %1614 = vmatprep.subr.mxu0 %v1243
    %1615 = vmatpush1.msra.mxu0 %v1242
    %1616 = vmatprep.subr.mxu0 %v1247
    %1617 = vmatpush1.msra.mxu0 %v1246
    %1618 = vmatprep.subr.mxu0 %v1251
    %1619 = vmatpush1.msra.mxu0 %v1250
    %1620 = vmatprep.subr.mxu0 %v1255
    %1621 = vmatpush1.msra.mxu0 %v1254
    %1622 = vmatprep.subr.mxu0 %v1259
    %1623 = vmatpush1.msra.mxu0 %v1258
    %1624 = vmatprep.subr.mxu0 %v1263
    %1625 = vmatpush1.msra.mxu0 %v1262
    %1626 = vmatprep.subr.mxu0 %v1267
    %1627 = vmatpush1.msra.mxu0 %v1266
    %1628 = vmatprep.subr.mxu0 %v1271
    %1629 = vmatpush1.msra.mxu0 %v1270
    %1630 = vmatprep.subr.mxu0 %v1275
    %1631 = vmatpush1.msra.mxu0 %v1274
    %1632 = vmatprep.mubr.f32.mxu0 %v1145
    %1633 = vmatmul.mubr.f32.gmra.mrb[0].mxu0 %v1144
    %v1634 = vpop.f32.mrb[0].mxu0
    %v1635 = vadd.f32 %v1417, %v1634
    %v1636 = vpop.f32.mrb[0].mxu0
    %v1637 = vadd.f32 %v1421, %v1636
    %1638 = vdwg.mxu0
    %1639 = vmatprep.subr.mxu0 %v1279
    %1640 = vmatpush1.msra.mxu0 %v1278
    %1641 = vmatprep.subr.mxu0 %v1283
    %1642 = vmatpush1.msra.mxu0 %v1282
    %1643 = vmatprep.subr.mxu0 %v1287
    %1644 = vmatpush1.msra.mxu0 %v1286
    %1645 = vmatprep.subr.mxu0 %v1291
    %1646 = vmatpush1.msra.mxu0 %v1290
    %1647 = vmatprep.subr.mxu0 %v1295
    %1648 = vmatpush1.msra.mxu0 %v1294
    %1649 = vmatprep.subr.mxu0 %v1299
    %1650 = vmatpush1.msra.mxu0 %v1298
    %1651 = vmatprep.subr.mxu0 %v1303
    %1652 = vmatpush1.msra.mxu0 %v1302
    %1653 = vmatprep.subr.mxu0 %v1307
    %1654 = vmatpush1.msra.mxu0 %v1306
    %1655 = vmatprep.subr.mxu0 %v1311
    %1656 = vmatpush1.msra.mxu0 %v1310
    %1657 = vmatprep.subr.mxu0 %v1315
    %1658 = vmatpush1.msra.mxu0 %v1314
    %1659 = vmatprep.subr.mxu0 %v1319
    %1660 = vmatpush1.msra.mxu0 %v1318
    %1661 = vmatprep.subr.mxu0 %v1323
    %1662 = vmatpush1.msra.mxu0 %v1322
    %1663 = vmatprep.subr.mxu0 %v1327
    %1664 = vmatpush1.msra.mxu0 %v1326
    %1665 = vmatprep.subr.mxu0 %v1331
    %1666 = vmatpush1.msra.mxu0 %v1330
    %1667 = vmatprep.subr.mxu0 %v1335
    %1668 = vmatpush1.msra.mxu0 %v1334
    %1669 = vmatprep.subr.mxu0 %v1339
    %1670 = vmatpush1.msra.mxu0 %v1338
    %1671 = vmatprep.subr.mxu0 %v1343
    %1672 = vmatpush1.msra.mxu0 %v1342
    %1673 = vmatprep.subr.mxu0 %v1347
    %1674 = vmatpush1.msra.mxu0 %v1346
    %1675 = vmatprep.subr.mxu0 %v1351
    %1676 = vmatpush1.msra.mxu0 %v1350
    %1677 = vmatprep.subr.mxu0 %v1355
    %1678 = vmatpush1.msra.mxu0 %v1354
    %1679 = vmatprep.subr.mxu0 %v1359
    %1680 = vmatpush1.msra.mxu0 %v1358
    %1681 = vmatprep.subr.mxu0 %v1363
    %1682 = vmatpush1.msra.mxu0 %v1362
    %1683 = vmatprep.subr.mxu0 %v1367
    %1684 = vmatpush1.msra.mxu0 %v1366
    %1685 = vmatprep.subr.mxu0 %v1371
    %1686 = vmatpush1.msra.mxu0 %v1370
    %1687 = vmatprep.subr.mxu0 %v1375
    %1688 = vmatpush1.msra.mxu0 %v1374
    %1689 = vmatprep.subr.mxu0 %v1379
    %1690 = vmatpush1.msra.mxu0 %v1378
    %1691 = vmatprep.subr.mxu0 %v1383
    %1692 = vmatpush1.msra.mxu0 %v1382
    %1693 = vmatprep.subr.mxu0 %v1387
    %1694 = vmatpush1.msra.mxu0 %v1386
    %1695 = vmatprep.subr.mxu0 %v1391
    %1696 = vmatpush1.msra.mxu0 %v1390
    %1697 = vmatprep.subr.mxu0 %v1395
    %1698 = vmatpush1.msra.mxu0 %v1394
    %1699 = vmatprep.subr.mxu0 %v1399
    %1700 = vmatpush1.msra.mxu0 %v1398
    %1701 = vmatprep.subr.mxu0 %v1403
    %1702 = vmatpush1.msra.mxu0 %v1402
    %1703 = vmatprep.mubr.f32.mxu0 %v1147
    %1704 = vmatmul.mubr.f32.gmra.mrb[0].mxu0 %v1146
    %v1705 = vpop.f32.mrb[0].mxu0
    %v1706 = vadd.f32 %v1635, %v1705
    %v1707 = vpop.f32.mrb[0].mxu0
    %v1708 = vadd.f32 %v1637, %v1707
    %1709 = vdwg.mxu0
    %v1710 = vmax.f32 %v1564, 0.0
    %v1711 = vmax.f32 %v1566, 0.0
    %v1712 = vmax.f32 %v1706, 0.0
    %v1713 = vmax.f32 %v1708, 0.0
    %v1714 = vld [vmem:[#allocation11] sm:$0xff]
    %v1715 = vld [vmem:[#allocation11 + $0x8] sm:$0xff]
    %v1716 = vld [vmem:[#allocation11 + $0x10] sm:$0xff]
    %v1717 = vld [vmem:[#allocation11 + $0x18] sm:$0xff]
    %v1718 = vld [vmem:[#allocation11 + $0x20] sm:$0xff]
    %v1719 = vld [vmem:[#allocation11 + $0x28] sm:$0xff]
    %v1720 = vld [vmem:[#allocation11 + $0x30] sm:$0xff]
    %v1721 = vld [vmem:[#allocation11 + $0x38] sm:$0xff]
    %v1722 = vld [vmem:[#allocation11 + $0x40] sm:$0xff]
    %v1723 = vld [vmem:[#allocation11 + $0x48] sm:$0xff]
    %v1724 = vld [vmem:[#allocation11 + $0x50] sm:$0xff]
    %v1725 = vld [vmem:[#allocation11 + $0x58] sm:$0xff]
    %v1726 = vld [vmem:[#allocation11 + $0x60] sm:$0xff]
    %v1727 = vld [vmem:[#allocation11 + $0x68] sm:$0xff]
    %v1728 = vld [vmem:[#allocation11 + $0x70] sm:$0xff]
    %v1729 = vld [vmem:[#allocation11 + $0x78] sm:$0xff]
    %v1730 = vld [vmem:[#allocation11 + $0x80] sm:$0xff]
    %v1731 = vld [vmem:[#allocation11 + $0x88] sm:$0xff]
    %v1732 = vld [vmem:[#allocation11 + $0x90] sm:$0xff]
    %v1733 = vld [vmem:[#allocation11 + $0x98] sm:$0xff]
    %v1734 = vld [vmem:[#allocation11 + $0xa0] sm:$0xff]
    %v1735 = vld [vmem:[#allocation11 + $0xa8] sm:$0xff]
    %v1736 = vld [vmem:[#allocation11 + $0xb0] sm:$0xff]
    %v1737 = vld [vmem:[#allocation11 + $0xb8] sm:$0xff]
    %v1738 = vld [vmem:[#allocation11 + $0xc0] sm:$0xff]
    %v1739 = vld [vmem:[#allocation11 + $0xc8] sm:$0xff]
    %v1740 = vld [vmem:[#allocation11 + $0xd0] sm:$0xff]
    %v1741 = vld [vmem:[#allocation11 + $0xd8] sm:$0xff]
    %v1742 = vld [vmem:[#allocation11 + $0xe0] sm:$0xff]
    %v1743 = vld [vmem:[#allocation11 + $0xe8] sm:$0xff]
    %v1744 = vld [vmem:[#allocation11 + $0xf0] sm:$0xff]
    %v1745 = vld [vmem:[#allocation11 + $0xf8] sm:$0xff]
    %v1746 = vld [vmem:[#allocation11 + $0x100] sm:$0xff]
    %v1747 = vld [vmem:[#allocation11 + $0x108] sm:$0xff]
    %v1748 = vld [vmem:[#allocation11 + $0x110] sm:$0xff]
    %v1749 = vld [vmem:[#allocation11 + $0x118] sm:$0xff]
    %v1750 = vld [vmem:[#allocation11 + $0x120] sm:$0xff]
    %v1751 = vld [vmem:[#allocation11 + $0x128] sm:$0xff]
    %v1752 = vld [vmem:[#allocation11 + $0x130] sm:$0xff]
    %v1753 = vld [vmem:[#allocation11 + $0x138] sm:$0xff]
    %v1754 = vld [vmem:[#allocation11 + $0x140] sm:$0xff]
    %v1755 = vld [vmem:[#allocation11 + $0x148] sm:$0xff]
    %v1756 = vld [vmem:[#allocation11 + $0x150] sm:$0xff]
    %v1757 = vld [vmem:[#allocation11 + $0x158] sm:$0xff]
    %v1758 = vld [vmem:[#allocation11 + $0x160] sm:$0xff]
    %v1759 = vld [vmem:[#allocation11 + $0x168] sm:$0xff]
    %v1760 = vld [vmem:[#allocation11 + $0x170] sm:$0xff]
    %v1761 = vld [vmem:[#allocation11 + $0x178] sm:$0xff]
    %v1762 = vld [vmem:[#allocation11 + $0x180] sm:$0xff]
    %v1763 = vld [vmem:[#allocation11 + $0x188] sm:$0xff]
    %v1764 = vld [vmem:[#allocation11 + $0x190] sm:$0xff]
    %v1765 = vld [vmem:[#allocation11 + $0x198] sm:$0xff]
    %v1766 = vld [vmem:[#allocation11 + $0x1a0] sm:$0xff]
    %v1767 = vld [vmem:[#allocation11 + $0x1a8] sm:$0xff]
    %v1768 = vld [vmem:[#allocation11 + $0x1b0] sm:$0xff]
    %v1769 = vld [vmem:[#allocation11 + $0x1b8] sm:$0xff]
    %v1770 = vld [vmem:[#allocation11 + $0x1c0] sm:$0xff]
    %v1771 = vld [vmem:[#allocation11 + $0x1c8] sm:$0xff]
    %v1772 = vld [vmem:[#allocation11 + $0x1d0] sm:$0xff]
    %v1773 = vld [vmem:[#allocation11 + $0x1d8] sm:$0xff]
    %v1774 = vld [vmem:[#allocation11 + $0x1e0] sm:$0xff]
    %v1775 = vld [vmem:[#allocation11 + $0x1e8] sm:$0xff]
    %v1776 = vld [vmem:[#allocation11 + $0x1f0] sm:$0xff]
    %v1777 = vld [vmem:[#allocation11 + $0x1f8] sm:$0xff]
    %v1778 = vld [vmem:[#allocation11 + $0x200] sm:$0xff]
    %v1779 = vld [vmem:[#allocation11 + $0x208] sm:$0xff]
    %v1780 = vld [vmem:[#allocation11 + $0x210] sm:$0xff]
    %v1781 = vld [vmem:[#allocation11 + $0x218] sm:$0xff]
    %v1782 = vld [vmem:[#allocation11 + $0x220] sm:$0xff]
    %v1783 = vld [vmem:[#allocation11 + $0x228] sm:$0xff]
    %v1784 = vld [vmem:[#allocation11 + $0x230] sm:$0xff]
    %v1785 = vld [vmem:[#allocation11 + $0x238] sm:$0xff]
    %v1786 = vld [vmem:[#allocation11 + $0x240] sm:$0xff]
    %v1787 = vld [vmem:[#allocation11 + $0x248] sm:$0xff]
    %v1788 = vld [vmem:[#allocation11 + $0x250] sm:$0xff]
    %v1789 = vld [vmem:[#allocation11 + $0x258] sm:$0xff]
    %v1790 = vld [vmem:[#allocation11 + $0x260] sm:$0xff]
    %v1791 = vld [vmem:[#allocation11 + $0x268] sm:$0xff]
    %v1792 = vld [vmem:[#allocation11 + $0x270] sm:$0xff]
    %v1793 = vld [vmem:[#allocation11 + $0x278] sm:$0xff]
    %v1794 = vld [vmem:[#allocation11 + $0x280] sm:$0xff]
    %v1795 = vld [vmem:[#allocation11 + $0x288] sm:$0xff]
    %v1796 = vld [vmem:[#allocation11 + $0x290] sm:$0xff]
    %v1797 = vld [vmem:[#allocation11 + $0x298] sm:$0xff]
    %v1798 = vld [vmem:[#allocation11 + $0x2a0] sm:$0xff]
    %v1799 = vld [vmem:[#allocation11 + $0x2a8] sm:$0xff]
    %v1800 = vld [vmem:[#allocation11 + $0x2b0] sm:$0xff]
    %v1801 = vld [vmem:[#allocation11 + $0x2b8] sm:$0xff]
    %v1802 = vld [vmem:[#allocation11 + $0x2c0] sm:$0xff]
    %v1803 = vld [vmem:[#allocation11 + $0x2c8] sm:$0xff]
    %v1804 = vld [vmem:[#allocation11 + $0x2d0] sm:$0xff]
    %v1805 = vld [vmem:[#allocation11 + $0x2d8] sm:$0xff]
    %v1806 = vld [vmem:[#allocation11 + $0x2e0] sm:$0xff]
    %v1807 = vld [vmem:[#allocation11 + $0x2e8] sm:$0xff]
    %v1808 = vld [vmem:[#allocation11 + $0x2f0] sm:$0xff]
    %v1809 = vld [vmem:[#allocation11 + $0x2f8] sm:$0xff]
    %v1810 = vld [vmem:[#allocation11 + $0x300] sm:$0xff]
    %v1811 = vld [vmem:[#allocation11 + $0x308] sm:$0xff]
    %v1812 = vld [vmem:[#allocation11 + $0x310] sm:$0xff]
    %v1813 = vld [vmem:[#allocation11 + $0x318] sm:$0xff]
    %v1814 = vld [vmem:[#allocation11 + $0x320] sm:$0xff]
    %v1815 = vld [vmem:[#allocation11 + $0x328] sm:$0xff]
    %v1816 = vld [vmem:[#allocation11 + $0x330] sm:$0xff]
    %v1817 = vld [vmem:[#allocation11 + $0x338] sm:$0xff]
    %v1818 = vld [vmem:[#allocation11 + $0x340] sm:$0xff]
    %v1819 = vld [vmem:[#allocation11 + $0x348] sm:$0xff]
    %v1820 = vld [vmem:[#allocation11 + $0x350] sm:$0xff]
    %v1821 = vld [vmem:[#allocation11 + $0x358] sm:$0xff]
    %v1822 = vld [vmem:[#allocation11 + $0x360] sm:$0xff]
    %v1823 = vld [vmem:[#allocation11 + $0x368] sm:$0xff]
    %v1824 = vld [vmem:[#allocation11 + $0x370] sm:$0xff]
    %v1825 = vld [vmem:[#allocation11 + $0x378] sm:$0xff]
    %v1826 = vld [vmem:[#allocation11 + $0x380] sm:$0xff]
    %v1827 = vld [vmem:[#allocation11 + $0x388] sm:$0xff]
    %v1828 = vld [vmem:[#allocation11 + $0x390] sm:$0xff]
    %v1829 = vld [vmem:[#allocation11 + $0x398] sm:$0xff]
    %v1830 = vld [vmem:[#allocation11 + $0x3a0] sm:$0xff]
    %v1831 = vld [vmem:[#allocation11 + $0x3a8] sm:$0xff]
    %v1832 = vld [vmem:[#allocation11 + $0x3b0] sm:$0xff]
    %v1833 = vld [vmem:[#allocation11 + $0x3b8] sm:$0xff]
    %v1834 = vld [vmem:[#allocation11 + $0x3c0] sm:$0xff]
    %v1835 = vld [vmem:[#allocation11 + $0x3c8] sm:$0xff]
    %v1836 = vld [vmem:[#allocation11 + $0x3d0] sm:$0xff]
    %v1837 = vld [vmem:[#allocation11 + $0x3d8] sm:$0xff]
    %v1838 = vld [vmem:[#allocation11 + $0x3e0] sm:$0xff]
    %v1839 = vld [vmem:[#allocation11 + $0x3e8] sm:$0xff]
    %v1840 = vld [vmem:[#allocation11 + $0x3f0] sm:$0xff]
    %v1841 = vld [vmem:[#allocation11 + $0x3f8] sm:$0xff]
    %v1842 = vld [vmem:[#allocation11 + $0x400] sm:$0xff]
    %v1843 = vld [vmem:[#allocation11 + $0x408] sm:$0xff]
    %v1844 = vld [vmem:[#allocation11 + $0x410] sm:$0xff]
    %v1845 = vld [vmem:[#allocation11 + $0x418] sm:$0xff]
    %v1846 = vld [vmem:[#allocation11 + $0x420] sm:$0xff]
    %v1847 = vld [vmem:[#allocation11 + $0x428] sm:$0xff]
    %v1848 = vld [vmem:[#allocation11 + $0x430] sm:$0xff]
    %v1849 = vld [vmem:[#allocation11 + $0x438] sm:$0xff]
    %v1850 = vld [vmem:[#allocation11 + $0x440] sm:$0xff]
    %v1851 = vld [vmem:[#allocation11 + $0x448] sm:$0xff]
    %v1852 = vld [vmem:[#allocation11 + $0x450] sm:$0xff]
    %v1853 = vld [vmem:[#allocation11 + $0x458] sm:$0xff]
    %v1854 = vld [vmem:[#allocation11 + $0x460] sm:$0xff]
    %v1855 = vld [vmem:[#allocation11 + $0x468] sm:$0xff]
    %v1856 = vld [vmem:[#allocation11 + $0x470] sm:$0xff]
    %v1857 = vld [vmem:[#allocation11 + $0x478] sm:$0xff]
    %v1858 = vld [vmem:[#allocation11 + $0x480] sm:$0xff]
    %v1859 = vld [vmem:[#allocation11 + $0x488] sm:$0xff]
    %v1860 = vld [vmem:[#allocation11 + $0x490] sm:$0xff]
    %v1861 = vld [vmem:[#allocation11 + $0x498] sm:$0xff]
    %v1862 = vld [vmem:[#allocation11 + $0x4a0] sm:$0xff]
    %v1863 = vld [vmem:[#allocation11 + $0x4a8] sm:$0xff]
    %v1864 = vld [vmem:[#allocation11 + $0x4b0] sm:$0xff]
    %v1865 = vld [vmem:[#allocation11 + $0x4b8] sm:$0xff]
    %v1866 = vld [vmem:[#allocation11 + $0x4c0] sm:$0xff]
    %v1867 = vld [vmem:[#allocation11 + $0x4c8] sm:$0xff]
    %v1868 = vld [vmem:[#allocation11 + $0x4d0] sm:$0xff]
    %v1869 = vld [vmem:[#allocation11 + $0x4d8] sm:$0xff]
    %v1870 = vld [vmem:[#allocation11 + $0x4e0] sm:$0xff]
    %v1871 = vld [vmem:[#allocation11 + $0x4e8] sm:$0xff]
    %v1872 = vld [vmem:[#allocation11 + $0x4f0] sm:$0xff]
    %v1873 = vld [vmem:[#allocation11 + $0x4f8] sm:$0xff]
    %v1874 = vld [vmem:[#allocation11 + $0x500] sm:$0xff]
    %v1875 = vld [vmem:[#allocation11 + $0x508] sm:$0xff]
    %v1876 = vld [vmem:[#allocation11 + $0x510] sm:$0xff]
    %v1877 = vld [vmem:[#allocation11 + $0x518] sm:$0xff]
    %v1878 = vld [vmem:[#allocation11 + $0x520] sm:$0xff]
    %v1879 = vld [vmem:[#allocation11 + $0x528] sm:$0xff]
    %v1880 = vld [vmem:[#allocation11 + $0x530] sm:$0xff]
    %v1881 = vld [vmem:[#allocation11 + $0x538] sm:$0xff]
    %v1882 = vld [vmem:[#allocation11 + $0x540] sm:$0xff]
    %v1883 = vld [vmem:[#allocation11 + $0x548] sm:$0xff]
    %v1884 = vld [vmem:[#allocation11 + $0x550] sm:$0xff]
    %v1885 = vld [vmem:[#allocation11 + $0x558] sm:$0xff]
    %v1886 = vld [vmem:[#allocation11 + $0x560] sm:$0xff]
    %v1887 = vld [vmem:[#allocation11 + $0x568] sm:$0xff]
    %v1888 = vld [vmem:[#allocation11 + $0x570] sm:$0xff]
    %v1889 = vld [vmem:[#allocation11 + $0x578] sm:$0xff]
    %v1890 = vld [vmem:[#allocation11 + $0x580] sm:$0xff]
    %v1891 = vld [vmem:[#allocation11 + $0x588] sm:$0xff]
    %v1892 = vld [vmem:[#allocation11 + $0x590] sm:$0xff]
    %v1893 = vld [vmem:[#allocation11 + $0x598] sm:$0xff]
    %v1894 = vld [vmem:[#allocation11 + $0x5a0] sm:$0xff]
    %v1895 = vld [vmem:[#allocation11 + $0x5a8] sm:$0xff]
    %v1896 = vld [vmem:[#allocation11 + $0x5b0] sm:$0xff]
    %v1897 = vld [vmem:[#allocation11 + $0x5b8] sm:$0xff]
    %v1898 = vld [vmem:[#allocation11 + $0x5c0] sm:$0xff]
    %v1899 = vld [vmem:[#allocation11 + $0x5c8] sm:$0xff]
    %v1900 = vld [vmem:[#allocation11 + $0x5d0] sm:$0xff]
    %v1901 = vld [vmem:[#allocation11 + $0x5d8] sm:$0xff]
    %v1902 = vld [vmem:[#allocation11 + $0x5e0] sm:$0xff]
    %v1903 = vld [vmem:[#allocation11 + $0x5e8] sm:$0xff]
    %v1904 = vld [vmem:[#allocation11 + $0x5f0] sm:$0xff]
    %v1905 = vld [vmem:[#allocation11 + $0x5f8] sm:$0xff]
    %v1906 = vld [vmem:[#allocation11 + $0x600] sm:$0xff]
    %v1907 = vld [vmem:[#allocation11 + $0x608] sm:$0xff]
    %v1908 = vld [vmem:[#allocation11 + $0x610] sm:$0xff]
    %v1909 = vld [vmem:[#allocation11 + $0x618] sm:$0xff]
    %v1910 = vld [vmem:[#allocation11 + $0x620] sm:$0xff]
    %v1911 = vld [vmem:[#allocation11 + $0x628] sm:$0xff]
    %v1912 = vld [vmem:[#allocation11 + $0x630] sm:$0xff]
    %v1913 = vld [vmem:[#allocation11 + $0x638] sm:$0xff]
    %v1914 = vld [vmem:[#allocation11 + $0x640] sm:$0xff]
    %v1915 = vld [vmem:[#allocation11 + $0x648] sm:$0xff]
    %v1916 = vld [vmem:[#allocation11 + $0x650] sm:$0xff]
    %v1917 = vld [vmem:[#allocation11 + $0x658] sm:$0xff]
    %v1918 = vld [vmem:[#allocation11 + $0x660] sm:$0xff]
    %v1919 = vld [vmem:[#allocation11 + $0x668] sm:$0xff]
    %v1920 = vld [vmem:[#allocation11 + $0x670] sm:$0xff]
    %v1921 = vld [vmem:[#allocation11 + $0x678] sm:$0xff]
    %v1922 = vld [vmem:[#allocation11 + $0x680] sm:$0xff]
    %v1923 = vld [vmem:[#allocation11 + $0x688] sm:$0xff]
    %v1924 = vld [vmem:[#allocation11 + $0x690] sm:$0xff]
    %v1925 = vld [vmem:[#allocation11 + $0x698] sm:$0xff]
    %v1926 = vld [vmem:[#allocation11 + $0x6a0] sm:$0xff]
    %v1927 = vld [vmem:[#allocation11 + $0x6a8] sm:$0xff]
    %v1928 = vld [vmem:[#allocation11 + $0x6b0] sm:$0xff]
    %v1929 = vld [vmem:[#allocation11 + $0x6b8] sm:$0xff]
    %v1930 = vld [vmem:[#allocation11 + $0x6c0] sm:$0xff]
    %v1931 = vld [vmem:[#allocation11 + $0x6c8] sm:$0xff]
    %v1932 = vld [vmem:[#allocation11 + $0x6d0] sm:$0xff]
    %v1933 = vld [vmem:[#allocation11 + $0x6d8] sm:$0xff]
    %v1934 = vld [vmem:[#allocation11 + $0x6e0] sm:$0xff]
    %v1935 = vld [vmem:[#allocation11 + $0x6e8] sm:$0xff]
    %v1936 = vld [vmem:[#allocation11 + $0x6f0] sm:$0xff]
    %v1937 = vld [vmem:[#allocation11 + $0x6f8] sm:$0xff]
    %v1938 = vld [vmem:[#allocation11 + $0x700] sm:$0xff]
    %v1939 = vld [vmem:[#allocation11 + $0x708] sm:$0xff]
    %v1940 = vld [vmem:[#allocation11 + $0x710] sm:$0xff]
    %v1941 = vld [vmem:[#allocation11 + $0x718] sm:$0xff]
    %v1942 = vld [vmem:[#allocation11 + $0x720] sm:$0xff]
    %v1943 = vld [vmem:[#allocation11 + $0x728] sm:$0xff]
    %v1944 = vld [vmem:[#allocation11 + $0x730] sm:$0xff]
    %v1945 = vld [vmem:[#allocation11 + $0x738] sm:$0xff]
    %v1946 = vld [vmem:[#allocation11 + $0x740] sm:$0xff]
    %v1947 = vld [vmem:[#allocation11 + $0x748] sm:$0xff]
    %v1948 = vld [vmem:[#allocation11 + $0x750] sm:$0xff]
    %v1949 = vld [vmem:[#allocation11 + $0x758] sm:$0xff]
    %v1950 = vld [vmem:[#allocation11 + $0x760] sm:$0xff]
    %v1951 = vld [vmem:[#allocation11 + $0x768] sm:$0xff]
    %v1952 = vld [vmem:[#allocation11 + $0x770] sm:$0xff]
    %v1953 = vld [vmem:[#allocation11 + $0x778] sm:$0xff]
    %v1954 = vld [vmem:[#allocation11 + $0x780] sm:$0xff]
    %v1955 = vld [vmem:[#allocation11 + $0x788] sm:$0xff]
    %v1956 = vld [vmem:[#allocation11 + $0x790] sm:$0xff]
    %v1957 = vld [vmem:[#allocation11 + $0x798] sm:$0xff]
    %v1958 = vld [vmem:[#allocation11 + $0x7a0] sm:$0xff]
    %v1959 = vld [vmem:[#allocation11 + $0x7a8] sm:$0xff]
    %v1960 = vld [vmem:[#allocation11 + $0x7b0] sm:$0xff]
    %v1961 = vld [vmem:[#allocation11 + $0x7b8] sm:$0xff]
    %v1962 = vld [vmem:[#allocation11 + $0x7c0] sm:$0xff]
    %v1963 = vld [vmem:[#allocation11 + $0x7c8] sm:$0xff]
    %v1964 = vld [vmem:[#allocation11 + $0x7d0] sm:$0xff]
    %v1965 = vld [vmem:[#allocation11 + $0x7d8] sm:$0xff]
    %v1966 = vld [vmem:[#allocation11 + $0x7e0] sm:$0xff]
    %v1967 = vld [vmem:[#allocation11 + $0x7e8] sm:$0xff]
    %v1968 = vld [vmem:[#allocation11 + $0x7f0] sm:$0xff]
    %v1969 = vld [vmem:[#allocation11 + $0x7f8] sm:$0xff]
    %v1970 = vld [vmem:[#allocation13] sm:$0xf]
    %v1972 = vlaneseq
    %v1973 = vshrl.u32 %v1972, 7
    %v1974 = vsub.s32 0, %v1973
    %v1975 = vrot.slane %v1970, %v1974
    %v1976 = vlaneseq
    %v1977 = vshrl.u32 %v1976, 7
    %v1978 = vsub.s32 1, %v1977
    %v1979 = vrot.slane %v1970, %v1978
    %v1980 = vlaneseq
    %v1981 = vshrl.u32 %v1980, 7
    %v1982 = vsub.s32 2, %v1981
    %v1983 = vrot.slane %v1970, %v1982
    %v1984 = vlaneseq
    %v1985 = vshrl.u32 %v1984, 7
    %v1986 = vsub.s32 3, %v1985
    %v1987 = vrot.slane %v1970, %v1986
    %1992 = vmatprep.subr.mxu0 %v1715
    %1993 = vmatpush1.msra.mxu0 %v1714
    %1994 = vmatprep.subr.mxu0 %v1719
    %1995 = vmatpush1.msra.mxu0 %v1718
    %1996 = vmatprep.subr.mxu0 %v1723
    %1997 = vmatpush1.msra.mxu0 %v1722
    %1998 = vmatprep.subr.mxu0 %v1727
    %1999 = vmatpush1.msra.mxu0 %v1726
    %2000 = vmatprep.subr.mxu0 %v1731
    %2001 = vmatpush1.msra.mxu0 %v1730
    %2002 = vmatprep.subr.mxu0 %v1735
    %2003 = vmatpush1.msra.mxu0 %v1734
    %2004 = vmatprep.subr.mxu0 %v1739
    %2005 = vmatpush1.msra.mxu0 %v1738
    %2006 = vmatprep.subr.mxu0 %v1743
    %2007 = vmatpush1.msra.mxu0 %v1742
    %2008 = vmatprep.subr.mxu0 %v1747
    %2009 = vmatpush1.msra.mxu0 %v1746
    %2010 = vmatprep.subr.mxu0 %v1751
    %2011 = vmatpush1.msra.mxu0 %v1750
    %2012 = vmatprep.subr.mxu0 %v1755
    %2013 = vmatpush1.msra.mxu0 %v1754
    %2014 = vmatprep.subr.mxu0 %v1759
    %2015 = vmatpush1.msra.mxu0 %v1758
    %2016 = vmatprep.subr.mxu0 %v1763
    %2017 = vmatpush1.msra.mxu0 %v1762
    %2018 = vmatprep.subr.mxu0 %v1767
    %2019 = vmatpush1.msra.mxu0 %v1766
    %2020 = vmatprep.subr.mxu0 %v1771
    %2021 = vmatpush1.msra.mxu0 %v1770
    %2022 = vmatprep.subr.mxu0 %v1775
    %2023 = vmatpush1.msra.mxu0 %v1774
    %2024 = vmatprep.subr.mxu0 %v1779
    %2025 = vmatpush1.msra.mxu0 %v1778
    %2026 = vmatprep.subr.mxu0 %v1783
    %2027 = vmatpush1.msra.mxu0 %v1782
    %2028 = vmatprep.subr.mxu0 %v1787
    %2029 = vmatpush1.msra.mxu0 %v1786
    %2030 = vmatprep.subr.mxu0 %v1791
    %2031 = vmatpush1.msra.mxu0 %v1790
    %2032 = vmatprep.subr.mxu0 %v1795
    %2033 = vmatpush1.msra.mxu0 %v1794
    %2034 = vmatprep.subr.mxu0 %v1799
    %2035 = vmatpush1.msra.mxu0 %v1798
    %2036 = vmatprep.subr.mxu0 %v1803
    %2037 = vmatpush1.msra.mxu0 %v1802
    %2038 = vmatprep.subr.mxu0 %v1807
    %2039 = vmatpush1.msra.mxu0 %v1806
    %2040 = vmatprep.subr.mxu0 %v1811
    %2041 = vmatpush1.msra.mxu0 %v1810
    %2042 = vmatprep.subr.mxu0 %v1815
    %2043 = vmatpush1.msra.mxu0 %v1814
    %2044 = vmatprep.subr.mxu0 %v1819
    %2045 = vmatpush1.msra.mxu0 %v1818
    %2046 = vmatprep.subr.mxu0 %v1823
    %2047 = vmatpush1.msra.mxu0 %v1822
    %2048 = vmatprep.subr.mxu0 %v1827
    %2049 = vmatpush1.msra.mxu0 %v1826
    %2050 = vmatprep.subr.mxu0 %v1831
    %2051 = vmatpush1.msra.mxu0 %v1830
    %2052 = vmatprep.subr.mxu0 %v1835
    %2053 = vmatpush1.msra.mxu0 %v1834
    %2054 = vmatprep.subr.mxu0 %v1839
    %2055 = vmatpush1.msra.mxu0 %v1838
    %2056 = vmatprep.mubr.f32.mxu0 %v1711
    %2057 = vmatmul.mubr.f32.gmra.mrb[0].mxu0 %v1710
    %v2058 = vpop.f32.mrb[0].mxu0
    %v2059 = vadd.f32 %v1975, %v2058
    %v2060 = vpop.f32.mrb[0].mxu0
    %v2061 = vadd.f32 %v1979, %v2060
    %2062 = vdwg.mxu0
    %2063 = vmatprep.subr.mxu0 %v1843
    %2064 = vmatpush1.msra.mxu0 %v1842
    %2065 = vmatprep.subr.mxu0 %v1847
    %2066 = vmatpush1.msra.mxu0 %v1846
    %2067 = vmatprep.subr.mxu0 %v1851
    %2068 = vmatpush1.msra.mxu0 %v1850
    %2069 = vmatprep.subr.mxu0 %v1855
    %2070 = vmatpush1.msra.mxu0 %v1854
    %2071 = vmatprep.subr.mxu0 %v1859
    %2072 = vmatpush1.msra.mxu0 %v1858
    %2073 = vmatprep.subr.mxu0 %v1863
    %2074 = vmatpush1.msra.mxu0 %v1862
    %2075 = vmatprep.subr.mxu0 %v1867
    %2076 = vmatpush1.msra.mxu0 %v1866
    %2077 = vmatprep.subr.mxu0 %v1871
    %2078 = vmatpush1.msra.mxu0 %v1870
    %2079 = vmatprep.subr.mxu0 %v1875
    %2080 = vmatpush1.msra.mxu0 %v1874
    %2081 = vmatprep.subr.mxu0 %v1879
    %2082 = vmatpush1.msra.mxu0 %v1878
    %2083 = vmatprep.subr.mxu0 %v1883
    %2084 = vmatpush1.msra.mxu0 %v1882
    %2085 = vmatprep.subr.mxu0 %v1887
    %2086 = vmatpush1.msra.mxu0 %v1886
    %2087 = vmatprep.subr.mxu0 %v1891
    %2088 = vmatpush1.msra.mxu0 %v1890
    %2089 = vmatprep.subr.mxu0 %v1895
    %2090 = vmatpush1.msra.mxu0 %v1894
    %2091 = vmatprep.subr.mxu0 %v1899
    %2092 = vmatpush1.msra.mxu0 %v1898
    %2093 = vmatprep.subr.mxu0 %v1903
    %2094 = vmatpush1.msra.mxu0 %v1902
    %2095 = vmatprep.subr.mxu0 %v1907
    %2096 = vmatpush1.msra.mxu0 %v1906
    %2097 = vmatprep.subr.mxu0 %v1911
    %2098 = vmatpush1.msra.mxu0 %v1910
    %2099 = vmatprep.subr.mxu0 %v1915
    %2100 = vmatpush1.msra.mxu0 %v1914
    %2101 = vmatprep.subr.mxu0 %v1919
    %2102 = vmatpush1.msra.mxu0 %v1918
    %2103 = vmatprep.subr.mxu0 %v1923
    %2104 = vmatpush1.msra.mxu0 %v1922
    %2105 = vmatprep.subr.mxu0 %v1927
    %2106 = vmatpush1.msra.mxu0 %v1926
    %2107 = vmatprep.subr.mxu0 %v1931
    %2108 = vmatpush1.msra.mxu0 %v1930
    %2109 = vmatprep.subr.mxu0 %v1935
    %2110 = vmatpush1.msra.mxu0 %v1934
    %2111 = vmatprep.subr.mxu0 %v1939
    %2112 = vmatpush1.msra.mxu0 %v1938
    %2113 = vmatprep.subr.mxu0 %v1943
    %2114 = vmatpush1.msra.mxu0 %v1942
    %2115 = vmatprep.subr.mxu0 %v1947
    %2116 = vmatpush1.msra.mxu0 %v1946
    %2117 = vmatprep.subr.mxu0 %v1951
    %2118 = vmatpush1.msra.mxu0 %v1950
    %2119 = vmatprep.subr.mxu0 %v1955
    %2120 = vmatpush1.msra.mxu0 %v1954
    %2121 = vmatprep.subr.mxu0 %v1959
    %2122 = vmatpush1.msra.mxu0 %v1958
    %2123 = vmatprep.subr.mxu0 %v1963
    %2124 = vmatpush1.msra.mxu0 %v1962
    %2125 = vmatprep.subr.mxu0 %v1967
    %2126 = vmatpush1.msra.mxu0 %v1966
    %2127 = vmatprep.mubr.f32.mxu0 %v1713
    %2128 = vmatmul.mubr.f32.gmra.mrb[0].mxu0 %v1712
    %v2129 = vpop.f32.mrb[0].mxu0
    %v2130 = vadd.f32 %v2059, %v2129
    %v2131 = vpop.f32.mrb[0].mxu0
    %v2132 = vadd.f32 %v2061, %v2131
    %2133 = vdwg.mxu0
    %2134 = vmatprep.subr.mxu0 %v1717
    %2135 = vmatpush1.msra.mxu0 %v1716
    %2136 = vmatprep.subr.mxu0 %v1721
    %2137 = vmatpush1.msra.mxu0 %v1720
    %2138 = vmatprep.subr.mxu0 %v1725
    %2139 = vmatpush1.msra.mxu0 %v1724
    %2140 = vmatprep.subr.mxu0 %v1729
    %2141 = vmatpush1.msra.mxu0 %v1728
    %2142 = vmatprep.subr.mxu0 %v1733
    %2143 = vmatpush1.msra.mxu0 %v1732
    %2144 = vmatprep.subr.mxu0 %v1737
    %2145 = vmatpush1.msra.mxu0 %v1736
    %2146 = vmatprep.subr.mxu0 %v1741
    %2147 = vmatpush1.msra.mxu0 %v1740
    %2148 = vmatprep.subr.mxu0 %v1745
    %2149 = vmatpush1.msra.mxu0 %v1744
    %2150 = vmatprep.subr.mxu0 %v1749
    %2151 = vmatpush1.msra.mxu0 %v1748
    %2152 = vmatprep.subr.mxu0 %v1753
    %2153 = vmatpush1.msra.mxu0 %v1752
    %2154 = vmatprep.subr.mxu0 %v1757
    %2155 = vmatpush1.msra.mxu0 %v1756
    %2156 = vmatprep.subr.mxu0 %v1761
    %2157 = vmatpush1.msra.mxu0 %v1760
    %2158 = vmatprep.subr.mxu0 %v1765
    %2159 = vmatpush1.msra.mxu0 %v1764
    %2160 = vmatprep.subr.mxu0 %v1769
    %2161 = vmatpush1.msra.mxu0 %v1768
    %2162 = vmatprep.subr.mxu0 %v1773
    %2163 = vmatpush1.msra.mxu0 %v1772
    %2164 = vmatprep.subr.mxu0 %v1777
    %2165 = vmatpush1.msra.mxu0 %v1776
    %2166 = vmatprep.subr.mxu0 %v1781
    %2167 = vmatpush1.msra.mxu0 %v1780
    %2168 = vmatprep.subr.mxu0 %v1785
    %2169 = vmatpush1.msra.mxu0 %v1784
    %2170 = vmatprep.subr.mxu0 %v1789
    %2171 = vmatpush1.msra.mxu0 %v1788
    %2172 = vmatprep.subr.mxu0 %v1793
    %2173 = vmatpush1.msra.mxu0 %v1792
    %2174 = vmatprep.subr.mxu0 %v1797
    %2175 = vmatpush1.msra.mxu0 %v1796
    %2176 = vmatprep.subr.mxu0 %v1801
    %2177 = vmatpush1.msra.mxu0 %v1800
    %2178 = vmatprep.subr.mxu0 %v1805
    %2179 = vmatpush1.msra.mxu0 %v1804
    %2180 = vmatprep.subr.mxu0 %v1809
    %2181 = vmatpush1.msra.mxu0 %v1808
    %2182 = vmatprep.subr.mxu0 %v1813
    %2183 = vmatpush1.msra.mxu0 %v1812
    %2184 = vmatprep.subr.mxu0 %v1817
    %2185 = vmatpush1.msra.mxu0 %v1816
    %2186 = vmatprep.subr.mxu0 %v1821
    %2187 = vmatpush1.msra.mxu0 %v1820
    %2188 = vmatprep.subr.mxu0 %v1825
    %2189 = vmatpush1.msra.mxu0 %v1824
    %2190 = vmatprep.subr.mxu0 %v1829
    %2191 = vmatpush1.msra.mxu0 %v1828
    %2192 = vmatprep.subr.mxu0 %v1833
    %2193 = vmatpush1.msra.mxu0 %v1832
    %2194 = vmatprep.subr.mxu0 %v1837
    %2195 = vmatpush1.msra.mxu0 %v1836
    %2196 = vmatprep.subr.mxu0 %v1841
    %2197 = vmatpush1.msra.mxu0 %v1840
    %2198 = vmatprep.mubr.f32.mxu0 %v1711
    %2199 = vmatmul.mubr.f32.gmra.mrb[0].mxu0 %v1710
    %v2200 = vpop.f32.mrb[0].mxu0
    %v2201 = vadd.f32 %v1983, %v2200
    %v2202 = vpop.f32.mrb[0].mxu0
    %v2203 = vadd.f32 %v1987, %v2202
    %2204 = vdwg.mxu0
    %2205 = vmatprep.subr.mxu0 %v1845
    %2206 = vmatpush1.msra.mxu0 %v1844
    %2207 = vmatprep.subr.mxu0 %v1849
    %2208 = vmatpush1.msra.mxu0 %v1848
    %2209 = vmatprep.subr.mxu0 %v1853
    %2210 = vmatpush1.msra.mxu0 %v1852
    %2211 = vmatprep.subr.mxu0 %v1857
    %2212 = vmatpush1.msra.mxu0 %v1856
    %2213 = vmatprep.subr.mxu0 %v1861
    %2214 = vmatpush1.msra.mxu0 %v1860
    %2215 = vmatprep.subr.mxu0 %v1865
    %2216 = vmatpush1.msra.mxu0 %v1864
    %2217 = vmatprep.subr.mxu0 %v1869
    %2218 = vmatpush1.msra.mxu0 %v1868
    %2219 = vmatprep.subr.mxu0 %v1873
    %2220 = vmatpush1.msra.mxu0 %v1872
    %2221 = vmatprep.subr.mxu0 %v1877
    %2222 = vmatpush1.msra.mxu0 %v1876
    %2223 = vmatprep.subr.mxu0 %v1881
    %2224 = vmatpush1.msra.mxu0 %v1880
    %2225 = vmatprep.subr.mxu0 %v1885
    %2226 = vmatpush1.msra.mxu0 %v1884
    %2227 = vmatprep.subr.mxu0 %v1889
    %2228 = vmatpush1.msra.mxu0 %v1888
    %2229 = vmatprep.subr.mxu0 %v1893
    %2230 = vmatpush1.msra.mxu0 %v1892
    %2231 = vmatprep.subr.mxu0 %v1897
    %2232 = vmatpush1.msra.mxu0 %v1896
    %2233 = vmatprep.subr.mxu0 %v1901
    %2234 = vmatpush1.msra.mxu0 %v1900
    %2235 = vmatprep.subr.mxu0 %v1905
    %2236 = vmatpush1.msra.mxu0 %v1904
    %2237 = vmatprep.subr.mxu0 %v1909
    %2238 = vmatpush1.msra.mxu0 %v1908
    %2239 = vmatprep.subr.mxu0 %v1913
    %2240 = vmatpush1.msra.mxu0 %v1912
    %2241 = vmatprep.subr.mxu0 %v1917
    %2242 = vmatpush1.msra.mxu0 %v1916
    %2243 = vmatprep.subr.mxu0 %v1921
    %2244 = vmatpush1.msra.mxu0 %v1920
    %2245 = vmatprep.subr.mxu0 %v1925
    %2246 = vmatpush1.msra.mxu0 %v1924
    %2247 = vmatprep.subr.mxu0 %v1929
    %2248 = vmatpush1.msra.mxu0 %v1928
    %2249 = vmatprep.subr.mxu0 %v1933
    %2250 = vmatpush1.msra.mxu0 %v1932
    %2251 = vmatprep.subr.mxu0 %v1937
    %2252 = vmatpush1.msra.mxu0 %v1936
    %2253 = vmatprep.subr.mxu0 %v1941
    %2254 = vmatpush1.msra.mxu0 %v1940
    %2255 = vmatprep.subr.mxu0 %v1945
    %2256 = vmatpush1.msra.mxu0 %v1944
    %2257 = vmatprep.subr.mxu0 %v1949
    %2258 = vmatpush1.msra.mxu0 %v1948
    %2259 = vmatprep.subr.mxu0 %v1953
    %2260 = vmatpush1.msra.mxu0 %v1952
    %2261 = vmatprep.subr.mxu0 %v1957
    %2262 = vmatpush1.msra.mxu0 %v1956
    %2263 = vmatprep.subr.mxu0 %v1961
    %2264 = vmatpush1.msra.mxu0 %v1960
    %2265 = vmatprep.subr.mxu0 %v1965
    %2266 = vmatpush1.msra.mxu0 %v1964
    %2267 = vmatprep.subr.mxu0 %v1969
    %2268 = vmatpush1.msra.mxu0 %v1968
    %2269 = vmatprep.mubr.f32.mxu0 %v1713
    %2270 = vmatmul.mubr.f32.gmra.mrb[0].mxu0 %v1712
    %v2271 = vpop.f32.mrb[0].mxu0
    %v2272 = vadd.f32 %v2201, %v2271
    %v2273 = vpop.f32.mrb[0].mxu0
    %v2274 = vadd.f32 %v2203, %v2273
    %2275 = vdwg.mxu0
    %v2276 = vmax.f32 %v2130, 0.0
    %v2277 = vmax.f32 %v2132, 0.0
    %v2278 = vmax.f32 %v2272, 0.0
    %v2279 = vmax.f32 %v2274, 0.0
    %v2280 = vld [vmem:[#allocation14] sm:$0xff]
    %v2281 = vld [vmem:[#allocation14 + $0x8] sm:$0xff]
    %v2282 = vld [vmem:[#allocation14 + $0x10] sm:$0xff]
    %v2283 = vld [vmem:[#allocation14 + $0x18] sm:$0xff]
    %v2284 = vld [vmem:[#allocation14 + $0x20] sm:$0xff]
    %v2285 = vld [vmem:[#allocation14 + $0x28] sm:$0xff]
    %v2286 = vld [vmem:[#allocation14 + $0x30] sm:$0xff]
    %v2287 = vld [vmem:[#allocation14 + $0x38] sm:$0xff]
    %v2288 = vld [vmem:[#allocation14 + $0x40] sm:$0xff]
    %v2289 = vld [vmem:[#allocation14 + $0x48] sm:$0xff]
    %v2290 = vld [vmem:[#allocation14 + $0x50] sm:$0xff]
    %v2291 = vld [vmem:[#allocation14 + $0x58] sm:$0xff]
    %v2292 = vld [vmem:[#allocation14 + $0x60] sm:$0xff]
    %v2293 = vld [vmem:[#allocation14 + $0x68] sm:$0xff]
    %v2294 = vld [vmem:[#allocation14 + $0x70] sm:$0xff]
    %v2295 = vld [vmem:[#allocation14 + $0x78] sm:$0xff]
    %v2296 = vld [vmem:[#allocation14 + $0x80] sm:$0xff]
    %v2297 = vld [vmem:[#allocation14 + $0x88] sm:$0xff]
    %v2298 = vld [vmem:[#allocation14 + $0x90] sm:$0xff]
    %v2299 = vld [vmem:[#allocation14 + $0x98] sm:$0xff]
    %v2300 = vld [vmem:[#allocation14 + $0xa0] sm:$0xff]
    %v2301 = vld [vmem:[#allocation14 + $0xa8] sm:$0xff]
    %v2302 = vld [vmem:[#allocation14 + $0xb0] sm:$0xff]
    %v2303 = vld [vmem:[#allocation14 + $0xb8] sm:$0xff]
    %v2304 = vld [vmem:[#allocation14 + $0xc0] sm:$0xff]
    %v2305 = vld [vmem:[#allocation14 + $0xc8] sm:$0xff]
    %v2306 = vld [vmem:[#allocation14 + $0xd0] sm:$0xff]
    %v2307 = vld [vmem:[#allocation14 + $0xd8] sm:$0xff]
    %v2308 = vld [vmem:[#allocation14 + $0xe0] sm:$0xff]
    %v2309 = vld [vmem:[#allocation14 + $0xe8] sm:$0xff]
    %v2310 = vld [vmem:[#allocation14 + $0xf0] sm:$0xff]
    %v2311 = vld [vmem:[#allocation14 + $0xf8] sm:$0xff]
    %v2312 = vld [vmem:[#allocation14 + $0x100] sm:$0xff]
    %v2313 = vld [vmem:[#allocation14 + $0x108] sm:$0xff]
    %v2314 = vld [vmem:[#allocation14 + $0x110] sm:$0xff]
    %v2315 = vld [vmem:[#allocation14 + $0x118] sm:$0xff]
    %v2316 = vld [vmem:[#allocation14 + $0x120] sm:$0xff]
    %v2317 = vld [vmem:[#allocation14 + $0x128] sm:$0xff]
    %v2318 = vld [vmem:[#allocation14 + $0x130] sm:$0xff]
    %v2319 = vld [vmem:[#allocation14 + $0x138] sm:$0xff]
    %v2320 = vld [vmem:[#allocation14 + $0x140] sm:$0xff]
    %v2321 = vld [vmem:[#allocation14 + $0x148] sm:$0xff]
    %v2322 = vld [vmem:[#allocation14 + $0x150] sm:$0xff]
    %v2323 = vld [vmem:[#allocation14 + $0x158] sm:$0xff]
    %v2324 = vld [vmem:[#allocation14 + $0x160] sm:$0xff]
    %v2325 = vld [vmem:[#allocation14 + $0x168] sm:$0xff]
    %v2326 = vld [vmem:[#allocation14 + $0x170] sm:$0xff]
    %v2327 = vld [vmem:[#allocation14 + $0x178] sm:$0xff]
    %v2328 = vld [vmem:[#allocation14 + $0x180] sm:$0xff]
    %v2329 = vld [vmem:[#allocation14 + $0x188] sm:$0xff]
    %v2330 = vld [vmem:[#allocation14 + $0x190] sm:$0xff]
    %v2331 = vld [vmem:[#allocation14 + $0x198] sm:$0xff]
    %v2332 = vld [vmem:[#allocation14 + $0x1a0] sm:$0xff]
    %v2333 = vld [vmem:[#allocation14 + $0x1a8] sm:$0xff]
    %v2334 = vld [vmem:[#allocation14 + $0x1b0] sm:$0xff]
    %v2335 = vld [vmem:[#allocation14 + $0x1b8] sm:$0xff]
    %v2336 = vld [vmem:[#allocation14 + $0x1c0] sm:$0xff]
    %v2337 = vld [vmem:[#allocation14 + $0x1c8] sm:$0xff]
    %v2338 = vld [vmem:[#allocation14 + $0x1d0] sm:$0xff]
    %v2339 = vld [vmem:[#allocation14 + $0x1d8] sm:$0xff]
    %v2340 = vld [vmem:[#allocation14 + $0x1e0] sm:$0xff]
    %v2341 = vld [vmem:[#allocation14 + $0x1e8] sm:$0xff]
    %v2342 = vld [vmem:[#allocation14 + $0x1f0] sm:$0xff]
    %v2343 = vld [vmem:[#allocation14 + $0x1f8] sm:$0xff]
    %v2344 = vld [vmem:[#allocation14 + $0x200] sm:$0xff]
    %v2345 = vld [vmem:[#allocation14 + $0x208] sm:$0xff]
    %v2346 = vld [vmem:[#allocation14 + $0x210] sm:$0xff]
    %v2347 = vld [vmem:[#allocation14 + $0x218] sm:$0xff]
    %v2348 = vld [vmem:[#allocation14 + $0x220] sm:$0xff]
    %v2349 = vld [vmem:[#allocation14 + $0x228] sm:$0xff]
    %v2350 = vld [vmem:[#allocation14 + $0x230] sm:$0xff]
    %v2351 = vld [vmem:[#allocation14 + $0x238] sm:$0xff]
    %v2352 = vld [vmem:[#allocation14 + $0x240] sm:$0xff]
    %v2353 = vld [vmem:[#allocation14 + $0x248] sm:$0xff]
    %v2354 = vld [vmem:[#allocation14 + $0x250] sm:$0xff]
    %v2355 = vld [vmem:[#allocation14 + $0x258] sm:$0xff]
    %v2356 = vld [vmem:[#allocation14 + $0x260] sm:$0xff]
    %v2357 = vld [vmem:[#allocation14 + $0x268] sm:$0xff]
    %v2358 = vld [vmem:[#allocation14 + $0x270] sm:$0xff]
    %v2359 = vld [vmem:[#allocation14 + $0x278] sm:$0xff]
    %v2360 = vld [vmem:[#allocation14 + $0x280] sm:$0xff]
    %v2361 = vld [vmem:[#allocation14 + $0x288] sm:$0xff]
    %v2362 = vld [vmem:[#allocation14 + $0x290] sm:$0xff]
    %v2363 = vld [vmem:[#allocation14 + $0x298] sm:$0xff]
    %v2364 = vld [vmem:[#allocation14 + $0x2a0] sm:$0xff]
    %v2365 = vld [vmem:[#allocation14 + $0x2a8] sm:$0xff]
    %v2366 = vld [vmem:[#allocation14 + $0x2b0] sm:$0xff]
    %v2367 = vld [vmem:[#allocation14 + $0x2b8] sm:$0xff]
    %v2368 = vld [vmem:[#allocation14 + $0x2c0] sm:$0xff]
    %v2369 = vld [vmem:[#allocation14 + $0x2c8] sm:$0xff]
    %v2370 = vld [vmem:[#allocation14 + $0x2d0] sm:$0xff]
    %v2371 = vld [vmem:[#allocation14 + $0x2d8] sm:$0xff]
    %v2372 = vld [vmem:[#allocation14 + $0x2e0] sm:$0xff]
    %v2373 = vld [vmem:[#allocation14 + $0x2e8] sm:$0xff]
    %v2374 = vld [vmem:[#allocation14 + $0x2f0] sm:$0xff]
    %v2375 = vld [vmem:[#allocation14 + $0x2f8] sm:$0xff]
    %v2376 = vld [vmem:[#allocation14 + $0x300] sm:$0xff]
    %v2377 = vld [vmem:[#allocation14 + $0x308] sm:$0xff]
    %v2378 = vld [vmem:[#allocation14 + $0x310] sm:$0xff]
    %v2379 = vld [vmem:[#allocation14 + $0x318] sm:$0xff]
    %v2380 = vld [vmem:[#allocation14 + $0x320] sm:$0xff]
    %v2381 = vld [vmem:[#allocation14 + $0x328] sm:$0xff]
    %v2382 = vld [vmem:[#allocation14 + $0x330] sm:$0xff]
    %v2383 = vld [vmem:[#allocation14 + $0x338] sm:$0xff]
    %v2384 = vld [vmem:[#allocation14 + $0x340] sm:$0xff]
    %v2385 = vld [vmem:[#allocation14 + $0x348] sm:$0xff]
    %v2386 = vld [vmem:[#allocation14 + $0x350] sm:$0xff]
    %v2387 = vld [vmem:[#allocation14 + $0x358] sm:$0xff]
    %v2388 = vld [vmem:[#allocation14 + $0x360] sm:$0xff]
    %v2389 = vld [vmem:[#allocation14 + $0x368] sm:$0xff]
    %v2390 = vld [vmem:[#allocation14 + $0x370] sm:$0xff]
    %v2391 = vld [vmem:[#allocation14 + $0x378] sm:$0xff]
    %v2392 = vld [vmem:[#allocation14 + $0x380] sm:$0xff]
    %v2393 = vld [vmem:[#allocation14 + $0x388] sm:$0xff]
    %v2394 = vld [vmem:[#allocation14 + $0x390] sm:$0xff]
    %v2395 = vld [vmem:[#allocation14 + $0x398] sm:$0xff]
    %v2396 = vld [vmem:[#allocation14 + $0x3a0] sm:$0xff]
    %v2397 = vld [vmem:[#allocation14 + $0x3a8] sm:$0xff]
    %v2398 = vld [vmem:[#allocation14 + $0x3b0] sm:$0xff]
    %v2399 = vld [vmem:[#allocation14 + $0x3b8] sm:$0xff]
    %v2400 = vld [vmem:[#allocation14 + $0x3c0] sm:$0xff]
    %v2401 = vld [vmem:[#allocation14 + $0x3c8] sm:$0xff]
    %v2402 = vld [vmem:[#allocation14 + $0x3d0] sm:$0xff]
    %v2403 = vld [vmem:[#allocation14 + $0x3d8] sm:$0xff]
    %v2404 = vld [vmem:[#allocation14 + $0x3e0] sm:$0xff]
    %v2405 = vld [vmem:[#allocation14 + $0x3e8] sm:$0xff]
    %v2406 = vld [vmem:[#allocation14 + $0x3f0] sm:$0xff]
    %v2407 = vld [vmem:[#allocation14 + $0x3f8] sm:$0xff]
    %v2408 = vld [vmem:[#allocation14 + $0x400] sm:$0xff]
    %v2409 = vld [vmem:[#allocation14 + $0x408] sm:$0xff]
    %v2410 = vld [vmem:[#allocation14 + $0x410] sm:$0xff]
    %v2411 = vld [vmem:[#allocation14 + $0x418] sm:$0xff]
    %v2412 = vld [vmem:[#allocation14 + $0x420] sm:$0xff]
    %v2413 = vld [vmem:[#allocation14 + $0x428] sm:$0xff]
    %v2414 = vld [vmem:[#allocation14 + $0x430] sm:$0xff]
    %v2415 = vld [vmem:[#allocation14 + $0x438] sm:$0xff]
    %v2416 = vld [vmem:[#allocation14 + $0x440] sm:$0xff]
    %v2417 = vld [vmem:[#allocation14 + $0x448] sm:$0xff]
    %v2418 = vld [vmem:[#allocation14 + $0x450] sm:$0xff]
    %v2419 = vld [vmem:[#allocation14 + $0x458] sm:$0xff]
    %v2420 = vld [vmem:[#allocation14 + $0x460] sm:$0xff]
    %v2421 = vld [vmem:[#allocation14 + $0x468] sm:$0xff]
    %v2422 = vld [vmem:[#allocation14 + $0x470] sm:$0xff]
    %v2423 = vld [vmem:[#allocation14 + $0x478] sm:$0xff]
    %v2424 = vld [vmem:[#allocation14 + $0x480] sm:$0xff]
    %v2425 = vld [vmem:[#allocation14 + $0x488] sm:$0xff]
    %v2426 = vld [vmem:[#allocation14 + $0x490] sm:$0xff]
    %v2427 = vld [vmem:[#allocation14 + $0x498] sm:$0xff]
    %v2428 = vld [vmem:[#allocation14 + $0x4a0] sm:$0xff]
    %v2429 = vld [vmem:[#allocation14 + $0x4a8] sm:$0xff]
    %v2430 = vld [vmem:[#allocation14 + $0x4b0] sm:$0xff]
    %v2431 = vld [vmem:[#allocation14 + $0x4b8] sm:$0xff]
    %v2432 = vld [vmem:[#allocation14 + $0x4c0] sm:$0xff]
    %v2433 = vld [vmem:[#allocation14 + $0x4c8] sm:$0xff]
    %v2434 = vld [vmem:[#allocation14 + $0x4d0] sm:$0xff]
    %v2435 = vld [vmem:[#allocation14 + $0x4d8] sm:$0xff]
    %v2436 = vld [vmem:[#allocation14 + $0x4e0] sm:$0xff]
    %v2437 = vld [vmem:[#allocation14 + $0x4e8] sm:$0xff]
    %v2438 = vld [vmem:[#allocation14 + $0x4f0] sm:$0xff]
    %v2439 = vld [vmem:[#allocation14 + $0x4f8] sm:$0xff]
    %v2440 = vld [vmem:[#allocation14 + $0x500] sm:$0xff]
    %v2441 = vld [vmem:[#allocation14 + $0x508] sm:$0xff]
    %v2442 = vld [vmem:[#allocation14 + $0x510] sm:$0xff]
    %v2443 = vld [vmem:[#allocation14 + $0x518] sm:$0xff]
    %v2444 = vld [vmem:[#allocation14 + $0x520] sm:$0xff]
    %v2445 = vld [vmem:[#allocation14 + $0x528] sm:$0xff]
    %v2446 = vld [vmem:[#allocation14 + $0x530] sm:$0xff]
    %v2447 = vld [vmem:[#allocation14 + $0x538] sm:$0xff]
    %v2448 = vld [vmem:[#allocation14 + $0x540] sm:$0xff]
    %v2449 = vld [vmem:[#allocation14 + $0x548] sm:$0xff]
    %v2450 = vld [vmem:[#allocation14 + $0x550] sm:$0xff]
    %v2451 = vld [vmem:[#allocation14 + $0x558] sm:$0xff]
    %v2452 = vld [vmem:[#allocation14 + $0x560] sm:$0xff]
    %v2453 = vld [vmem:[#allocation14 + $0x568] sm:$0xff]
    %v2454 = vld [vmem:[#allocation14 + $0x570] sm:$0xff]
    %v2455 = vld [vmem:[#allocation14 + $0x578] sm:$0xff]
    %v2456 = vld [vmem:[#allocation14 + $0x580] sm:$0xff]
    %v2457 = vld [vmem:[#allocation14 + $0x588] sm:$0xff]
    %v2458 = vld [vmem:[#allocation14 + $0x590] sm:$0xff]
    %v2459 = vld [vmem:[#allocation14 + $0x598] sm:$0xff]
    %v2460 = vld [vmem:[#allocation14 + $0x5a0] sm:$0xff]
    %v2461 = vld [vmem:[#allocation14 + $0x5a8] sm:$0xff]
    %v2462 = vld [vmem:[#allocation14 + $0x5b0] sm:$0xff]
    %v2463 = vld [vmem:[#allocation14 + $0x5b8] sm:$0xff]
    %v2464 = vld [vmem:[#allocation14 + $0x5c0] sm:$0xff]
    %v2465 = vld [vmem:[#allocation14 + $0x5c8] sm:$0xff]
    %v2466 = vld [vmem:[#allocation14 + $0x5d0] sm:$0xff]
    %v2467 = vld [vmem:[#allocation14 + $0x5d8] sm:$0xff]
    %v2468 = vld [vmem:[#allocation14 + $0x5e0] sm:$0xff]
    %v2469 = vld [vmem:[#allocation14 + $0x5e8] sm:$0xff]
    %v2470 = vld [vmem:[#allocation14 + $0x5f0] sm:$0xff]
    %v2471 = vld [vmem:[#allocation14 + $0x5f8] sm:$0xff]
    %v2472 = vld [vmem:[#allocation14 + $0x600] sm:$0xff]
    %v2473 = vld [vmem:[#allocation14 + $0x608] sm:$0xff]
    %v2474 = vld [vmem:[#allocation14 + $0x610] sm:$0xff]
    %v2475 = vld [vmem:[#allocation14 + $0x618] sm:$0xff]
    %v2476 = vld [vmem:[#allocation14 + $0x620] sm:$0xff]
    %v2477 = vld [vmem:[#allocation14 + $0x628] sm:$0xff]
    %v2478 = vld [vmem:[#allocation14 + $0x630] sm:$0xff]
    %v2479 = vld [vmem:[#allocation14 + $0x638] sm:$0xff]
    %v2480 = vld [vmem:[#allocation14 + $0x640] sm:$0xff]
    %v2481 = vld [vmem:[#allocation14 + $0x648] sm:$0xff]
    %v2482 = vld [vmem:[#allocation14 + $0x650] sm:$0xff]
    %v2483 = vld [vmem:[#allocation14 + $0x658] sm:$0xff]
    %v2484 = vld [vmem:[#allocation14 + $0x660] sm:$0xff]
    %v2485 = vld [vmem:[#allocation14 + $0x668] sm:$0xff]
    %v2486 = vld [vmem:[#allocation14 + $0x670] sm:$0xff]
    %v2487 = vld [vmem:[#allocation14 + $0x678] sm:$0xff]
    %v2488 = vld [vmem:[#allocation14 + $0x680] sm:$0xff]
    %v2489 = vld [vmem:[#allocation14 + $0x688] sm:$0xff]
    %v2490 = vld [vmem:[#allocation14 + $0x690] sm:$0xff]
    %v2491 = vld [vmem:[#allocation14 + $0x698] sm:$0xff]
    %v2492 = vld [vmem:[#allocation14 + $0x6a0] sm:$0xff]
    %v2493 = vld [vmem:[#allocation14 + $0x6a8] sm:$0xff]
    %v2494 = vld [vmem:[#allocation14 + $0x6b0] sm:$0xff]
    %v2495 = vld [vmem:[#allocation14 + $0x6b8] sm:$0xff]
    %v2496 = vld [vmem:[#allocation14 + $0x6c0] sm:$0xff]
    %v2497 = vld [vmem:[#allocation14 + $0x6c8] sm:$0xff]
    %v2498 = vld [vmem:[#allocation14 + $0x6d0] sm:$0xff]
    %v2499 = vld [vmem:[#allocation14 + $0x6d8] sm:$0xff]
    %v2500 = vld [vmem:[#allocation14 + $0x6e0] sm:$0xff]
    %v2501 = vld [vmem:[#allocation14 + $0x6e8] sm:$0xff]
    %v2502 = vld [vmem:[#allocation14 + $0x6f0] sm:$0xff]
    %v2503 = vld [vmem:[#allocation14 + $0x6f8] sm:$0xff]
    %v2504 = vld [vmem:[#allocation14 + $0x700] sm:$0xff]
    %v2505 = vld [vmem:[#allocation14 + $0x708] sm:$0xff]
    %v2506 = vld [vmem:[#allocation14 + $0x710] sm:$0xff]
    %v2507 = vld [vmem:[#allocation14 + $0x718] sm:$0xff]
    %v2508 = vld [vmem:[#allocation14 + $0x720] sm:$0xff]
    %v2509 = vld [vmem:[#allocation14 + $0x728] sm:$0xff]
    %v2510 = vld [vmem:[#allocation14 + $0x730] sm:$0xff]
    %v2511 = vld [vmem:[#allocation14 + $0x738] sm:$0xff]
    %v2512 = vld [vmem:[#allocation14 + $0x740] sm:$0xff]
    %v2513 = vld [vmem:[#allocation14 + $0x748] sm:$0xff]
    %v2514 = vld [vmem:[#allocation14 + $0x750] sm:$0xff]
    %v2515 = vld [vmem:[#allocation14 + $0x758] sm:$0xff]
    %v2516 = vld [vmem:[#allocation14 + $0x760] sm:$0xff]
    %v2517 = vld [vmem:[#allocation14 + $0x768] sm:$0xff]
    %v2518 = vld [vmem:[#allocation14 + $0x770] sm:$0xff]
    %v2519 = vld [vmem:[#allocation14 + $0x778] sm:$0xff]
    %v2520 = vld [vmem:[#allocation14 + $0x780] sm:$0xff]
    %v2521 = vld [vmem:[#allocation14 + $0x788] sm:$0xff]
    %v2522 = vld [vmem:[#allocation14 + $0x790] sm:$0xff]
    %v2523 = vld [vmem:[#allocation14 + $0x798] sm:$0xff]
    %v2524 = vld [vmem:[#allocation14 + $0x7a0] sm:$0xff]
    %v2525 = vld [vmem:[#allocation14 + $0x7a8] sm:$0xff]
    %v2526 = vld [vmem:[#allocation14 + $0x7b0] sm:$0xff]
    %v2527 = vld [vmem:[#allocation14 + $0x7b8] sm:$0xff]
    %v2528 = vld [vmem:[#allocation14 + $0x7c0] sm:$0xff]
    %v2529 = vld [vmem:[#allocation14 + $0x7c8] sm:$0xff]
    %v2530 = vld [vmem:[#allocation14 + $0x7d0] sm:$0xff]
    %v2531 = vld [vmem:[#allocation14 + $0x7d8] sm:$0xff]
    %v2532 = vld [vmem:[#allocation14 + $0x7e0] sm:$0xff]
    %v2533 = vld [vmem:[#allocation14 + $0x7e8] sm:$0xff]
    %v2534 = vld [vmem:[#allocation14 + $0x7f0] sm:$0xff]
    %v2535 = vld [vmem:[#allocation14 + $0x7f8] sm:$0xff]
    %v2536 = vld [vmem:[#allocation16] sm:$0xf]
    %v2538 = vlaneseq
    %v2539 = vshrl.u32 %v2538, 7
    %v2540 = vsub.s32 0, %v2539
    %v2541 = vrot.slane %v2536, %v2540
    %v2542 = vlaneseq
    %v2543 = vshrl.u32 %v2542, 7
    %v2544 = vsub.s32 1, %v2543
    %v2545 = vrot.slane %v2536, %v2544
    %v2546 = vlaneseq
    %v2547 = vshrl.u32 %v2546, 7
    %v2548 = vsub.s32 2, %v2547
    %v2549 = vrot.slane %v2536, %v2548
    %v2550 = vlaneseq
    %v2551 = vshrl.u32 %v2550, 7
    %v2552 = vsub.s32 3, %v2551
    %v2553 = vrot.slane %v2536, %v2552
    %2558 = vmatprep.subr.mxu0 %v2281
    %2559 = vmatpush1.msra.mxu0 %v2280
    %2560 = vmatprep.subr.mxu0 %v2285
    %2561 = vmatpush1.msra.mxu0 %v2284
    %2562 = vmatprep.subr.mxu0 %v2289
    %2563 = vmatpush1.msra.mxu0 %v2288
    %2564 = vmatprep.subr.mxu0 %v2293
    %2565 = vmatpush1.msra.mxu0 %v2292
    %2566 = vmatprep.subr.mxu0 %v2297
    %2567 = vmatpush1.msra.mxu0 %v2296
    %2568 = vmatprep.subr.mxu0 %v2301
    %2569 = vmatpush1.msra.mxu0 %v2300
    %2570 = vmatprep.subr.mxu0 %v2305
    %2571 = vmatpush1.msra.mxu0 %v2304
    %2572 = vmatprep.subr.mxu0 %v2309
    %2573 = vmatpush1.msra.mxu0 %v2308
    %2574 = vmatprep.subr.mxu0 %v2313
    %2575 = vmatpush1.msra.mxu0 %v2312
    %2576 = vmatprep.subr.mxu0 %v2317
    %2577 = vmatpush1.msra.mxu0 %v2316
    %2578 = vmatprep.subr.mxu0 %v2321
    %2579 = vmatpush1.msra.mxu0 %v2320
    %2580 = vmatprep.subr.mxu0 %v2325
    %2581 = vmatpush1.msra.mxu0 %v2324
    %2582 = vmatprep.subr.mxu0 %v2329
    %2583 = vmatpush1.msra.mxu0 %v2328
    %2584 = vmatprep.subr.mxu0 %v2333
    %2585 = vmatpush1.msra.mxu0 %v2332
    %2586 = vmatprep.subr.mxu0 %v2337
    %2587 = vmatpush1.msra.mxu0 %v2336
    %2588 = vmatprep.subr.mxu0 %v2341
    %2589 = vmatpush1.msra.mxu0 %v2340
    %2590 = vmatprep.subr.mxu0 %v2345
    %2591 = vmatpush1.msra.mxu0 %v2344
    %2592 = vmatprep.subr.mxu0 %v2349
    %2593 = vmatpush1.msra.mxu0 %v2348
    %2594 = vmatprep.subr.mxu0 %v2353
    %2595 = vmatpush1.msra.mxu0 %v2352
    %2596 = vmatprep.subr.mxu0 %v2357
    %2597 = vmatpush1.msra.mxu0 %v2356
    %2598 = vmatprep.subr.mxu0 %v2361
    %2599 = vmatpush1.msra.mxu0 %v2360
    %2600 = vmatprep.subr.mxu0 %v2365
    %2601 = vmatpush1.msra.mxu0 %v2364
    %2602 = vmatprep.subr.mxu0 %v2369
    %2603 = vmatpush1.msra.mxu0 %v2368
    %2604 = vmatprep.subr.mxu0 %v2373
    %2605 = vmatpush1.msra.mxu0 %v2372
    %2606 = vmatprep.subr.mxu0 %v2377
    %2607 = vmatpush1.msra.mxu0 %v2376
    %2608 = vmatprep.subr.mxu0 %v2381
    %2609 = vmatpush1.msra.mxu0 %v2380
    %2610 = vmatprep.subr.mxu0 %v2385
    %2611 = vmatpush1.msra.mxu0 %v2384
    %2612 = vmatprep.subr.mxu0 %v2389
    %2613 = vmatpush1.msra.mxu0 %v2388
    %2614 = vmatprep.subr.mxu0 %v2393
    %2615 = vmatpush1.msra.mxu0 %v2392
    %2616 = vmatprep.subr.mxu0 %v2397
    %2617 = vmatpush1.msra.mxu0 %v2396
    %2618 = vmatprep.subr.mxu0 %v2401
    %2619 = vmatpush1.msra.mxu0 %v2400
    %2620 = vmatprep.subr.mxu0 %v2405
    %2621 = vmatpush1.msra.mxu0 %v2404
    %2622 = vmatprep.mubr.f32.mxu0 %v2277
    %2623 = vmatmul.mubr.f32.gmra.mrb[0].mxu0 %v2276
    %v2624 = vpop.f32.mrb[0].mxu0
    %v2625 = vadd.f32 %v2541, %v2624
    %v2626 = vpop.f32.mrb[0].mxu0
    %v2627 = vadd.f32 %v2545, %v2626
    %2628 = vdwg.mxu0
    %2629 = vmatprep.subr.mxu0 %v2409
    %2630 = vmatpush1.msra.mxu0 %v2408
    %2631 = vmatprep.subr.mxu0 %v2413
    %2632 = vmatpush1.msra.mxu0 %v2412
    %2633 = vmatprep.subr.mxu0 %v2417
    %2634 = vmatpush1.msra.mxu0 %v2416
    %2635 = vmatprep.subr.mxu0 %v2421
    %2636 = vmatpush1.msra.mxu0 %v2420
    %2637 = vmatprep.subr.mxu0 %v2425
    %2638 = vmatpush1.msra.mxu0 %v2424
    %2639 = vmatprep.subr.mxu0 %v2429
    %2640 = vmatpush1.msra.mxu0 %v2428
    %2641 = vmatprep.subr.mxu0 %v2433
    %2642 = vmatpush1.msra.mxu0 %v2432
    %2643 = vmatprep.subr.mxu0 %v2437
    %2644 = vmatpush1.msra.mxu0 %v2436
    %2645 = vmatprep.subr.mxu0 %v2441
    %2646 = vmatpush1.msra.mxu0 %v2440
    %2647 = vmatprep.subr.mxu0 %v2445
    %2648 = vmatpush1.msra.mxu0 %v2444
    %2649 = vmatprep.subr.mxu0 %v2449
    %2650 = vmatpush1.msra.mxu0 %v2448
    %2651 = vmatprep.subr.mxu0 %v2453
    %2652 = vmatpush1.msra.mxu0 %v2452
    %2653 = vmatprep.subr.mxu0 %v2457
    %2654 = vmatpush1.msra.mxu0 %v2456
    %2655 = vmatprep.subr.mxu0 %v2461
    %2656 = vmatpush1.msra.mxu0 %v2460
    %2657 = vmatprep.subr.mxu0 %v2465
    %2658 = vmatpush1.msra.mxu0 %v2464
    %2659 = vmatprep.subr.mxu0 %v2469
    %2660 = vmatpush1.msra.mxu0 %v2468
    %2661 = vmatprep.subr.mxu0 %v2473
    %2662 = vmatpush1.msra.mxu0 %v2472
    %2663 = vmatprep.subr.mxu0 %v2477
    %2664 = vmatpush1.msra.mxu0 %v2476
    %2665 = vmatprep.subr.mxu0 %v2481
    %2666 = vmatpush1.msra.mxu0 %v2480
    %2667 = vmatprep.subr.mxu0 %v2485
    %2668 = vmatpush1.msra.mxu0 %v2484
    %2669 = vmatprep.subr.mxu0 %v2489
    %2670 = vmatpush1.msra.mxu0 %v2488
    %2671 = vmatprep.subr.mxu0 %v2493
    %2672 = vmatpush1.msra.mxu0 %v2492
    %2673 = vmatprep.subr.mxu0 %v2497
    %2674 = vmatpush1.msra.mxu0 %v2496
    %2675 = vmatprep.subr.mxu0 %v2501
    %2676 = vmatpush1.msra.mxu0 %v2500
    %2677 = vmatprep.subr.mxu0 %v2505
    %2678 = vmatpush1.msra.mxu0 %v2504
    %2679 = vmatprep.subr.mxu0 %v2509
    %2680 = vmatpush1.msra.mxu0 %v2508
    %2681 = vmatprep.subr.mxu0 %v2513
    %2682 = vmatpush1.msra.mxu0 %v2512
    %2683 = vmatprep.subr.mxu0 %v2517
    %2684 = vmatpush1.msra.mxu0 %v2516
    %2685 = vmatprep.subr.mxu0 %v2521
    %2686 = vmatpush1.msra.mxu0 %v2520
    %2687 = vmatprep.subr.mxu0 %v2525
    %2688 = vmatpush1.msra.mxu0 %v2524
    %2689 = vmatprep.subr.mxu0 %v2529
    %2690 = vmatpush1.msra.mxu0 %v2528
    %2691 = vmatprep.subr.mxu0 %v2533
    %2692 = vmatpush1.msra.mxu0 %v2532
    %2693 = vmatprep.mubr.f32.mxu0 %v2279
    %2694 = vmatmul.mubr.f32.gmra.mrb[0].mxu0 %v2278
    %v2695 = vpop.f32.mrb[0].mxu0
    %v2696 = vadd.f32 %v2625, %v2695
    %v2697 = vpop.f32.mrb[0].mxu0
    %v2698 = vadd.f32 %v2627, %v2697
    %2699 = vdwg.mxu0
    %2700 = vmatprep.subr.mxu0 %v2283
    %2701 = vmatpush1.msra.mxu0 %v2282
    %2702 = vmatprep.subr.mxu0 %v2287
    %2703 = vmatpush1.msra.mxu0 %v2286
    %2704 = vmatprep.subr.mxu0 %v2291
    %2705 = vmatpush1.msra.mxu0 %v2290
    %2706 = vmatprep.subr.mxu0 %v2295
    %2707 = vmatpush1.msra.mxu0 %v2294
    %2708 = vmatprep.subr.mxu0 %v2299
    %2709 = vmatpush1.msra.mxu0 %v2298
    %2710 = vmatprep.subr.mxu0 %v2303
    %2711 = vmatpush1.msra.mxu0 %v2302
    %2712 = vmatprep.subr.mxu0 %v2307
    %2713 = vmatpush1.msra.mxu0 %v2306
    %2714 = vmatprep.subr.mxu0 %v2311
    %2715 = vmatpush1.msra.mxu0 %v2310
    %2716 = vmatprep.subr.mxu0 %v2315
    %2717 = vmatpush1.msra.mxu0 %v2314
    %2718 = vmatprep.subr.mxu0 %v2319
    %2719 = vmatpush1.msra.mxu0 %v2318
    %2720 = vmatprep.subr.mxu0 %v2323
    %2721 = vmatpush1.msra.mxu0 %v2322
    %2722 = vmatprep.subr.mxu0 %v2327
    %2723 = vmatpush1.msra.mxu0 %v2326
    %2724 = vmatprep.subr.mxu0 %v2331
    %2725 = vmatpush1.msra.mxu0 %v2330
    %2726 = vmatprep.subr.mxu0 %v2335
    %2727 = vmatpush1.msra.mxu0 %v2334
    %2728 = vmatprep.subr.mxu0 %v2339
    %2729 = vmatpush1.msra.mxu0 %v2338
    %2730 = vmatprep.subr.mxu0 %v2343
    %2731 = vmatpush1.msra.mxu0 %v2342
    %2732 = vmatprep.subr.mxu0 %v2347
    %2733 = vmatpush1.msra.mxu0 %v2346
    %2734 = vmatprep.subr.mxu0 %v2351
    %2735 = vmatpush1.msra.mxu0 %v2350
    %2736 = vmatprep.subr.mxu0 %v2355
    %2737 = vmatpush1.msra.mxu0 %v2354
    %2738 = vmatprep.subr.mxu0 %v2359
    %2739 = vmatpush1.msra.mxu0 %v2358
    %2740 = vmatprep.subr.mxu0 %v2363
    %2741 = vmatpush1.msra.mxu0 %v2362
    %2742 = vmatprep.subr.mxu0 %v2367
    %2743 = vmatpush1.msra.mxu0 %v2366
    %2744 = vmatprep.subr.mxu0 %v2371
    %2745 = vmatpush1.msra.mxu0 %v2370
    %2746 = vmatprep.subr.mxu0 %v2375
    %2747 = vmatpush1.msra.mxu0 %v2374
    %2748 = vmatprep.subr.mxu0 %v2379
    %2749 = vmatpush1.msra.mxu0 %v2378
    %2750 = vmatprep.subr.mxu0 %v2383
    %2751 = vmatpush1.msra.mxu0 %v2382
    %2752 = vmatprep.subr.mxu0 %v2387
    %2753 = vmatpush1.msra.mxu0 %v2386
    %2754 = vmatprep.subr.mxu0 %v2391
    %2755 = vmatpush1.msra.mxu0 %v2390
    %2756 = vmatprep.subr.mxu0 %v2395
    %2757 = vmatpush1.msra.mxu0 %v2394
    %2758 = vmatprep.subr.mxu0 %v2399
    %2759 = vmatpush1.msra.mxu0 %v2398
    %2760 = vmatprep.subr.mxu0 %v2403
    %2761 = vmatpush1.msra.mxu0 %v2402
    %2762 = vmatprep.subr.mxu0 %v2407
    %2763 = vmatpush1.msra.mxu0 %v2406
    %2764 = vmatprep.mubr.f32.mxu0 %v2277
    %2765 = vmatmul.mubr.f32.gmra.mrb[0].mxu0 %v2276
    %v2766 = vpop.f32.mrb[0].mxu0
    %v2767 = vadd.f32 %v2549, %v2766
    %v2768 = vpop.f32.mrb[0].mxu0
    %v2769 = vadd.f32 %v2553, %v2768
    %2770 = vdwg.mxu0
    %2771 = vmatprep.subr.mxu0 %v2411
    %2772 = vmatpush1.msra.mxu0 %v2410
    %2773 = vmatprep.subr.mxu0 %v2415
    %2774 = vmatpush1.msra.mxu0 %v2414
    %2775 = vmatprep.subr.mxu0 %v2419
    %2776 = vmatpush1.msra.mxu0 %v2418
    %2777 = vmatprep.subr.mxu0 %v2423
    %2778 = vmatpush1.msra.mxu0 %v2422
    %2779 = vmatprep.subr.mxu0 %v2427
    %2780 = vmatpush1.msra.mxu0 %v2426
    %2781 = vmatprep.subr.mxu0 %v2431
    %2782 = vmatpush1.msra.mxu0 %v2430
    %2783 = vmatprep.subr.mxu0 %v2435
    %2784 = vmatpush1.msra.mxu0 %v2434
    %2785 = vmatprep.subr.mxu0 %v2439
    %2786 = vmatpush1.msra.mxu0 %v2438
    %2787 = vmatprep.subr.mxu0 %v2443
    %2788 = vmatpush1.msra.mxu0 %v2442
    %2789 = vmatprep.subr.mxu0 %v2447
    %2790 = vmatpush1.msra.mxu0 %v2446
    %2791 = vmatprep.subr.mxu0 %v2451
    %2792 = vmatpush1.msra.mxu0 %v2450
    %2793 = vmatprep.subr.mxu0 %v2455
    %2794 = vmatpush1.msra.mxu0 %v2454
    %2795 = vmatprep.subr.mxu0 %v2459
    %2796 = vmatpush1.msra.mxu0 %v2458
    %2797 = vmatprep.subr.mxu0 %v2463
    %2798 = vmatpush1.msra.mxu0 %v2462
    %2799 = vmatprep.subr.mxu0 %v2467
    %2800 = vmatpush1.msra.mxu0 %v2466
    %2801 = vmatprep.subr.mxu0 %v2471
    %2802 = vmatpush1.msra.mxu0 %v2470
    %2803 = vmatprep.subr.mxu0 %v2475
    %2804 = vmatpush1.msra.mxu0 %v2474
    %2805 = vmatprep.subr.mxu0 %v2479
    %2806 = vmatpush1.msra.mxu0 %v2478
    %2807 = vmatprep.subr.mxu0 %v2483
    %2808 = vmatpush1.msra.mxu0 %v2482
    %2809 = vmatprep.subr.mxu0 %v2487
    %2810 = vmatpush1.msra.mxu0 %v2486
    %2811 = vmatprep.subr.mxu0 %v2491
    %2812 = vmatpush1.msra.mxu0 %v2490
    %2813 = vmatprep.subr.mxu0 %v2495
    %2814 = vmatpush1.msra.mxu0 %v2494
    %2815 = vmatprep.subr.mxu0 %v2499
    %2816 = vmatpush1.msra.mxu0 %v2498
    %2817 = vmatprep.subr.mxu0 %v2503
    %2818 = vmatpush1.msra.mxu0 %v2502
    %2819 = vmatprep.subr.mxu0 %v2507
    %2820 = vmatpush1.msra.mxu0 %v2506
    %2821 = vmatprep.subr.mxu0 %v2511
    %2822 = vmatpush1.msra.mxu0 %v2510
    %2823 = vmatprep.subr.mxu0 %v2515
    %2824 = vmatpush1.msra.mxu0 %v2514
    %2825 = vmatprep.subr.mxu0 %v2519
    %2826 = vmatpush1.msra.mxu0 %v2518
    %2827 = vmatprep.subr.mxu0 %v2523
    %2828 = vmatpush1.msra.mxu0 %v2522
    %2829 = vmatprep.subr.mxu0 %v2527
    %2830 = vmatpush1.msra.mxu0 %v2526
    %2831 = vmatprep.subr.mxu0 %v2531
    %2832 = vmatpush1.msra.mxu0 %v2530
    %2833 = vmatprep.subr.mxu0 %v2535
    %2834 = vmatpush1.msra.mxu0 %v2534
    %2835 = vmatprep.mubr.f32.mxu0 %v2279
    %2836 = vmatmul.mubr.f32.gmra.mrb[0].mxu0 %v2278
    %v2837 = vpop.f32.mrb[0].mxu0
    %v2838 = vadd.f32 %v2767, %v2837
    %v2839 = vpop.f32.mrb[0].mxu0
    %v2840 = vadd.f32 %v2769, %v2839
    %2841 = vdwg.mxu0
    %v2842 = vmax.f32 %v2696, 0.0
    %v2843 = vmax.f32 %v2698, 0.0
    %v2844 = vmax.f32 %v2838, 0.0
    %v2845 = vmax.f32 %v2840, 0.0
    %v2846 = vld [vmem:[#allocation17] sm:$0xff]
    %v2847 = vld [vmem:[#allocation17 + $0x8] sm:$0xff]
    %v2848 = vld [vmem:[#allocation17 + $0x40] sm:$0xff]
    %v2849 = vld [vmem:[#allocation17 + $0x48] sm:$0xff]
    %v2850 = vld [vmem:[#allocation17 + $0x80] sm:$0xff]
    %v2851 = vld [vmem:[#allocation17 + $0x88] sm:$0xff]
    %v2852 = vld [vmem:[#allocation17 + $0xc0] sm:$0xff]
    %v2853 = vld [vmem:[#allocation17 + $0xc8] sm:$0xff]
    %v2854 = vld [vmem:[#allocation17 + $0x100] sm:$0xff]
    %v2855 = vld [vmem:[#allocation17 + $0x108] sm:$0xff]
    %v2856 = vld [vmem:[#allocation17 + $0x140] sm:$0xff]
    %v2857 = vld [vmem:[#allocation17 + $0x148] sm:$0xff]
    %v2858 = vld [vmem:[#allocation17 + $0x180] sm:$0xff]
    %v2859 = vld [vmem:[#allocation17 + $0x188] sm:$0xff]
    %v2860 = vld [vmem:[#allocation17 + $0x1c0] sm:$0xff]
    %v2861 = vld [vmem:[#allocation17 + $0x1c8] sm:$0xff]
    %v2862 = vld [vmem:[#allocation17 + $0x200] sm:$0xff]
    %v2863 = vld [vmem:[#allocation17 + $0x208] sm:$0xff]
    %v2864 = vld [vmem:[#allocation17 + $0x240] sm:$0xff]
    %v2865 = vld [vmem:[#allocation17 + $0x248] sm:$0xff]
    %v2866 = vld [vmem:[#allocation17 + $0x280] sm:$0xff]
    %v2867 = vld [vmem:[#allocation17 + $0x288] sm:$0xff]
    %v2868 = vld [vmem:[#allocation17 + $0x2c0] sm:$0xff]
    %v2869 = vld [vmem:[#allocation17 + $0x2c8] sm:$0xff]
    %v2870 = vld [vmem:[#allocation17 + $0x300] sm:$0xff]
    %v2871 = vld [vmem:[#allocation17 + $0x308] sm:$0xff]
    %v2872 = vld [vmem:[#allocation17 + $0x340] sm:$0xff]
    %v2873 = vld [vmem:[#allocation17 + $0x348] sm:$0xff]
    %v2874 = vld [vmem:[#allocation17 + $0x380] sm:$0xff]
    %v2875 = vld [vmem:[#allocation17 + $0x388] sm:$0xff]
    %v2876 = vld [vmem:[#allocation17 + $0x3c0] sm:$0xff]
    %v2877 = vld [vmem:[#allocation17 + $0x3c8] sm:$0xff]
    %v2878 = vld [vmem:[#allocation17 + $0x400] sm:$0xff]
    %v2879 = vld [vmem:[#allocation17 + $0x408] sm:$0xff]
    %v2880 = vld [vmem:[#allocation17 + $0x440] sm:$0xff]
    %v2881 = vld [vmem:[#allocation17 + $0x448] sm:$0xff]
    %v2882 = vld [vmem:[#allocation17 + $0x480] sm:$0xff]
    %v2883 = vld [vmem:[#allocation17 + $0x488] sm:$0xff]
    %v2884 = vld [vmem:[#allocation17 + $0x4c0] sm:$0xff]
    %v2885 = vld [vmem:[#allocation17 + $0x4c8] sm:$0xff]
    %v2886 = vld [vmem:[#allocation17 + $0x500] sm:$0xff]
    %v2887 = vld [vmem:[#allocation17 + $0x508] sm:$0xff]
    %v2888 = vld [vmem:[#allocation17 + $0x540] sm:$0xff]
    %v2889 = vld [vmem:[#allocation17 + $0x548] sm:$0xff]
    %v2890 = vld [vmem:[#allocation17 + $0x580] sm:$0xff]
    %v2891 = vld [vmem:[#allocation17 + $0x588] sm:$0xff]
    %v2892 = vld [vmem:[#allocation17 + $0x5c0] sm:$0xff]
    %v2893 = vld [vmem:[#allocation17 + $0x5c8] sm:$0xff]
    %v2894 = vld [vmem:[#allocation17 + $0x600] sm:$0xff]
    %v2895 = vld [vmem:[#allocation17 + $0x608] sm:$0xff]
    %v2896 = vld [vmem:[#allocation17 + $0x640] sm:$0xff]
    %v2897 = vld [vmem:[#allocation17 + $0x648] sm:$0xff]
    %v2898 = vld [vmem:[#allocation17 + $0x680] sm:$0xff]
    %v2899 = vld [vmem:[#allocation17 + $0x688] sm:$0xff]
    %v2900 = vld [vmem:[#allocation17 + $0x6c0] sm:$0xff]
    %v2901 = vld [vmem:[#allocation17 + $0x6c8] sm:$0xff]
    %v2902 = vld [vmem:[#allocation17 + $0x700] sm:$0xff]
    %v2903 = vld [vmem:[#allocation17 + $0x708] sm:$0xff]
    %v2904 = vld [vmem:[#allocation17 + $0x740] sm:$0xff]
    %v2905 = vld [vmem:[#allocation17 + $0x748] sm:$0xff]
    %v2906 = vld [vmem:[#allocation17 + $0x780] sm:$0xff]
    %v2907 = vld [vmem:[#allocation17 + $0x788] sm:$0xff]
    %v2908 = vld [vmem:[#allocation17 + $0x7c0] sm:$0xff]
    %v2909 = vld [vmem:[#allocation17 + $0x7c8] sm:$0xff]
    %v2910 = vld [vmem:[#allocation17 + $0x800] sm:$0xff]
    %v2911 = vld [vmem:[#allocation17 + $0x808] sm:$0xff]
    %v2912 = vld [vmem:[#allocation17 + $0x840] sm:$0xff]
    %v2913 = vld [vmem:[#allocation17 + $0x848] sm:$0xff]
    %v2914 = vld [vmem:[#allocation17 + $0x880] sm:$0xff]
    %v2915 = vld [vmem:[#allocation17 + $0x888] sm:$0xff]
    %v2916 = vld [vmem:[#allocation17 + $0x8c0] sm:$0xff]
    %v2917 = vld [vmem:[#allocation17 + $0x8c8] sm:$0xff]
    %v2918 = vld [vmem:[#allocation17 + $0x900] sm:$0xff]
    %v2919 = vld [vmem:[#allocation17 + $0x908] sm:$0xff]
    %v2920 = vld [vmem:[#allocation17 + $0x940] sm:$0xff]
    %v2921 = vld [vmem:[#allocation17 + $0x948] sm:$0xff]
    %v2922 = vld [vmem:[#allocation17 + $0x980] sm:$0xff]
    %v2923 = vld [vmem:[#allocation17 + $0x988] sm:$0xff]
    %v2924 = vld [vmem:[#allocation17 + $0x9c0] sm:$0xff]
    %v2925 = vld [vmem:[#allocation17 + $0x9c8] sm:$0xff]
    %v2926 = vld [vmem:[#allocation17 + $0xa00] sm:$0xff]
    %v2927 = vld [vmem:[#allocation17 + $0xa08] sm:$0xff]
    %v2928 = vld [vmem:[#allocation17 + $0xa40] sm:$0xff]
    %v2929 = vld [vmem:[#allocation17 + $0xa48] sm:$0xff]
    %v2930 = vld [vmem:[#allocation17 + $0xa80] sm:$0xff]
    %v2931 = vld [vmem:[#allocation17 + $0xa88] sm:$0xff]
    %v2932 = vld [vmem:[#allocation17 + $0xac0] sm:$0xff]
    %v2933 = vld [vmem:[#allocation17 + $0xac8] sm:$0xff]
    %v2934 = vld [vmem:[#allocation17 + $0xb00] sm:$0xff]
    %v2935 = vld [vmem:[#allocation17 + $0xb08] sm:$0xff]
    %v2936 = vld [vmem:[#allocation17 + $0xb40] sm:$0xff]
    %v2937 = vld [vmem:[#allocation17 + $0xb48] sm:$0xff]
    %v2938 = vld [vmem:[#allocation17 + $0xb80] sm:$0xff]
    %v2939 = vld [vmem:[#allocation17 + $0xb88] sm:$0xff]
    %v2940 = vld [vmem:[#allocation17 + $0xbc0] sm:$0xff]
    %v2941 = vld [vmem:[#allocation17 + $0xbc8] sm:$0xff]
    %v2942 = vld [vmem:[#allocation17 + $0xc00] sm:$0xff]
    %v2943 = vld [vmem:[#allocation17 + $0xc08] sm:$0xff]
    %v2944 = vld [vmem:[#allocation17 + $0xc40] sm:$0xff]
    %v2945 = vld [vmem:[#allocation17 + $0xc48] sm:$0xff]
    %v2946 = vld [vmem:[#allocation17 + $0xc80] sm:$0xff]
    %v2947 = vld [vmem:[#allocation17 + $0xc88] sm:$0xff]
    %v2948 = vld [vmem:[#allocation17 + $0xcc0] sm:$0xff]
    %v2949 = vld [vmem:[#allocation17 + $0xcc8] sm:$0xff]
    %v2950 = vld [vmem:[#allocation17 + $0xd00] sm:$0xff]
    %v2951 = vld [vmem:[#allocation17 + $0xd08] sm:$0xff]
    %v2952 = vld [vmem:[#allocation17 + $0xd40] sm:$0xff]
    %v2953 = vld [vmem:[#allocation17 + $0xd48] sm:$0xff]
    %v2954 = vld [vmem:[#allocation17 + $0xd80] sm:$0xff]
    %v2955 = vld [vmem:[#allocation17 + $0xd88] sm:$0xff]
    %v2956 = vld [vmem:[#allocation17 + $0xdc0] sm:$0xff]
    %v2957 = vld [vmem:[#allocation17 + $0xdc8] sm:$0xff]
    %v2958 = vld [vmem:[#allocation17 + $0xe00] sm:$0xff]
    %v2959 = vld [vmem:[#allocation17 + $0xe08] sm:$0xff]
    %v2960 = vld [vmem:[#allocation17 + $0xe40] sm:$0xff]
    %v2961 = vld [vmem:[#allocation17 + $0xe48] sm:$0xff]
    %v2962 = vld [vmem:[#allocation17 + $0xe80] sm:$0xff]
    %v2963 = vld [vmem:[#allocation17 + $0xe88] sm:$0xff]
    %v2964 = vld [vmem:[#allocation17 + $0xec0] sm:$0xff]
    %v2965 = vld [vmem:[#allocation17 + $0xec8] sm:$0xff]
    %v2966 = vld [vmem:[#allocation17 + $0xf00] sm:$0xff]
    %v2967 = vld [vmem:[#allocation17 + $0xf08] sm:$0xff]
    %v2968 = vld [vmem:[#allocation17 + $0xf40] sm:$0xff]
    %v2969 = vld [vmem:[#allocation17 + $0xf48] sm:$0xff]
    %v2970 = vld [vmem:[#allocation17 + $0xf80] sm:$0xff]
    %v2971 = vld [vmem:[#allocation17 + $0xf88] sm:$0xff]
    %v2972 = vld [vmem:[#allocation17 + $0xfc0] sm:$0xff]
    %v2973 = vld [vmem:[#allocation17 + $0xfc8] sm:$0xff]
    %v2974 = vld [vmem:[#allocation19] sm:$0x3]
    %v2976 = vlaneseq
    %v2977 = vshrl.u32 %v2976, 7
    %v2978 = vsub.s32 0, %v2977
    %v2979 = vrot.slane %v2974, %v2978
    %v2980 = vlaneseq
    %v2981 = vshrl.u32 %v2980, 7
    %v2982 = vsub.s32 1, %v2981
    %v2983 = vrot.slane %v2974, %v2982
    %2986 = vmatprep.subr.mxu0 %v2847
    %2987 = vmatpush1.msra.mxu0 %v2846
    %2988 = vmatprep.subr.mxu0 %v2849
    %2989 = vmatpush1.msra.mxu0 %v2848
    %2990 = vmatprep.subr.mxu0 %v2851
    %2991 = vmatpush1.msra.mxu0 %v2850
    %2992 = vmatprep.subr.mxu0 %v2853
    %2993 = vmatpush1.msra.mxu0 %v2852
    %2994 = vmatprep.subr.mxu0 %v2855
    %2995 = vmatpush1.msra.mxu0 %v2854
    %2996 = vmatprep.subr.mxu0 %v2857
    %2997 = vmatpush1.msra.mxu0 %v2856
    %2998 = vmatprep.subr.mxu0 %v2859
    %2999 = vmatpush1.msra.mxu0 %v2858
    %3000 = vmatprep.subr.mxu0 %v2861
    %3001 = vmatpush1.msra.mxu0 %v2860
    %3002 = vmatprep.subr.mxu0 %v2863
    %3003 = vmatpush1.msra.mxu0 %v2862
    %3004 = vmatprep.subr.mxu0 %v2865
    %3005 = vmatpush1.msra.mxu0 %v2864
    %3006 = vmatprep.subr.mxu0 %v2867
    %3007 = vmatpush1.msra.mxu0 %v2866
    %3008 = vmatprep.subr.mxu0 %v2869
    %3009 = vmatpush1.msra.mxu0 %v2868
    %3010 = vmatprep.subr.mxu0 %v2871
    %3011 = vmatpush1.msra.mxu0 %v2870
    %3012 = vmatprep.subr.mxu0 %v2873
    %3013 = vmatpush1.msra.mxu0 %v2872
    %3014 = vmatprep.subr.mxu0 %v2875
    %3015 = vmatpush1.msra.mxu0 %v2874
    %3016 = vmatprep.subr.mxu0 %v2877
    %3017 = vmatpush1.msra.mxu0 %v2876
    %3018 = vmatprep.subr.mxu0 %v2879
    %3019 = vmatpush1.msra.mxu0 %v2878
    %3020 = vmatprep.subr.mxu0 %v2881
    %3021 = vmatpush1.msra.mxu0 %v2880
    %3022 = vmatprep.subr.mxu0 %v2883
    %3023 = vmatpush1.msra.mxu0 %v2882
    %3024 = vmatprep.subr.mxu0 %v2885
    %3025 = vmatpush1.msra.mxu0 %v2884
    %3026 = vmatprep.subr.mxu0 %v2887
    %3027 = vmatpush1.msra.mxu0 %v2886
    %3028 = vmatprep.subr.mxu0 %v2889
    %3029 = vmatpush1.msra.mxu0 %v2888
    %3030 = vmatprep.subr.mxu0 %v2891
    %3031 = vmatpush1.msra.mxu0 %v2890
    %3032 = vmatprep.subr.mxu0 %v2893
    %3033 = vmatpush1.msra.mxu0 %v2892
    %3034 = vmatprep.subr.mxu0 %v2895
    %3035 = vmatpush1.msra.mxu0 %v2894
    %3036 = vmatprep.subr.mxu0 %v2897
    %3037 = vmatpush1.msra.mxu0 %v2896
    %3038 = vmatprep.subr.mxu0 %v2899
    %3039 = vmatpush1.msra.mxu0 %v2898
    %3040 = vmatprep.subr.mxu0 %v2901
    %3041 = vmatpush1.msra.mxu0 %v2900
    %3042 = vmatprep.subr.mxu0 %v2903
    %3043 = vmatpush1.msra.mxu0 %v2902
    %3044 = vmatprep.subr.mxu0 %v2905
    %3045 = vmatpush1.msra.mxu0 %v2904
    %3046 = vmatprep.subr.mxu0 %v2907
    %3047 = vmatpush1.msra.mxu0 %v2906
    %3048 = vmatprep.subr.mxu0 %v2909
    %3049 = vmatpush1.msra.mxu0 %v2908
    %3050 = vmatprep.mubr.f32.mxu0 %v2843
    %3051 = vmatmul.mubr.f32.gmra.mrb[0].mxu0 %v2842
    %v3052 = vpop.f32.mrb[0].mxu0
    %v3053 = vadd.f32 %v2979, %v3052
    %v3054 = vpop.f32.mrb[0].mxu0
    %v3055 = vadd.f32 %v2983, %v3054
    %3056 = vdwg.mxu0
    %3057 = vmatprep.subr.mxu0 %v2911
    %3058 = vmatpush1.msra.mxu0 %v2910
    %3059 = vmatprep.subr.mxu0 %v2913
    %3060 = vmatpush1.msra.mxu0 %v2912
    %3061 = vmatprep.subr.mxu0 %v2915
    %3062 = vmatpush1.msra.mxu0 %v2914
    %3063 = vmatprep.subr.mxu0 %v2917
    %3064 = vmatpush1.msra.mxu0 %v2916
    %3065 = vmatprep.subr.mxu0 %v2919
    %3066 = vmatpush1.msra.mxu0 %v2918
    %3067 = vmatprep.subr.mxu0 %v2921
    %3068 = vmatpush1.msra.mxu0 %v2920
    %3069 = vmatprep.subr.mxu0 %v2923
    %3070 = vmatpush1.msra.mxu0 %v2922
    %3071 = vmatprep.subr.mxu0 %v2925
    %3072 = vmatpush1.msra.mxu0 %v2924
    %3073 = vmatprep.subr.mxu0 %v2927
    %3074 = vmatpush1.msra.mxu0 %v2926
    %3075 = vmatprep.subr.mxu0 %v2929
    %3076 = vmatpush1.msra.mxu0 %v2928
    %3077 = vmatprep.subr.mxu0 %v2931
    %3078 = vmatpush1.msra.mxu0 %v2930
    %3079 = vmatprep.subr.mxu0 %v2933
    %3080 = vmatpush1.msra.mxu0 %v2932
    %3081 = vmatprep.subr.mxu0 %v2935
    %3082 = vmatpush1.msra.mxu0 %v2934
    %3083 = vmatprep.subr.mxu0 %v2937
    %3084 = vmatpush1.msra.mxu0 %v2936
    %3085 = vmatprep.subr.mxu0 %v2939
    %3086 = vmatpush1.msra.mxu0 %v2938
    %3087 = vmatprep.subr.mxu0 %v2941
    %3088 = vmatpush1.msra.mxu0 %v2940
    %3089 = vmatprep.subr.mxu0 %v2943
    %3090 = vmatpush1.msra.mxu0 %v2942
    %3091 = vmatprep.subr.mxu0 %v2945
    %3092 = vmatpush1.msra.mxu0 %v2944
    %3093 = vmatprep.subr.mxu0 %v2947
    %3094 = vmatpush1.msra.mxu0 %v2946
    %3095 = vmatprep.subr.mxu0 %v2949
    %3096 = vmatpush1.msra.mxu0 %v2948
    %3097 = vmatprep.subr.mxu0 %v2951
    %3098 = vmatpush1.msra.mxu0 %v2950
    %3099 = vmatprep.subr.mxu0 %v2953
    %3100 = vmatpush1.msra.mxu0 %v2952
    %3101 = vmatprep.subr.mxu0 %v2955
    %3102 = vmatpush1.msra.mxu0 %v2954
    %3103 = vmatprep.subr.mxu0 %v2957
    %3104 = vmatpush1.msra.mxu0 %v2956
    %3105 = vmatprep.subr.mxu0 %v2959
    %3106 = vmatpush1.msra.mxu0 %v2958
    %3107 = vmatprep.subr.mxu0 %v2961
    %3108 = vmatpush1.msra.mxu0 %v2960
    %3109 = vmatprep.subr.mxu0 %v2963
    %3110 = vmatpush1.msra.mxu0 %v2962
    %3111 = vmatprep.subr.mxu0 %v2965
    %3112 = vmatpush1.msra.mxu0 %v2964
    %3113 = vmatprep.subr.mxu0 %v2967
    %3114 = vmatpush1.msra.mxu0 %v2966
    %3115 = vmatprep.subr.mxu0 %v2969
    %3116 = vmatpush1.msra.mxu0 %v2968
    %3117 = vmatprep.subr.mxu0 %v2971
    %3118 = vmatpush1.msra.mxu0 %v2970
    %3119 = vmatprep.subr.mxu0 %v2973
    %3120 = vmatpush1.msra.mxu0 %v2972
    %3121 = vmatprep.mubr.f32.mxu0 %v2845
    %3122 = vmatmul.mubr.f32.gmra.mrb[0].mxu0 %v2844
    %v3123 = vpop.f32.mrb[0].mxu0
    %v3124 = vadd.f32 %v3053, %v3123
    %v3125 = vpop.f32.mrb[0].mxu0
    %v3126 = vadd.f32 %v3055, %v3125
    %3127 = vdwg.mxu0
    %v3128 = vmax.f32 %v3124, 0.0
    %v3129 = vmax.f32 %v3126, 0.0
    %v3130 = vld [vmem:[#allocation17 + $0x10] sm:$0xff]
    %v3131 = vld [vmem:[#allocation17 + $0x18] sm:$0xff]
    %v3132 = vld [vmem:[#allocation17 + $0x50] sm:$0xff]
    %v3133 = vld [vmem:[#allocation17 + $0x58] sm:$0xff]
    %v3134 = vld [vmem:[#allocation17 + $0x90] sm:$0xff]
    %v3135 = vld [vmem:[#allocation17 + $0x98] sm:$0xff]
    %v3136 = vld [vmem:[#allocation17 + $0xd0] sm:$0xff]
    %v3137 = vld [vmem:[#allocation17 + $0xd8] sm:$0xff]
    %v3138 = vld [vmem:[#allocation17 + $0x110] sm:$0xff]
    %v3139 = vld [vmem:[#allocation17 + $0x118] sm:$0xff]
    %v3140 = vld [vmem:[#allocation17 + $0x150] sm:$0xff]
    %v3141 = vld [vmem:[#allocation17 + $0x158] sm:$0xff]
    %v3142 = vld [vmem:[#allocation17 + $0x190] sm:$0xff]
    %v3143 = vld [vmem:[#allocation17 + $0x198] sm:$0xff]
    %v3144 = vld [vmem:[#allocation17 + $0x1d0] sm:$0xff]
    %v3145 = vld [vmem:[#allocation17 + $0x1d8] sm:$0xff]
    %v3146 = vld [vmem:[#allocation17 + $0x210] sm:$0xff]
    %v3147 = vld [vmem:[#allocation17 + $0x218] sm:$0xff]
    %v3148 = vld [vmem:[#allocation17 + $0x250] sm:$0xff]
    %v3149 = vld [vmem:[#allocation17 + $0x258] sm:$0xff]
    %v3150 = vld [vmem:[#allocation17 + $0x290] sm:$0xff]
    %v3151 = vld [vmem:[#allocation17 + $0x298] sm:$0xff]
    %v3152 = vld [vmem:[#allocation17 + $0x2d0] sm:$0xff]
    %v3153 = vld [vmem:[#allocation17 + $0x2d8] sm:$0xff]
    %v3154 = vld [vmem:[#allocation17 + $0x310] sm:$0xff]
    %v3155 = vld [vmem:[#allocation17 + $0x318] sm:$0xff]
    %v3156 = vld [vmem:[#allocation17 + $0x350] sm:$0xff]
    %v3157 = vld [vmem:[#allocation17 + $0x358] sm:$0xff]
    %v3158 = vld [vmem:[#allocation17 + $0x390] sm:$0xff]
    %v3159 = vld [vmem:[#allocation17 + $0x398] sm:$0xff]
    %v3160 = vld [vmem:[#allocation17 + $0x3d0] sm:$0xff]
    %v3161 = vld [vmem:[#allocation17 + $0x3d8] sm:$0xff]
    %v3162 = vld [vmem:[#allocation17 + $0x410] sm:$0xff]
    %v3163 = vld [vmem:[#allocation17 + $0x418] sm:$0xff]
    %v3164 = vld [vmem:[#allocation17 + $0x450] sm:$0xff]
    %v3165 = vld [vmem:[#allocation17 + $0x458] sm:$0xff]
    %v3166 = vld [vmem:[#allocation17 + $0x490] sm:$0xff]
    %v3167 = vld [vmem:[#allocation17 + $0x498] sm:$0xff]
    %v3168 = vld [vmem:[#allocation17 + $0x4d0] sm:$0xff]
    %v3169 = vld [vmem:[#allocation17 + $0x4d8] sm:$0xff]
    %v3170 = vld [vmem:[#allocation17 + $0x510] sm:$0xff]
    %v3171 = vld [vmem:[#allocation17 + $0x518] sm:$0xff]
    %v3172 = vld [vmem:[#allocation17 + $0x550] sm:$0xff]
    %v3173 = vld [vmem:[#allocation17 + $0x558] sm:$0xff]
    %v3174 = vld [vmem:[#allocation17 + $0x590] sm:$0xff]
    %v3175 = vld [vmem:[#allocation17 + $0x598] sm:$0xff]
    %v3176 = vld [vmem:[#allocation17 + $0x5d0] sm:$0xff]
    %v3177 = vld [vmem:[#allocation17 + $0x5d8] sm:$0xff]
    %v3178 = vld [vmem:[#allocation17 + $0x610] sm:$0xff]
    %v3179 = vld [vmem:[#allocation17 + $0x618] sm:$0xff]
    %v3180 = vld [vmem:[#allocation17 + $0x650] sm:$0xff]
    %v3181 = vld [vmem:[#allocation17 + $0x658] sm:$0xff]
    %v3182 = vld [vmem:[#allocation17 + $0x690] sm:$0xff]
    %v3183 = vld [vmem:[#allocation17 + $0x698] sm:$0xff]
    %v3184 = vld [vmem:[#allocation17 + $0x6d0] sm:$0xff]
    %v3185 = vld [vmem:[#allocation17 + $0x6d8] sm:$0xff]
    %v3186 = vld [vmem:[#allocation17 + $0x710] sm:$0xff]
    %v3187 = vld [vmem:[#allocation17 + $0x718] sm:$0xff]
    %v3188 = vld [vmem:[#allocation17 + $0x750] sm:$0xff]
    %v3189 = vld [vmem:[#allocation17 + $0x758] sm:$0xff]
    %v3190 = vld [vmem:[#allocation17 + $0x790] sm:$0xff]
    %v3191 = vld [vmem:[#allocation17 + $0x798] sm:$0xff]
    %v3192 = vld [vmem:[#allocation17 + $0x7d0] sm:$0xff]
    %v3193 = vld [vmem:[#allocation17 + $0x7d8] sm:$0xff]
    %v3194 = vld [vmem:[#allocation17 + $0x810] sm:$0xff]
    %v3195 = vld [vmem:[#allocation17 + $0x818] sm:$0xff]
    %v3196 = vld [vmem:[#allocation17 + $0x850] sm:$0xff]
    %v3197 = vld [vmem:[#allocation17 + $0x858] sm:$0xff]
    %v3198 = vld [vmem:[#allocation17 + $0x890] sm:$0xff]
    %v3199 = vld [vmem:[#allocation17 + $0x898] sm:$0xff]
    %v3200 = vld [vmem:[#allocation17 + $0x8d0] sm:$0xff]
    %v3201 = vld [vmem:[#allocation17 + $0x8d8] sm:$0xff]
    %v3202 = vld [vmem:[#allocation17 + $0x910] sm:$0xff]
    %v3203 = vld [vmem:[#allocation17 + $0x918] sm:$0xff]
    %v3204 = vld [vmem:[#allocation17 + $0x950] sm:$0xff]
    %v3205 = vld [vmem:[#allocation17 + $0x958] sm:$0xff]
    %v3206 = vld [vmem:[#allocation17 + $0x990] sm:$0xff]
    %v3207 = vld [vmem:[#allocation17 + $0x998] sm:$0xff]
    %v3208 = vld [vmem:[#allocation17 + $0x9d0] sm:$0xff]
    %v3209 = vld [vmem:[#allocation17 + $0x9d8] sm:$0xff]
    %v3210 = vld [vmem:[#allocation17 + $0xa10] sm:$0xff]
    %v3211 = vld [vmem:[#allocation17 + $0xa18] sm:$0xff]
    %v3212 = vld [vmem:[#allocation17 + $0xa50] sm:$0xff]
    %v3213 = vld [vmem:[#allocation17 + $0xa58] sm:$0xff]
    %v3214 = vld [vmem:[#allocation17 + $0xa90] sm:$0xff]
    %v3215 = vld [vmem:[#allocation17 + $0xa98] sm:$0xff]
    %v3216 = vld [vmem:[#allocation17 + $0xad0] sm:$0xff]
    %v3217 = vld [vmem:[#allocation17 + $0xad8] sm:$0xff]
    %v3218 = vld [vmem:[#allocation17 + $0xb10] sm:$0xff]
    %v3219 = vld [vmem:[#allocation17 + $0xb18] sm:$0xff]
    %v3220 = vld [vmem:[#allocation17 + $0xb50] sm:$0xff]
    %v3221 = vld [vmem:[#allocation17 + $0xb58] sm:$0xff]
    %v3222 = vld [vmem:[#allocation17 + $0xb90] sm:$0xff]
    %v3223 = vld [vmem:[#allocation17 + $0xb98] sm:$0xff]
    %v3224 = vld [vmem:[#allocation17 + $0xbd0] sm:$0xff]
    %v3225 = vld [vmem:[#allocation17 + $0xbd8] sm:$0xff]
    %v3226 = vld [vmem:[#allocation17 + $0xc10] sm:$0xff]
    %v3227 = vld [vmem:[#allocation17 + $0xc18] sm:$0xff]
    %v3228 = vld [vmem:[#allocation17 + $0xc50] sm:$0xff]
    %v3229 = vld [vmem:[#allocation17 + $0xc58] sm:$0xff]
    %v3230 = vld [vmem:[#allocation17 + $0xc90] sm:$0xff]
    %v3231 = vld [vmem:[#allocation17 + $0xc98] sm:$0xff]
    %v3232 = vld [vmem:[#allocation17 + $0xcd0] sm:$0xff]
    %v3233 = vld [vmem:[#allocation17 + $0xcd8] sm:$0xff]
    %v3234 = vld [vmem:[#allocation17 + $0xd10] sm:$0xff]
    %v3235 = vld [vmem:[#allocation17 + $0xd18] sm:$0xff]
    %v3236 = vld [vmem:[#allocation17 + $0xd50] sm:$0xff]
    %v3237 = vld [vmem:[#allocation17 + $0xd58] sm:$0xff]
    %v3238 = vld [vmem:[#allocation17 + $0xd90] sm:$0xff]
    %v3239 = vld [vmem:[#allocation17 + $0xd98] sm:$0xff]
    %v3240 = vld [vmem:[#allocation17 + $0xdd0] sm:$0xff]
    %v3241 = vld [vmem:[#allocation17 + $0xdd8] sm:$0xff]
    %v3242 = vld [vmem:[#allocation17 + $0xe10] sm:$0xff]
    %v3243 = vld [vmem:[#allocation17 + $0xe18] sm:$0xff]
    %v3244 = vld [vmem:[#allocation17 + $0xe50] sm:$0xff]
    %v3245 = vld [vmem:[#allocation17 + $0xe58] sm:$0xff]
    %v3246 = vld [vmem:[#allocation17 + $0xe90] sm:$0xff]
    %v3247 = vld [vmem:[#allocation17 + $0xe98] sm:$0xff]
    %v3248 = vld [vmem:[#allocation17 + $0xed0] sm:$0xff]
    %v3249 = vld [vmem:[#allocation17 + $0xed8] sm:$0xff]
    %v3250 = vld [vmem:[#allocation17 + $0xf10] sm:$0xff]
    %v3251 = vld [vmem:[#allocation17 + $0xf18] sm:$0xff]
    %v3252 = vld [vmem:[#allocation17 + $0xf50] sm:$0xff]
    %v3253 = vld [vmem:[#allocation17 + $0xf58] sm:$0xff]
    %v3254 = vld [vmem:[#allocation17 + $0xf90] sm:$0xff]
    %v3255 = vld [vmem:[#allocation17 + $0xf98] sm:$0xff]
    %v3256 = vld [vmem:[#allocation17 + $0xfd0] sm:$0xff]
    %v3257 = vld [vmem:[#allocation17 + $0xfd8] sm:$0xff]
    %v3258 = vld [vmem:[#allocation19 + $0x2] sm:$0x3]
    %v3260 = vlaneseq
    %v3261 = vshrl.u32 %v3260, 7
    %v3262 = vsub.s32 0, %v3261
    %v3263 = vrot.slane %v3258, %v3262
    %v3264 = vlaneseq
    %v3265 = vshrl.u32 %v3264, 7
    %v3266 = vsub.s32 1, %v3265
    %v3267 = vrot.slane %v3258, %v3266
    %3270 = vmatprep.subr.mxu0 %v3131
    %3271 = vmatpush1.msra.mxu0 %v3130
    %3272 = vmatprep.subr.mxu0 %v3133
    %3273 = vmatpush1.msra.mxu0 %v3132
    %3274 = vmatprep.subr.mxu0 %v3135
    %3275 = vmatpush1.msra.mxu0 %v3134
    %3276 = vmatprep.subr.mxu0 %v3137
    %3277 = vmatpush1.msra.mxu0 %v3136
    %3278 = vmatprep.subr.mxu0 %v3139
    %3279 = vmatpush1.msra.mxu0 %v3138
    %3280 = vmatprep.subr.mxu0 %v3141
    %3281 = vmatpush1.msra.mxu0 %v3140
    %3282 = vmatprep.subr.mxu0 %v3143
    %3283 = vmatpush1.msra.mxu0 %v3142
    %3284 = vmatprep.subr.mxu0 %v3145
    %3285 = vmatpush1.msra.mxu0 %v3144
    %3286 = vmatprep.subr.mxu0 %v3147
    %3287 = vmatpush1.msra.mxu0 %v3146
    %3288 = vmatprep.subr.mxu0 %v3149
    %3289 = vmatpush1.msra.mxu0 %v3148
    %3290 = vmatprep.subr.mxu0 %v3151
    %3291 = vmatpush1.msra.mxu0 %v3150
    %3292 = vmatprep.subr.mxu0 %v3153
    %3293 = vmatpush1.msra.mxu0 %v3152
    %3294 = vmatprep.subr.mxu0 %v3155
    %3295 = vmatpush1.msra.mxu0 %v3154
    %3296 = vmatprep.subr.mxu0 %v3157
    %3297 = vmatpush1.msra.mxu0 %v3156
    %3298 = vmatprep.subr.mxu0 %v3159
    %3299 = vmatpush1.msra.mxu0 %v3158
    %3300 = vmatprep.subr.mxu0 %v3161
    %3301 = vmatpush1.msra.mxu0 %v3160
    %3302 = vmatprep.subr.mxu0 %v3163
    %3303 = vmatpush1.msra.mxu0 %v3162
    %3304 = vmatprep.subr.mxu0 %v3165
    %3305 = vmatpush1.msra.mxu0 %v3164
    %3306 = vmatprep.subr.mxu0 %v3167
    %3307 = vmatpush1.msra.mxu0 %v3166
    %3308 = vmatprep.subr.mxu0 %v3169
    %3309 = vmatpush1.msra.mxu0 %v3168
    %3310 = vmatprep.subr.mxu0 %v3171
    %3311 = vmatpush1.msra.mxu0 %v3170
    %3312 = vmatprep.subr.mxu0 %v3173
    %3313 = vmatpush1.msra.mxu0 %v3172
    %3314 = vmatprep.subr.mxu0 %v3175
    %3315 = vmatpush1.msra.mxu0 %v3174
    %3316 = vmatprep.subr.mxu0 %v3177
    %3317 = vmatpush1.msra.mxu0 %v3176
    %3318 = vmatprep.subr.mxu0 %v3179
    %3319 = vmatpush1.msra.mxu0 %v3178
    %3320 = vmatprep.subr.mxu0 %v3181
    %3321 = vmatpush1.msra.mxu0 %v3180
    %3322 = vmatprep.subr.mxu0 %v3183
    %3323 = vmatpush1.msra.mxu0 %v3182
    %3324 = vmatprep.subr.mxu0 %v3185
    %3325 = vmatpush1.msra.mxu0 %v3184
    %3326 = vmatprep.subr.mxu0 %v3187
    %3327 = vmatpush1.msra.mxu0 %v3186
    %3328 = vmatprep.subr.mxu0 %v3189
    %3329 = vmatpush1.msra.mxu0 %v3188
    %3330 = vmatprep.subr.mxu0 %v3191
    %3331 = vmatpush1.msra.mxu0 %v3190
    %3332 = vmatprep.subr.mxu0 %v3193
    %3333 = vmatpush1.msra.mxu0 %v3192
    %3334 = vmatprep.mubr.f32.mxu0 %v2843
    %3335 = vmatmul.mubr.f32.gmra.mrb[0].mxu0 %v2842
    %v3336 = vpop.f32.mrb[0].mxu0
    %v3337 = vadd.f32 %v3263, %v3336
    %v3338 = vpop.f32.mrb[0].mxu0
    %v3339 = vadd.f32 %v3267, %v3338
    %3340 = vdwg.mxu0
    %3341 = vmatprep.subr.mxu0 %v3195
    %3342 = vmatpush1.msra.mxu0 %v3194
    %3343 = vmatprep.subr.mxu0 %v3197
    %3344 = vmatpush1.msra.mxu0 %v3196
    %3345 = vmatprep.subr.mxu0 %v3199
    %3346 = vmatpush1.msra.mxu0 %v3198
    %3347 = vmatprep.subr.mxu0 %v3201
    %3348 = vmatpush1.msra.mxu0 %v3200
    %3349 = vmatprep.subr.mxu0 %v3203
    %3350 = vmatpush1.msra.mxu0 %v3202
    %3351 = vmatprep.subr.mxu0 %v3205
    %3352 = vmatpush1.msra.mxu0 %v3204
    %3353 = vmatprep.subr.mxu0 %v3207
    %3354 = vmatpush1.msra.mxu0 %v3206
    %3355 = vmatprep.subr.mxu0 %v3209
    %3356 = vmatpush1.msra.mxu0 %v3208
    %3357 = vmatprep.subr.mxu0 %v3211
    %3358 = vmatpush1.msra.mxu0 %v3210
    %3359 = vmatprep.subr.mxu0 %v3213
    %3360 = vmatpush1.msra.mxu0 %v3212
    %3361 = vmatprep.subr.mxu0 %v3215
    %3362 = vmatpush1.msra.mxu0 %v3214
    %3363 = vmatprep.subr.mxu0 %v3217
    %3364 = vmatpush1.msra.mxu0 %v3216
    %3365 = vmatprep.subr.mxu0 %v3219
    %3366 = vmatpush1.msra.mxu0 %v3218
    %3367 = vmatprep.subr.mxu0 %v3221
    %3368 = vmatpush1.msra.mxu0 %v3220
    %3369 = vmatprep.subr.mxu0 %v3223
    %3370 = vmatpush1.msra.mxu0 %v3222
    %3371 = vmatprep.subr.mxu0 %v3225
    %3372 = vmatpush1.msra.mxu0 %v3224
    %3373 = vmatprep.subr.mxu0 %v3227
    %3374 = vmatpush1.msra.mxu0 %v3226
    %3375 = vmatprep.subr.mxu0 %v3229
    %3376 = vmatpush1.msra.mxu0 %v3228
    %3377 = vmatprep.subr.mxu0 %v3231
    %3378 = vmatpush1.msra.mxu0 %v3230
    %3379 = vmatprep.subr.mxu0 %v3233
    %3380 = vmatpush1.msra.mxu0 %v3232
    %3381 = vmatprep.subr.mxu0 %v3235
    %3382 = vmatpush1.msra.mxu0 %v3234
    %3383 = vmatprep.subr.mxu0 %v3237
    %3384 = vmatpush1.msra.mxu0 %v3236
    %3385 = vmatprep.subr.mxu0 %v3239
    %3386 = vmatpush1.msra.mxu0 %v3238
    %3387 = vmatprep.subr.mxu0 %v3241
    %3388 = vmatpush1.msra.mxu0 %v3240
    %3389 = vmatprep.subr.mxu0 %v3243
    %3390 = vmatpush1.msra.mxu0 %v3242
    %3391 = vmatprep.subr.mxu0 %v3245
    %3392 = vmatpush1.msra.mxu0 %v3244
    %3393 = vmatprep.subr.mxu0 %v3247
    %3394 = vmatpush1.msra.mxu0 %v3246
    %3395 = vmatprep.subr.mxu0 %v3249
    %3396 = vmatpush1.msra.mxu0 %v3248
    %3397 = vmatprep.subr.mxu0 %v3251
    %3398 = vmatpush1.msra.mxu0 %v3250
    %3399 = vmatprep.subr.mxu0 %v3253
    %3400 = vmatpush1.msra.mxu0 %v3252
    %3401 = vmatprep.subr.mxu0 %v3255
    %3402 = vmatpush1.msra.mxu0 %v3254
    %3403 = vmatprep.subr.mxu0 %v3257
    %3404 = vmatpush1.msra.mxu0 %v3256
    %3405 = vmatprep.mubr.f32.mxu0 %v2845
    %3406 = vmatmul.mubr.f32.gmra.mrb[0].mxu0 %v2844
    %v3407 = vpop.f32.mrb[0].mxu0
    %v3408 = vadd.f32 %v3337, %v3407
    %v3409 = vpop.f32.mrb[0].mxu0
    %v3410 = vadd.f32 %v3339, %v3409
    %3411 = vdwg.mxu0
    %v3412 = vmax.f32 %v3408, 0.0
    %v3413 = vmax.f32 %v3410, 0.0
    %v3414 = vmax.f32 %v3128, %v3412
    %v3415 = vmax.f32 %v3129, %v3413
    %v3416 = vld [vmem:[#allocation17 + $0x20] sm:$0xff]
    %v3417 = vld [vmem:[#allocation17 + $0x28] sm:$0xff]
    %v3418 = vld [vmem:[#allocation17 + $0x60] sm:$0xff]
    %v3419 = vld [vmem:[#allocation17 + $0x68] sm:$0xff]
    %v3420 = vld [vmem:[#allocation17 + $0xa0] sm:$0xff]
    %v3421 = vld [vmem:[#allocation17 + $0xa8] sm:$0xff]
    %v3422 = vld [vmem:[#allocation17 + $0xe0] sm:$0xff]
    %v3423 = vld [vmem:[#allocation17 + $0xe8] sm:$0xff]
    %v3424 = vld [vmem:[#allocation17 + $0x120] sm:$0xff]
    %v3425 = vld [vmem:[#allocation17 + $0x128] sm:$0xff]
    %v3426 = vld [vmem:[#allocation17 + $0x160] sm:$0xff]
    %v3427 = vld [vmem:[#allocation17 + $0x168] sm:$0xff]
    %v3428 = vld [vmem:[#allocation17 + $0x1a0] sm:$0xff]
    %v3429 = vld [vmem:[#allocation17 + $0x1a8] sm:$0xff]
    %v3430 = vld [vmem:[#allocation17 + $0x1e0] sm:$0xff]
    %v3431 = vld [vmem:[#allocation17 + $0x1e8] sm:$0xff]
    %v3432 = vld [vmem:[#allocation17 + $0x220] sm:$0xff]
    %v3433 = vld [vmem:[#allocation17 + $0x228] sm:$0xff]
    %v3434 = vld [vmem:[#allocation17 + $0x260] sm:$0xff]
    %v3435 = vld [vmem:[#allocation17 + $0x268] sm:$0xff]
    %v3436 = vld [vmem:[#allocation17 + $0x2a0] sm:$0xff]
    %v3437 = vld [vmem:[#allocation17 + $0x2a8] sm:$0xff]
    %v3438 = vld [vmem:[#allocation17 + $0x2e0] sm:$0xff]
    %v3439 = vld [vmem:[#allocation17 + $0x2e8] sm:$0xff]
    %v3440 = vld [vmem:[#allocation17 + $0x320] sm:$0xff]
    %v3441 = vld [vmem:[#allocation17 + $0x328] sm:$0xff]
    %v3442 = vld [vmem:[#allocation17 + $0x360] sm:$0xff]
    %v3443 = vld [vmem:[#allocation17 + $0x368] sm:$0xff]
    %v3444 = vld [vmem:[#allocation17 + $0x3a0] sm:$0xff]
    %v3445 = vld [vmem:[#allocation17 + $0x3a8] sm:$0xff]
    %v3446 = vld [vmem:[#allocation17 + $0x3e0] sm:$0xff]
    %v3447 = vld [vmem:[#allocation17 + $0x3e8] sm:$0xff]
    %v3448 = vld [vmem:[#allocation17 + $0x420] sm:$0xff]
    %v3449 = vld [vmem:[#allocation17 + $0x428] sm:$0xff]
    %v3450 = vld [vmem:[#allocation17 + $0x460] sm:$0xff]
    %v3451 = vld [vmem:[#allocation17 + $0x468] sm:$0xff]
    %v3452 = vld [vmem:[#allocation17 + $0x4a0] sm:$0xff]
    %v3453 = vld [vmem:[#allocation17 + $0x4a8] sm:$0xff]
    %v3454 = vld [vmem:[#allocation17 + $0x4e0] sm:$0xff]
    %v3455 = vld [vmem:[#allocation17 + $0x4e8] sm:$0xff]
    %v3456 = vld [vmem:[#allocation17 + $0x520] sm:$0xff]
    %v3457 = vld [vmem:[#allocation17 + $0x528] sm:$0xff]
    %v3458 = vld [vmem:[#allocation17 + $0x560] sm:$0xff]
    %v3459 = vld [vmem:[#allocation17 + $0x568] sm:$0xff]
    %v3460 = vld [vmem:[#allocation17 + $0x5a0] sm:$0xff]
    %v3461 = vld [vmem:[#allocation17 + $0x5a8] sm:$0xff]
    %v3462 = vld [vmem:[#allocation17 + $0x5e0] sm:$0xff]
    %v3463 = vld [vmem:[#allocation17 + $0x5e8] sm:$0xff]
    %v3464 = vld [vmem:[#allocation17 + $0x620] sm:$0xff]
    %v3465 = vld [vmem:[#allocation17 + $0x628] sm:$0xff]
    %v3466 = vld [vmem:[#allocation17 + $0x660] sm:$0xff]
    %v3467 = vld [vmem:[#allocation17 + $0x668] sm:$0xff]
    %v3468 = vld [vmem:[#allocation17 + $0x6a0] sm:$0xff]
    %v3469 = vld [vmem:[#allocation17 + $0x6a8] sm:$0xff]
    %v3470 = vld [vmem:[#allocation17 + $0x6e0] sm:$0xff]
    %v3471 = vld [vmem:[#allocation17 + $0x6e8] sm:$0xff]
    %v3472 = vld [vmem:[#allocation17 + $0x720] sm:$0xff]
    %v3473 = vld [vmem:[#allocation17 + $0x728] sm:$0xff]
    %v3474 = vld [vmem:[#allocation17 + $0x760] sm:$0xff]
    %v3475 = vld [vmem:[#allocation17 + $0x768] sm:$0xff]
    %v3476 = vld [vmem:[#allocation17 + $0x7a0] sm:$0xff]
    %v3477 = vld [vmem:[#allocation17 + $0x7a8] sm:$0xff]
    %v3478 = vld [vmem:[#allocation17 + $0x7e0] sm:$0xff]
    %v3479 = vld [vmem:[#allocation17 + $0x7e8] sm:$0xff]
    %v3480 = vld [vmem:[#allocation17 + $0x820] sm:$0xff]
    %v3481 = vld [vmem:[#allocation17 + $0x828] sm:$0xff]
    %v3482 = vld [vmem:[#allocation17 + $0x860] sm:$0xff]
    %v3483 = vld [vmem:[#allocation17 + $0x868] sm:$0xff]
    %v3484 = vld [vmem:[#allocation17 + $0x8a0] sm:$0xff]
    %v3485 = vld [vmem:[#allocation17 + $0x8a8] sm:$0xff]
    %v3486 = vld [vmem:[#allocation17 + $0x8e0] sm:$0xff]
    %v3487 = vld [vmem:[#allocation17 + $0x8e8] sm:$0xff]
    %v3488 = vld [vmem:[#allocation17 + $0x920] sm:$0xff]
    %v3489 = vld [vmem:[#allocation17 + $0x928] sm:$0xff]
    %v3490 = vld [vmem:[#allocation17 + $0x960] sm:$0xff]
    %v3491 = vld [vmem:[#allocation17 + $0x968] sm:$0xff]
    %v3492 = vld [vmem:[#allocation17 + $0x9a0] sm:$0xff]
    %v3493 = vld [vmem:[#allocation17 + $0x9a8] sm:$0xff]
    %v3494 = vld [vmem:[#allocation17 + $0x9e0] sm:$0xff]
    %v3495 = vld [vmem:[#allocation17 + $0x9e8] sm:$0xff]
    %v3496 = vld [vmem:[#allocation17 + $0xa20] sm:$0xff]
    %v3497 = vld [vmem:[#allocation17 + $0xa28] sm:$0xff]
    %v3498 = vld [vmem:[#allocation17 + $0xa60] sm:$0xff]
    %v3499 = vld [vmem:[#allocation17 + $0xa68] sm:$0xff]
    %v3500 = vld [vmem:[#allocation17 + $0xaa0] sm:$0xff]
    %v3501 = vld [vmem:[#allocation17 + $0xaa8] sm:$0xff]
    %v3502 = vld [vmem:[#allocation17 + $0xae0] sm:$0xff]
    %v3503 = vld [vmem:[#allocation17 + $0xae8] sm:$0xff]
    %v3504 = vld [vmem:[#allocation17 + $0xb20] sm:$0xff]
    %v3505 = vld [vmem:[#allocation17 + $0xb28] sm:$0xff]
    %v3506 = vld [vmem:[#allocation17 + $0xb60] sm:$0xff]
    %v3507 = vld [vmem:[#allocation17 + $0xb68] sm:$0xff]
    %v3508 = vld [vmem:[#allocation17 + $0xba0] sm:$0xff]
    %v3509 = vld [vmem:[#allocation17 + $0xba8] sm:$0xff]
    %v3510 = vld [vmem:[#allocation17 + $0xbe0] sm:$0xff]
    %v3511 = vld [vmem:[#allocation17 + $0xbe8] sm:$0xff]
    %v3512 = vld [vmem:[#allocation17 + $0xc20] sm:$0xff]
    %v3513 = vld [vmem:[#allocation17 + $0xc28] sm:$0xff]
    %v3514 = vld [vmem:[#allocation17 + $0xc60] sm:$0xff]
    %v3515 = vld [vmem:[#allocation17 + $0xc68] sm:$0xff]
    %v3516 = vld [vmem:[#allocation17 + $0xca0] sm:$0xff]
    %v3517 = vld [vmem:[#allocation17 + $0xca8] sm:$0xff]
    %v3518 = vld [vmem:[#allocation17 + $0xce0] sm:$0xff]
    %v3519 = vld [vmem:[#allocation17 + $0xce8] sm:$0xff]
    %v3520 = vld [vmem:[#allocation17 + $0xd20] sm:$0xff]
    %v3521 = vld [vmem:[#allocation17 + $0xd28] sm:$0xff]
    %v3522 = vld [vmem:[#allocation17 + $0xd60] sm:$0xff]
    %v3523 = vld [vmem:[#allocation17 + $0xd68] sm:$0xff]
    %v3524 = vld [vmem:[#allocation17 + $0xda0] sm:$0xff]
    %v3525 = vld [vmem:[#allocation17 + $0xda8] sm:$0xff]
    %v3526 = vld [vmem:[#allocation17 + $0xde0] sm:$0xff]
    %v3527 = vld [vmem:[#allocation17 + $0xde8] sm:$0xff]
    %v3528 = vld [vmem:[#allocation17 + $0xe20] sm:$0xff]
    %v3529 = vld [vmem:[#allocation17 + $0xe28] sm:$0xff]
    %v3530 = vld [vmem:[#allocation17 + $0xe60] sm:$0xff]
    %v3531 = vld [vmem:[#allocation17 + $0xe68] sm:$0xff]
    %v3532 = vld [vmem:[#allocation17 + $0xea0] sm:$0xff]
    %v3533 = vld [vmem:[#allocation17 + $0xea8] sm:$0xff]
    %v3534 = vld [vmem:[#allocation17 + $0xee0] sm:$0xff]
    %v3535 = vld [vmem:[#allocation17 + $0xee8] sm:$0xff]
    %v3536 = vld [vmem:[#allocation17 + $0xf20] sm:$0xff]
    %v3537 = vld [vmem:[#allocation17 + $0xf28] sm:$0xff]
    %v3538 = vld [vmem:[#allocation17 + $0xf60] sm:$0xff]
    %v3539 = vld [vmem:[#allocation17 + $0xf68] sm:$0xff]
    %v3540 = vld [vmem:[#allocation17 + $0xfa0] sm:$0xff]
    %v3541 = vld [vmem:[#allocation17 + $0xfa8] sm:$0xff]
    %v3542 = vld [vmem:[#allocation17 + $0xfe0] sm:$0xff]
    %v3543 = vld [vmem:[#allocation17 + $0xfe8] sm:$0xff]
    %v3544 = vld [vmem:[#allocation19 + $0x4] sm:$0x3]
    %v3546 = vlaneseq
    %v3547 = vshrl.u32 %v3546, 7
    %v3548 = vsub.s32 0, %v3547
    %v3549 = vrot.slane %v3544, %v3548
    %v3550 = vlaneseq
    %v3551 = vshrl.u32 %v3550, 7
    %v3552 = vsub.s32 1, %v3551
    %v3553 = vrot.slane %v3544, %v3552
    %3556 = vmatprep.subr.mxu0 %v3417
    %3557 = vmatpush1.msra.mxu0 %v3416
    %3558 = vmatprep.subr.mxu0 %v3419
    %3559 = vmatpush1.msra.mxu0 %v3418
    %3560 = vmatprep.subr.mxu0 %v3421
    %3561 = vmatpush1.msra.mxu0 %v3420
    %3562 = vmatprep.subr.mxu0 %v3423
    %3563 = vmatpush1.msra.mxu0 %v3422
    %3564 = vmatprep.subr.mxu0 %v3425
    %3565 = vmatpush1.msra.mxu0 %v3424
    %3566 = vmatprep.subr.mxu0 %v3427
    %3567 = vmatpush1.msra.mxu0 %v3426
    %3568 = vmatprep.subr.mxu0 %v3429
    %3569 = vmatpush1.msra.mxu0 %v3428
    %3570 = vmatprep.subr.mxu0 %v3431
    %3571 = vmatpush1.msra.mxu0 %v3430
    %3572 = vmatprep.subr.mxu0 %v3433
    %3573 = vmatpush1.msra.mxu0 %v3432
    %3574 = vmatprep.subr.mxu0 %v3435
    %3575 = vmatpush1.msra.mxu0 %v3434
    %3576 = vmatprep.subr.mxu0 %v3437
    %3577 = vmatpush1.msra.mxu0 %v3436
    %3578 = vmatprep.subr.mxu0 %v3439
    %3579 = vmatpush1.msra.mxu0 %v3438
    %3580 = vmatprep.subr.mxu0 %v3441
    %3581 = vmatpush1.msra.mxu0 %v3440
    %3582 = vmatprep.subr.mxu0 %v3443
    %3583 = vmatpush1.msra.mxu0 %v3442
    %3584 = vmatprep.subr.mxu0 %v3445
    %3585 = vmatpush1.msra.mxu0 %v3444
    %3586 = vmatprep.subr.mxu0 %v3447
    %3587 = vmatpush1.msra.mxu0 %v3446
    %3588 = vmatprep.subr.mxu0 %v3449
    %3589 = vmatpush1.msra.mxu0 %v3448
    %3590 = vmatprep.subr.mxu0 %v3451
    %3591 = vmatpush1.msra.mxu0 %v3450
    %3592 = vmatprep.subr.mxu0 %v3453
    %3593 = vmatpush1.msra.mxu0 %v3452
    %3594 = vmatprep.subr.mxu0 %v3455
    %3595 = vmatpush1.msra.mxu0 %v3454
    %3596 = vmatprep.subr.mxu0 %v3457
    %3597 = vmatpush1.msra.mxu0 %v3456
    %3598 = vmatprep.subr.mxu0 %v3459
    %3599 = vmatpush1.msra.mxu0 %v3458
    %3600 = vmatprep.subr.mxu0 %v3461
    %3601 = vmatpush1.msra.mxu0 %v3460
    %3602 = vmatprep.subr.mxu0 %v3463
    %3603 = vmatpush1.msra.mxu0 %v3462
    %3604 = vmatprep.subr.mxu0 %v3465
    %3605 = vmatpush1.msra.mxu0 %v3464
    %3606 = vmatprep.subr.mxu0 %v3467
    %3607 = vmatpush1.msra.mxu0 %v3466
    %3608 = vmatprep.subr.mxu0 %v3469
    %3609 = vmatpush1.msra.mxu0 %v3468
    %3610 = vmatprep.subr.mxu0 %v3471
    %3611 = vmatpush1.msra.mxu0 %v3470
    %3612 = vmatprep.subr.mxu0 %v3473
    %3613 = vmatpush1.msra.mxu0 %v3472
    %3614 = vmatprep.subr.mxu0 %v3475
    %3615 = vmatpush1.msra.mxu0 %v3474
    %3616 = vmatprep.subr.mxu0 %v3477
    %3617 = vmatpush1.msra.mxu0 %v3476
    %3618 = vmatprep.subr.mxu0 %v3479
    %3619 = vmatpush1.msra.mxu0 %v3478
    %3620 = vmatprep.mubr.f32.mxu0 %v2843
    %3621 = vmatmul.mubr.f32.gmra.mrb[0].mxu0 %v2842
    %v3622 = vpop.f32.mrb[0].mxu0
    %v3623 = vadd.f32 %v3549, %v3622
    %v3624 = vpop.f32.mrb[0].mxu0
    %v3625 = vadd.f32 %v3553, %v3624
    %3626 = vdwg.mxu0
    %3627 = vmatprep.subr.mxu0 %v3481
    %3628 = vmatpush1.msra.mxu0 %v3480
    %3629 = vmatprep.subr.mxu0 %v3483
    %3630 = vmatpush1.msra.mxu0 %v3482
    %3631 = vmatprep.subr.mxu0 %v3485
    %3632 = vmatpush1.msra.mxu0 %v3484
    %3633 = vmatprep.subr.mxu0 %v3487
    %3634 = vmatpush1.msra.mxu0 %v3486
    %3635 = vmatprep.subr.mxu0 %v3489
    %3636 = vmatpush1.msra.mxu0 %v3488
    %3637 = vmatprep.subr.mxu0 %v3491
    %3638 = vmatpush1.msra.mxu0 %v3490
    %3639 = vmatprep.subr.mxu0 %v3493
    %3640 = vmatpush1.msra.mxu0 %v3492
    %3641 = vmatprep.subr.mxu0 %v3495
    %3642 = vmatpush1.msra.mxu0 %v3494
    %3643 = vmatprep.subr.mxu0 %v3497
    %3644 = vmatpush1.msra.mxu0 %v3496
    %3645 = vmatprep.subr.mxu0 %v3499
    %3646 = vmatpush1.msra.mxu0 %v3498
    %3647 = vmatprep.subr.mxu0 %v3501
    %3648 = vmatpush1.msra.mxu0 %v3500
    %3649 = vmatprep.subr.mxu0 %v3503
    %3650 = vmatpush1.msra.mxu0 %v3502
    %3651 = vmatprep.subr.mxu0 %v3505
    %3652 = vmatpush1.msra.mxu0 %v3504
    %3653 = vmatprep.subr.mxu0 %v3507
    %3654 = vmatpush1.msra.mxu0 %v3506
    %3655 = vmatprep.subr.mxu0 %v3509
    %3656 = vmatpush1.msra.mxu0 %v3508
    %3657 = vmatprep.subr.mxu0 %v3511
    %3658 = vmatpush1.msra.mxu0 %v3510
    %3659 = vmatprep.subr.mxu0 %v3513
    %3660 = vmatpush1.msra.mxu0 %v3512
    %3661 = vmatprep.subr.mxu0 %v3515
    %3662 = vmatpush1.msra.mxu0 %v3514
    %3663 = vmatprep.subr.mxu0 %v3517
    %3664 = vmatpush1.msra.mxu0 %v3516
    %3665 = vmatprep.subr.mxu0 %v3519
    %3666 = vmatpush1.msra.mxu0 %v3518
    %3667 = vmatprep.subr.mxu0 %v3521
    %3668 = vmatpush1.msra.mxu0 %v3520
    %3669 = vmatprep.subr.mxu0 %v3523
    %3670 = vmatpush1.msra.mxu0 %v3522
    %3671 = vmatprep.subr.mxu0 %v3525
    %3672 = vmatpush1.msra.mxu0 %v3524
    %3673 = vmatprep.subr.mxu0 %v3527
    %3674 = vmatpush1.msra.mxu0 %v3526
    %3675 = vmatprep.subr.mxu0 %v3529
    %3676 = vmatpush1.msra.mxu0 %v3528
    %3677 = vmatprep.subr.mxu0 %v3531
    %3678 = vmatpush1.msra.mxu0 %v3530
    %3679 = vmatprep.subr.mxu0 %v3533
    %3680 = vmatpush1.msra.mxu0 %v3532
    %3681 = vmatprep.subr.mxu0 %v3535
    %3682 = vmatpush1.msra.mxu0 %v3534
    %3683 = vmatprep.subr.mxu0 %v3537
    %3684 = vmatpush1.msra.mxu0 %v3536
    %3685 = vmatprep.subr.mxu0 %v3539
    %3686 = vmatpush1.msra.mxu0 %v3538
    %3687 = vmatprep.subr.mxu0 %v3541
    %3688 = vmatpush1.msra.mxu0 %v3540
    %3689 = vmatprep.subr.mxu0 %v3543
    %3690 = vmatpush1.msra.mxu0 %v3542
    %3691 = vmatprep.mubr.f32.mxu0 %v2845
    %3692 = vmatmul.mubr.f32.gmra.mrb[0].mxu0 %v2844
    %v3693 = vpop.f32.mrb[0].mxu0
    %v3694 = vadd.f32 %v3623, %v3693
    %v3695 = vpop.f32.mrb[0].mxu0
    %v3696 = vadd.f32 %v3625, %v3695
    %3697 = vdwg.mxu0
    %v3698 = vmax.f32 %v3694, 0.0
    %v3699 = vmax.f32 %v3696, 0.0
    %v3700 = vmax.f32 %v3414, %v3698
    %v3701 = vmax.f32 %v3415, %v3699
    %v3702 = vld [vmem:[#allocation17 + $0x30] sm:$0xff]
    %v3703 = vld [vmem:[#allocation17 + $0x38] sm:$0xff]
    %v3704 = vld [vmem:[#allocation17 + $0x70] sm:$0xff]
    %v3705 = vld [vmem:[#allocation17 + $0x78] sm:$0xff]
    %v3706 = vld [vmem:[#allocation17 + $0xb0] sm:$0xff]
    %v3707 = vld [vmem:[#allocation17 + $0xb8] sm:$0xff]
    %v3708 = vld [vmem:[#allocation17 + $0xf0] sm:$0xff]
    %v3709 = vld [vmem:[#allocation17 + $0xf8] sm:$0xff]
    %v3710 = vld [vmem:[#allocation17 + $0x130] sm:$0xff]
    %v3711 = vld [vmem:[#allocation17 + $0x138] sm:$0xff]
    %v3712 = vld [vmem:[#allocation17 + $0x170] sm:$0xff]
    %v3713 = vld [vmem:[#allocation17 + $0x178] sm:$0xff]
    %v3714 = vld [vmem:[#allocation17 + $0x1b0] sm:$0xff]
    %v3715 = vld [vmem:[#allocation17 + $0x1b8] sm:$0xff]
    %v3716 = vld [vmem:[#allocation17 + $0x1f0] sm:$0xff]
    %v3717 = vld [vmem:[#allocation17 + $0x1f8] sm:$0xff]
    %v3718 = vld [vmem:[#allocation17 + $0x230] sm:$0xff]
    %v3719 = vld [vmem:[#allocation17 + $0x238] sm:$0xff]
    %v3720 = vld [vmem:[#allocation17 + $0x270] sm:$0xff]
    %v3721 = vld [vmem:[#allocation17 + $0x278] sm:$0xff]
    %v3722 = vld [vmem:[#allocation17 + $0x2b0] sm:$0xff]
    %v3723 = vld [vmem:[#allocation17 + $0x2b8] sm:$0xff]
    %v3724 = vld [vmem:[#allocation17 + $0x2f0] sm:$0xff]
    %v3725 = vld [vmem:[#allocation17 + $0x2f8] sm:$0xff]
    %v3726 = vld [vmem:[#allocation17 + $0x330] sm:$0xff]
    %v3727 = vld [vmem:[#allocation17 + $0x338] sm:$0xff]
    %v3728 = vld [vmem:[#allocation17 + $0x370] sm:$0xff]
    %v3729 = vld [vmem:[#allocation17 + $0x378] sm:$0xff]
    %v3730 = vld [vmem:[#allocation17 + $0x3b0] sm:$0xff]
    %v3731 = vld [vmem:[#allocation17 + $0x3b8] sm:$0xff]
    %v3732 = vld [vmem:[#allocation17 + $0x3f0] sm:$0xff]
    %v3733 = vld [vmem:[#allocation17 + $0x3f8] sm:$0xff]
    %v3734 = vld [vmem:[#allocation17 + $0x430] sm:$0xff]
    %v3735 = vld [vmem:[#allocation17 + $0x438] sm:$0xff]
    %v3736 = vld [vmem:[#allocation17 + $0x470] sm:$0xff]
    %v3737 = vld [vmem:[#allocation17 + $0x478] sm:$0xff]
    %v3738 = vld [vmem:[#allocation17 + $0x4b0] sm:$0xff]
    %v3739 = vld [vmem:[#allocation17 + $0x4b8] sm:$0xff]
    %v3740 = vld [vmem:[#allocation17 + $0x4f0] sm:$0xff]
    %v3741 = vld [vmem:[#allocation17 + $0x4f8] sm:$0xff]
    %v3742 = vld [vmem:[#allocation17 + $0x530] sm:$0xff]
    %v3743 = vld [vmem:[#allocation17 + $0x538] sm:$0xff]
    %v3744 = vld [vmem:[#allocation17 + $0x570] sm:$0xff]
    %v3745 = vld [vmem:[#allocation17 + $0x578] sm:$0xff]
    %v3746 = vld [vmem:[#allocation17 + $0x5b0] sm:$0xff]
    %v3747 = vld [vmem:[#allocation17 + $0x5b8] sm:$0xff]
    %v3748 = vld [vmem:[#allocation17 + $0x5f0] sm:$0xff]
    %v3749 = vld [vmem:[#allocation17 + $0x5f8] sm:$0xff]
    %v3750 = vld [vmem:[#allocation17 + $0x630] sm:$0xff]
    %v3751 = vld [vmem:[#allocation17 + $0x638] sm:$0xff]
    %v3752 = vld [vmem:[#allocation17 + $0x670] sm:$0xff]
    %v3753 = vld [vmem:[#allocation17 + $0x678] sm:$0xff]
    %v3754 = vld [vmem:[#allocation17 + $0x6b0] sm:$0xff]
    %v3755 = vld [vmem:[#allocation17 + $0x6b8] sm:$0xff]
    %v3756 = vld [vmem:[#allocation17 + $0x6f0] sm:$0xff]
    %v3757 = vld [vmem:[#allocation17 + $0x6f8] sm:$0xff]
    %v3758 = vld [vmem:[#allocation17 + $0x730] sm:$0xff]
    %v3759 = vld [vmem:[#allocation17 + $0x738] sm:$0xff]
    %v3760 = vld [vmem:[#allocation17 + $0x770] sm:$0xff]
    %v3761 = vld [vmem:[#allocation17 + $0x778] sm:$0xff]
    %v3762 = vld [vmem:[#allocation17 + $0x7b0] sm:$0xff]
    %v3763 = vld [vmem:[#allocation17 + $0x7b8] sm:$0xff]
    %v3764 = vld [vmem:[#allocation17 + $0x7f0] sm:$0xff]
    %v3765 = vld [vmem:[#allocation17 + $0x7f8] sm:$0xff]
    %v3766 = vld [vmem:[#allocation17 + $0x830] sm:$0xff]
    %v3767 = vld [vmem:[#allocation17 + $0x838] sm:$0xff]
    %v3768 = vld [vmem:[#allocation17 + $0x870] sm:$0xff]
    %v3769 = vld [vmem:[#allocation17 + $0x878] sm:$0xff]
    %v3770 = vld [vmem:[#allocation17 + $0x8b0] sm:$0xff]
    %v3771 = vld [vmem:[#allocation17 + $0x8b8] sm:$0xff]
    %v3772 = vld [vmem:[#allocation17 + $0x8f0] sm:$0xff]
    %v3773 = vld [vmem:[#allocation17 + $0x8f8] sm:$0xff]
    %v3774 = vld [vmem:[#allocation17 + $0x930] sm:$0xff]
    %v3775 = vld [vmem:[#allocation17 + $0x938] sm:$0xff]
    %v3776 = vld [vmem:[#allocation17 + $0x970] sm:$0xff]
    %v3777 = vld [vmem:[#allocation17 + $0x978] sm:$0xff]
    %v3778 = vld [vmem:[#allocation17 + $0x9b0] sm:$0xff]
    %v3779 = vld [vmem:[#allocation17 + $0x9b8] sm:$0xff]
    %v3780 = vld [vmem:[#allocation17 + $0x9f0] sm:$0xff]
    %v3781 = vld [vmem:[#allocation17 + $0x9f8] sm:$0xff]
    %v3782 = vld [vmem:[#allocation17 + $0xa30] sm:$0xff]
    %v3783 = vld [vmem:[#allocation17 + $0xa38] sm:$0xff]
    %v3784 = vld [vmem:[#allocation17 + $0xa70] sm:$0xff]
    %v3785 = vld [vmem:[#allocation17 + $0xa78] sm:$0xff]
    %v3786 = vld [vmem:[#allocation17 + $0xab0] sm:$0xff]
    %v3787 = vld [vmem:[#allocation17 + $0xab8] sm:$0xff]
    %v3788 = vld [vmem:[#allocation17 + $0xaf0] sm:$0xff]
    %v3789 = vld [vmem:[#allocation17 + $0xaf8] sm:$0xff]
    %v3790 = vld [vmem:[#allocation17 + $0xb30] sm:$0xff]
    %v3791 = vld [vmem:[#allocation17 + $0xb38] sm:$0xff]
    %v3792 = vld [vmem:[#allocation17 + $0xb70] sm:$0xff]
    %v3793 = vld [vmem:[#allocation17 + $0xb78] sm:$0xff]
    %v3794 = vld [vmem:[#allocation17 + $0xbb0] sm:$0xff]
    %v3795 = vld [vmem:[#allocation17 + $0xbb8] sm:$0xff]
    %v3796 = vld [vmem:[#allocation17 + $0xbf0] sm:$0xff]
    %v3797 = vld [vmem:[#allocation17 + $0xbf8] sm:$0xff]
    %v3798 = vld [vmem:[#allocation17 + $0xc30] sm:$0xff]
    %v3799 = vld [vmem:[#allocation17 + $0xc38] sm:$0xff]
    %v3800 = vld [vmem:[#allocation17 + $0xc70] sm:$0xff]
    %v3801 = vld [vmem:[#allocation17 + $0xc78] sm:$0xff]
    %v3802 = vld [vmem:[#allocation17 + $0xcb0] sm:$0xff]
    %v3803 = vld [vmem:[#allocation17 + $0xcb8] sm:$0xff]
    %v3804 = vld [vmem:[#allocation17 + $0xcf0] sm:$0xff]
    %v3805 = vld [vmem:[#allocation17 + $0xcf8] sm:$0xff]
    %v3806 = vld [vmem:[#allocation17 + $0xd30] sm:$0xff]
    %v3807 = vld [vmem:[#allocation17 + $0xd38] sm:$0xff]
    %v3808 = vld [vmem:[#allocation17 + $0xd70] sm:$0xff]
    %v3809 = vld [vmem:[#allocation17 + $0xd78] sm:$0xff]
    %v3810 = vld [vmem:[#allocation17 + $0xdb0] sm:$0xff]
    %v3811 = vld [vmem:[#allocation17 + $0xdb8] sm:$0xff]
    %v3812 = vld [vmem:[#allocation17 + $0xdf0] sm:$0xff]
    %v3813 = vld [vmem:[#allocation17 + $0xdf8] sm:$0xff]
    %v3814 = vld [vmem:[#allocation17 + $0xe30] sm:$0xff]
    %v3815 = vld [vmem:[#allocation17 + $0xe38] sm:$0xff]
    %v3816 = vld [vmem:[#allocation17 + $0xe70] sm:$0xff]
    %v3817 = vld [vmem:[#allocation17 + $0xe78] sm:$0xff]
    %v3818 = vld [vmem:[#allocation17 + $0xeb0] sm:$0xff]
    %v3819 = vld [vmem:[#allocation17 + $0xeb8] sm:$0xff]
    %v3820 = vld [vmem:[#allocation17 + $0xef0] sm:$0xff]
    %v3821 = vld [vmem:[#allocation17 + $0xef8] sm:$0xff]
    %v3822 = vld [vmem:[#allocation17 + $0xf30] sm:$0xff]
    %v3823 = vld [vmem:[#allocation17 + $0xf38] sm:$0xff]
    %v3824 = vld [vmem:[#allocation17 + $0xf70] sm:$0xff]
    %v3825 = vld [vmem:[#allocation17 + $0xf78] sm:$0xff]
    %v3826 = vld [vmem:[#allocation17 + $0xfb0] sm:$0xff]
    %v3827 = vld [vmem:[#allocation17 + $0xfb8] sm:$0xff]
    %v3828 = vld [vmem:[#allocation17 + $0xff0] sm:$0xff]
    %v3829 = vld [vmem:[#allocation17 + $0xff8] sm:$0xff]
    %v3830 = vld [vmem:[#allocation19 + $0x6] sm:$0x3]
    %v3832 = vlaneseq
    %v3833 = vshrl.u32 %v3832, 7
    %v3834 = vsub.s32 0, %v3833
    %v3835 = vrot.slane %v3830, %v3834
    %v3836 = vlaneseq
    %v3837 = vshrl.u32 %v3836, 7
    %v3838 = vsub.s32 1, %v3837
    %v3839 = vrot.slane %v3830, %v3838
    %3842 = vmatprep.subr.mxu0 %v3703
    %3843 = vmatpush1.msra.mxu0 %v3702
    %3844 = vmatprep.subr.mxu0 %v3705
    %3845 = vmatpush1.msra.mxu0 %v3704
    %3846 = vmatprep.subr.mxu0 %v3707
    %3847 = vmatpush1.msra.mxu0 %v3706
    %3848 = vmatprep.subr.mxu0 %v3709
    %3849 = vmatpush1.msra.mxu0 %v3708
    %3850 = vmatprep.subr.mxu0 %v3711
    %3851 = vmatpush1.msra.mxu0 %v3710
    %3852 = vmatprep.subr.mxu0 %v3713
    %3853 = vmatpush1.msra.mxu0 %v3712
    %3854 = vmatprep.subr.mxu0 %v3715
    %3855 = vmatpush1.msra.mxu0 %v3714
    %3856 = vmatprep.subr.mxu0 %v3717
    %3857 = vmatpush1.msra.mxu0 %v3716
    %3858 = vmatprep.subr.mxu0 %v3719
    %3859 = vmatpush1.msra.mxu0 %v3718
    %3860 = vmatprep.subr.mxu0 %v3721
    %3861 = vmatpush1.msra.mxu0 %v3720
    %3862 = vmatprep.subr.mxu0 %v3723
    %3863 = vmatpush1.msra.mxu0 %v3722
    %3864 = vmatprep.subr.mxu0 %v3725
    %3865 = vmatpush1.msra.mxu0 %v3724
    %3866 = vmatprep.subr.mxu0 %v3727
    %3867 = vmatpush1.msra.mxu0 %v3726
    %3868 = vmatprep.subr.mxu0 %v3729
    %3869 = vmatpush1.msra.mxu0 %v3728
    %3870 = vmatprep.subr.mxu0 %v3731
    %3871 = vmatpush1.msra.mxu0 %v3730
    %3872 = vmatprep.subr.mxu0 %v3733
    %3873 = vmatpush1.msra.mxu0 %v3732
    %3874 = vmatprep.subr.mxu0 %v3735
    %3875 = vmatpush1.msra.mxu0 %v3734
    %3876 = vmatprep.subr.mxu0 %v3737
    %3877 = vmatpush1.msra.mxu0 %v3736
    %3878 = vmatprep.subr.mxu0 %v3739
    %3879 = vmatpush1.msra.mxu0 %v3738
    %3880 = vmatprep.subr.mxu0 %v3741
    %3881 = vmatpush1.msra.mxu0 %v3740
    %3882 = vmatprep.subr.mxu0 %v3743
    %3883 = vmatpush1.msra.mxu0 %v3742
    %3884 = vmatprep.subr.mxu0 %v3745
    %3885 = vmatpush1.msra.mxu0 %v3744
    %3886 = vmatprep.subr.mxu0 %v3747
    %3887 = vmatpush1.msra.mxu0 %v3746
    %3888 = vmatprep.subr.mxu0 %v3749
    %3889 = vmatpush1.msra.mxu0 %v3748
    %3890 = vmatprep.subr.mxu0 %v3751
    %3891 = vmatpush1.msra.mxu0 %v3750
    %3892 = vmatprep.subr.mxu0 %v3753
    %3893 = vmatpush1.msra.mxu0 %v3752
    %3894 = vmatprep.subr.mxu0 %v3755
    %3895 = vmatpush1.msra.mxu0 %v3754
    %3896 = vmatprep.subr.mxu0 %v3757
    %3897 = vmatpush1.msra.mxu0 %v3756
    %3898 = vmatprep.subr.mxu0 %v3759
    %3899 = vmatpush1.msra.mxu0 %v3758
    %3900 = vmatprep.subr.mxu0 %v3761
    %3901 = vmatpush1.msra.mxu0 %v3760
    %3902 = vmatprep.subr.mxu0 %v3763
    %3903 = vmatpush1.msra.mxu0 %v3762
    %3904 = vmatprep.subr.mxu0 %v3765
    %3905 = vmatpush1.msra.mxu0 %v3764
    %3906 = vmatprep.mubr.f32.mxu0 %v2843
    %3907 = vmatmul.mubr.f32.gmra.mrb[0].mxu0 %v2842
    %v3908 = vpop.f32.mrb[0].mxu0
    %v3909 = vadd.f32 %v3835, %v3908
    %v3910 = vpop.f32.mrb[0].mxu0
    %v3911 = vadd.f32 %v3839, %v3910
    %3912 = vdwg.mxu0
    %3913 = vmatprep.subr.mxu0 %v3767
    %3914 = vmatpush1.msra.mxu0 %v3766
    %3915 = vmatprep.subr.mxu0 %v3769
    %3916 = vmatpush1.msra.mxu0 %v3768
    %3917 = vmatprep.subr.mxu0 %v3771
    %3918 = vmatpush1.msra.mxu0 %v3770
    %3919 = vmatprep.subr.mxu0 %v3773
    %3920 = vmatpush1.msra.mxu0 %v3772
    %3921 = vmatprep.subr.mxu0 %v3775
    %3922 = vmatpush1.msra.mxu0 %v3774
    %3923 = vmatprep.subr.mxu0 %v3777
    %3924 = vmatpush1.msra.mxu0 %v3776
    %3925 = vmatprep.subr.mxu0 %v3779
    %3926 = vmatpush1.msra.mxu0 %v3778
    %3927 = vmatprep.subr.mxu0 %v3781
    %3928 = vmatpush1.msra.mxu0 %v3780
    %3929 = vmatprep.subr.mxu0 %v3783
    %3930 = vmatpush1.msra.mxu0 %v3782
    %3931 = vmatprep.subr.mxu0 %v3785
    %3932 = vmatpush1.msra.mxu0 %v3784
    %3933 = vmatprep.subr.mxu0 %v3787
    %3934 = vmatpush1.msra.mxu0 %v3786
    %3935 = vmatprep.subr.mxu0 %v3789
    %3936 = vmatpush1.msra.mxu0 %v3788
    %3937 = vmatprep.subr.mxu0 %v3791
    %3938 = vmatpush1.msra.mxu0 %v3790
    %3939 = vmatprep.subr.mxu0 %v3793
    %3940 = vmatpush1.msra.mxu0 %v3792
    %3941 = vmatprep.subr.mxu0 %v3795
    %3942 = vmatpush1.msra.mxu0 %v3794
    %3943 = vmatprep.subr.mxu0 %v3797
    %3944 = vmatpush1.msra.mxu0 %v3796
    %3945 = vmatprep.subr.mxu0 %v3799
    %3946 = vmatpush1.msra.mxu0 %v3798
    %3947 = vmatprep.subr.mxu0 %v3801
    %3948 = vmatpush1.msra.mxu0 %v3800
    %3949 = vmatprep.subr.mxu0 %v3803
    %3950 = vmatpush1.msra.mxu0 %v3802
    %3951 = vmatprep.subr.mxu0 %v3805
    %3952 = vmatpush1.msra.mxu0 %v3804
    %3953 = vmatprep.subr.mxu0 %v3807
    %3954 = vmatpush1.msra.mxu0 %v3806
    %3955 = vmatprep.subr.mxu0 %v3809
    %3956 = vmatpush1.msra.mxu0 %v3808
    %3957 = vmatprep.subr.mxu0 %v3811
    %3958 = vmatpush1.msra.mxu0 %v3810
    %3959 = vmatprep.subr.mxu0 %v3813
    %3960 = vmatpush1.msra.mxu0 %v3812
    %3961 = vmatprep.subr.mxu0 %v3815
    %3962 = vmatpush1.msra.mxu0 %v3814
    %3963 = vmatprep.subr.mxu0 %v3817
    %3964 = vmatpush1.msra.mxu0 %v3816
    %3965 = vmatprep.subr.mxu0 %v3819
    %3966 = vmatpush1.msra.mxu0 %v3818
    %3967 = vmatprep.subr.mxu0 %v3821
    %3968 = vmatpush1.msra.mxu0 %v3820
    %3969 = vmatprep.subr.mxu0 %v3823
    %3970 = vmatpush1.msra.mxu0 %v3822
    %3971 = vmatprep.subr.mxu0 %v3825
    %3972 = vmatpush1.msra.mxu0 %v3824
    %3973 = vmatprep.subr.mxu0 %v3827
    %3974 = vmatpush1.msra.mxu0 %v3826
    %3975 = vmatprep.subr.mxu0 %v3829
    %3976 = vmatpush1.msra.mxu0 %v3828
    %3977 = vmatprep.mubr.f32.mxu0 %v2845
    %3978 = vmatmul.mubr.f32.gmra.mrb[0].mxu0 %v2844
    %v3979 = vpop.f32.mrb[0].mxu0
    %v3980 = vadd.f32 %v3909, %v3979
    %v3981 = vpop.f32.mrb[0].mxu0
    %v3982 = vadd.f32 %v3911, %v3981
    %3983 = vdwg.mxu0
    %v3984 = vmax.f32 %v3980, 0.0
    %v3985 = vmax.f32 %v3982, 0.0
    %v3986 = vmax.f32 %v3700, %v3984
    %v3987 = vmax.f32 %v3701, %v3985
    %v3988 = vld [vmem:[#allocation20] sm:$0xff]
    %v3989 = vld [vmem:[#allocation20 + $0x8] sm:$0xff]
    %v3990 = vld [vmem:[#allocation20 + $0x10] sm:$0xff]
    %v3991 = vld [vmem:[#allocation20 + $0x18] sm:$0xff]
    %v3992 = vld [vmem:[#allocation20 + $0x20] sm:$0xff]
    %v3993 = vld [vmem:[#allocation20 + $0x28] sm:$0xff]
    %v3994 = vld [vmem:[#allocation20 + $0x30] sm:$0xff]
    %v3995 = vld [vmem:[#allocation20 + $0x38] sm:$0xff]
    %v3996 = vld [vmem:[#allocation20 + $0x40] sm:$0xff]
    %v3997 = vld [vmem:[#allocation20 + $0x48] sm:$0xff]
    %v3998 = vld [vmem:[#allocation20 + $0x50] sm:$0xff]
    %v3999 = vld [vmem:[#allocation20 + $0x58] sm:$0xff]
    %v4000 = vld [vmem:[#allocation20 + $0x60] sm:$0xff]
    %v4001 = vld [vmem:[#allocation20 + $0x68] sm:$0xff]
    %v4002 = vld [vmem:[#allocation20 + $0x70] sm:$0xff]
    %v4003 = vld [vmem:[#allocation20 + $0x78] sm:$0xff]
    %v4004 = vld [vmem:[#allocation20 + $0x80] sm:$0xff]
    %v4005 = vld [vmem:[#allocation20 + $0x88] sm:$0xff]
    %v4006 = vld [vmem:[#allocation20 + $0x90] sm:$0xff]
    %v4007 = vld [vmem:[#allocation20 + $0x98] sm:$0xff]
    %v4008 = vld [vmem:[#allocation20 + $0xa0] sm:$0xff]
    %v4009 = vld [vmem:[#allocation20 + $0xa8] sm:$0xff]
    %v4010 = vld [vmem:[#allocation20 + $0xb0] sm:$0xff]
    %v4011 = vld [vmem:[#allocation20 + $0xb8] sm:$0xff]
    %v4012 = vld [vmem:[#allocation20 + $0xc0] sm:$0xff]
    %v4013 = vld [vmem:[#allocation20 + $0xc8] sm:$0xff]
    %v4014 = vld [vmem:[#allocation20 + $0xd0] sm:$0xff]
    %v4015 = vld [vmem:[#allocation20 + $0xd8] sm:$0xff]
    %v4016 = vld [vmem:[#allocation20 + $0xe0] sm:$0xff]
    %v4017 = vld [vmem:[#allocation20 + $0xe8] sm:$0xff]
    %v4018 = vld [vmem:[#allocation20 + $0xf0] sm:$0xff]
    %v4019 = vld [vmem:[#allocation20 + $0xf8] sm:$0xff]
    %v4020 = vld [vmem:[#allocation22] sm:$0x1]
    %v4022 = vlaneseq
    %v4023 = vshrl.u32 %v4022, 7
    %v4024 = vsub.s32 0, %v4023
    %v4025 = vrot.slane %v4020, %v4024
    %4027 = vmatprep.subr.mxu0 0.0
    %4028 = vmatpush1.msra.mxu0 %v3988
    %4029 = vmatprep.subr.mxu0 0.0
    %4030 = vmatpush1.msra.mxu0 %v3989
    %4031 = vmatprep.subr.mxu0 0.0
    %4032 = vmatpush1.msra.mxu0 %v3990
    %4033 = vmatprep.subr.mxu0 0.0
    %4034 = vmatpush1.msra.mxu0 %v3991
    %4035 = vmatprep.subr.mxu0 0.0
    %4036 = vmatpush1.msra.mxu0 %v3992
    %4037 = vmatprep.subr.mxu0 0.0
    %4038 = vmatpush1.msra.mxu0 %v3993
    %4039 = vmatprep.subr.mxu0 0.0
    %4040 = vmatpush1.msra.mxu0 %v3994
    %4041 = vmatprep.subr.mxu0 0.0
    %4042 = vmatpush1.msra.mxu0 %v3995
    %4043 = vmatprep.subr.mxu0 0.0
    %4044 = vmatpush1.msra.mxu0 %v3996
    %4045 = vmatprep.subr.mxu0 0.0
    %4046 = vmatpush1.msra.mxu0 %v3997
    %4047 = vmatprep.subr.mxu0 0.0
    %4048 = vmatpush1.msra.mxu0 %v3998
    %4049 = vmatprep.subr.mxu0 0.0
    %4050 = vmatpush1.msra.mxu0 %v3999
    %4051 = vmatprep.subr.mxu0 0.0
    %4052 = vmatpush1.msra.mxu0 %v4000
    %4053 = vmatprep.subr.mxu0 0.0
    %4054 = vmatpush1.msra.mxu0 %v4001
    %4055 = vmatprep.subr.mxu0 0.0
    %4056 = vmatpush1.msra.mxu0 %v4002
    %4057 = vmatprep.subr.mxu0 0.0
    %4058 = vmatpush1.msra.mxu0 %v4003
    %4059 = vmatprep.subr.mxu0 0.0
    %4060 = vmatpush1.msra.mxu0 %v4004
    %4061 = vmatprep.subr.mxu0 0.0
    %4062 = vmatpush1.msra.mxu0 %v4005
    %4063 = vmatprep.subr.mxu0 0.0
    %4064 = vmatpush1.msra.mxu0 %v4006
    %4065 = vmatprep.subr.mxu0 0.0
    %4066 = vmatpush1.msra.mxu0 %v4007
    %4067 = vmatprep.subr.mxu0 0.0
    %4068 = vmatpush1.msra.mxu0 %v4008
    %4069 = vmatprep.subr.mxu0 0.0
    %4070 = vmatpush1.msra.mxu0 %v4009
    %4071 = vmatprep.subr.mxu0 0.0
    %4072 = vmatpush1.msra.mxu0 %v4010
    %4073 = vmatprep.subr.mxu0 0.0
    %4074 = vmatpush1.msra.mxu0 %v4011
    %4075 = vmatprep.subr.mxu0 0.0
    %4076 = vmatpush1.msra.mxu0 %v4012
    %4077 = vmatprep.subr.mxu0 0.0
    %4078 = vmatpush1.msra.mxu0 %v4013
    %4079 = vmatprep.subr.mxu0 0.0
    %4080 = vmatpush1.msra.mxu0 %v4014
    %4081 = vmatprep.subr.mxu0 0.0
    %4082 = vmatpush1.msra.mxu0 %v4015
    %4083 = vmatprep.subr.mxu0 0.0
    %4084 = vmatpush1.msra.mxu0 %v4016
    %4085 = vmatprep.subr.mxu0 0.0
    %4086 = vmatpush1.msra.mxu0 %v4017
    %4087 = vmatprep.subr.mxu0 0.0
    %4088 = vmatpush1.msra.mxu0 %v4018
    %4089 = vmatprep.subr.mxu0 0.0
    %4090 = vmatpush1.msra.mxu0 %v4019
    %4091 = vmatprep.mubr.f32.mxu0 %v3987
    %4092 = vmatmul.mubr.f32.gmra.mrb[0].mxu0 %v3986
    %v4093 = vpop.f32.mrb[0].mxu0
    %v4094 = vadd.f32 %v4025, %v4093
    %v4095 = vpop.f32.mrb[0].mxu0
    %4096 = vdwg.mxu0
    %4097 = vst [vmem:[#allocation23] sm:$0xff] %v4094
    // Predicated region
    $region106: #{tpu_custom_call.1} parent=1 // pred_check
      _
    $region107: #{tpu_custom_call.1} parent=1 // pred_check_branch
      %4099 = sbr.rel (0) target = $region109
    $region108: #{tpu_custom_call.1} parent=1 // pred_region
      %s4101 = ssub.s32 128, 128
      %4102 = vsyncadd [#allocation4], %s4101
      %s4104 = sshll.u32 [#allocation23], 4
      %s4105 = int_to_ptr.vmem [resolvable:$true] %s4104
      %4107 = dma.vmem_to_hbm [thread:$0]  %s4105, 128, %s13, [#allocation4]
    $region109: #{tpu_custom_call.1} parent=1 // pred_fallthru
      _
    // Predicated region
    $region110: #{tpu_custom_call.1} parent=1 // pred_check
      _
    $region111: #{tpu_custom_call.1} parent=1 // pred_check_branch
      %4109 = sbr.rel (0) target = $region113
    $region112: #{tpu_custom_call.1} parent=1 // pred_region
      %4110 = dma.done [#allocation4], 128
    $region113: #{tpu_custom_call.1} parent=1 // pred_fallthru
      _
    %4111 = vsyncpa [#allocation3], 1
    %4112 = vsyncpa [#allocation6], 1
    %4113 = vsyncpa [#allocation9], 1
    %4114 = vsyncpa [#allocation12], 1
    %4115 = vsyncpa [#allocation15], 1
    %4116 = vsyncpa [#allocation18], 1
    %4117 = vsyncpa [#allocation21], 1
    %4118 = vsyncpa [#allocation4], 1

// kernel: tpu_custom_call.1
$region0: #{tpu_custom_call.1}
  #allocation0 [shape = 'u32[]', space=smem, size = 0x4, offset = 0x4, fixed_abs, tag = 'smem constant byte address 0x4 - core index']
  #allocation1 [shape = 'u32[144,128]{1,0:T(1,128)}', space=vmem, size = 0x12000, scoped, tag = 'internal scratch']
  %s0 = inlined_call_operand.hbm [shape: f32[8,128], index: 0, kind: input, shape index: {}]
  %s1 = inlined_call_operand.hbm [shape: f32[128,2048], index: 1, kind: input, shape index: {}]
  %s2 = inlined_call_operand.hbm [shape: f32[1,2048], index: 2, kind: input, shape index: {}]
  %s3 = inlined_call_operand.hbm [shape: f32[512,512], index: 3, kind: input, shape index: {}]
  %s4 = inlined_call_operand.hbm [shape: f32[1,512], index: 4, kind: input, shape index: {}]
  %s5 = inlined_call_operand.hbm [shape: f32[512,512], index: 5, kind: input, shape index: {}]
  %s6 = inlined_call_operand.hbm [shape: f32[1,512], index: 6, kind: input, shape index: {}]
  %s7 = inlined_call_operand.hbm [shape: f32[512,512], index: 7, kind: input, shape index: {}]
  %s8 = inlined_call_operand.hbm [shape: f32[1,512], index: 8, kind: input, shape index: {}]
  %s9 = inlined_call_operand.hbm [shape: f32[512,1024], index: 9, kind: input, shape index: {}]
  %s10 = inlined_call_operand.hbm [shape: f32[1,1024], index: 10, kind: input, shape index: {}]
  %s11 = inlined_call_operand.hbm [shape: f32[256,128], index: 11, kind: input, shape index: {}]
  %s12 = inlined_call_operand.hbm [shape: f32[1,128], index: 12, kind: input, shape index: {}]
  %s13 = inlined_call_operand.hbm [shape: f32[8,128], index: 13, kind: output, shape index: {}]
  %s14 = sld [smem:[#allocation0]]
  $region114: #{tpu_custom_call.1} parent=0
    _
  %s16 = ssub.s32 1, %s14
  %s17 = scalar_select 0, %s16, %s14
  $region1: #{tpu_custom_call.1} parent=0
    #allocation2 [shape = 'u8[4096]{0}', space=vmem, size = 0x1000, scoped, tag = 'input window, operand 0, single buffered']
    #allocation3 [shape = 's32[1]{0}', space=sflag, size = 0x4, scoped, tag = 'scoped memory for tpu_custom_call.1']
    #allocation4 [shape = 's32[1]{0}', space=sflag, size = 0x4, scoped, tag = 'scoped memory for tpu_custom_call.1']
    #allocation5 [shape = 'u8[1048576]{0}', space=vmem, size = 0x100000, scoped, tag = 'input window, operand 1, single buffered']
    #allocation6 [shape = 's32[1]{0}', space=sflag, size = 0x4, scoped, tag = 'scoped memory for tpu_custom_call.1']
    #allocation7 [shape = 'u8[8192]{0}', space=vmem, size = 0x2000, scoped, tag = 'input window, operand 2, single buffered']
    #allocation8 [shape = 'u8[1048576]{0}', space=vmem, size = 0x100000, scoped, tag = 'input window, operand 3, single buffered']
    #allocation9 [shape = 's32[1]{0}', space=sflag, size = 0x4, scoped, tag = 'scoped memory for tpu_custom_call.1']
    #allocation10 [shape = 'u8[2048]{0}', space=vmem, size = 0x800, scoped, tag = 'input window, operand 4, single buffered']
    #allocation11 [shape = 'u8[1048576]{0}', space=vmem, size = 0x100000, scoped, tag = 'input window, operand 5, single buffered']
    #allocation12 [shape = 's32[1]{0}', space=sflag, size = 0x4, scoped, tag = 'scoped memory for tpu_custom_call.1']
    #allocation13 [shape = 'u8[2048]{0}', space=vmem, size = 0x800, scoped, tag = 'input window, operand 6, single buffered']
    #allocation14 [shape = 'u8[1048576]{0}', space=vmem, size = 0x100000, scoped, tag = 'input window, operand 7, single buffered']
    #allocation15 [shape = 's32[1]{0}', space=sflag, size = 0x4, scoped, tag = 'scoped memory for tpu_custom_call.1']
    #allocation16 [shape = 'u8[2048]{0}', space=vmem, size = 0x800, scoped, tag = 'input window, operand 8, single buffered']
    #allocation17 [shape = 'u8[2097152]{0}', space=vmem, size = 0x200000, scoped, tag = 'input window, operand 9, single buffered']
    #allocation18 [shape = 's32[1]{0}', space=sflag, size = 0x4, scoped, tag = 'scoped memory for tpu_custom_call.1']
    #allocation19 [shape = 'u8[4096]{0}', space=vmem, size = 0x1000, scoped, tag = 'input window, operand 10, single buffered']
    #allocation20 [shape = 'u8[131072]{0}', space=vmem, size = 0x20000, scoped, tag = 'input window, operand 11, single buffered']
    #allocation21 [shape = 's32[1]{0}', space=sflag, size = 0x4, scoped, tag = 'scoped memory for tpu_custom_call.1']
    #allocation22 [shape = 'u8[512]{0}', space=vmem, size = 0x400, scoped, tag = 'input window, operand 12, single buffered']
    #allocation23 [shape = 'u8[4096]{0}', space=vmem, size = 0x1000, scoped, tag = 'output window, operand 0, single buffered']
    %18 = vsyncpa [#allocation3], 0
    %19 = vsyncpa [#allocation6], 0
    %20 = vsyncpa [#allocation9], 0
    %21 = vsyncpa [#allocation12], 0
    %22 = vsyncpa [#allocation15], 0
    %23 = vsyncpa [#allocation18], 0
    %24 = vsyncpa [#allocation21], 0
    %25 = vsyncpa [#allocation4], 0
    // Predicated region
    $region2: #{tpu_custom_call.1} parent=1 // pred_check
      _
    $region3: #{tpu_custom_call.1} parent=1 // pred_check_branch
      %27 = sbr.rel (0) target = $region5
    $region4: #{tpu_custom_call.1} parent=1 // pred_region
      %s29 = ssub.s32 128, 128
      %30 = vsyncadd [#allocation3], %s29
      %s32 = sshll.u32 [#allocation2], 4
      %s33 = int_to_ptr.vmem [resolvable:$true] %s32
      %35 = dma.hbm_to_vmem [thread:$0]  %s0, 128, %s33, [#allocation3]
    $region5: #{tpu_custom_call.1} parent=1 // pred_fallthru
      _
    // Predicated region
    $region6: #{tpu_custom_call.1} parent=1 // pred_check
      _
    $region7: #{tpu_custom_call.1} parent=1 // pred_check_branch
      %37 = sbr.rel (0) target = $region9
    $region8: #{tpu_custom_call.1} parent=1 // pred_region
      %s39 = ssub.s32 32768, 32768
      %40 = vsyncadd [#allocation6], %s39
      %s41 = sshll.u32 [#allocation5], 4
      %s42 = int_to_ptr.vmem [resolvable:$true] %s41
      %47 = dma.hbm_to_vmem [thread:$0]  %s1, 32768, %s42, [#allocation6], 2048, 2048, 128
    $region9: #{tpu_custom_call.1} parent=1 // pred_fallthru
      _
    // Predicated region
    $region10: #{tpu_custom_call.1} parent=1 // pred_check
      _
    $region11: #{tpu_custom_call.1} parent=1 // pred_check_branch
      %49 = sbr.rel (0) target = $region13
    $region12: #{tpu_custom_call.1} parent=1 // pred_region
      %s51 = ssub.s32 256, 256
      %52 = vsyncadd [#allocation6], %s51
      %s54 = sshll.u32 [#allocation7], 4
      %s55 = int_to_ptr.vmem [resolvable:$true] %s54
      %57 = dma.hbm_to_vmem [thread:$0]  %s2, 256, %s55, [#allocation6]
    $region13: #{tpu_custom_call.1} parent=1 // pred_fallthru
      _
    // Predicated region
    $region14: #{tpu_custom_call.1} parent=1 // pred_check
      _
    $region15: #{tpu_custom_call.1} parent=1 // pred_check_branch
      %59 = sbr.rel (0) target = $region17
    $region16: #{tpu_custom_call.1} parent=1 // pred_region
      %s61 = ssub.s32 32768, 32768
      %62 = vsyncadd [#allocation9], %s61
      %s63 = sshll.u32 [#allocation8], 4
      %s64 = int_to_ptr.vmem [resolvable:$true] %s63
      %69 = dma.hbm_to_vmem [thread:$0]  %s3, 32768, %s64, [#allocation9], 512, 512, 32
    $region17: #{tpu_custom_call.1} parent=1 // pred_fallthru
      _
    // Predicated region
    $region18: #{tpu_custom_call.1} parent=1 // pred_check
      _
    $region19: #{tpu_custom_call.1} parent=1 // pred_check_branch
      %71 = sbr.rel (0) target = $region21
    $region20: #{tpu_custom_call.1} parent=1 // pred_region
      %s73 = ssub.s32 64, 64
      %74 = vsyncadd [#allocation9], %s73
      %s76 = sshll.u32 [#allocation10], 4
      %s77 = int_to_ptr.vmem [resolvable:$true] %s76
      %79 = dma.hbm_to_vmem [thread:$0]  %s4, 64, %s77, [#allocation9]
    $region21: #{tpu_custom_call.1} parent=1 // pred_fallthru
      _
    // Predicated region
    $region22: #{tpu_custom_call.1} parent=1 // pred_check
      _
    $region23: #{tpu_custom_call.1} parent=1 // pred_check_branch
      %81 = sbr.rel (0) target = $region25
    $region24: #{tpu_custom_call.1} parent=1 // pred_region
      %s83 = ssub.s32 32768, 32768
      %84 = vsyncadd [#allocation12], %s83
      %s85 = sshll.u32 [#allocation11], 4
      %s86 = int_to_ptr.vmem [resolvable:$true] %s85
      %91 = dma.hbm_to_vmem [thread:$0]  %s5, 32768, %s86, [#allocation12], 512, 512, 32
    $region25: #{tpu_custom_call.1} parent=1 // pred_fallthru
      _
    // Predicated region
    $region26: #{tpu_custom_call.1} parent=1 // pred_check
      _
    $region27: #{tpu_custom_call.1} parent=1 // pred_check_branch
      %93 = sbr.rel (0) target = $region29
    $region28: #{tpu_custom_call.1} parent=1 // pred_region
      %s95 = ssub.s32 64, 64
      %96 = vsyncadd [#allocation12], %s95
      %s98 = sshll.u32 [#allocation13], 4
      %s99 = int_to_ptr.vmem [resolvable:$true] %s98
      %101 = dma.hbm_to_vmem [thread:$0]  %s6, 64, %s99, [#allocation12]
    $region29: #{tpu_custom_call.1} parent=1 // pred_fallthru
      _
    // Predicated region
    $region30: #{tpu_custom_call.1} parent=1 // pred_check
      _
    $region31: #{tpu_custom_call.1} parent=1 // pred_check_branch
      %103 = sbr.rel (0) target = $region33
    $region32: #{tpu_custom_call.1} parent=1 // pred_region
      %s105 = ssub.s32 32768, 32768
      %106 = vsyncadd [#allocation15], %s105
      %s107 = sshll.u32 [#allocation14], 4
      %s108 = int_to_ptr.vmem [resolvable:$true] %s107
      %113 = dma.hbm_to_vmem [thread:$0]  %s7, 32768, %s108, [#allocation15], 512, 512, 32
    $region33: #{tpu_custom_call.1} parent=1 // pred_fallthru
      _
    // Predicated region
    $region34: #{tpu_custom_call.1} parent=1 // pred_check
      _
    $region35: #{tpu_custom_call.1} parent=1 // pred_check_branch
      %115 = sbr.rel (0) target = $region37
    $region36: #{tpu_custom_call.1} parent=1 // pred_region
      %s117 = ssub.s32 64, 64
      %118 = vsyncadd [#allocation15], %s117
      %s120 = sshll.u32 [#allocation16], 4
      %s121 = int_to_ptr.vmem [resolvable:$true] %s120
      %123 = dma.hbm_to_vmem [thread:$0]  %s8, 64, %s121, [#allocation15]
    $region37: #{tpu_custom_call.1} parent=1 // pred_fallthru
      _
    // Predicated region
    $region38: #{tpu_custom_call.1} parent=1 // pred_check
      _
    $region39: #{tpu_custom_call.1} parent=1 // pred_check_branch
      %125 = sbr.rel (0) target = $region41
    $region40: #{tpu_custom_call.1} parent=1 // pred_region
      %s127 = ssub.s32 65536, 65536
      %128 = vsyncadd [#allocation18], %s127
      %s129 = sshll.u32 [#allocation17], 4
      %s130 = int_to_ptr.vmem [resolvable:$true] %s129
      %135 = dma.hbm_to_vmem [thread:$0]  %s9, 65536, %s130, [#allocation18], 1024, 1024, 64
    $region41: #{tpu_custom_call.1} parent=1 // pred_fallthru
      _
    // Predicated region
    $region42: #{tpu_custom_call.1} parent=1 // pred_check
      _
    $region43: #{tpu_custom_call.1} parent=1 // pred_check_branch
      %137 = sbr.rel (0) target = $region45
    $region44: #{tpu_custom_call.1} parent=1 // pred_region
      %s139 = ssub.s32 128, 128
      %140 = vsyncadd [#allocation18], %s139
      %s142 = sshll.u32 [#allocation19], 4
      %s143 = int_to_ptr.vmem [resolvable:$true] %s142
      %145 = dma.hbm_to_vmem [thread:$0]  %s10, 128, %s143, [#allocation18]
    $region45: #{tpu_custom_call.1} parent=1 // pred_fallthru
      _
    // Predicated region
    $region46: #{tpu_custom_call.1} parent=1 // pred_check
      _
    $region47: #{tpu_custom_call.1} parent=1 // pred_check_branch
      %147 = sbr.rel (0) target = $region49
    $region48: #{tpu_custom_call.1} parent=1 // pred_region
      %s149 = ssub.s32 4096, 4096
      %150 = vsyncadd [#allocation21], %s149
      %s151 = sshll.u32 [#allocation20], 4
      %s152 = int_to_ptr.vmem [resolvable:$true] %s151
      %157 = dma.hbm_to_vmem [thread:$0]  %s11, 4096, %s152, [#allocation21], 128, 128, 8
    $region49: #{tpu_custom_call.1} parent=1 // pred_fallthru
      _
    // Predicated region
    $region50: #{tpu_custom_call.1} parent=1 // pred_check
      _
    $region51: #{tpu_custom_call.1} parent=1 // pred_check_branch
      %159 = sbr.rel (0) target = $region53
    $region52: #{tpu_custom_call.1} parent=1 // pred_region
      %s161 = ssub.s32 16, 16
      %162 = vsyncadd [#allocation21], %s161
      %s164 = sshll.u32 [#allocation22], 4
      %s165 = int_to_ptr.vmem [resolvable:$true] %s164
      %167 = dma.hbm_to_vmem [thread:$0]  %s12, 16, %s165, [#allocation21]
    $region53: #{tpu_custom_call.1} parent=1 // pred_fallthru
      _
    // Predicated region
    $region54: #{tpu_custom_call.1} parent=1 // pred_check
      _
    $region55: #{tpu_custom_call.1} parent=1 // pred_check_branch
      %169 = sbr.rel (0) target = $region57
    $region56: #{tpu_custom_call.1} parent=1 // pred_region
      %170 = dma.done [#allocation3], 128
    $region57: #{tpu_custom_call.1} parent=1 // pred_fallthru
      _
    // Predicated region
    $region58: #{tpu_custom_call.1} parent=1 // pred_check
      _
    $region59: #{tpu_custom_call.1} parent=1 // pred_check_branch
      %172 = sbr.rel (0) target = $region61
    $region60: #{tpu_custom_call.1} parent=1 // pred_region
      %173 = dma.done [#allocation6], 32768
    $region61: #{tpu_custom_call.1} parent=1 // pred_fallthru
      _
    // Predicated region
    $region62: #{tpu_custom_call.1} parent=1 // pred_check
      _
    $region63: #{tpu_custom_call.1} parent=1 // pred_check_branch
      %175 = sbr.rel (0) target = $region65
    $region64: #{tpu_custom_call.1} parent=1 // pred_region
      %176 = dma.done [#allocation6], 256
    $region65: #{tpu_custom_call.1} parent=1 // pred_fallthru
      _
    // Predicated region
    $region66: #{tpu_custom_call.1} parent=1 // pred_check
      _
    $region67: #{tpu_custom_call.1} parent=1 // pred_check_branch
      %178 = sbr.rel (0) target = $region69
    $region68: #{tpu_custom_call.1} parent=1 // pred_region
      %179 = dma.done [#allocation9], 32768
    $region69: #{tpu_custom_call.1} parent=1 // pred_fallthru
      _
    // Predicated region
    $region70: #{tpu_custom_call.1} parent=1 // pred_check
      _
    $region71: #{tpu_custom_call.1} parent=1 // pred_check_branch
      %181 = sbr.rel (0) target = $region73
    $region72: #{tpu_custom_call.1} parent=1 // pred_region
      %182 = dma.done [#allocation9], 64
    $region73: #{tpu_custom_call.1} parent=1 // pred_fallthru
      _
    // Predicated region
    $region74: #{tpu_custom_call.1} parent=1 // pred_check
      _
    $region75: #{tpu_custom_call.1} parent=1 // pred_check_branch
      %184 = sbr.rel (0) target = $region77
    $region76: #{tpu_custom_call.1} parent=1 // pred_region
      %185 = dma.done [#allocation12], 32768
    $region77: #{tpu_custom_call.1} parent=1 // pred_fallthru
      _
    // Predicated region
    $region78: #{tpu_custom_call.1} parent=1 // pred_check
      _
    $region79: #{tpu_custom_call.1} parent=1 // pred_check_branch
      %187 = sbr.rel (0) target = $region81
    $region80: #{tpu_custom_call.1} parent=1 // pred_region
      %188 = dma.done [#allocation12], 64
    $region81: #{tpu_custom_call.1} parent=1 // pred_fallthru
      _
    // Predicated region
    $region82: #{tpu_custom_call.1} parent=1 // pred_check
      _
    $region83: #{tpu_custom_call.1} parent=1 // pred_check_branch
      %190 = sbr.rel (0) target = $region85
    $region84: #{tpu_custom_call.1} parent=1 // pred_region
      %191 = dma.done [#allocation15], 32768
    $region85: #{tpu_custom_call.1} parent=1 // pred_fallthru
      _
    // Predicated region
    $region86: #{tpu_custom_call.1} parent=1 // pred_check
      _
    $region87: #{tpu_custom_call.1} parent=1 // pred_check_branch
      %193 = sbr.rel (0) target = $region89
    $region88: #{tpu_custom_call.1} parent=1 // pred_region
      %194 = dma.done [#allocation15], 64
    $region89: #{tpu_custom_call.1} parent=1 // pred_fallthru
      _
    // Predicated region
    $region90: #{tpu_custom_call.1} parent=1 // pred_check
      _
    $region91: #{tpu_custom_call.1} parent=1 // pred_check_branch
      %196 = sbr.rel (0) target = $region93
    $region92: #{tpu_custom_call.1} parent=1 // pred_region
      %197 = dma.done [#allocation18], 65536
    $region93: #{tpu_custom_call.1} parent=1 // pred_fallthru
      _
    // Predicated region
    $region94: #{tpu_custom_call.1} parent=1 // pred_check
      _
    $region95: #{tpu_custom_call.1} parent=1 // pred_check_branch
      %199 = sbr.rel (0) target = $region97
    $region96: #{tpu_custom_call.1} parent=1 // pred_region
      %200 = dma.done [#allocation18], 128
    $region97: #{tpu_custom_call.1} parent=1 // pred_fallthru
      _
    // Predicated region
    $region98: #{tpu_custom_call.1} parent=1 // pred_check
      _
    $region99: #{tpu_custom_call.1} parent=1 // pred_check_branch
      %202 = sbr.rel (0) target = $region101
    $region100: #{tpu_custom_call.1} parent=1 // pred_region
      %203 = dma.done [#allocation21], 4096
    $region101: #{tpu_custom_call.1} parent=1 // pred_fallthru
      _
    // Predicated region
    $region102: #{tpu_custom_call.1} parent=1 // pred_check
      _
    $region103: #{tpu_custom_call.1} parent=1 // pred_check_branch
      %205 = sbr.rel (0) target = $region105
    $region104: #{tpu_custom_call.1} parent=1 // pred_region
      %206 = dma.done [#allocation21], 16
    $region105: #{tpu_custom_call.1} parent=1 // pred_fallthru
      _
    %v207 = vld [vmem:[#allocation2] sm:$0xff]
    %v208 = vld [vmem:[#allocation5] sm:$0xff]
    %v209 = vld [vmem:[#allocation5 + $0x8] sm:$0xff]
    %v210 = vld [vmem:[#allocation5 + $0x10] sm:$0xff]
    %v211 = vld [vmem:[#allocation5 + $0x18] sm:$0xff]
    %v212 = vld [vmem:[#allocation5 + $0x80] sm:$0xff]
    %v213 = vld [vmem:[#allocation5 + $0x88] sm:$0xff]
    %v214 = vld [vmem:[#allocation5 + $0x90] sm:$0xff]
    %v215 = vld [vmem:[#allocation5 + $0x98] sm:$0xff]
    %v216 = vld [vmem:[#allocation5 + $0x100] sm:$0xff]
    %v217 = vld [vmem:[#allocation5 + $0x108] sm:$0xff]
    %v218 = vld [vmem:[#allocation5 + $0x110] sm:$0xff]
    %v219 = vld [vmem:[#allocation5 + $0x118] sm:$0xff]
    %v220 = vld [vmem:[#allocation5 + $0x180] sm:$0xff]
    %v221 = vld [vmem:[#allocation5 + $0x188] sm:$0xff]
    %v222 = vld [vmem:[#allocation5 + $0x190] sm:$0xff]
    %v223 = vld [vmem:[#allocation5 + $0x198] sm:$0xff]
    %v224 = vld [vmem:[#allocation5 + $0x200] sm:$0xff]
    %v225 = vld [vmem:[#allocation5 + $0x208] sm:$0xff]
    %v226 = vld [vmem:[#allocation5 + $0x210] sm:$0xff]
    %v227 = vld [vmem:[#allocation5 + $0x218] sm:$0xff]
    %v228 = vld [vmem:[#allocation5 + $0x280] sm:$0xff]
    %v229 = vld [vmem:[#allocation5 + $0x288] sm:$0xff]
    %v230 = vld [vmem:[#allocation5 + $0x290] sm:$0xff]
    %v231 = vld [vmem:[#allocation5 + $0x298] sm:$0xff]
    %v232 = vld [vmem:[#allocation5 + $0x300] sm:$0xff]
    %v233 = vld [vmem:[#allocation5 + $0x308] sm:$0xff]
    %v234 = vld [vmem:[#allocation5 + $0x310] sm:$0xff]
    %v235 = vld [vmem:[#allocation5 + $0x318] sm:$0xff]
    %v236 = vld [vmem:[#allocation5 + $0x380] sm:$0xff]
    %v237 = vld [vmem:[#allocation5 + $0x388] sm:$0xff]
    %v238 = vld [vmem:[#allocation5 + $0x390] sm:$0xff]
    %v239 = vld [vmem:[#allocation5 + $0x398] sm:$0xff]
    %v240 = vld [vmem:[#allocation5 + $0x400] sm:$0xff]
    %v241 = vld [vmem:[#allocation5 + $0x408] sm:$0xff]
    %v242 = vld [vmem:[#allocation5 + $0x410] sm:$0xff]
    %v243 = vld [vmem:[#allocation5 + $0x418] sm:$0xff]
    %v244 = vld [vmem:[#allocation5 + $0x480] sm:$0xff]
    %v245 = vld [vmem:[#allocation5 + $0x488] sm:$0xff]
    %v246 = vld [vmem:[#allocation5 + $0x490] sm:$0xff]
    %v247 = vld [vmem:[#allocation5 + $0x498] sm:$0xff]
    %v248 = vld [vmem:[#allocation5 + $0x500] sm:$0xff]
    %v249 = vld [vmem:[#allocation5 + $0x508] sm:$0xff]
    %v250 = vld [vmem:[#allocation5 + $0x510] sm:$0xff]
    %v251 = vld [vmem:[#allocation5 + $0x518] sm:$0xff]
    %v252 = vld [vmem:[#allocation5 + $0x580] sm:$0xff]
    %v253 = vld [vmem:[#allocation5 + $0x588] sm:$0xff]
    %v254 = vld [vmem:[#allocation5 + $0x590] sm:$0xff]
    %v255 = vld [vmem:[#allocation5 + $0x598] sm:$0xff]
    %v256 = vld [vmem:[#allocation5 + $0x600] sm:$0xff]
    %v257 = vld [vmem:[#allocation5 + $0x608] sm:$0xff]
    %v258 = vld [vmem:[#allocation5 + $0x610] sm:$0xff]
    %v259 = vld [vmem:[#allocation5 + $0x618] sm:$0xff]
    %v260 = vld [vmem:[#allocation5 + $0x680] sm:$0xff]
    %v261 = vld [vmem:[#allocation5 + $0x688] sm:$0xff]
    %v262 = vld [vmem:[#allocation5 + $0x690] sm:$0xff]
    %v263 = vld [vmem:[#allocation5 + $0x698] sm:$0xff]
    %v264 = vld [vmem:[#allocation5 + $0x700] sm:$0xff]
    %v265 = vld [vmem:[#allocation5 + $0x708] sm:$0xff]
    %v266 = vld [vmem:[#allocation5 + $0x710] sm:$0xff]
    %v267 = vld [vmem:[#allocation5 + $0x718] sm:$0xff]
    %v268 = vld [vmem:[#allocation5 + $0x780] sm:$0xff]
    %v269 = vld [vmem:[#allocation5 + $0x788] sm:$0xff]
    %v270 = vld [vmem:[#allocation5 + $0x790] sm:$0xff]
    %v271 = vld [vmem:[#allocation5 + $0x798] sm:$0xff]
    %v272 = vld [vmem:[#allocation7] sm:$0xf]
    %v274 = vlaneseq
    %v275 = vshrl.u32 %v274, 7
    %v276 = vsub.s32 0, %v275
    %v277 = vrot.slane %v272, %v276
    %v278 = vlaneseq
    %v279 = vshrl.u32 %v278, 7
    %v280 = vsub.s32 1, %v279
    %v281 = vrot.slane %v272, %v280
    %v282 = vlaneseq
    %v283 = vshrl.u32 %v282, 7
    %v284 = vsub.s32 2, %v283
    %v285 = vrot.slane %v272, %v284
    %v286 = vlaneseq
    %v287 = vshrl.u32 %v286, 7
    %v288 = vsub.s32 3, %v287
    %v289 = vrot.slane %v272, %v288
    %294 = vmatprep.subr.mxu0 %v209
    %295 = vmatpush1.msra.mxu0 %v208
    %296 = vmatprep.subr.mxu0 %v213
    %297 = vmatpush1.msra.mxu0 %v212
    %298 = vmatprep.subr.mxu0 %v217
    %299 = vmatpush1.msra.mxu0 %v216
    %300 = vmatprep.subr.mxu0 %v221
    %301 = vmatpush1.msra.mxu0 %v220
    %302 = vmatprep.subr.mxu0 %v225
    %303 = vmatpush1.msra.mxu0 %v224
    %304 = vmatprep.subr.mxu0 %v229
    %305 = vmatpush1.msra.mxu0 %v228
    %306 = vmatprep.subr.mxu0 %v233
    %307 = vmatpush1.msra.mxu0 %v232
    %308 = vmatprep.subr.mxu0 %v237
    %309 = vmatpush1.msra.mxu0 %v236
    %310 = vmatprep.subr.mxu0 %v241
    %311 = vmatpush1.msra.mxu0 %v240
    %312 = vmatprep.subr.mxu0 %v245
    %313 = vmatpush1.msra.mxu0 %v244
    %314 = vmatprep.subr.mxu0 %v249
    %315 = vmatpush1.msra.mxu0 %v248
    %316 = vmatprep.subr.mxu0 %v253
    %317 = vmatpush1.msra.mxu0 %v252
    %318 = vmatprep.subr.mxu0 %v257
    %319 = vmatpush1.msra.mxu0 %v256
    %320 = vmatprep.subr.mxu0 %v261
    %321 = vmatpush1.msra.mxu0 %v260
    %322 = vmatprep.subr.mxu0 %v265
    %323 = vmatpush1.msra.mxu0 %v264
    %324 = vmatprep.subr.mxu0 %v269
    %325 = vmatpush1.msra.mxu0 %v268
    %326 = vmatprep.subr.mxu0 0.0
    %327 = vmatpush1.msra.mxu0 0.0
    %328 = vmatprep.subr.mxu0 0.0
    %329 = vmatpush1.msra.mxu0 0.0
    %330 = vmatprep.subr.mxu0 0.0
    %331 = vmatpush1.msra.mxu0 0.0
    %332 = vmatprep.subr.mxu0 0.0
    %333 = vmatpush1.msra.mxu0 0.0
    %334 = vmatprep.subr.mxu0 0.0
    %335 = vmatpush1.msra.mxu0 0.0
    %336 = vmatprep.subr.mxu0 0.0
    %337 = vmatpush1.msra.mxu0 0.0
    %338 = vmatprep.subr.mxu0 0.0
    %339 = vmatpush1.msra.mxu0 0.0
    %340 = vmatprep.subr.mxu0 0.0
    %341 = vmatpush1.msra.mxu0 0.0
    %342 = vmatprep.subr.mxu0 0.0
    %343 = vmatpush1.msra.mxu0 0.0
    %344 = vmatprep.subr.mxu0 0.0
    %345 = vmatpush1.msra.mxu0 0.0
    %346 = vmatprep.subr.mxu0 0.0
    %347 = vmatpush1.msra.mxu0 0.0
    %348 = vmatprep.subr.mxu0 0.0
    %349 = vmatpush1.msra.mxu0 0.0
    %350 = vmatprep.subr.mxu0 0.0
    %351 = vmatpush1.msra.mxu0 0.0
    %352 = vmatprep.subr.mxu0 0.0
    %353 = vmatpush1.msra.mxu0 0.0
    %354 = vmatprep.subr.mxu0 0.0
    %355 = vmatpush1.msra.mxu0 0.0
    %356 = vmatprep.subr.mxu0 0.0
    %357 = vmatpush1.msra.mxu0 0.0
    %358 = vmatprep.mubr.f32.mxu0 0.0
    %359 = vmatmul.mubr.f32.gmra.mrb[0].mxu0 %v207
    %v360 = vpop.f32.mrb[0].mxu0
    %v361 = vadd.f32 %v277, %v360
    %v362 = vpop.f32.mrb[0].mxu0
    %v363 = vadd.f32 %v281, %v362
    %364 = vdwg.mxu0
    %365 = vmatprep.subr.mxu0 %v211
    %366 = vmatpush1.msra.mxu0 %v210
    %367 = vmatprep.subr.mxu0 %v215
    %368 = vmatpush1.msra.mxu0 %v214
    %369 = vmatprep.subr.mxu0 %v219
    %370 = vmatpush1.msra.mxu0 %v218
    %371 = vmatprep.subr.mxu0 %v223
    %372 = vmatpush1.msra.mxu0 %v222
    %373 = vmatprep.subr.mxu0 %v227
    %374 = vmatpush1.msra.mxu0 %v226
    %375 = vmatprep.subr.mxu0 %v231
    %376 = vmatpush1.msra.mxu0 %v230
    %377 = vmatprep.subr.mxu0 %v235
    %378 = vmatpush1.msra.mxu0 %v234
    %379 = vmatprep.subr.mxu0 %v239
    %380 = vmatpush1.msra.mxu0 %v238
    %381 = vmatprep.subr.mxu0 %v243
    %382 = vmatpush1.msra.mxu0 %v242
    %383 = vmatprep.subr.mxu0 %v247
    %384 = vmatpush1.msra.mxu0 %v246
    %385 = vmatprep.subr.mxu0 %v251
    %386 = vmatpush1.msra.mxu0 %v250
    %387 = vmatprep.subr.mxu0 %v255
    %388 = vmatpush1.msra.mxu0 %v254
    %389 = vmatprep.subr.mxu0 %v259
    %390 = vmatpush1.msra.mxu0 %v258
    %391 = vmatprep.subr.mxu0 %v263
    %392 = vmatpush1.msra.mxu0 %v262
    %393 = vmatprep.subr.mxu0 %v267
    %394 = vmatpush1.msra.mxu0 %v266
    %395 = vmatprep.subr.mxu0 %v271
    %396 = vmatpush1.msra.mxu0 %v270
    %397 = vmatprep.subr.mxu0 0.0
    %398 = vmatpush1.msra.mxu0 0.0
    %399 = vmatprep.subr.mxu0 0.0
    %400 = vmatpush1.msra.mxu0 0.0
    %401 = vmatprep.subr.mxu0 0.0
    %402 = vmatpush1.msra.mxu0 0.0
    %403 = vmatprep.subr.mxu0 0.0
    %404 = vmatpush1.msra.mxu0 0.0
    %405 = vmatprep.subr.mxu0 0.0
    %406 = vmatpush1.msra.mxu0 0.0
    %407 = vmatprep.subr.mxu0 0.0
    %408 = vmatpush1.msra.mxu0 0.0
    %409 = vmatprep.subr.mxu0 0.0
    %410 = vmatpush1.msra.mxu0 0.0
    %411 = vmatprep.subr.mxu0 0.0
    %412 = vmatpush1.msra.mxu0 0.0
    %413 = vmatprep.subr.mxu0 0.0
    %414 = vmatpush1.msra.mxu0 0.0
    %415 = vmatprep.subr.mxu0 0.0
    %416 = vmatpush1.msra.mxu0 0.0
    %417 = vmatprep.subr.mxu0 0.0
    %418 = vmatpush1.msra.mxu0 0.0
    %419 = vmatprep.subr.mxu0 0.0
    %420 = vmatpush1.msra.mxu0 0.0
    %421 = vmatprep.subr.mxu0 0.0
    %422 = vmatpush1.msra.mxu0 0.0
    %423 = vmatprep.subr.mxu0 0.0
    %424 = vmatpush1.msra.mxu0 0.0
    %425 = vmatprep.subr.mxu0 0.0
    %426 = vmatpush1.msra.mxu0 0.0
    %427 = vmatprep.subr.mxu0 0.0
    %428 = vmatpush1.msra.mxu0 0.0
    %429 = vmatprep.mubr.f32.mxu0 0.0
    %430 = vmatmul.mubr.f32.gmra.mrb[0].mxu0 %v207
    %v431 = vpop.f32.mrb[0].mxu0
    %v432 = vadd.f32 %v285, %v431
    %v433 = vpop.f32.mrb[0].mxu0
    %v434 = vadd.f32 %v289, %v433
    %435 = vdwg.mxu0
    %v436 = vmax.f32 %v361, 0.0
    %v437 = vmax.f32 %v363, 0.0
    %v438 = vmax.f32 %v432, 0.0
    %v439 = vmax.f32 %v434, 0.0
    %v440 = vld [vmem:[#allocation5 + $0x20] sm:$0xff]
    %v441 = vld [vmem:[#allocation5 + $0x28] sm:$0xff]
    %v442 = vld [vmem:[#allocation5 + $0x30] sm:$0xff]
    %v443 = vld [vmem:[#allocation5 + $0x38] sm:$0xff]
    %v444 = vld [vmem:[#allocation5 + $0xa0] sm:$0xff]
    %v445 = vld [vmem:[#allocation5 + $0xa8] sm:$0xff]
    %v446 = vld [vmem:[#allocation5 + $0xb0] sm:$0xff]
    %v447 = vld [vmem:[#allocation5 + $0xb8] sm:$0xff]
    %v448 = vld [vmem:[#allocation5 + $0x120] sm:$0xff]
    %v449 = vld [vmem:[#allocation5 + $0x128] sm:$0xff]
    %v450 = vld [vmem:[#allocation5 + $0x130] sm:$0xff]
    %v451 = vld [vmem:[#allocation5 + $0x138] sm:$0xff]
    %v452 = vld [vmem:[#allocation5 + $0x1a0] sm:$0xff]
    %v453 = vld [vmem:[#allocation5 + $0x1a8] sm:$0xff]
    %v454 = vld [vmem:[#allocation5 + $0x1b0] sm:$0xff]
    %v455 = vld [vmem:[#allocation5 + $0x1b8] sm:$0xff]
    %v456 = vld [vmem:[#allocation5 + $0x220] sm:$0xff]
    %v457 = vld [vmem:[#allocation5 + $0x228] sm:$0xff]
    %v458 = vld [vmem:[#allocation5 + $0x230] sm:$0xff]
    %v459 = vld [vmem:[#allocation5 + $0x238] sm:$0xff]
    %v460 = vld [vmem:[#allocation5 + $0x2a0] sm:$0xff]
    %v461 = vld [vmem:[#allocation5 + $0x2a8] sm:$0xff]
    %v462 = vld [vmem:[#allocation5 + $0x2b0] sm:$0xff]
    %v463 = vld [vmem:[#allocation5 + $0x2b8] sm:$0xff]
    %v464 = vld [vmem:[#allocation5 + $0x320] sm:$0xff]
    %v465 = vld [vmem:[#allocation5 + $0x328] sm:$0xff]
    %v466 = vld [vmem:[#allocation5 + $0x330] sm:$0xff]
    %v467 = vld [vmem:[#allocation5 + $0x338] sm:$0xff]
    %v468 = vld [vmem:[#allocation5 + $0x3a0] sm:$0xff]
    %v469 = vld [vmem:[#allocation5 + $0x3a8] sm:$0xff]
    %v470 = vld [vmem:[#allocation5 + $0x3b0] sm:$0xff]
    %v471 = vld [vmem:[#allocation5 + $0x3b8] sm:$0xff]
    %v472 = vld [vmem:[#allocation5 + $0x420] sm:$0xff]
    %v473 = vld [vmem:[#allocation5 + $0x428] sm:$0xff]
    %v474 = vld [vmem:[#allocation5 + $0x430] sm:$0xff]
    %v475 = vld [vmem:[#allocation5 + $0x438] sm:$0xff]
    %v476 = vld [vmem:[#allocation5 + $0x4a0] sm:$0xff]
    %v477 = vld [vmem:[#allocation5 + $0x4a8] sm:$0xff]
    %v478 = vld [vmem:[#allocation5 + $0x4b0] sm:$0xff]
    %v479 = vld [vmem:[#allocation5 + $0x4b8] sm:$0xff]
    %v480 = vld [vmem:[#allocation5 + $0x520] sm:$0xff]
    %v481 = vld [vmem:[#allocation5 + $0x528] sm:$0xff]
    %v482 = vld [vmem:[#allocation5 + $0x530] sm:$0xff]
    %v483 = vld [vmem:[#allocation5 + $0x538] sm:$0xff]
    %v484 = vld [vmem:[#allocation5 + $0x5a0] sm:$0xff]
    %v485 = vld [vmem:[#allocation5 + $0x5a8] sm:$0xff]
    %v486 = vld [vmem:[#allocation5 + $0x5b0] sm:$0xff]
    %v487 = vld [vmem:[#allocation5 + $0x5b8] sm:$0xff]
    %v488 = vld [vmem:[#allocation5 + $0x620] sm:$0xff]
    %v489 = vld [vmem:[#allocation5 + $0x628] sm:$0xff]
    %v490 = vld [vmem:[#allocation5 + $0x630] sm:$0xff]
    %v491 = vld [vmem:[#allocation5 + $0x638] sm:$0xff]
    %v492 = vld [vmem:[#allocation5 + $0x6a0] sm:$0xff]
    %v493 = vld [vmem:[#allocation5 + $0x6a8] sm:$0xff]
    %v494 = vld [vmem:[#allocation5 + $0x6b0] sm:$0xff]
    %v495 = vld [vmem:[#allocation5 + $0x6b8] sm:$0xff]
    %v496 = vld [vmem:[#allocation5 + $0x720] sm:$0xff]
    %v497 = vld [vmem:[#allocation5 + $0x728] sm:$0xff]
    %v498 = vld [vmem:[#allocation5 + $0x730] sm:$0xff]
    %v499 = vld [vmem:[#allocation5 + $0x738] sm:$0xff]
    %v500 = vld [vmem:[#allocation5 + $0x7a0] sm:$0xff]
    %v501 = vld [vmem:[#allocation5 + $0x7a8] sm:$0xff]
    %v502 = vld [vmem:[#allocation5 + $0x7b0] sm:$0xff]
    %v503 = vld [vmem:[#allocation5 + $0x7b8] sm:$0xff]
    %v504 = vld [vmem:[#allocation7 + $0x4] sm:$0xf]
    %v506 = vlaneseq
    %v507 = vshrl.u32 %v506, 7
    %v508 = vsub.s32 0, %v507
    %v509 = vrot.slane %v504, %v508
    %v510 = vlaneseq
    %v511 = vshrl.u32 %v510, 7
    %v512 = vsub.s32 1, %v511
    %v513 = vrot.slane %v504, %v512
    %v514 = vlaneseq
    %v515 = vshrl.u32 %v514, 7
    %v516 = vsub.s32 2, %v515
    %v517 = vrot.slane %v504, %v516
    %v518 = vlaneseq
    %v519 = vshrl.u32 %v518, 7
    %v520 = vsub.s32 3, %v519
    %v521 = vrot.slane %v504, %v520
    %526 = vmatprep.subr.mxu0 %v441
    %527 = vmatpush1.msra.mxu0 %v440
    %528 = vmatprep.subr.mxu0 %v445
    %529 = vmatpush1.msra.mxu0 %v444
    %530 = vmatprep.subr.mxu0 %v449
    %531 = vmatpush1.msra.mxu0 %v448
    %532 = vmatprep.subr.mxu0 %v453
    %533 = vmatpush1.msra.mxu0 %v452
    %534 = vmatprep.subr.mxu0 %v457
    %535 = vmatpush1.msra.mxu0 %v456
    %536 = vmatprep.subr.mxu0 %v461
    %537 = vmatpush1.msra.mxu0 %v460
    %538 = vmatprep.subr.mxu0 %v465
    %539 = vmatpush1.msra.mxu0 %v464
    %540 = vmatprep.subr.mxu0 %v469
    %541 = vmatpush1.msra.mxu0 %v468
    %542 = vmatprep.subr.mxu0 %v473
    %543 = vmatpush1.msra.mxu0 %v472
    %544 = vmatprep.subr.mxu0 %v477
    %545 = vmatpush1.msra.mxu0 %v476
    %546 = vmatprep.subr.mxu0 %v481
    %547 = vmatpush1.msra.mxu0 %v480
    %548 = vmatprep.subr.mxu0 %v485
    %549 = vmatpush1.msra.mxu0 %v484
    %550 = vmatprep.subr.mxu0 %v489
    %551 = vmatpush1.msra.mxu0 %v488
    %552 = vmatprep.subr.mxu0 %v493
    %553 = vmatpush1.msra.mxu0 %v492
    %554 = vmatprep.subr.mxu0 %v497
    %555 = vmatpush1.msra.mxu0 %v496
    %556 = vmatprep.subr.mxu0 %v501
    %557 = vmatpush1.msra.mxu0 %v500
    %558 = vmatprep.subr.mxu0 0.0
    %559 = vmatpush1.msra.mxu0 0.0
    %560 = vmatprep.subr.mxu0 0.0
    %561 = vmatpush1.msra.mxu0 0.0
    %562 = vmatprep.subr.mxu0 0.0
    %563 = vmatpush1.msra.mxu0 0.0
    %564 = vmatprep.subr.mxu0 0.0
    %565 = vmatpush1.msra.mxu0 0.0
    %566 = vmatprep.subr.mxu0 0.0
    %567 = vmatpush1.msra.mxu0 0.0
    %568 = vmatprep.subr.mxu0 0.0
    %569 = vmatpush1.msra.mxu0 0.0
    %570 = vmatprep.subr.mxu0 0.0
    %571 = vmatpush1.msra.mxu0 0.0
    %572 = vmatprep.subr.mxu0 0.0
    %573 = vmatpush1.msra.mxu0 0.0
    %574 = vmatprep.subr.mxu0 0.0
    %575 = vmatpush1.msra.mxu0 0.0
    %576 = vmatprep.subr.mxu0 0.0
    %577 = vmatpush1.msra.mxu0 0.0
    %578 = vmatprep.subr.mxu0 0.0
    %579 = vmatpush1.msra.mxu0 0.0
    %580 = vmatprep.subr.mxu0 0.0
    %581 = vmatpush1.msra.mxu0 0.0
    %582 = vmatprep.subr.mxu0 0.0
    %583 = vmatpush1.msra.mxu0 0.0
    %584 = vmatprep.subr.mxu0 0.0
    %585 = vmatpush1.msra.mxu0 0.0
    %586 = vmatprep.subr.mxu0 0.0
    %587 = vmatpush1.msra.mxu0 0.0
    %588 = vmatprep.subr.mxu0 0.0
    %589 = vmatpush1.msra.mxu0 0.0
    %590 = vmatprep.mubr.f32.mxu0 0.0
    %591 = vmatmul.mubr.f32.gmra.mrb[0].mxu0 %v207
    %v592 = vpop.f32.mrb[0].mxu0
    %v593 = vadd.f32 %v509, %v592
    %v594 = vpop.f32.mrb[0].mxu0
    %v595 = vadd.f32 %v513, %v594
    %596 = vdwg.mxu0
    %597 = vmatprep.subr.mxu0 %v443
    %598 = vmatpush1.msra.mxu0 %v442
    %599 = vmatprep.subr.mxu0 %v447
    %600 = vmatpush1.msra.mxu0 %v446
    %601 = vmatprep.subr.mxu0 %v451
    %602 = vmatpush1.msra.mxu0 %v450
    %603 = vmatprep.subr.mxu0 %v455
    %604 = vmatpush1.msra.mxu0 %v454
    %605 = vmatprep.subr.mxu0 %v459
    %606 = vmatpush1.msra.mxu0 %v458
    %607 = vmatprep.subr.mxu0 %v463
    %608 = vmatpush1.msra.mxu0 %v462
    %609 = vmatprep.subr.mxu0 %v467
    %610 = vmatpush1.msra.mxu0 %v466
    %611 = vmatprep.subr.mxu0 %v471
    %612 = vmatpush1.msra.mxu0 %v470
    %613 = vmatprep.subr.mxu0 %v475
    %614 = vmatpush1.msra.mxu0 %v474
    %615 = vmatprep.subr.mxu0 %v479
    %616 = vmatpush1.msra.mxu0 %v478
    %617 = vmatprep.subr.mxu0 %v483
    %618 = vmatpush1.msra.mxu0 %v482
    %619 = vmatprep.subr.mxu0 %v487
    %620 = vmatpush1.msra.mxu0 %v486
    %621 = vmatprep.subr.mxu0 %v491
    %622 = vmatpush1.msra.mxu0 %v490
    %623 = vmatprep.subr.mxu0 %v495
    %624 = vmatpush1.msra.mxu0 %v494
    %625 = vmatprep.subr.mxu0 %v499
    %626 = vmatpush1.msra.mxu0 %v498
    %627 = vmatprep.subr.mxu0 %v503
    %628 = vmatpush1.msra.mxu0 %v502
    %629 = vmatprep.subr.mxu0 0.0
    %630 = vmatpush1.msra.mxu0 0.0
    %631 = vmatprep.subr.mxu0 0.0
    %632 = vmatpush1.msra.mxu0 0.0
    %633 = vmatprep.subr.mxu0 0.0
    %634 = vmatpush1.msra.mxu0 0.0
    %635 = vmatprep.subr.mxu0 0.0
    %636 = vmatpush1.msra.mxu0 0.0
    %637 = vmatprep.subr.mxu0 0.0
    %638 = vmatpush1.msra.mxu0 0.0
    %639 = vmatprep.subr.mxu0 0.0
    %640 = vmatpush1.msra.mxu0 0.0
    %641 = vmatprep.subr.mxu0 0.0
    %642 = vmatpush1.msra.mxu0 0.0
    %643 = vmatprep.subr.mxu0 0.0
    %644 = vmatpush1.msra.mxu0 0.0
    %645 = vmatprep.subr.mxu0 0.0
    %646 = vmatpush1.msra.mxu0 0.0
    %647 = vmatprep.subr.mxu0 0.0
    %648 = vmatpush1.msra.mxu0 0.0
    %649 = vmatprep.subr.mxu0 0.0
    %650 = vmatpush1.msra.mxu0 0.0
    %651 = vmatprep.subr.mxu0 0.0
    %652 = vmatpush1.msra.mxu0 0.0
    %653 = vmatprep.subr.mxu0 0.0
    %654 = vmatpush1.msra.mxu0 0.0
    %655 = vmatprep.subr.mxu0 0.0
    %656 = vmatpush1.msra.mxu0 0.0
    %657 = vmatprep.subr.mxu0 0.0
    %658 = vmatpush1.msra.mxu0 0.0
    %659 = vmatprep.subr.mxu0 0.0
    %660 = vmatpush1.msra.mxu0 0.0
    %661 = vmatprep.mubr.f32.mxu0 0.0
    %662 = vmatmul.mubr.f32.gmra.mrb[0].mxu0 %v207
    %v663 = vpop.f32.mrb[0].mxu0
    %v664 = vadd.f32 %v517, %v663
    %v665 = vpop.f32.mrb[0].mxu0
    %v666 = vadd.f32 %v521, %v665
    %667 = vdwg.mxu0
    %v668 = vmax.f32 %v593, 0.0
    %v669 = vmax.f32 %v595, 0.0
    %v670 = vmax.f32 %v664, 0.0
    %v671 = vmax.f32 %v666, 0.0
    %v672 = vmax.f32 %v436, %v668
    %v673 = vmax.f32 %v437, %v669
    %v674 = vmax.f32 %v438, %v670
    %v675 = vmax.f32 %v439, %v671
    %v676 = vld [vmem:[#allocation5 + $0x40] sm:$0xff]
    %v677 = vld [vmem:[#allocation5 + $0x48] sm:$0xff]
    %v678 = vld [vmem:[#allocation5 + $0x50] sm:$0xff]
    %v679 = vld [vmem:[#allocation5 + $0x58] sm:$0xff]
    %v680 = vld [vmem:[#allocation5 + $0xc0] sm:$0xff]
    %v681 = vld [vmem:[#allocation5 + $0xc8] sm:$0xff]
    %v682 = vld [vmem:[#allocation5 + $0xd0] sm:$0xff]
    %v683 = vld [vmem:[#allocation5 + $0xd8] sm:$0xff]
    %v684 = vld [vmem:[#allocation5 + $0x140] sm:$0xff]
    %v685 = vld [vmem:[#allocation5 + $0x148] sm:$0xff]
    %v686 = vld [vmem:[#allocation5 + $0x150] sm:$0xff]
    %v687 = vld [vmem:[#allocation5 + $0x158] sm:$0xff]
    %v688 = vld [vmem:[#allocation5 + $0x1c0] sm:$0xff]
    %v689 = vld [vmem:[#allocation5 + $0x1c8] sm:$0xff]
    %v690 = vld [vmem:[#allocation5 + $0x1d0] sm:$0xff]
    %v691 = vld [vmem:[#allocation5 + $0x1d8] sm:$0xff]
    %v692 = vld [vmem:[#allocation5 + $0x240] sm:$0xff]
    %v693 = vld [vmem:[#allocation5 + $0x248] sm:$0xff]
    %v694 = vld [vmem:[#allocation5 + $0x250] sm:$0xff]
    %v695 = vld [vmem:[#allocation5 + $0x258] sm:$0xff]
    %v696 = vld [vmem:[#allocation5 + $0x2c0] sm:$0xff]
    %v697 = vld [vmem:[#allocation5 + $0x2c8] sm:$0xff]
    %v698 = vld [vmem:[#allocation5 + $0x2d0] sm:$0xff]
    %v699 = vld [vmem:[#allocation5 + $0x2d8] sm:$0xff]
    %v700 = vld [vmem:[#allocation5 + $0x340] sm:$0xff]
    %v701 = vld [vmem:[#allocation5 + $0x348] sm:$0xff]
    %v702 = vld [vmem:[#allocation5 + $0x350] sm:$0xff]
    %v703 = vld [vmem:[#allocation5 + $0x358] sm:$0xff]
    %v704 = vld [vmem:[#allocation5 + $0x3c0] sm:$0xff]
    %v705 = vld [vmem:[#allocation5 + $0x3c8] sm:$0xff]
    %v706 = vld [vmem:[#allocation5 + $0x3d0] sm:$0xff]
    %v707 = vld [vmem:[#allocation5 + $0x3d8] sm:$0xff]
    %v708 = vld [vmem:[#allocation5 + $0x440] sm:$0xff]
    %v709 = vld [vmem:[#allocation5 + $0x448] sm:$0xff]
    %v710 = vld [vmem:[#allocation5 + $0x450] sm:$0xff]
    %v711 = vld [vmem:[#allocation5 + $0x458] sm:$0xff]
    %v712 = vld [vmem:[#allocation5 + $0x4c0] sm:$0xff]
    %v713 = vld [vmem:[#allocation5 + $0x4c8] sm:$0xff]
    %v714 = vld [vmem:[#allocation5 + $0x4d0] sm:$0xff]
    %v715 = vld [vmem:[#allocation5 + $0x4d8] sm:$0xff]
    %v716 = vld [vmem:[#allocation5 + $0x540] sm:$0xff]
    %v717 = vld [vmem:[#allocation5 + $0x548] sm:$0xff]
    %v718 = vld [vmem:[#allocation5 + $0x550] sm:$0xff]
    %v719 = vld [vmem:[#allocation5 + $0x558] sm:$0xff]
    %v720 = vld [vmem:[#allocation5 + $0x5c0] sm:$0xff]
    %v721 = vld [vmem:[#allocation5 + $0x5c8] sm:$0xff]
    %v722 = vld [vmem:[#allocation5 + $0x5d0] sm:$0xff]
    %v723 = vld [vmem:[#allocation5 + $0x5d8] sm:$0xff]
    %v724 = vld [vmem:[#allocation5 + $0x640] sm:$0xff]
    %v725 = vld [vmem:[#allocation5 + $0x648] sm:$0xff]
    %v726 = vld [vmem:[#allocation5 + $0x650] sm:$0xff]
    %v727 = vld [vmem:[#allocation5 + $0x658] sm:$0xff]
    %v728 = vld [vmem:[#allocation5 + $0x6c0] sm:$0xff]
    %v729 = vld [vmem:[#allocation5 + $0x6c8] sm:$0xff]
    %v730 = vld [vmem:[#allocation5 + $0x6d0] sm:$0xff]
    %v731 = vld [vmem:[#allocation5 + $0x6d8] sm:$0xff]
    %v732 = vld [vmem:[#allocation5 + $0x740] sm:$0xff]
    %v733 = vld [vmem:[#allocation5 + $0x748] sm:$0xff]
    %v734 = vld [vmem:[#allocation5 + $0x750] sm:$0xff]
    %v735 = vld [vmem:[#allocation5 + $0x758] sm:$0xff]
    %v736 = vld [vmem:[#allocation5 + $0x7c0] sm:$0xff]
    %v737 = vld [vmem:[#allocation5 + $0x7c8] sm:$0xff]
    %v738 = vld [vmem:[#allocation5 + $0x7d0] sm:$0xff]
    %v739 = vld [vmem:[#allocation5 + $0x7d8] sm:$0xff]
    %v740 = vld [vmem:[#allocation7 + $0x8] sm:$0xf]
    %v742 = vlaneseq
    %v743 = vshrl.u32 %v742, 7
    %v744 = vsub.s32 0, %v743
    %v745 = vrot.slane %v740, %v744
    %v746 = vlaneseq
    %v747 = vshrl.u32 %v746, 7
    %v748 = vsub.s32 1, %v747
    %v749 = vrot.slane %v740, %v748
    %v750 = vlaneseq
    %v751 = vshrl.u32 %v750, 7
    %v752 = vsub.s32 2, %v751
    %v753 = vrot.slane %v740, %v752
    %v754 = vlaneseq
    %v755 = vshrl.u32 %v754, 7
    %v756 = vsub.s32 3, %v755
    %v757 = vrot.slane %v740, %v756
    %762 = vmatprep.subr.mxu0 %v677
    %763 = vmatpush1.msra.mxu0 %v676
    %764 = vmatprep.subr.mxu0 %v681
    %765 = vmatpush1.msra.mxu0 %v680
    %766 = vmatprep.subr.mxu0 %v685
    %767 = vmatpush1.msra.mxu0 %v684
    %768 = vmatprep.subr.mxu0 %v689
    %769 = vmatpush1.msra.mxu0 %v688
    %770 = vmatprep.subr.mxu0 %v693
    %771 = vmatpush1.msra.mxu0 %v692
    %772 = vmatprep.subr.mxu0 %v697
    %773 = vmatpush1.msra.mxu0 %v696
    %774 = vmatprep.subr.mxu0 %v701
    %775 = vmatpush1.msra.mxu0 %v700
    %776 = vmatprep.subr.mxu0 %v705
    %777 = vmatpush1.msra.mxu0 %v704
    %778 = vmatprep.subr.mxu0 %v709
    %779 = vmatpush1.msra.mxu0 %v708
    %780 = vmatprep.subr.mxu0 %v713
    %781 = vmatpush1.msra.mxu0 %v712
    %782 = vmatprep.subr.mxu0 %v717
    %783 = vmatpush1.msra.mxu0 %v716
    %784 = vmatprep.subr.mxu0 %v721
    %785 = vmatpush1.msra.mxu0 %v720
    %786 = vmatprep.subr.mxu0 %v725
    %787 = vmatpush1.msra.mxu0 %v724
    %788 = vmatprep.subr.mxu0 %v729
    %789 = vmatpush1.msra.mxu0 %v728
    %790 = vmatprep.subr.mxu0 %v733
    %791 = vmatpush1.msra.mxu0 %v732
    %792 = vmatprep.subr.mxu0 %v737
    %793 = vmatpush1.msra.mxu0 %v736
    %794 = vmatprep.subr.mxu0 0.0
    %795 = vmatpush1.msra.mxu0 0.0
    %796 = vmatprep.subr.mxu0 0.0
    %797 = vmatpush1.msra.mxu0 0.0
    %798 = vmatprep.subr.mxu0 0.0
    %799 = vmatpush1.msra.mxu0 0.0
    %800 = vmatprep.subr.mxu0 0.0
    %801 = vmatpush1.msra.mxu0 0.0
    %802 = vmatprep.subr.mxu0 0.0
    %803 = vmatpush1.msra.mxu0 0.0
    %804 = vmatprep.subr.mxu0 0.0
    %805 = vmatpush1.msra.mxu0 0.0
    %806 = vmatprep.subr.mxu0 0.0
    %807 = vmatpush1.msra.mxu0 0.0
    %808 = vmatprep.subr.mxu0 0.0
    %809 = vmatpush1.msra.mxu0 0.0
    %810 = vmatprep.subr.mxu0 0.0
    %811 = vmatpush1.msra.mxu0 0.0
    %812 = vmatprep.subr.mxu0 0.0
    %813 = vmatpush1.msra.mxu0 0.0
    %814 = vmatprep.subr.mxu0 0.0
    %815 = vmatpush1.msra.mxu0 0.0
    %816 = vmatprep.subr.mxu0 0.0
    %817 = vmatpush1.msra.mxu0 0.0
    %818 = vmatprep.subr.mxu0 0.0
    %819 = vmatpush1.msra.mxu0 0.0
    %820 = vmatprep.subr.mxu0 0.0
    %821 = vmatpush1.msra.mxu0 0.0
    %822 = vmatprep.subr.mxu0 0.0
    %823 = vmatpush1.msra.mxu0 0.0
    %824 = vmatprep.subr.mxu0 0.0
    %825 = vmatpush1.msra.mxu0 0.0
    %826 = vmatprep.mubr.f32.mxu0 0.0
    %827 = vmatmul.mubr.f32.gmra.mrb[0].mxu0 %v207
    %v828 = vpop.f32.mrb[0].mxu0
    %v829 = vadd.f32 %v745, %v828
    %v830 = vpop.f32.mrb[0].mxu0
    %v831 = vadd.f32 %v749, %v830
    %832 = vdwg.mxu0
    %833 = vmatprep.subr.mxu0 %v679
    %834 = vmatpush1.msra.mxu0 %v678
    %835 = vmatprep.subr.mxu0 %v683
    %836 = vmatpush1.msra.mxu0 %v682
    %837 = vmatprep.subr.mxu0 %v687
    %838 = vmatpush1.msra.mxu0 %v686
    %839 = vmatprep.subr.mxu0 %v691
    %840 = vmatpush1.msra.mxu0 %v690
    %841 = vmatprep.subr.mxu0 %v695
    %842 = vmatpush1.msra.mxu0 %v694
    %843 = vmatprep.subr.mxu0 %v699
    %844 = vmatpush1.msra.mxu0 %v698
    %845 = vmatprep.subr.mxu0 %v703
    %846 = vmatpush1.msra.mxu0 %v702
    %847 = vmatprep.subr.mxu0 %v707
    %848 = vmatpush1.msra.mxu0 %v706
    %849 = vmatprep.subr.mxu0 %v711
    %850 = vmatpush1.msra.mxu0 %v710
    %851 = vmatprep.subr.mxu0 %v715
    %852 = vmatpush1.msra.mxu0 %v714
    %853 = vmatprep.subr.mxu0 %v719
    %854 = vmatpush1.msra.mxu0 %v718
    %855 = vmatprep.subr.mxu0 %v723
    %856 = vmatpush1.msra.mxu0 %v722
    %857 = vmatprep.subr.mxu0 %v727
    %858 = vmatpush1.msra.mxu0 %v726
    %859 = vmatprep.subr.mxu0 %v731
    %860 = vmatpush1.msra.mxu0 %v730
    %861 = vmatprep.subr.mxu0 %v735
    %862 = vmatpush1.msra.mxu0 %v734
    %863 = vmatprep.subr.mxu0 %v739
    %864 = vmatpush1.msra.mxu0 %v738
    %865 = vmatprep.subr.mxu0 0.0
    %866 = vmatpush1.msra.mxu0 0.0
    %867 = vmatprep.subr.mxu0 0.0
    %868 = vmatpush1.msra.mxu0 0.0
    %869 = vmatprep.subr.mxu0 0.0
    %870 = vmatpush1.msra.mxu0 0.0
    %871 = vmatprep.subr.mxu0 0.0
    %872 = vmatpush1.msra.mxu0 0.0
    %873 = vmatprep.subr.mxu0 0.0
    %874 = vmatpush1.msra.mxu0 0.0
    %875 = vmatprep.subr.mxu0 0.0
    %876 = vmatpush1.msra.mxu0 0.0
    %877 = vmatprep.subr.mxu0 0.0
    %878 = vmatpush1.msra.mxu0 0.0
    %879 = vmatprep.subr.mxu0 0.0
    %880 = vmatpush1.msra.mxu0 0.0
    %881 = vmatprep.subr.mxu0 0.0
    %882 = vmatpush1.msra.mxu0 0.0
    %883 = vmatprep.subr.mxu0 0.0
    %884 = vmatpush1.msra.mxu0 0.0
    %885 = vmatprep.subr.mxu0 0.0
    %886 = vmatpush1.msra.mxu0 0.0
    %887 = vmatprep.subr.mxu0 0.0
    %888 = vmatpush1.msra.mxu0 0.0
    %889 = vmatprep.subr.mxu0 0.0
    %890 = vmatpush1.msra.mxu0 0.0
    %891 = vmatprep.subr.mxu0 0.0
    %892 = vmatpush1.msra.mxu0 0.0
    %893 = vmatprep.subr.mxu0 0.0
    %894 = vmatpush1.msra.mxu0 0.0
    %895 = vmatprep.subr.mxu0 0.0
    %896 = vmatpush1.msra.mxu0 0.0
    %897 = vmatprep.mubr.f32.mxu0 0.0
    %898 = vmatmul.mubr.f32.gmra.mrb[0].mxu0 %v207
    %v899 = vpop.f32.mrb[0].mxu0
    %v900 = vadd.f32 %v753, %v899
    %v901 = vpop.f32.mrb[0].mxu0
    %v902 = vadd.f32 %v757, %v901
    %903 = vdwg.mxu0
    %v904 = vmax.f32 %v829, 0.0
    %v905 = vmax.f32 %v831, 0.0
    %v906 = vmax.f32 %v900, 0.0
    %v907 = vmax.f32 %v902, 0.0
    %v908 = vmax.f32 %v672, %v904
    %v909 = vmax.f32 %v673, %v905
    %v910 = vmax.f32 %v674, %v906
    %v911 = vmax.f32 %v675, %v907
    %v912 = vld [vmem:[#allocation5 + $0x60] sm:$0xff]
    %v913 = vld [vmem:[#allocation5 + $0x68] sm:$0xff]
    %v914 = vld [vmem:[#allocation5 + $0x70] sm:$0xff]
    %v915 = vld [vmem:[#allocation5 + $0x78] sm:$0xff]
    %v916 = vld [vmem:[#allocation5 + $0xe0] sm:$0xff]
    %v917 = vld [vmem:[#allocation5 + $0xe8] sm:$0xff]
    %v918 = vld [vmem:[#allocation5 + $0xf0] sm:$0xff]
    %v919 = vld [vmem:[#allocation5 + $0xf8] sm:$0xff]
    %v920 = vld [vmem:[#allocation5 + $0x160] sm:$0xff]
    %v921 = vld [vmem:[#allocation5 + $0x168] sm:$0xff]
    %v922 = vld [vmem:[#allocation5 + $0x170] sm:$0xff]
    %v923 = vld [vmem:[#allocation5 + $0x178] sm:$0xff]
    %v924 = vld [vmem:[#allocation5 + $0x1e0] sm:$0xff]
    %v925 = vld [vmem:[#allocation5 + $0x1e8] sm:$0xff]
    %v926 = vld [vmem:[#allocation5 + $0x1f0] sm:$0xff]
    %v927 = vld [vmem:[#allocation5 + $0x1f8] sm:$0xff]
    %v928 = vld [vmem:[#allocation5 + $0x260] sm:$0xff]
    %v929 = vld [vmem:[#allocation5 + $0x268] sm:$0xff]
    %v930 = vld [vmem:[#allocation5 + $0x270] sm:$0xff]
    %v931 = vld [vmem:[#allocation5 + $0x278] sm:$0xff]
    %v932 = vld [vmem:[#allocation5 + $0x2e0] sm:$0xff]
    %v933 = vld [vmem:[#allocation5 + $0x2e8] sm:$0xff]
    %v934 = vld [vmem:[#allocation5 + $0x2f0] sm:$0xff]
    %v935 = vld [vmem:[#allocation5 + $0x2f8] sm:$0xff]
    %v936 = vld [vmem:[#allocation5 + $0x360] sm:$0xff]
    %v937 = vld [vmem:[#allocation5 + $0x368] sm:$0xff]
    %v938 = vld [vmem:[#allocation5 + $0x370] sm:$0xff]
    %v939 = vld [vmem:[#allocation5 + $0x378] sm:$0xff]
    %v940 = vld [vmem:[#allocation5 + $0x3e0] sm:$0xff]
    %v941 = vld [vmem:[#allocation5 + $0x3e8] sm:$0xff]
    %v942 = vld [vmem:[#allocation5 + $0x3f0] sm:$0xff]
    %v943 = vld [vmem:[#allocation5 + $0x3f8] sm:$0xff]
    %v944 = vld [vmem:[#allocation5 + $0x460] sm:$0xff]
    %v945 = vld [vmem:[#allocation5 + $0x468] sm:$0xff]
    %v946 = vld [vmem:[#allocation5 + $0x470] sm:$0xff]
    %v947 = vld [vmem:[#allocation5 + $0x478] sm:$0xff]
    %v948 = vld [vmem:[#allocation5 + $0x4e0] sm:$0xff]
    %v949 = vld [vmem:[#allocation5 + $0x4e8] sm:$0xff]
    %v950 = vld [vmem:[#allocation5 + $0x4f0] sm:$0xff]
    %v951 = vld [vmem:[#allocation5 + $0x4f8] sm:$0xff]
    %v952 = vld [vmem:[#allocation5 + $0x560] sm:$0xff]
    %v953 = vld [vmem:[#allocation5 + $0x568] sm:$0xff]
    %v954 = vld [vmem:[#allocation5 + $0x570] sm:$0xff]
    %v955 = vld [vmem:[#allocation5 + $0x578] sm:$0xff]
    %v956 = vld [vmem:[#allocation5 + $0x5e0] sm:$0xff]
    %v957 = vld [vmem:[#allocation5 + $0x5e8] sm:$0xff]
    %v958 = vld [vmem:[#allocation5 + $0x5f0] sm:$0xff]
    %v959 = vld [vmem:[#allocation5 + $0x5f8] sm:$0xff]
    %v960 = vld [vmem:[#allocation5 + $0x660] sm:$0xff]
    %v961 = vld [vmem:[#allocation5 + $0x668] sm:$0xff]
    %v962 = vld [vmem:[#allocation5 + $0x670] sm:$0xff]
    %v963 = vld [vmem:[#allocation5 + $0x678] sm:$0xff]
    %v964 = vld [vmem:[#allocation5 + $0x6e0] sm:$0xff]
    %v965 = vld [vmem:[#allocation5 + $0x6e8] sm:$0xff]
    %v966 = vld [vmem:[#allocation5 + $0x6f0] sm:$0xff]
    %v967 = vld [vmem:[#allocation5 + $0x6f8] sm:$0xff]
    %v968 = vld [vmem:[#allocation5 + $0x760] sm:$0xff]
    %v969 = vld [vmem:[#allocation5 + $0x768] sm:$0xff]
    %v970 = vld [vmem:[#allocation5 + $0x770] sm:$0xff]
    %v971 = vld [vmem:[#allocation5 + $0x778] sm:$0xff]
    %v972 = vld [vmem:[#allocation5 + $0x7e0] sm:$0xff]
    %v973 = vld [vmem:[#allocation5 + $0x7e8] sm:$0xff]
    %v974 = vld [vmem:[#allocation5 + $0x7f0] sm:$0xff]
    %v975 = vld [vmem:[#allocation5 + $0x7f8] sm:$0xff]
    %v976 = vld [vmem:[#allocation7 + $0xc] sm:$0xf]
    %v978 = vlaneseq
    %v979 = vshrl.u32 %v978, 7
    %v980 = vsub.s32 0, %v979
    %v981 = vrot.slane %v976, %v980
    %v982 = vlaneseq
    %v983 = vshrl.u32 %v982, 7
    %v984 = vsub.s32 1, %v983
    %v985 = vrot.slane %v976, %v984
    %v986 = vlaneseq
    %v987 = vshrl.u32 %v986, 7
    %v988 = vsub.s32 2, %v987
    %v989 = vrot.slane %v976, %v988
    %v990 = vlaneseq
    %v991 = vshrl.u32 %v990, 7
    %v992 = vsub.s32 3, %v991
    %v993 = vrot.slane %v976, %v992
    %998 = vmatprep.subr.mxu0 %v913
    %999 = vmatpush1.msra.mxu0 %v912
    %1000 = vmatprep.subr.mxu0 %v917
    %1001 = vmatpush1.msra.mxu0 %v916
    %1002 = vmatprep.subr.mxu0 %v921
    %1003 = vmatpush1.msra.mxu0 %v920
    %1004 = vmatprep.subr.mxu0 %v925
    %1005 = vmatpush1.msra.mxu0 %v924
    %1006 = vmatprep.subr.mxu0 %v929
    %1007 = vmatpush1.msra.mxu0 %v928
    %1008 = vmatprep.subr.mxu0 %v933
    %1009 = vmatpush1.msra.mxu0 %v932
    %1010 = vmatprep.subr.mxu0 %v937
    %1011 = vmatpush1.msra.mxu0 %v936
    %1012 = vmatprep.subr.mxu0 %v941
    %1013 = vmatpush1.msra.mxu0 %v940
    %1014 = vmatprep.subr.mxu0 %v945
    %1015 = vmatpush1.msra.mxu0 %v944
    %1016 = vmatprep.subr.mxu0 %v949
    %1017 = vmatpush1.msra.mxu0 %v948
    %1018 = vmatprep.subr.mxu0 %v953
    %1019 = vmatpush1.msra.mxu0 %v952
    %1020 = vmatprep.subr.mxu0 %v957
    %1021 = vmatpush1.msra.mxu0 %v956
    %1022 = vmatprep.subr.mxu0 %v961
    %1023 = vmatpush1.msra.mxu0 %v960
    %1024 = vmatprep.subr.mxu0 %v965
    %1025 = vmatpush1.msra.mxu0 %v964
    %1026 = vmatprep.subr.mxu0 %v969
    %1027 = vmatpush1.msra.mxu0 %v968
    %1028 = vmatprep.subr.mxu0 %v973
    %1029 = vmatpush1.msra.mxu0 %v972
    %1030 = vmatprep.subr.mxu0 0.0
    %1031 = vmatpush1.msra.mxu0 0.0
    %1032 = vmatprep.subr.mxu0 0.0
    %1033 = vmatpush1.msra.mxu0 0.0
    %1034 = vmatprep.subr.mxu0 0.0
    %1035 = vmatpush1.msra.mxu0 0.0
    %1036 = vmatprep.subr.mxu0 0.0
    %1037 = vmatpush1.msra.mxu0 0.0
    %1038 = vmatprep.subr.mxu0 0.0
    %1039 = vmatpush1.msra.mxu0 0.0
    %1040 = vmatprep.subr.mxu0 0.0
    %1041 = vmatpush1.msra.mxu0 0.0
    %1042 = vmatprep.subr.mxu0 0.0
    %1043 = vmatpush1.msra.mxu0 0.0
    %1044 = vmatprep.subr.mxu0 0.0
    %1045 = vmatpush1.msra.mxu0 0.0
    %1046 = vmatprep.subr.mxu0 0.0
    %1047 = vmatpush1.msra.mxu0 0.0
    %1048 = vmatprep.subr.mxu0 0.0
    %1049 = vmatpush1.msra.mxu0 0.0
    %1050 = vmatprep.subr.mxu0 0.0
    %1051 = vmatpush1.msra.mxu0 0.0
    %1052 = vmatprep.subr.mxu0 0.0
    %1053 = vmatpush1.msra.mxu0 0.0
    %1054 = vmatprep.subr.mxu0 0.0
    %1055 = vmatpush1.msra.mxu0 0.0
    %1056 = vmatprep.subr.mxu0 0.0
    %1057 = vmatpush1.msra.mxu0 0.0
    %1058 = vmatprep.subr.mxu0 0.0
    %1059 = vmatpush1.msra.mxu0 0.0
    %1060 = vmatprep.subr.mxu0 0.0
    %1061 = vmatpush1.msra.mxu0 0.0
    %1062 = vmatprep.mubr.f32.mxu0 0.0
    %1063 = vmatmul.mubr.f32.gmra.mrb[0].mxu0 %v207
    %v1064 = vpop.f32.mrb[0].mxu0
    %v1065 = vadd.f32 %v981, %v1064
    %v1066 = vpop.f32.mrb[0].mxu0
    %v1067 = vadd.f32 %v985, %v1066
    %1068 = vdwg.mxu0
    %1069 = vmatprep.subr.mxu0 %v915
    %1070 = vmatpush1.msra.mxu0 %v914
    %1071 = vmatprep.subr.mxu0 %v919
    %1072 = vmatpush1.msra.mxu0 %v918
    %1073 = vmatprep.subr.mxu0 %v923
    %1074 = vmatpush1.msra.mxu0 %v922
    %1075 = vmatprep.subr.mxu0 %v927
    %1076 = vmatpush1.msra.mxu0 %v926
    %1077 = vmatprep.subr.mxu0 %v931
    %1078 = vmatpush1.msra.mxu0 %v930
    %1079 = vmatprep.subr.mxu0 %v935
    %1080 = vmatpush1.msra.mxu0 %v934
    %1081 = vmatprep.subr.mxu0 %v939
    %1082 = vmatpush1.msra.mxu0 %v938
    %1083 = vmatprep.subr.mxu0 %v943
    %1084 = vmatpush1.msra.mxu0 %v942
    %1085 = vmatprep.subr.mxu0 %v947
    %1086 = vmatpush1.msra.mxu0 %v946
    %1087 = vmatprep.subr.mxu0 %v951
    %1088 = vmatpush1.msra.mxu0 %v950
    %1089 = vmatprep.subr.mxu0 %v955
    %1090 = vmatpush1.msra.mxu0 %v954
    %1091 = vmatprep.subr.mxu0 %v959
    %1092 = vmatpush1.msra.mxu0 %v958
    %1093 = vmatprep.subr.mxu0 %v963
    %1094 = vmatpush1.msra.mxu0 %v962
    %1095 = vmatprep.subr.mxu0 %v967
    %1096 = vmatpush1.msra.mxu0 %v966
    %1097 = vmatprep.subr.mxu0 %v971
    %1098 = vmatpush1.msra.mxu0 %v970
    %1099 = vmatprep.subr.mxu0 %v975
    %1100 = vmatpush1.msra.mxu0 %v974
    %1101 = vmatprep.subr.mxu0 0.0
    %1102 = vmatpush1.msra.mxu0 0.0
    %1103 = vmatprep.subr.mxu0 0.0
    %1104 = vmatpush1.msra.mxu0 0.0
    %1105 = vmatprep.subr.mxu0 0.0
    %1106 = vmatpush1.msra.mxu0 0.0
    %1107 = vmatprep.subr.mxu0 0.0
    %1108 = vmatpush1.msra.mxu0 0.0
    %1109 = vmatprep.subr.mxu0 0.0
    %1110 = vmatpush1.msra.mxu0 0.0
    %1111 = vmatprep.subr.mxu0 0.0
    %1112 = vmatpush1.msra.mxu0 0.0
    %1113 = vmatprep.subr.mxu0 0.0
    %1114 = vmatpush1.msra.mxu0 0.0
    %1115 = vmatprep.subr.mxu0 0.0
    %1116 = vmatpush1.msra.mxu0 0.0
    %1117 = vmatprep.subr.mxu0 0.0
    %1118 = vmatpush1.msra.mxu0 0.0
    %1119 = vmatprep.subr.mxu0 0.0
    %1120 = vmatpush1.msra.mxu0 0.0
    %1121 = vmatprep.subr.mxu0 0.0
    %1122 = vmatpush1.msra.mxu0 0.0
    %1123 = vmatprep.subr.mxu0 0.0
    %1124 = vmatpush1.msra.mxu0 0.0
    %1125 = vmatprep.subr.mxu0 0.0
    %1126 = vmatpush1.msra.mxu0 0.0
    %1127 = vmatprep.subr.mxu0 0.0
    %1128 = vmatpush1.msra.mxu0 0.0
    %1129 = vmatprep.subr.mxu0 0.0
    %1130 = vmatpush1.msra.mxu0 0.0
    %1131 = vmatprep.subr.mxu0 0.0
    %1132 = vmatpush1.msra.mxu0 0.0
    %1133 = vmatprep.mubr.f32.mxu0 0.0
    %1134 = vmatmul.mubr.f32.gmra.mrb[0].mxu0 %v207
    %v1135 = vpop.f32.mrb[0].mxu0
    %v1136 = vadd.f32 %v989, %v1135
    %v1137 = vpop.f32.mrb[0].mxu0
    %v1138 = vadd.f32 %v993, %v1137
    %1139 = vdwg.mxu0
    %v1140 = vmax.f32 %v1065, 0.0
    %v1141 = vmax.f32 %v1067, 0.0
    %v1142 = vmax.f32 %v1136, 0.0
    %v1143 = vmax.f32 %v1138, 0.0
    %v1144 = vmax.f32 %v908, %v1140
    %v1145 = vmax.f32 %v909, %v1141
    %v1146 = vmax.f32 %v910, %v1142
    %v1147 = vmax.f32 %v911, %v1143
    %v1148 = vld [vmem:[#allocation8] sm:$0xff]
    %v1149 = vld [vmem:[#allocation8 + $0x8] sm:$0xff]
    %v1150 = vld [vmem:[#allocation8 + $0x10] sm:$0xff]
    %v1151 = vld [vmem:[#allocation8 + $0x18] sm:$0xff]
    %v1152 = vld [vmem:[#allocation8 + $0x20] sm:$0xff]
    %v1153 = vld [vmem:[#allocation8 + $0x28] sm:$0xff]
    %v1154 = vld [vmem:[#allocation8 + $0x30] sm:$0xff]
    %v1155 = vld [vmem:[#allocation8 + $0x38] sm:$0xff]
    %v1156 = vld [vmem:[#allocation8 + $0x40] sm:$0xff]
    %v1157 = vld [vmem:[#allocation8 + $0x48] sm:$0xff]
    %v1158 = vld [vmem:[#allocation8 + $0x50] sm:$0xff]
    %v1159 = vld [vmem:[#allocation8 + $0x58] sm:$0xff]
    %v1160 = vld [vmem:[#allocation8 + $0x60] sm:$0xff]
    %v1161 = vld [vmem:[#allocation8 + $0x68] sm:$0xff]
    %v1162 = vld [vmem:[#allocation8 + $0x70] sm:$0xff]
    %v1163 = vld [vmem:[#allocation8 + $0x78] sm:$0xff]
    %v1164 = vld [vmem:[#allocation8 + $0x80] sm:$0xff]
    %v1165 = vld [vmem:[#allocation8 + $0x88] sm:$0xff]
    %v1166 = vld [vmem:[#allocation8 + $0x90] sm:$0xff]
    %v1167 = vld [vmem:[#allocation8 + $0x98] sm:$0xff]
    %v1168 = vld [vmem:[#allocation8 + $0xa0] sm:$0xff]
    %v1169 = vld [vmem:[#allocation8 + $0xa8] sm:$0xff]
    %v1170 = vld [vmem:[#allocation8 + $0xb0] sm:$0xff]
    %v1171 = vld [vmem:[#allocation8 + $0xb8] sm:$0xff]
    %v1172 = vld [vmem:[#allocation8 + $0xc0] sm:$0xff]
    %v1173 = vld [vmem:[#allocation8 + $0xc8] sm:$0xff]
    %v1174 = vld [vmem:[#allocation8 + $0xd0] sm:$0xff]
    %v1175 = vld [vmem:[#allocation8 + $0xd8] sm:$0xff]
    %v1176 = vld [vmem:[#allocation8 + $0xe0] sm:$0xff]
    %v1177 = vld [vmem:[#allocation8 + $0xe8] sm:$0xff]
    %v1178 = vld [vmem:[#allocation8 + $0xf0] sm:$0xff]
    %v1179 = vld [vmem:[#allocation8 + $0xf8] sm:$0xff]
    %v1180 = vld [vmem:[#allocation8 + $0x100] sm:$0xff]
    %v1181 = vld [vmem:[#allocation8 + $0x108] sm:$0xff]
    %v1182 = vld [vmem:[#allocation8 + $0x110] sm:$0xff]
    %v1183 = vld [vmem:[#allocation8 + $0x118] sm:$0xff]
    %v1184 = vld [vmem:[#allocation8 + $0x120] sm:$0xff]
    %v1185 = vld [vmem:[#allocation8 + $0x128] sm:$0xff]
    %v1186 = vld [vmem:[#allocation8 + $0x130] sm:$0xff]
    %v1187 = vld [vmem:[#allocation8 + $0x138] sm:$0xff]
    %v1188 = vld [vmem:[#allocation8 + $0x140] sm:$0xff]
    %v1189 = vld [vmem:[#allocation8 + $0x148] sm:$0xff]
    %v1190 = vld [vmem:[#allocation8 + $0x150] sm:$0xff]
    %v1191 = vld [vmem:[#allocation8 + $0x158] sm:$0xff]
    %v1192 = vld [vmem:[#allocation8 + $0x160] sm:$0xff]
    %v1193 = vld [vmem:[#allocation8 + $0x168] sm:$0xff]
    %v1194 = vld [vmem:[#allocation8 + $0x170] sm:$0xff]
    %v1195 = vld [vmem:[#allocation8 + $0x178] sm:$0xff]
    %v1196 = vld [vmem:[#allocation8 + $0x180] sm:$0xff]
    %v1197 = vld [vmem:[#allocation8 + $0x188] sm:$0xff]
    %v1198 = vld [vmem:[#allocation8 + $0x190] sm:$0xff]
    %v1199 = vld [vmem:[#allocation8 + $0x198] sm:$0xff]
    %v1200 = vld [vmem:[#allocation8 + $0x1a0] sm:$0xff]
    %v1201 = vld [vmem:[#allocation8 + $0x1a8] sm:$0xff]
    %v1202 = vld [vmem:[#allocation8 + $0x1b0] sm:$0xff]
    %v1203 = vld [vmem:[#allocation8 + $0x1b8] sm:$0xff]
    %v1204 = vld [vmem:[#allocation8 + $0x1c0] sm:$0xff]
    %v1205 = vld [vmem:[#allocation8 + $0x1c8] sm:$0xff]
    %v1206 = vld [vmem:[#allocation8 + $0x1d0] sm:$0xff]
    %v1207 = vld [vmem:[#allocation8 + $0x1d8] sm:$0xff]
    %v1208 = vld [vmem:[#allocation8 + $0x1e0] sm:$0xff]
    %v1209 = vld [vmem:[#allocation8 + $0x1e8] sm:$0xff]
    %v1210 = vld [vmem:[#allocation8 + $0x1f0] sm:$0xff]
    %v1211 = vld [vmem:[#allocation8 + $0x1f8] sm:$0xff]
    %v1212 = vld [vmem:[#allocation8 + $0x200] sm:$0xff]
    %v1213 = vld [vmem:[#allocation8 + $0x208] sm:$0xff]
    %v1214 = vld [vmem:[#allocation8 + $0x210] sm:$0xff]
    %v1215 = vld [vmem:[#allocation8 + $0x218] sm:$0xff]
    %v1216 = vld [vmem:[#allocation8 + $0x220] sm:$0xff]
    %v1217 = vld [vmem:[#allocation8 + $0x228] sm:$0xff]
    %v1218 = vld [vmem:[#allocation8 + $0x230] sm:$0xff]
    %v1219 = vld [vmem:[#allocation8 + $0x238] sm:$0xff]
    %v1220 = vld [vmem:[#allocation8 + $0x240] sm:$0xff]
    %v1221 = vld [vmem:[#allocation8 + $0x248] sm:$0xff]
    %v1222 = vld [vmem:[#allocation8 + $0x250] sm:$0xff]
    %v1223 = vld [vmem:[#allocation8 + $0x258] sm:$0xff]
    %v1224 = vld [vmem:[#allocation8 + $0x260] sm:$0xff]
    %v1225 = vld [vmem:[#allocation8 + $0x268] sm:$0xff]
    %v1226 = vld [vmem:[#allocation8 + $0x270] sm:$0xff]
    %v1227 = vld [vmem:[#allocation8 + $0x278] sm:$0xff]
    %v1228 = vld [vmem:[#allocation8 + $0x280] sm:$0xff]
    %v1229 = vld [vmem:[#allocation8 + $0x288] sm:$0xff]
    %v1230 = vld [vmem:[#allocation8 + $0x290] sm:$0xff]
    %v1231 = vld [vmem:[#allocation8 + $0x298] sm:$0xff]
    %v1232 = vld [vmem:[#allocation8 + $0x2a0] sm:$0xff]
    %v1233 = vld [vmem:[#allocation8 + $0x2a8] sm:$0xff]
    %v1234 = vld [vmem:[#allocation8 + $0x2b0] sm:$0xff]
    %v1235 = vld [vmem:[#allocation8 + $0x2b8] sm:$0xff]
    %v1236 = vld [vmem:[#allocation8 + $0x2c0] sm:$0xff]
    %v1237 = vld [vmem:[#allocation8 + $0x2c8] sm:$0xff]
    %v1238 = vld [vmem:[#allocation8 + $0x2d0] sm:$0xff]
    %v1239 = vld [vmem:[#allocation8 + $0x2d8] sm:$0xff]
    %v1240 = vld [vmem:[#allocation8 + $0x2e0] sm:$0xff]
    %v1241 = vld [vmem:[#allocation8 + $0x2e8] sm:$0xff]
    %v1242 = vld [vmem:[#allocation8 + $0x2f0] sm:$0xff]
    %v1243 = vld [vmem:[#allocation8 + $0x2f8] sm:$0xff]
    %v1244 = vld [vmem:[#allocation8 + $0x300] sm:$0xff]
    %v1245 = vld [vmem:[#allocation8 + $0x308] sm:$0xff]
    %v1246 = vld [vmem:[#allocation8 + $0x310] sm:$0xff]
    %v1247 = vld [vmem:[#allocation8 + $0x318] sm:$0xff]
    %v1248 = vld [vmem:[#allocation8 + $0x320] sm:$0xff]
    %v1249 = vld [vmem:[#allocation8 + $0x328] sm:$0xff]
    %v1250 = vld [vmem:[#allocation8 + $0x330] sm:$0xff]
    %v1251 = vld [vmem:[#allocation8 + $0x338] sm:$0xff]
    %v1252 = vld [vmem:[#allocation8 + $0x340] sm:$0xff]
    %v1253 = vld [vmem:[#allocation8 + $0x348] sm:$0xff]
    %v1254 = vld [vmem:[#allocation8 + $0x350] sm:$0xff]
    %v1255 = vld [vmem:[#allocation8 + $0x358] sm:$0xff]
    %v1256 = vld [vmem:[#allocation8 + $0x360] sm:$0xff]
    %v1257 = vld [vmem:[#allocation8 + $0x368] sm:$0xff]
    %v1258 = vld [vmem:[#allocation8 + $0x370] sm:$0xff]
    %v1259 = vld [vmem:[#allocation8 + $0x378] sm:$0xff]
    %v1260 = vld [vmem:[#allocation8 + $0x380] sm:$0xff]
    %v1261 = vld [vmem:[#allocation8 + $0x388] sm:$0xff]
    %v1262 = vld [vmem:[#allocation8 + $0x390] sm:$0xff]
    %v1263 = vld [vmem:[#allocation8 + $0x398] sm:$0xff]
    %v1264 = vld [vmem:[#allocation8 + $0x3a0] sm:$0xff]
    %v1265 = vld [vmem:[#allocation8 + $0x3a8] sm:$0xff]
    %v1266 = vld [vmem:[#allocation8 + $0x3b0] sm:$0xff]
    %v1267 = vld [vmem:[#allocation8 + $0x3b8] sm:$0xff]
    %v1268 = vld [vmem:[#allocation8 + $0x3c0] sm:$0xff]
    %v1269 = vld [vmem:[#allocation8 + $0x3c8] sm:$0xff]
    %v1270 = vld [vmem:[#allocation8 + $0x3d0] sm:$0xff]
    %v1271 = vld [vmem:[#allocation8 + $0x3d8] sm:$0xff]
    %v1272 = vld [vmem:[#allocation8 + $0x3e0] sm:$0xff]
    %v1273 = vld [vmem:[#allocation8 + $0x3e8] sm:$0xff]
    %v1274 = vld [vmem:[#allocation8 + $0x3f0] sm:$0xff]
    %v1275 = vld [vmem:[#allocation8 + $0x3f8] sm:$0xff]
    %v1276 = vld [vmem:[#allocation8 + $0x400] sm:$0xff]
    %v1277 = vld [vmem:[#allocation8 + $0x408] sm:$0xff]
    %v1278 = vld [vmem:[#allocation8 + $0x410] sm:$0xff]
    %v1279 = vld [vmem:[#allocation8 + $0x418] sm:$0xff]
    %v1280 = vld [vmem:[#allocation8 + $0x420] sm:$0xff]
    %v1281 = vld [vmem:[#allocation8 + $0x428] sm:$0xff]
    %v1282 = vld [vmem:[#allocation8 + $0x430] sm:$0xff]
    %v1283 = vld [vmem:[#allocation8 + $0x438] sm:$0xff]
    %v1284 = vld [vmem:[#allocation8 + $0x440] sm:$0xff]
    %v1285 = vld [vmem:[#allocation8 + $0x448] sm:$0xff]
    %v1286 = vld [vmem:[#allocation8 + $0x450] sm:$0xff]
    %v1287 = vld [vmem:[#allocation8 + $0x458] sm:$0xff]
    %v1288 = vld [vmem:[#allocation8 + $0x460] sm:$0xff]
    %v1289 = vld [vmem:[#allocation8 + $0x468] sm:$0xff]
    %v1290 = vld [vmem:[#allocation8 + $0x470] sm:$0xff]
    %v1291 = vld [vmem:[#allocation8 + $0x478] sm:$0xff]
    %v1292 = vld [vmem:[#allocation8 + $0x480] sm:$0xff]
    %v1293 = vld [vmem:[#allocation8 + $0x488] sm:$0xff]
    %v1294 = vld [vmem:[#allocation8 + $0x490] sm:$0xff]
    %v1295 = vld [vmem:[#allocation8 + $0x498] sm:$0xff]
    %v1296 = vld [vmem:[#allocation8 + $0x4a0] sm:$0xff]
    %v1297 = vld [vmem:[#allocation8 + $0x4a8] sm:$0xff]
    %v1298 = vld [vmem:[#allocation8 + $0x4b0] sm:$0xff]
    %v1299 = vld [vmem:[#allocation8 + $0x4b8] sm:$0xff]
    %v1300 = vld [vmem:[#allocation8 + $0x4c0] sm:$0xff]
    %v1301 = vld [vmem:[#allocation8 + $0x4c8] sm:$0xff]
    %v1302 = vld [vmem:[#allocation8 + $0x4d0] sm:$0xff]
    %v1303 = vld [vmem:[#allocation8 + $0x4d8] sm:$0xff]
    %v1304 = vld [vmem:[#allocation8 + $0x4e0] sm:$0xff]
    %v1305 = vld [vmem:[#allocation8 + $0x4e8] sm:$0xff]
    %v1306 = vld [vmem:[#allocation8 + $0x4f0] sm:$0xff]
    %v1307 = vld [vmem:[#allocation8 + $0x4f8] sm:$0xff]
    %v1308 = vld [vmem:[#allocation8 + $0x500] sm:$0xff]
    %v1309 = vld [vmem:[#allocation8 + $0x508] sm:$0xff]
    %v1310 = vld [vmem:[#allocation8 + $0x510] sm:$0xff]
    %v1311 = vld [vmem:[#allocation8 + $0x518] sm:$0xff]
    %v1312 = vld [vmem:[#allocation8 + $0x520] sm:$0xff]
    %v1313 = vld [vmem:[#allocation8 + $0x528] sm:$0xff]
    %v1314 = vld [vmem:[#allocation8 + $0x530] sm:$0xff]
    %v1315 = vld [vmem:[#allocation8 + $0x538] sm:$0xff]
    %v1316 = vld [vmem:[#allocation8 + $0x540] sm:$0xff]
    %v1317 = vld [vmem:[#allocation8 + $0x548] sm:$0xff]
    %v1318 = vld [vmem:[#allocation8 + $0x550] sm:$0xff]
    %v1319 = vld [vmem:[#allocation8 + $0x558] sm:$0xff]
    %v1320 = vld [vmem:[#allocation8 + $0x560] sm:$0xff]
    %v1321 = vld [vmem:[#allocation8 + $0x568] sm:$0xff]
    %v1322 = vld [vmem:[#allocation8 + $0x570] sm:$0xff]
    %v1323 = vld [vmem:[#allocation8 + $0x578] sm:$0xff]
    %v1324 = vld [vmem:[#allocation8 + $0x580] sm:$0xff]
    %v1325 = vld [vmem:[#allocation8 + $0x588] sm:$0xff]
    %v1326 = vld [vmem:[#allocation8 + $0x590] sm:$0xff]
    %v1327 = vld [vmem:[#allocation8 + $0x598] sm:$0xff]
    %v1328 = vld [vmem:[#allocation8 + $0x5a0] sm:$0xff]
    %v1329 = vld [vmem:[#allocation8 + $0x5a8] sm:$0xff]
    %v1330 = vld [vmem:[#allocation8 + $0x5b0] sm:$0xff]
    %v1331 = vld [vmem:[#allocation8 + $0x5b8] sm:$0xff]
    %v1332 = vld [vmem:[#allocation8 + $0x5c0] sm:$0xff]
    %v1333 = vld [vmem:[#allocation8 + $0x5c8] sm:$0xff]
    %v1334 = vld [vmem:[#allocation8 + $0x5d0] sm:$0xff]
    %v1335 = vld [vmem:[#allocation8 + $0x5d8] sm:$0xff]
    %v1336 = vld [vmem:[#allocation8 + $0x5e0] sm:$0xff]
    %v1337 = vld [vmem:[#allocation8 + $0x5e8] sm:$0xff]
    %v1338 = vld [vmem:[#allocation8 + $0x5f0] sm:$0xff]
    %v1339 = vld [vmem:[#allocation8 + $0x5f8] sm:$0xff]
    %v1340 = vld [vmem:[#allocation8 + $0x600] sm:$0xff]
    %v1341 = vld [vmem:[#allocation8 + $0x608] sm:$0xff]
    %v1342 = vld [vmem:[#allocation8 + $0x610] sm:$0xff]
    %v1343 = vld [vmem:[#allocation8 + $0x618] sm:$0xff]
    %v1344 = vld [vmem:[#allocation8 + $0x620] sm:$0xff]
    %v1345 = vld [vmem:[#allocation8 + $0x628] sm:$0xff]
    %v1346 = vld [vmem:[#allocation8 + $0x630] sm:$0xff]
    %v1347 = vld [vmem:[#allocation8 + $0x638] sm:$0xff]
    %v1348 = vld [vmem:[#allocation8 + $0x640] sm:$0xff]
    %v1349 = vld [vmem:[#allocation8 + $0x648] sm:$0xff]
    %v1350 = vld [vmem:[#allocation8 + $0x650] sm:$0xff]
    %v1351 = vld [vmem:[#allocation8 + $0x658] sm:$0xff]
    %v1352 = vld [vmem:[#allocation8 + $0x660] sm:$0xff]
    %v1353 = vld [vmem:[#allocation8 + $0x668] sm:$0xff]
    %v1354 = vld [vmem:[#allocation8 + $0x670] sm:$0xff]
    %v1355 = vld [vmem:[#allocation8 + $0x678] sm:$0xff]
    %v1356 = vld [vmem:[#allocation8 + $0x680] sm:$0xff]
    %v1357 = vld [vmem:[#allocation8 + $0x688] sm:$0xff]
    %v1358 = vld [vmem:[#allocation8 + $0x690] sm:$0xff]
    %v1359 = vld [vmem:[#allocation8 + $0x698] sm:$0xff]
    %v1360 = vld [vmem:[#allocation8 + $0x6a0] sm:$0xff]
    %v1361 = vld [vmem:[#allocation8 + $0x6a8] sm:$0xff]
    %v1362 = vld [vmem:[#allocation8 + $0x6b0] sm:$0xff]
    %v1363 = vld [vmem:[#allocation8 + $0x6b8] sm:$0xff]
    %v1364 = vld [vmem:[#allocation8 + $0x6c0] sm:$0xff]
    %v1365 = vld [vmem:[#allocation8 + $0x6c8] sm:$0xff]
    %v1366 = vld [vmem:[#allocation8 + $0x6d0] sm:$0xff]
    %v1367 = vld [vmem:[#allocation8 + $0x6d8] sm:$0xff]
    %v1368 = vld [vmem:[#allocation8 + $0x6e0] sm:$0xff]
    %v1369 = vld [vmem:[#allocation8 + $0x6e8] sm:$0xff]
    %v1370 = vld [vmem:[#allocation8 + $0x6f0] sm:$0xff]
    %v1371 = vld [vmem:[#allocation8 + $0x6f8] sm:$0xff]
    %v1372 = vld [vmem:[#allocation8 + $0x700] sm:$0xff]
    %v1373 = vld [vmem:[#allocation8 + $0x708] sm:$0xff]
    %v1374 = vld [vmem:[#allocation8 + $0x710] sm:$0xff]
    %v1375 = vld [vmem:[#allocation8 + $0x718] sm:$0xff]
    %v1376 = vld [vmem:[#allocation8 + $0x720] sm:$0xff]
    %v1377 = vld [vmem:[#allocation8 + $0x728] sm:$0xff]
    %v1378 = vld [vmem:[#allocation8 + $0x730] sm:$0xff]
    %v1379 = vld [vmem:[#allocation8 + $0x738] sm:$0xff]
    %v1380 = vld [vmem:[#allocation8 + $0x740] sm:$0xff]
    %v1381 = vld [vmem:[#allocation8 + $0x748] sm:$0xff]
    %v1382 = vld [vmem:[#allocation8 + $0x750] sm:$0xff]
    %v1383 = vld [vmem:[#allocation8 + $0x758] sm:$0xff]
    %v1384 = vld [vmem:[#allocation8 + $0x760] sm:$0xff]
    %v1385 = vld [vmem:[#allocation8 + $0x768] sm:$0xff]
    %v1386 = vld [vmem:[#allocation8 + $0x770] sm:$0xff]
    %v1387 = vld [vmem:[#allocation8 + $0x778] sm:$0xff]
    %v1388 = vld [vmem:[#allocation8 + $0x780] sm:$0xff]
    %v1389 = vld [vmem:[#allocation8 + $0x788] sm:$0xff]
    %v1390 = vld [vmem:[#allocation8 + $0x790] sm:$0xff]
    %v1391 = vld [vmem:[#allocation8 + $0x798] sm:$0xff]
    %v1392 = vld [vmem:[#allocation8 + $0x7a0] sm:$0xff]
    %v1393 = vld [vmem:[#allocation8 + $0x7a8] sm:$0xff]
    %v1394 = vld [vmem:[#allocation8 + $0x7b0] sm:$0xff]
    %v1395 = vld [vmem:[#allocation8 + $0x7b8] sm:$0xff]
    %v1396 = vld [vmem:[#allocation8 + $0x7c0] sm:$0xff]
    %v1397 = vld [vmem:[#allocation8 + $0x7c8] sm:$0xff]
    %v1398 = vld [vmem:[#allocation8 + $0x7d0] sm:$0xff]
    %v1399 = vld [vmem:[#allocation8 + $0x7d8] sm:$0xff]
    %v1400 = vld [vmem:[#allocation8 + $0x7e0] sm:$0xff]
    %v1401 = vld [vmem:[#allocation8 + $0x7e8] sm:$0xff]
    %v1402 = vld [vmem:[#allocation8 + $0x7f0] sm:$0xff]
    %v1403 = vld [vmem:[#allocation8 + $0x7f8] sm:$0xff]
    %v1404 = vld [vmem:[#allocation10] sm:$0xf]
    %v1406 = vlaneseq
    %v1407 = vshrl.u32 %v1406, 7
    %v1408 = vsub.s32 0, %v1407
    %v1409 = vrot.slane %v1404, %v1408
    %v1410 = vlaneseq
    %v1411 = vshrl.u32 %v1410, 7
    %v1412 = vsub.s32 1, %v1411
    %v1413 = vrot.slane %v1404, %v1412
    %v1414 = vlaneseq
    %v1415 = vshrl.u32 %v1414, 7
    %v1416 = vsub.s32 2, %v1415
    %v1417 = vrot.slane %v1404, %v1416
    %v1418 = vlaneseq
    %v1419 = vshrl.u32 %v1418, 7
    %v1420 = vsub.s32 3, %v1419
    %v1421 = vrot.slane %v1404, %v1420
    %1426 = vmatprep.subr.mxu0 %v1149
    %1427 = vmatpush1.msra.mxu0 %v1148
    %1428 = vmatprep.subr.mxu0 %v1153
    %1429 = vmatpush1.msra.mxu0 %v1152
    %1430 = vmatprep.subr.mxu0 %v1157
    %1431 = vmatpush1.msra.mxu0 %v1156
    %1432 = vmatprep.subr.mxu0 %v1161
    %1433 = vmatpush1.msra.mxu0 %v1160
    %1434 = vmatprep.subr.mxu0 %v1165
    %1435 = vmatpush1.msra.mxu0 %v1164
    %1436 = vmatprep.subr.mxu0 %v1169
    %1437 = vmatpush1.msra.mxu0 %v1168
    %1438 = vmatprep.subr.mxu0 %v1173
    %1439 = vmatpush1.msra.mxu0 %v1172
    %1440 = vmatprep.subr.mxu0 %v1177
    %1441 = vmatpush1.msra.mxu0 %v1176
    %1442 = vmatprep.subr.mxu0 %v1181
    %1443 = vmatpush1.msra.mxu0 %v1180
    %1444 = vmatprep.subr.mxu0 %v1185
    %1445 = vmatpush1.msra.mxu0 %v1184
    %1446 = vmatprep.subr.mxu0 %v1189
    %1447 = vmatpush1.msra.mxu0 %v1188
    %1448 = vmatprep.subr.mxu0 %v1193
    %1449 = vmatpush1.msra.mxu0 %v1192
    %1450 = vmatprep.subr.mxu0 %v1197
    %1451 = vmatpush1.msra.mxu0 %v1196
    %1452 = vmatprep.subr.mxu0 %v1201
    %1453 = vmatpush1.msra.mxu0 %v1200
    %1454 = vmatprep.subr.mxu0 %v1205
    %1455 = vmatpush1.msra.mxu0 %v1204
    %1456 = vmatprep.subr.mxu0 %v1209
    %1457 = vmatpush1.msra.mxu0 %v1208
    %1458 = vmatprep.subr.mxu0 %v1213
    %1459 = vmatpush1.msra.mxu0 %v1212
    %1460 = vmatprep.subr.mxu0 %v1217
    %1461 = vmatpush1.msra.mxu0 %v1216
    %1462 = vmatprep.subr.mxu0 %v1221
    %1463 = vmatpush1.msra.mxu0 %v1220
    %1464 = vmatprep.subr.mxu0 %v1225
    %1465 = vmatpush1.msra.mxu0 %v1224
    %1466 = vmatprep.subr.mxu0 %v1229
    %1467 = vmatpush1.msra.mxu0 %v1228
    %1468 = vmatprep.subr.mxu0 %v1233
    %1469 = vmatpush1.msra.mxu0 %v1232
    %1470 = vmatprep.subr.mxu0 %v1237
    %1471 = vmatpush1.msra.mxu0 %v1236
    %1472 = vmatprep.subr.mxu0 %v1241
    %1473 = vmatpush1.msra.mxu0 %v1240
    %1474 = vmatprep.subr.mxu0 %v1245
    %1475 = vmatpush1.msra.mxu0 %v1244
    %1476 = vmatprep.subr.mxu0 %v1249
    %1477 = vmatpush1.msra.mxu0 %v1248
    %1478 = vmatprep.subr.mxu0 %v1253
    %1479 = vmatpush1.msra.mxu0 %v1252
    %1480 = vmatprep.subr.mxu0 %v1257
    %1481 = vmatpush1.msra.mxu0 %v1256
    %1482 = vmatprep.subr.mxu0 %v1261
    %1483 = vmatpush1.msra.mxu0 %v1260
    %1484 = vmatprep.subr.mxu0 %v1265
    %1485 = vmatpush1.msra.mxu0 %v1264
    %1486 = vmatprep.subr.mxu0 %v1269
    %1487 = vmatpush1.msra.mxu0 %v1268
    %1488 = vmatprep.subr.mxu0 %v1273
    %1489 = vmatpush1.msra.mxu0 %v1272
    %1490 = vmatprep.mubr.f32.mxu0 %v1145
    %1491 = vmatmul.mubr.f32.gmra.mrb[0].mxu0 %v1144
    %v1492 = vpop.f32.mrb[0].mxu0
    %v1493 = vadd.f32 %v1409, %v1492
    %v1494 = vpop.f32.mrb[0].mxu0
    %v1495 = vadd.f32 %v1413, %v1494
    %1496 = vdwg.mxu0
    %1497 = vmatprep.subr.mxu0 %v1277
    %1498 = vmatpush1.msra.mxu0 %v1276
    %1499 = vmatprep.subr.mxu0 %v1281
    %1500 = vmatpush1.msra.mxu0 %v1280
    %1501 = vmatprep.subr.mxu0 %v1285
    %1502 = vmatpush1.msra.mxu0 %v1284
    %1503 = vmatprep.subr.mxu0 %v1289
    %1504 = vmatpush1.msra.mxu0 %v1288
    %1505 = vmatprep.subr.mxu0 %v1293
    %1506 = vmatpush1.msra.mxu0 %v1292
    %1507 = vmatprep.subr.mxu0 %v1297
    %1508 = vmatpush1.msra.mxu0 %v1296
    %1509 = vmatprep.subr.mxu0 %v1301
    %1510 = vmatpush1.msra.mxu0 %v1300
    %1511 = vmatprep.subr.mxu0 %v1305
    %1512 = vmatpush1.msra.mxu0 %v1304
    %1513 = vmatprep.subr.mxu0 %v1309
    %1514 = vmatpush1.msra.mxu0 %v1308
    %1515 = vmatprep.subr.mxu0 %v1313
    %1516 = vmatpush1.msra.mxu0 %v1312
    %1517 = vmatprep.subr.mxu0 %v1317
    %1518 = vmatpush1.msra.mxu0 %v1316
    %1519 = vmatprep.subr.mxu0 %v1321
    %1520 = vmatpush1.msra.mxu0 %v1320
    %1521 = vmatprep.subr.mxu0 %v1325
    %1522 = vmatpush1.msra.mxu0 %v1324
    %1523 = vmatprep.subr.mxu0 %v1329
    %1524 = vmatpush1.msra.mxu0 %v1328
    %1525 = vmatprep.subr.mxu0 %v1333
    %1526 = vmatpush1.msra.mxu0 %v1332
    %1527 = vmatprep.subr.mxu0 %v1337
    %1528 = vmatpush1.msra.mxu0 %v1336
    %1529 = vmatprep.subr.mxu0 %v1341
    %1530 = vmatpush1.msra.mxu0 %v1340
    %1531 = vmatprep.subr.mxu0 %v1345
    %1532 = vmatpush1.msra.mxu0 %v1344
    %1533 = vmatprep.subr.mxu0 %v1349
    %1534 = vmatpush1.msra.mxu0 %v1348
    %1535 = vmatprep.subr.mxu0 %v1353
    %1536 = vmatpush1.msra.mxu0 %v1352
    %1537 = vmatprep.subr.mxu0 %v1357
    %1538 = vmatpush1.msra.mxu0 %v1356
    %1539 = vmatprep.subr.mxu0 %v1361
    %1540 = vmatpush1.msra.mxu0 %v1360
    %1541 = vmatprep.subr.mxu0 %v1365
    %1542 = vmatpush1.msra.mxu0 %v1364
    %1543 = vmatprep.subr.mxu0 %v1369
    %1544 = vmatpush1.msra.mxu0 %v1368
    %1545 = vmatprep.subr.mxu0 %v1373
    %1546 = vmatpush1.msra.mxu0 %v1372
    %1547 = vmatprep.subr.mxu0 %v1377
    %1548 = vmatpush1.msra.mxu0 %v1376
    %1549 = vmatprep.subr.mxu0 %v1381
    %1550 = vmatpush1.msra.mxu0 %v1380
    %1551 = vmatprep.subr.mxu0 %v1385
    %1552 = vmatpush1.msra.mxu0 %v1384
    %1553 = vmatprep.subr.mxu0 %v1389
    %1554 = vmatpush1.msra.mxu0 %v1388
    %1555 = vmatprep.subr.mxu0 %v1393
    %1556 = vmatpush1.msra.mxu0 %v1392
    %1557 = vmatprep.subr.mxu0 %v1397
    %1558 = vmatpush1.msra.mxu0 %v1396
    %1559 = vmatprep.subr.mxu0 %v1401
    %1560 = vmatpush1.msra.mxu0 %v1400
    %1561 = vmatprep.mubr.f32.mxu0 %v1147
    %1562 = vmatmul.mubr.f32.gmra.mrb[0].mxu0 %v1146
    %v1563 = vpop.f32.mrb[0].mxu0
    %v1564 = vadd.f32 %v1493, %v1563
    %v1565 = vpop.f32.mrb[0].mxu0
    %v1566 = vadd.f32 %v1495, %v1565
    %1567 = vdwg.mxu0
    %1568 = vmatprep.subr.mxu0 %v1151
    %1569 = vmatpush1.msra.mxu0 %v1150
    %1570 = vmatprep.subr.mxu0 %v1155
    %1571 = vmatpush1.msra.mxu0 %v1154
    %1572 = vmatprep.subr.mxu0 %v1159
    %1573 = vmatpush1.msra.mxu0 %v1158
    %1574 = vmatprep.subr.mxu0 %v1163
    %1575 = vmatpush1.msra.mxu0 %v1162
    %1576 = vmatprep.subr.mxu0 %v1167
    %1577 = vmatpush1.msra.mxu0 %v1166
    %1578 = vmatprep.subr.mxu0 %v1171
    %1579 = vmatpush1.msra.mxu0 %v1170
    %1580 = vmatprep.subr.mxu0 %v1175
    %1581 = vmatpush1.msra.mxu0 %v1174
    %1582 = vmatprep.subr.mxu0 %v1179
    %1583 = vmatpush1.msra.mxu0 %v1178
    %1584 = vmatprep.subr.mxu0 %v1183
    %1585 = vmatpush1.msra.mxu0 %v1182
    %1586 = vmatprep.subr.mxu0 %v1187
    %1587 = vmatpush1.msra.mxu0 %v1186
    %1588 = vmatprep.subr.mxu0 %v1191
    %1589 = vmatpush1.msra.mxu0 %v1190
    %1590 = vmatprep.subr.mxu0 %v1195
    %1591 = vmatpush1.msra.mxu0 %v1194
    %1592 = vmatprep.subr.mxu0 %v1199
    %1593 = vmatpush1.msra.mxu0 %v1198
    %1594 = vmatprep.subr.mxu0 %v1203
    %1595 = vmatpush1.msra.mxu0 %v1202
    %1596 = vmatprep.subr.mxu0 %v1207
    %1597 = vmatpush1.msra.mxu0 %v1206
    %1598 = vmatprep.subr.mxu0 %v1211
    %1599 = vmatpush1.msra.mxu0 %v1210
    %1600 = vmatprep.subr.mxu0 %v1215
    %1601 = vmatpush1.msra.mxu0 %v1214
    %1602 = vmatprep.subr.mxu0 %v1219
    %1603 = vmatpush1.msra.mxu0 %v1218
    %1604 = vmatprep.subr.mxu0 %v1223
    %1605 = vmatpush1.msra.mxu0 %v1222
    %1606 = vmatprep.subr.mxu0 %v1227
    %1607 = vmatpush1.msra.mxu0 %v1226
    %1608 = vmatprep.subr.mxu0 %v1231
    %1609 = vmatpush1.msra.mxu0 %v1230
    %1610 = vmatprep.subr.mxu0 %v1235
    %1611 = vmatpush1.msra.mxu0 %v1234
    %1612 = vmatprep.subr.mxu0 %v1239
    %1613 = vmatpush1.msra.mxu0 %v1238
    %1614 = vmatprep.subr.mxu0 %v1243
    %1615 = vmatpush1.msra.mxu0 %v1242
    %1616 = vmatprep.subr.mxu0 %v1247
    %1617 = vmatpush1.msra.mxu0 %v1246
    %1618 = vmatprep.subr.mxu0 %v1251
    %1619 = vmatpush1.msra.mxu0 %v1250
    %1620 = vmatprep.subr.mxu0 %v1255
    %1621 = vmatpush1.msra.mxu0 %v1254
    %1622 = vmatprep.subr.mxu0 %v1259
    %1623 = vmatpush1.msra.mxu0 %v1258
    %1624 = vmatprep.subr.mxu0 %v1263
    %1625 = vmatpush1.msra.mxu0 %v1262
    %1626 = vmatprep.subr.mxu0 %v1267
    %1627 = vmatpush1.msra.mxu0 %v1266
    %1628 = vmatprep.subr.mxu0 %v1271
    %1629 = vmatpush1.msra.mxu0 %v1270
    %1630 = vmatprep.subr.mxu0 %v1275
    %1631 = vmatpush1.msra.mxu0 %v1274
    %1632 = vmatprep.mubr.f32.mxu0 %v1145
    %1633 = vmatmul.mubr.f32.gmra.mrb[0].mxu0 %v1144
    %v1634 = vpop.f32.mrb[0].mxu0
    %v1635 = vadd.f32 %v1417, %v1634
    %v1636 = vpop.f32.mrb[0].mxu0
    %v1637 = vadd.f32 %v1421, %v1636
    %1638 = vdwg.mxu0
    %1639 = vmatprep.subr.mxu0 %v1279
    %1640 = vmatpush1.msra.mxu0 %v1278
    %1641 = vmatprep.subr.mxu0 %v1283
    %1642 = vmatpush1.msra.mxu0 %v1282
    %1643 = vmatprep.subr.mxu0 %v1287
    %1644 = vmatpush1.msra.mxu0 %v1286
    %1645 = vmatprep.subr.mxu0 %v1291
    %1646 = vmatpush1.msra.mxu0 %v1290
    %1647 = vmatprep.subr.mxu0 %v1295
    %1648 = vmatpush1.msra.mxu0 %v1294
    %1649 = vmatprep.subr.mxu0 %v1299
    %1650 = vmatpush1.msra.mxu0 %v1298
    %1651 = vmatprep.subr.mxu0 %v1303
    %1652 = vmatpush1.msra.mxu0 %v1302
    %1653 = vmatprep.subr.mxu0 %v1307
    %1654 = vmatpush1.msra.mxu0 %v1306
    %1655 = vmatprep.subr.mxu0 %v1311
    %1656 = vmatpush1.msra.mxu0 %v1310
    %1657 = vmatprep.subr.mxu0 %v1315
    %1658 = vmatpush1.msra.mxu0 %v1314
    %1659 = vmatprep.subr.mxu0 %v1319
    %1660 = vmatpush1.msra.mxu0 %v1318
    %1661 = vmatprep.subr.mxu0 %v1323
    %1662 = vmatpush1.msra.mxu0 %v1322
    %1663 = vmatprep.subr.mxu0 %v1327
    %1664 = vmatpush1.msra.mxu0 %v1326
    %1665 = vmatprep.subr.mxu0 %v1331
    %1666 = vmatpush1.msra.mxu0 %v1330
    %1667 = vmatprep.subr.mxu0 %v1335
    %1668 = vmatpush1.msra.mxu0 %v1334
    %1669 = vmatprep.subr.mxu0 %v1339
    %1670 = vmatpush1.msra.mxu0 %v1338
    %1671 = vmatprep.subr.mxu0 %v1343
    %1672 = vmatpush1.msra.mxu0 %v1342
    %1673 = vmatprep.subr.mxu0 %v1347
    %1674 = vmatpush1.msra.mxu0 %v1346
    %1675 = vmatprep.subr.mxu0 %v1351
    %1676 = vmatpush1.msra.mxu0 %v1350
    %1677 = vmatprep.subr.mxu0 %v1355
    %1678 = vmatpush1.msra.mxu0 %v1354
    %1679 = vmatprep.subr.mxu0 %v1359
    %1680 = vmatpush1.msra.mxu0 %v1358
    %1681 = vmatprep.subr.mxu0 %v1363
    %1682 = vmatpush1.msra.mxu0 %v1362
    %1683 = vmatprep.subr.mxu0 %v1367
    %1684 = vmatpush1.msra.mxu0 %v1366
    %1685 = vmatprep.subr.mxu0 %v1371
    %1686 = vmatpush1.msra.mxu0 %v1370
    %1687 = vmatprep.subr.mxu0 %v1375
    %1688 = vmatpush1.msra.mxu0 %v1374
    %1689 = vmatprep.subr.mxu0 %v1379
    %1690 = vmatpush1.msra.mxu0 %v1378
    %1691 = vmatprep.subr.mxu0 %v1383
    %1692 = vmatpush1.msra.mxu0 %v1382
    %1693 = vmatprep.subr.mxu0 %v1387
    %1694 = vmatpush1.msra.mxu0 %v1386
    %1695 = vmatprep.subr.mxu0 %v1391
    %1696 = vmatpush1.msra.mxu0 %v1390
    %1697 = vmatprep.subr.mxu0 %v1395
    %1698 = vmatpush1.msra.mxu0 %v1394
    %1699 = vmatprep.subr.mxu0 %v1399
    %1700 = vmatpush1.msra.mxu0 %v1398
    %1701 = vmatprep.subr.mxu0 %v1403
    %1702 = vmatpush1.msra.mxu0 %v1402
    %1703 = vmatprep.mubr.f32.mxu0 %v1147
    %1704 = vmatmul.mubr.f32.gmra.mrb[0].mxu0 %v1146
    %v1705 = vpop.f32.mrb[0].mxu0
    %v1706 = vadd.f32 %v1635, %v1705
    %v1707 = vpop.f32.mrb[0].mxu0
    %v1708 = vadd.f32 %v1637, %v1707
    %1709 = vdwg.mxu0
    %v1710 = vmax.f32 %v1564, 0.0
    %v1711 = vmax.f32 %v1566, 0.0
    %v1712 = vmax.f32 %v1706, 0.0
    %v1713 = vmax.f32 %v1708, 0.0
    %v1714 = vld [vmem:[#allocation11] sm:$0xff]
    %v1715 = vld [vmem:[#allocation11 + $0x8] sm:$0xff]
    %v1716 = vld [vmem:[#allocation11 + $0x10] sm:$0xff]
    %v1717 = vld [vmem:[#allocation11 + $0x18] sm:$0xff]
    %v1718 = vld [vmem:[#allocation11 + $0x20] sm:$0xff]
    %v1719 = vld [vmem:[#allocation11 + $0x28] sm:$0xff]
    %v1720 = vld [vmem:[#allocation11 + $0x30] sm:$0xff]
    %v1721 = vld [vmem:[#allocation11 + $0x38] sm:$0xff]
    %v1722 = vld [vmem:[#allocation11 + $0x40] sm:$0xff]
    %v1723 = vld [vmem:[#allocation11 + $0x48] sm:$0xff]
    %v1724 = vld [vmem:[#allocation11 + $0x50] sm:$0xff]
    %v1725 = vld [vmem:[#allocation11 + $0x58] sm:$0xff]
    %v1726 = vld [vmem:[#allocation11 + $0x60] sm:$0xff]
    %v1727 = vld [vmem:[#allocation11 + $0x68] sm:$0xff]
    %v1728 = vld [vmem:[#allocation11 + $0x70] sm:$0xff]
    %v1729 = vld [vmem:[#allocation11 + $0x78] sm:$0xff]
    %v1730 = vld [vmem:[#allocation11 + $0x80] sm:$0xff]
    %v1731 = vld [vmem:[#allocation11 + $0x88] sm:$0xff]
    %v1732 = vld [vmem:[#allocation11 + $0x90] sm:$0xff]
    %v1733 = vld [vmem:[#allocation11 + $0x98] sm:$0xff]
    %v1734 = vld [vmem:[#allocation11 + $0xa0] sm:$0xff]
    %v1735 = vld [vmem:[#allocation11 + $0xa8] sm:$0xff]
    %v1736 = vld [vmem:[#allocation11 + $0xb0] sm:$0xff]
    %v1737 = vld [vmem:[#allocation11 + $0xb8] sm:$0xff]
    %v1738 = vld [vmem:[#allocation11 + $0xc0] sm:$0xff]
    %v1739 = vld [vmem:[#allocation11 + $0xc8] sm:$0xff]
    %v1740 = vld [vmem:[#allocation11 + $0xd0] sm:$0xff]
    %v1741 = vld [vmem:[#allocation11 + $0xd8] sm:$0xff]
    %v1742 = vld [vmem:[#allocation11 + $0xe0] sm:$0xff]
    %v1743 = vld [vmem:[#allocation11 + $0xe8] sm:$0xff]
    %v1744 = vld [vmem:[#allocation11 + $0xf0] sm:$0xff]
    %v1745 = vld [vmem:[#allocation11 + $0xf8] sm:$0xff]
    %v1746 = vld [vmem:[#allocation11 + $0x100] sm:$0xff]
    %v1747 = vld [vmem:[#allocation11 + $0x108] sm:$0xff]
    %v1748 = vld [vmem:[#allocation11 + $0x110] sm:$0xff]
    %v1749 = vld [vmem:[#allocation11 + $0x118] sm:$0xff]
    %v1750 = vld [vmem:[#allocation11 + $0x120] sm:$0xff]
    %v1751 = vld [vmem:[#allocation11 + $0x128] sm:$0xff]
    %v1752 = vld [vmem:[#allocation11 + $0x130] sm:$0xff]
    %v1753 = vld [vmem:[#allocation11 + $0x138] sm:$0xff]
    %v1754 = vld [vmem:[#allocation11 + $0x140] sm:$0xff]
    %v1755 = vld [vmem:[#allocation11 + $0x148] sm:$0xff]
    %v1756 = vld [vmem:[#allocation11 + $0x150] sm:$0xff]
    %v1757 = vld [vmem:[#allocation11 + $0x158] sm:$0xff]
    %v1758 = vld [vmem:[#allocation11 + $0x160] sm:$0xff]
    %v1759 = vld [vmem:[#allocation11 + $0x168] sm:$0xff]
    %v1760 = vld [vmem:[#allocation11 + $0x170] sm:$0xff]
    %v1761 = vld [vmem:[#allocation11 + $0x178] sm:$0xff]
    %v1762 = vld [vmem:[#allocation11 + $0x180] sm:$0xff]
    %v1763 = vld [vmem:[#allocation11 + $0x188] sm:$0xff]
    %v1764 = vld [vmem:[#allocation11 + $0x190] sm:$0xff]
    %v1765 = vld [vmem:[#allocation11 + $0x198] sm:$0xff]
    %v1766 = vld [vmem:[#allocation11 + $0x1a0] sm:$0xff]
    %v1767 = vld [vmem:[#allocation11 + $0x1a8] sm:$0xff]
    %v1768 = vld [vmem:[#allocation11 + $0x1b0] sm:$0xff]
    %v1769 = vld [vmem:[#allocation11 + $0x1b8] sm:$0xff]
    %v1770 = vld [vmem:[#allocation11 + $0x1c0] sm:$0xff]
    %v1771 = vld [vmem:[#allocation11 + $0x1c8] sm:$0xff]
    %v1772 = vld [vmem:[#allocation11 + $0x1d0] sm:$0xff]
    %v1773 = vld [vmem:[#allocation11 + $0x1d8] sm:$0xff]
    %v1774 = vld [vmem:[#allocation11 + $0x1e0] sm:$0xff]
    %v1775 = vld [vmem:[#allocation11 + $0x1e8] sm:$0xff]
    %v1776 = vld [vmem:[#allocation11 + $0x1f0] sm:$0xff]
    %v1777 = vld [vmem:[#allocation11 + $0x1f8] sm:$0xff]
    %v1778 = vld [vmem:[#allocation11 + $0x200] sm:$0xff]
    %v1779 = vld [vmem:[#allocation11 + $0x208] sm:$0xff]
    %v1780 = vld [vmem:[#allocation11 + $0x210] sm:$0xff]
    %v1781 = vld [vmem:[#allocation11 + $0x218] sm:$0xff]
    %v1782 = vld [vmem:[#allocation11 + $0x220] sm:$0xff]
    %v1783 = vld [vmem:[#allocation11 + $0x228] sm:$0xff]
    %v1784 = vld [vmem:[#allocation11 + $0x230] sm:$0xff]
    %v1785 = vld [vmem:[#allocation11 + $0x238] sm:$0xff]
    %v1786 = vld [vmem:[#allocation11 + $0x240] sm:$0xff]
    %v1787 = vld [vmem:[#allocation11 + $0x248] sm:$0xff]
    %v1788 = vld [vmem:[#allocation11 + $0x250] sm:$0xff]
    %v1789 = vld [vmem:[#allocation11 + $0x258] sm:$0xff]
    %v1790 = vld [vmem:[#allocation11 + $0x260] sm:$0xff]
    %v1791 = vld [vmem:[#allocation11 + $0x268] sm:$0xff]
    %v1792 = vld [vmem:[#allocation11 + $0x270] sm:$0xff]
    %v1793 = vld [vmem:[#allocation11 + $0x278] sm:$0xff]
    %v1794 = vld [vmem:[#allocation11 + $0x280] sm:$0xff]
    %v1795 = vld [vmem:[#allocation11 + $0x288] sm:$0xff]
    %v1796 = vld [vmem:[#allocation11 + $0x290] sm:$0xff]
    %v1797 = vld [vmem:[#allocation11 + $0x298] sm:$0xff]
    %v1798 = vld [vmem:[#allocation11 + $0x2a0] sm:$0xff]
    %v1799 = vld [vmem:[#allocation11 + $0x2a8] sm:$0xff]
    %v1800 = vld [vmem:[#allocation11 + $0x2b0] sm:$0xff]
    %v1801 = vld [vmem:[#allocation11 + $0x2b8] sm:$0xff]
    %v1802 = vld [vmem:[#allocation11 + $0x2c0] sm:$0xff]
    %v1803 = vld [vmem:[#allocation11 + $0x2c8] sm:$0xff]
    %v1804 = vld [vmem:[#allocation11 + $0x2d0] sm:$0xff]
    %v1805 = vld [vmem:[#allocation11 + $0x2d8] sm:$0xff]
    %v1806 = vld [vmem:[#allocation11 + $0x2e0] sm:$0xff]
    %v1807 = vld [vmem:[#allocation11 + $0x2e8] sm:$0xff]
    %v1808 = vld [vmem:[#allocation11 + $0x2f0] sm:$0xff]
    %v1809 = vld [vmem:[#allocation11 + $0x2f8] sm:$0xff]
    %v1810 = vld [vmem:[#allocation11 + $0x300] sm:$0xff]
    %v1811 = vld [vmem:[#allocation11 + $0x308] sm:$0xff]
    %v1812 = vld [vmem:[#allocation11 + $0x310] sm:$0xff]
    %v1813 = vld [vmem:[#allocation11 + $0x318] sm:$0xff]
    %v1814 = vld [vmem:[#allocation11 + $0x320] sm:$0xff]
    %v1815 = vld [vmem:[#allocation11 + $0x328] sm:$0xff]
    %v1816 = vld [vmem:[#allocation11 + $0x330] sm:$0xff]
    %v1817 = vld [vmem:[#allocation11 + $0x338] sm:$0xff]
    %v1818 = vld [vmem:[#allocation11 + $0x340] sm:$0xff]
    %v1819 = vld [vmem:[#allocation11 + $0x348] sm:$0xff]
    %v1820 = vld [vmem:[#allocation11 + $0x350] sm:$0xff]
    %v1821 = vld [vmem:[#allocation11 + $0x358] sm:$0xff]
    %v1822 = vld [vmem:[#allocation11 + $0x360] sm:$0xff]
    %v1823 = vld [vmem:[#allocation11 + $0x368] sm:$0xff]
    %v1824 = vld [vmem:[#allocation11 + $0x370] sm:$0xff]
    %v1825 = vld [vmem:[#allocation11 + $0x378] sm:$0xff]
    %v1826 = vld [vmem:[#allocation11 + $0x380] sm:$0xff]
    %v1827 = vld [vmem:[#allocation11 + $0x388] sm:$0xff]
    %v1828 = vld [vmem:[#allocation11 + $0x390] sm:$0xff]
    %v1829 = vld [vmem:[#allocation11 + $0x398] sm:$0xff]
    %v1830 = vld [vmem:[#allocation11 + $0x3a0] sm:$0xff]
    %v1831 = vld [vmem:[#allocation11 + $0x3a8] sm:$0xff]
    %v1832 = vld [vmem:[#allocation11 + $0x3b0] sm:$0xff]
    %v1833 = vld [vmem:[#allocation11 + $0x3b8] sm:$0xff]
    %v1834 = vld [vmem:[#allocation11 + $0x3c0] sm:$0xff]
    %v1835 = vld [vmem:[#allocation11 + $0x3c8] sm:$0xff]
    %v1836 = vld [vmem:[#allocation11 + $0x3d0] sm:$0xff]
    %v1837 = vld [vmem:[#allocation11 + $0x3d8] sm:$0xff]
    %v1838 = vld [vmem:[#allocation11 + $0x3e0] sm:$0xff]
    %v1839 = vld [vmem:[#allocation11 + $0x3e8] sm:$0xff]
    %v1840 = vld [vmem:[#allocation11 + $0x3f0] sm:$0xff]
    %v1841 = vld [vmem:[#allocation11 + $0x3f8] sm:$0xff]
    %v1842 = vld [vmem:[#allocation11 + $0x400] sm:$0xff]
    %v1843 = vld [vmem:[#allocation11 + $0x408] sm:$0xff]
    %v1844 = vld [vmem:[#allocation11 + $0x410] sm:$0xff]
    %v1845 = vld [vmem:[#allocation11 + $0x418] sm:$0xff]
    %v1846 = vld [vmem:[#allocation11 + $0x420] sm:$0xff]
    %v1847 = vld [vmem:[#allocation11 + $0x428] sm:$0xff]
    %v1848 = vld [vmem:[#allocation11 + $0x430] sm:$0xff]
    %v1849 = vld [vmem:[#allocation11 + $0x438] sm:$0xff]
    %v1850 = vld [vmem:[#allocation11 + $0x440] sm:$0xff]
    %v1851 = vld [vmem:[#allocation11 + $0x448] sm:$0xff]
    %v1852 = vld [vmem:[#allocation11 + $0x450] sm:$0xff]
    %v1853 = vld [vmem:[#allocation11 + $0x458] sm:$0xff]
    %v1854 = vld [vmem:[#allocation11 + $0x460] sm:$0xff]
    %v1855 = vld [vmem:[#allocation11 + $0x468] sm:$0xff]
    %v1856 = vld [vmem:[#allocation11 + $0x470] sm:$0xff]
    %v1857 = vld [vmem:[#allocation11 + $0x478] sm:$0xff]
    %v1858 = vld [vmem:[#allocation11 + $0x480] sm:$0xff]
    %v1859 = vld [vmem:[#allocation11 + $0x488] sm:$0xff]
    %v1860 = vld [vmem:[#allocation11 + $0x490] sm:$0xff]
    %v1861 = vld [vmem:[#allocation11 + $0x498] sm:$0xff]
    %v1862 = vld [vmem:[#allocation11 + $0x4a0] sm:$0xff]
    %v1863 = vld [vmem:[#allocation11 + $0x4a8] sm:$0xff]
    %v1864 = vld [vmem:[#allocation11 + $0x4b0] sm:$0xff]
    %v1865 = vld [vmem:[#allocation11 + $0x4b8] sm:$0xff]
    %v1866 = vld [vmem:[#allocation11 + $0x4c0] sm:$0xff]
    %v1867 = vld [vmem:[#allocation11 + $0x4c8] sm:$0xff]
    %v1868 = vld [vmem:[#allocation11 + $0x4d0] sm:$0xff]
    %v1869 = vld [vmem:[#allocation11 + $0x4d8] sm:$0xff]
    %v1870 = vld [vmem:[#allocation11 + $0x4e0] sm:$0xff]
    %v1871 = vld [vmem:[#allocation11 + $0x4e8] sm:$0xff]
    %v1872 = vld [vmem:[#allocation11 + $0x4f0] sm:$0xff]
    %v1873 = vld [vmem:[#allocation11 + $0x4f8] sm:$0xff]
    %v1874 = vld [vmem:[#allocation11 + $0x500] sm:$0xff]
    %v1875 = vld [vmem:[#allocation11 + $0x508] sm:$0xff]
    %v1876 = vld [vmem:[#allocation11 + $0x510] sm:$0xff]
    %v1877 = vld [vmem:[#allocation11 + $0x518] sm:$0xff]
    %v1878 = vld [vmem:[#allocation11 + $0x520] sm:$0xff]
    %v1879 = vld [vmem:[#allocation11 + $0x528] sm:$0xff]
    %v1880 = vld [vmem:[#allocation11 + $0x530] sm:$0xff]
    %v1881 = vld [vmem:[#allocation11 + $0x538] sm:$0xff]
    %v1882 = vld [vmem:[#allocation11 + $0x540] sm:$0xff]
    %v1883 = vld [vmem:[#allocation11 + $0x548] sm:$0xff]
    %v1884 = vld [vmem:[#allocation11 + $0x550] sm:$0xff]
    %v1885 = vld [vmem:[#allocation11 + $0x558] sm:$0xff]
    %v1886 = vld [vmem:[#allocation11 + $0x560] sm:$0xff]
    %v1887 = vld [vmem:[#allocation11 + $0x568] sm:$0xff]
    %v1888 = vld [vmem:[#allocation11 + $0x570] sm:$0xff]
    %v1889 = vld [vmem:[#allocation11 + $0x578] sm:$0xff]
    %v1890 = vld [vmem:[#allocation11 + $0x580] sm:$0xff]
    %v1891 = vld [vmem:[#allocation11 + $0x588] sm:$0xff]
    %v1892 = vld [vmem:[#allocation11 + $0x590] sm:$0xff]
    %v1893 = vld [vmem:[#allocation11 + $0x598] sm:$0xff]
    %v1894 = vld [vmem:[#allocation11 + $0x5a0] sm:$0xff]
    %v1895 = vld [vmem:[#allocation11 + $0x5a8] sm:$0xff]
    %v1896 = vld [vmem:[#allocation11 + $0x5b0] sm:$0xff]
    %v1897 = vld [vmem:[#allocation11 + $0x5b8] sm:$0xff]
    %v1898 = vld [vmem:[#allocation11 + $0x5c0] sm:$0xff]
    %v1899 = vld [vmem:[#allocation11 + $0x5c8] sm:$0xff]
    %v1900 = vld [vmem:[#allocation11 + $0x5d0] sm:$0xff]
    %v1901 = vld [vmem:[#allocation11 + $0x5d8] sm:$0xff]
    %v1902 = vld [vmem:[#allocation11 + $0x5e0] sm:$0xff]
    %v1903 = vld [vmem:[#allocation11 + $0x5e8] sm:$0xff]
    %v1904 = vld [vmem:[#allocation11 + $0x5f0] sm:$0xff]
    %v1905 = vld [vmem:[#allocation11 + $0x5f8] sm:$0xff]
    %v1906 = vld [vmem:[#allocation11 + $0x600] sm:$0xff]
    %v1907 = vld [vmem:[#allocation11 + $0x608] sm:$0xff]
    %v1908 = vld [vmem:[#allocation11 + $0x610] sm:$0xff]
    %v1909 = vld [vmem:[#allocation11 + $0x618] sm:$0xff]
    %v1910 = vld [vmem:[#allocation11 + $0x620] sm:$0xff]
    %v1911 = vld [vmem:[#allocation11 + $0x628] sm:$0xff]
    %v1912 = vld [vmem:[#allocation11 + $0x630] sm:$0xff]
    %v1913 = vld [vmem:[#allocation11 + $0x638] sm:$0xff]
    %v1914 = vld [vmem:[#allocation11 + $0x640] sm:$0xff]
    %v1915 = vld [vmem:[#allocation11 + $0x648] sm:$0xff]
    %v1916 = vld [vmem:[#allocation11 + $0x650] sm:$0xff]
    %v1917 = vld [vmem:[#allocation11 + $0x658] sm:$0xff]
    %v1918 = vld [vmem:[#allocation11 + $0x660] sm:$0xff]
    %v1919 = vld [vmem:[#allocation11 + $0x668] sm:$0xff]
    %v1920 = vld [vmem:[#allocation11 + $0x670] sm:$0xff]
    %v1921 = vld [vmem:[#allocation11 + $0x678] sm:$0xff]
    %v1922 = vld [vmem:[#allocation11 + $0x680] sm:$0xff]
    %v1923 = vld [vmem:[#allocation11 + $0x688] sm:$0xff]
    %v1924 = vld [vmem:[#allocation11 + $0x690] sm:$0xff]
    %v1925 = vld [vmem:[#allocation11 + $0x698] sm:$0xff]
    %v1926 = vld [vmem:[#allocation11 + $0x6a0] sm:$0xff]
    %v1927 = vld [vmem:[#allocation11 + $0x6a8] sm:$0xff]
    %v1928 = vld [vmem:[#allocation11 + $0x6b0] sm:$0xff]
    %v1929 = vld [vmem:[#allocation11 + $0x6b8] sm:$0xff]
    %v1930 = vld [vmem:[#allocation11 + $0x6c0] sm:$0xff]
    %v1931 = vld [vmem:[#allocation11 + $0x6c8] sm:$0xff]
    %v1932 = vld [vmem:[#allocation11 + $0x6d0] sm:$0xff]
    %v1933 = vld [vmem:[#allocation11 + $0x6d8] sm:$0xff]
    %v1934 = vld [vmem:[#allocation11 + $0x6e0] sm:$0xff]
    %v1935 = vld [vmem:[#allocation11 + $0x6e8] sm:$0xff]
    %v1936 = vld [vmem:[#allocation11 + $0x6f0] sm:$0xff]
    %v1937 = vld [vmem:[#allocation11 + $0x6f8] sm:$0xff]
    %v1938 = vld [vmem:[#allocation11 + $0x700] sm:$0xff]
    %v1939 = vld [vmem:[#allocation11 + $0x708] sm:$0xff]
    %v1940 = vld [vmem:[#allocation11 + $0x710] sm:$0xff]
    %v1941 = vld [vmem:[#allocation11 + $0x718] sm:$0xff]
    %v1942 = vld [vmem:[#allocation11 + $0x720] sm:$0xff]
    %v1943 = vld [vmem:[#allocation11 + $0x728] sm:$0xff]
    %v1944 = vld [vmem:[#allocation11 + $0x730] sm:$0xff]
    %v1945 = vld [vmem:[#allocation11 + $0x738] sm:$0xff]
    %v1946 = vld [vmem:[#allocation11 + $0x740] sm:$0xff]
    %v1947 = vld [vmem:[#allocation11 + $0x748] sm:$0xff]
    %v1948 = vld [vmem:[#allocation11 + $0x750] sm:$0xff]
    %v1949 = vld [vmem:[#allocation11 + $0x758] sm:$0xff]
    %v1950 = vld [vmem:[#allocation11 + $0x760] sm:$0xff]
    %v1951 = vld [vmem:[#allocation11 + $0x768] sm:$0xff]
    %v1952 = vld [vmem:[#allocation11 + $0x770] sm:$0xff]
    %v1953 = vld [vmem:[#allocation11 + $0x778] sm:$0xff]
    %v1954 = vld [vmem:[#allocation11 + $0x780] sm:$0xff]
    %v1955 = vld [vmem:[#allocation11 + $0x788] sm:$0xff]
    %v1956 = vld [vmem:[#allocation11 + $0x790] sm:$0xff]
    %v1957 = vld [vmem:[#allocation11 + $0x798] sm:$0xff]
    %v1958 = vld [vmem:[#allocation11 + $0x7a0] sm:$0xff]
    %v1959 = vld [vmem:[#allocation11 + $0x7a8] sm:$0xff]
    %v1960 = vld [vmem:[#allocation11 + $0x7b0] sm:$0xff]
    %v1961 = vld [vmem:[#allocation11 + $0x7b8] sm:$0xff]
    %v1962 = vld [vmem:[#allocation11 + $0x7c0] sm:$0xff]
    %v1963 = vld [vmem:[#allocation11 + $0x7c8] sm:$0xff]
    %v1964 = vld [vmem:[#allocation11 + $0x7d0] sm:$0xff]
    %v1965 = vld [vmem:[#allocation11 + $0x7d8] sm:$0xff]
    %v1966 = vld [vmem:[#allocation11 + $0x7e0] sm:$0xff]
    %v1967 = vld [vmem:[#allocation11 + $0x7e8] sm:$0xff]
    %v1968 = vld [vmem:[#allocation11 + $0x7f0] sm:$0xff]
    %v1969 = vld [vmem:[#allocation11 + $0x7f8] sm:$0xff]
    %v1970 = vld [vmem:[#allocation13] sm:$0xf]
    %v1972 = vlaneseq
    %v1973 = vshrl.u32 %v1972, 7
    %v1974 = vsub.s32 0, %v1973
    %v1975 = vrot.slane %v1970, %v1974
    %v1976 = vlaneseq
    %v1977 = vshrl.u32 %v1976, 7
    %v1978 = vsub.s32 1, %v1977
    %v1979 = vrot.slane %v1970, %v1978
    %v1980 = vlaneseq
    %v1981 = vshrl.u32 %v1980, 7
    %v1982 = vsub.s32 2, %v1981
    %v1983 = vrot.slane %v1970, %v1982
    %v1984 = vlaneseq
    %v1985 = vshrl.u32 %v1984, 7
    %v1986 = vsub.s32 3, %v1985
    %v1987 = vrot.slane %v1970, %v1986
    %1992 = vmatprep.subr.mxu0 %v1715
    %1993 = vmatpush1.msra.mxu0 %v1714
    %1994 = vmatprep.subr.mxu0 %v1719
    %1995 = vmatpush1.msra.mxu0 %v1718
    %1996 = vmatprep.subr.mxu0 %v1723
    %1997 = vmatpush1.msra.mxu0 %v1722
    %1998 = vmatprep.subr.mxu0 %v1727
    %1999 = vmatpush1.msra.mxu0 %v1726
    %2000 = vmatprep.subr.mxu0 %v1731
    %2001 = vmatpush1.msra.mxu0 %v1730
    %2002 = vmatprep.subr.mxu0 %v1735
    %2003 = vmatpush1.msra.mxu0 %v1734
    %2004 = vmatprep.subr.mxu0 %v1739
    %2005 = vmatpush1.msra.mxu0 %v1738
    %2006 = vmatprep.subr.mxu0 %v1743
    %2007 = vmatpush1.msra.mxu0 %v1742
    %2008 = vmatprep.subr.mxu0 %v1747
    %2009 = vmatpush1.msra.mxu0 %v1746
    %2010 = vmatprep.subr.mxu0 %v1751
    %2011 = vmatpush1.msra.mxu0 %v1750
    %2012 = vmatprep.subr.mxu0 %v1755
    %2013 = vmatpush1.msra.mxu0 %v1754
    %2014 = vmatprep.subr.mxu0 %v1759
    %2015 = vmatpush1.msra.mxu0 %v1758
    %2016 = vmatprep.subr.mxu0 %v1763
    %2017 = vmatpush1.msra.mxu0 %v1762
    %2018 = vmatprep.subr.mxu0 %v1767
    %2019 = vmatpush1.msra.mxu0 %v1766
    %2020 = vmatprep.subr.mxu0 %v1771
    %2021 = vmatpush1.msra.mxu0 %v1770
    %2022 = vmatprep.subr.mxu0 %v1775
    %2023 = vmatpush1.msra.mxu0 %v1774
    %2024 = vmatprep.subr.mxu0 %v1779
    %2025 = vmatpush1.msra.mxu0 %v1778
    %2026 = vmatprep.subr.mxu0 %v1783
    %2027 = vmatpush1.msra.mxu0 %v1782
    %2028 = vmatprep.subr.mxu0 %v1787
    %2029 = vmatpush1.msra.mxu0 %v1786
    %2030 = vmatprep.subr.mxu0 %v1791
    %2031 = vmatpush1.msra.mxu0 %v1790
    %2032 = vmatprep.subr.mxu0 %v1795
    %2033 = vmatpush1.msra.mxu0 %v1794
    %2034 = vmatprep.subr.mxu0 %v1799
    %2035 = vmatpush1.msra.mxu0 %v1798
    %2036 = vmatprep.subr.mxu0 %v1803
    %2037 = vmatpush1.msra.mxu0 %v1802
    %2038 = vmatprep.subr.mxu0 %v1807
    %2039 = vmatpush1.msra.mxu0 %v1806
    %2040 = vmatprep.subr.mxu0 %v1811
    %2041 = vmatpush1.msra.mxu0 %v1810
    %2042 = vmatprep.subr.mxu0 %v1815
    %2043 = vmatpush1.msra.mxu0 %v1814
    %2044 = vmatprep.subr.mxu0 %v1819
    %2045 = vmatpush1.msra.mxu0 %v1818
    %2046 = vmatprep.subr.mxu0 %v1823
    %2047 = vmatpush1.msra.mxu0 %v1822
    %2048 = vmatprep.subr.mxu0 %v1827
    %2049 = vmatpush1.msra.mxu0 %v1826
    %2050 = vmatprep.subr.mxu0 %v1831
    %2051 = vmatpush1.msra.mxu0 %v1830
    %2052 = vmatprep.subr.mxu0 %v1835
    %2053 = vmatpush1.msra.mxu0 %v1834
    %2054 = vmatprep.subr.mxu0 %v1839
    %2055 = vmatpush1.msra.mxu0 %v1838
    %2056 = vmatprep.mubr.f32.mxu0 %v1711
    %2057 = vmatmul.mubr.f32.gmra.mrb[0].mxu0 %v1710
    %v2058 = vpop.f32.mrb[0].mxu0
    %v2059 = vadd.f32 %v1975, %v2058
    %v2060 = vpop.f32.mrb[0].mxu0
    %v2061 = vadd.f32 %v1979, %v2060
    %2062 = vdwg.mxu0
    %2063 = vmatprep.subr.mxu0 %v1843
    %2064 = vmatpush1.msra.mxu0 %v1842
    %2065 = vmatprep.subr.mxu0 %v1847
    %2066 = vmatpush1.msra.mxu0 %v1846
    %2067 = vmatprep.subr.mxu0 %v1851
    %2068 = vmatpush1.msra.mxu0 %v1850
    %2069 = vmatprep.subr.mxu0 %v1855
    %2070 = vmatpush1.msra.mxu0 %v1854
    %2071 = vmatprep.subr.mxu0 %v1859
    %2072 = vmatpush1.msra.mxu0 %v1858
    %2073 = vmatprep.subr.mxu0 %v1863
    %2074 = vmatpush1.msra.mxu0 %v1862
    %2075 = vmatprep.subr.mxu0 %v1867
    %2076 = vmatpush1.msra.mxu0 %v1866
    %2077 = vmatprep.subr.mxu0 %v1871
    %2078 = vmatpush1.msra.mxu0 %v1870
    %2079 = vmatprep.subr.mxu0 %v1875
    %2080 = vmatpush1.msra.mxu0 %v1874
    %2081 = vmatprep.subr.mxu0 %v1879
    %2082 = vmatpush1.msra.mxu0 %v1878
    %2083 = vmatprep.subr.mxu0 %v1883
    %2084 = vmatpush1.msra.mxu0 %v1882
    %2085 = vmatprep.subr.mxu0 %v1887
    %2086 = vmatpush1.msra.mxu0 %v1886
    %2087 = vmatprep.subr.mxu0 %v1891
    %2088 = vmatpush1.msra.mxu0 %v1890
    %2089 = vmatprep.subr.mxu0 %v1895
    %2090 = vmatpush1.msra.mxu0 %v1894
    %2091 = vmatprep.subr.mxu0 %v1899
    %2092 = vmatpush1.msra.mxu0 %v1898
    %2093 = vmatprep.subr.mxu0 %v1903
    %2094 = vmatpush1.msra.mxu0 %v1902
    %2095 = vmatprep.subr.mxu0 %v1907
    %2096 = vmatpush1.msra.mxu0 %v1906
    %2097 = vmatprep.subr.mxu0 %v1911
    %2098 = vmatpush1.msra.mxu0 %v1910
    %2099 = vmatprep.subr.mxu0 %v1915
    %2100 = vmatpush1.msra.mxu0 %v1914
    %2101 = vmatprep.subr.mxu0 %v1919
    %2102 = vmatpush1.msra.mxu0 %v1918
    %2103 = vmatprep.subr.mxu0 %v1923
    %2104 = vmatpush1.msra.mxu0 %v1922
    %2105 = vmatprep.subr.mxu0 %v1927
    %2106 = vmatpush1.msra.mxu0 %v1926
    %2107 = vmatprep.subr.mxu0 %v1931
    %2108 = vmatpush1.msra.mxu0 %v1930
    %2109 = vmatprep.subr.mxu0 %v1935
    %2110 = vmatpush1.msra.mxu0 %v1934
    %2111 = vmatprep.subr.mxu0 %v1939
    %2112 = vmatpush1.msra.mxu0 %v1938
    %2113 = vmatprep.subr.mxu0 %v1943
    %2114 = vmatpush1.msra.mxu0 %v1942
    %2115 = vmatprep.subr.mxu0 %v1947
    %2116 = vmatpush1.msra.mxu0 %v1946
    %2117 = vmatprep.subr.mxu0 %v1951
    %2118 = vmatpush1.msra.mxu0 %v1950
    %2119 = vmatprep.subr.mxu0 %v1955
    %2120 = vmatpush1.msra.mxu0 %v1954
    %2121 = vmatprep.subr.mxu0 %v1959
    %2122 = vmatpush1.msra.mxu0 %v1958
    %2123 = vmatprep.subr.mxu0 %v1963
    %2124 = vmatpush1.msra.mxu0 %v1962
    %2125 = vmatprep.subr.mxu0 %v1967
    %2126 = vmatpush1.msra.mxu0 %v1966
    %2127 = vmatprep.mubr.f32.mxu0 %v1713
    %2128 = vmatmul.mubr.f32.gmra.mrb[0].mxu0 %v1712
    %v2129 = vpop.f32.mrb[0].mxu0
    %v2130 = vadd.f32 %v2059, %v2129
    %v2131 = vpop.f32.mrb[0].mxu0
    %v2132 = vadd.f32 %v2061, %v2131
    %2133 = vdwg.mxu0
    %2134 = vmatprep.subr.mxu0 %v1717
    %2135 = vmatpush1.msra.mxu0 %v1716
    %2136 = vmatprep.subr.mxu0 %v1721
    %2137 = vmatpush1.msra.mxu0 %v1720
    %2138 = vmatprep.subr.mxu0 %v1725
    %2139 = vmatpush1.msra.mxu0 %v1724
    %2140 = vmatprep.subr.mxu0 %v1729
    %2141 = vmatpush1.msra.mxu0 %v1728
    %2142 = vmatprep.subr.mxu0 %v1733
    %2143 = vmatpush1.msra.mxu0 %v1732
    %2144 = vmatprep.subr.mxu0 %v1737
    %2145 = vmatpush1.msra.mxu0 %v1736
    %2146 = vmatprep.subr.mxu0 %v1741
    %2147 = vmatpush1.msra.mxu0 %v1740
    %2148 = vmatprep.subr.mxu0 %v1745
    %2149 = vmatpush1.msra.mxu0 %v1744
    %2150 = vmatprep.subr.mxu0 %v1749
    %2151 = vmatpush1.msra.mxu0 %v1748
    %2152 = vmatprep.subr.mxu0 %v1753
    %2153 = vmatpush1.msra.mxu0 %v1752
    %2154 = vmatprep.subr.mxu0 %v1757
    %2155 = vmatpush1.msra.mxu0 %v1756
    %2156 = vmatprep.subr.mxu0 %v1761
    %2157 = vmatpush1.msra.mxu0 %v1760
    %2158 = vmatprep.subr.mxu0 %v1765
    %2159 = vmatpush1.msra.mxu0 %v1764
    %2160 = vmatprep.subr.mxu0 %v1769
    %2161 = vmatpush1.msra.mxu0 %v1768
    %2162 = vmatprep.subr.mxu0 %v1773
    %2163 = vmatpush1.msra.mxu0 %v1772
    %2164 = vmatprep.subr.mxu0 %v1777
    %2165 = vmatpush1.msra.mxu0 %v1776
    %2166 = vmatprep.subr.mxu0 %v1781
    %2167 = vmatpush1.msra.mxu0 %v1780
    %2168 = vmatprep.subr.mxu0 %v1785
    %2169 = vmatpush1.msra.mxu0 %v1784
    %2170 = vmatprep.subr.mxu0 %v1789
    %2171 = vmatpush1.msra.mxu0 %v1788
    %2172 = vmatprep.subr.mxu0 %v1793
    %2173 = vmatpush1.msra.mxu0 %v1792
    %2174 = vmatprep.subr.mxu0 %v1797
    %2175 = vmatpush1.msra.mxu0 %v1796
    %2176 = vmatprep.subr.mxu0 %v1801
    %2177 = vmatpush1.msra.mxu0 %v1800
    %2178 = vmatprep.subr.mxu0 %v1805
    %2179 = vmatpush1.msra.mxu0 %v1804
    %2180 = vmatprep.subr.mxu0 %v1809
    %2181 = vmatpush1.msra.mxu0 %v1808
    %2182 = vmatprep.subr.mxu0 %v1813
    %2183 = vmatpush1.msra.mxu0 %v1812
    %2184 = vmatprep.subr.mxu0 %v1817
    %2185 = vmatpush1.msra.mxu0 %v1816
    %2186 = vmatprep.subr.mxu0 %v1821
    %2187 = vmatpush1.msra.mxu0 %v1820
    %2188 = vmatprep.subr.mxu0 %v1825
    %2189 = vmatpush1.msra.mxu0 %v1824
    %2190 = vmatprep.subr.mxu0 %v1829
    %2191 = vmatpush1.msra.mxu0 %v1828
    %2192 = vmatprep.subr.mxu0 %v1833
    %2193 = vmatpush1.msra.mxu0 %v1832
    %2194 = vmatprep.subr.mxu0 %v1837
    %2195 = vmatpush1.msra.mxu0 %v1836
    %2196 = vmatprep.subr.mxu0 %v1841
    %2197 = vmatpush1.msra.mxu0 %v1840
    %2198 = vmatprep.mubr.f32.mxu0 %v1711
    %2199 = vmatmul.mubr.f32.gmra.mrb[0].mxu0 %v1710
    %v2200 = vpop.f32.mrb[0].mxu0
    %v2201 = vadd.f32 %v1983, %v2200
    %v2202 = vpop.f32.mrb[0].mxu0
    %v2203 = vadd.f32 %v1987, %v2202
    %2204 = vdwg.mxu0
    %2205 = vmatprep.subr.mxu0 %v1845
    %2206 = vmatpush1.msra.mxu0 %v1844
    %2207 = vmatprep.subr.mxu0 %v1849
    %2208 = vmatpush1.msra.mxu0 %v1848
    %2209 = vmatprep.subr.mxu0 %v1853
    %2210 = vmatpush1.msra.mxu0 %v1852
    %2211 = vmatprep.subr.mxu0 %v1857
    %2212 = vmatpush1.msra.mxu0 %v1856
    %2213 = vmatprep.subr.mxu0 %v1861
    %2214 = vmatpush1.msra.mxu0 %v1860
    %2215 = vmatprep.subr.mxu0 %v1865
    %2216 = vmatpush1.msra.mxu0 %v1864
    %2217 = vmatprep.subr.mxu0 %v1869
    %2218 = vmatpush1.msra.mxu0 %v1868
    %2219 = vmatprep.subr.mxu0 %v1873
    %2220 = vmatpush1.msra.mxu0 %v1872
    %2221 = vmatprep.subr.mxu0 %v1877
    %2222 = vmatpush1.msra.mxu0 %v1876
    %2223 = vmatprep.subr.mxu0 %v1881
    %2224 = vmatpush1.msra.mxu0 %v1880
    %2225 = vmatprep.subr.mxu0 %v1885
    %2226 = vmatpush1.msra.mxu0 %v1884
    %2227 = vmatprep.subr.mxu0 %v1889
    %2228 = vmatpush1.msra.mxu0 %v1888
    %2229 = vmatprep.subr.mxu0 %v1893
    %2230 = vmatpush1.msra.mxu0 %v1892
    %2231 = vmatprep.subr.mxu0 %v1897
    %2232 = vmatpush1.msra.mxu0 %v1896
    %2233 = vmatprep.subr.mxu0 %v1901
    %2234 = vmatpush1.msra.mxu0 %v1900
    %2235 = vmatprep.subr.mxu0 %v1905
    %2236 = vmatpush1.msra.mxu0 %v1904
    %2237 = vmatprep.subr.mxu0 %v1909
    %2238 = vmatpush1.msra.mxu0 %v1908
    %2239 = vmatprep.subr.mxu0 %v1913
    %2240 = vmatpush1.msra.mxu0 %v1912
    %2241 = vmatprep.subr.mxu0 %v1917
    %2242 = vmatpush1.msra.mxu0 %v1916
    %2243 = vmatprep.subr.mxu0 %v1921
    %2244 = vmatpush1.msra.mxu0 %v1920
    %2245 = vmatprep.subr.mxu0 %v1925
    %2246 = vmatpush1.msra.mxu0 %v1924
    %2247 = vmatprep.subr.mxu0 %v1929
    %2248 = vmatpush1.msra.mxu0 %v1928
    %2249 = vmatprep.subr.mxu0 %v1933
    %2250 = vmatpush1.msra.mxu0 %v1932
    %2251 = vmatprep.subr.mxu0 %v1937
    %2252 = vmatpush1.msra.mxu0 %v1936
    %2253 = vmatprep.subr.mxu0 %v1941
    %2254 = vmatpush1.msra.mxu0 %v1940
    %2255 = vmatprep.subr.mxu0 %v1945
    %2256 = vmatpush1.msra.mxu0 %v1944
    %2257 = vmatprep.subr.mxu0 %v1949
    %2258 = vmatpush1.msra.mxu0 %v1948
    %2259 = vmatprep.subr.mxu0 %v1953
    %2260 = vmatpush1.msra.mxu0 %v1952
    %2261 = vmatprep.subr.mxu0 %v1957
    %2262 = vmatpush1.msra.mxu0 %v1956
    %2263 = vmatprep.subr.mxu0 %v1961
    %2264 = vmatpush1.msra.mxu0 %v1960
    %2265 = vmatprep.subr.mxu0 %v1965
    %2266 = vmatpush1.msra.mxu0 %v1964
    %2267 = vmatprep.subr.mxu0 %v1969
    %2268 = vmatpush1.msra.mxu0 %v1968
    %2269 = vmatprep.mubr.f32.mxu0 %v1713
    %2270 = vmatmul.mubr.f32.gmra.mrb[0].mxu0 %v1712
    %v2271 = vpop.f32.mrb[0].mxu0
    %v2272 = vadd.f32 %v2201, %v2271
    %v2273 = vpop.f32.mrb[0].mxu0
    %v2274 = vadd.f32 %v2203, %v2273
    %2275 = vdwg.mxu0
    %v2276 = vmax.f32 %v2130, 0.0
    %v2277 = vmax.f32 %v2132, 0.0
    %v2278 = vmax.f32 %v2272, 0.0
    %v2279 = vmax.f32 %v2274, 0.0
    %v2280 = vld [vmem:[#allocation14] sm:$0xff]
    %v2281 = vld [vmem:[#allocation14 + $0x8] sm:$0xff]
    %v2282 = vld [vmem:[#allocation14 + $0x10] sm:$0xff]
    %v2283 = vld [vmem:[#allocation14 + $0x18] sm:$0xff]
    %v2284 = vld [vmem:[#allocation14 + $0x20] sm:$0xff]
    %v2285 = vld [vmem:[#allocation14 + $0x28] sm:$0xff]
    %v2286 = vld [vmem:[#allocation14 + $0x30] sm:$0xff]
    %v2287 = vld [vmem:[#allocation14 + $0x38] sm:$0xff]
    %v2288 = vld [vmem:[#allocation14 + $0x40] sm:$0xff]
    %v2289 = vld [vmem:[#allocation14 + $0x48] sm:$0xff]
    %v2290 = vld [vmem:[#allocation14 + $0x50] sm:$0xff]
    %v2291 = vld [vmem:[#allocation14 + $0x58] sm:$0xff]
    %v2292 = vld [vmem:[#allocation14 + $0x60] sm:$0xff]
    %v2293 = vld [vmem:[#allocation14 + $0x68] sm:$0xff]
    %v2294 = vld [vmem:[#allocation14 + $0x70] sm:$0xff]
    %v2295 = vld [vmem:[#allocation14 + $0x78] sm:$0xff]
    %v2296 = vld [vmem:[#allocation14 + $0x80] sm:$0xff]
    %v2297 = vld [vmem:[#allocation14 + $0x88] sm:$0xff]
    %v2298 = vld [vmem:[#allocation14 + $0x90] sm:$0xff]
    %v2299 = vld [vmem:[#allocation14 + $0x98] sm:$0xff]
    %v2300 = vld [vmem:[#allocation14 + $0xa0] sm:$0xff]
    %v2301 = vld [vmem:[#allocation14 + $0xa8] sm:$0xff]
    %v2302 = vld [vmem:[#allocation14 + $0xb0] sm:$0xff]
    %v2303 = vld [vmem:[#allocation14 + $0xb8] sm:$0xff]
    %v2304 = vld [vmem:[#allocation14 + $0xc0] sm:$0xff]
    %v2305 = vld [vmem:[#allocation14 + $0xc8] sm:$0xff]
    %v2306 = vld [vmem:[#allocation14 + $0xd0] sm:$0xff]
    %v2307 = vld [vmem:[#allocation14 + $0xd8] sm:$0xff]
    %v2308 = vld [vmem:[#allocation14 + $0xe0] sm:$0xff]
    %v2309 = vld [vmem:[#allocation14 + $0xe8] sm:$0xff]
    %v2310 = vld [vmem:[#allocation14 + $0xf0] sm:$0xff]
    %v2311 = vld [vmem:[#allocation14 + $0xf8] sm:$0xff]
    %v2312 = vld [vmem:[#allocation14 + $0x100] sm:$0xff]
    %v2313 = vld [vmem:[#allocation14 + $0x108] sm:$0xff]
    %v2314 = vld [vmem:[#allocation14 + $0x110] sm:$0xff]
    %v2315 = vld [vmem:[#allocation14 + $0x118] sm:$0xff]
    %v2316 = vld [vmem:[#allocation14 + $0x120] sm:$0xff]
    %v2317 = vld [vmem:[#allocation14 + $0x128] sm:$0xff]
    %v2318 = vld [vmem:[#allocation14 + $0x130] sm:$0xff]
    %v2319 = vld [vmem:[#allocation14 + $0x138] sm:$0xff]
    %v2320 = vld [vmem:[#allocation14 + $0x140] sm:$0xff]
    %v2321 = vld [vmem:[#allocation14 + $0x148] sm:$0xff]
    %v2322 = vld [vmem:[#allocation14 + $0x150] sm:$0xff]
    %v2323 = vld [vmem:[#allocation14 + $0x158] sm:$0xff]
    %v2324 = vld [vmem:[#allocation14 + $0x160] sm:$0xff]
    %v2325 = vld [vmem:[#allocation14 + $0x168] sm:$0xff]
    %v2326 = vld [vmem:[#allocation14 + $0x170] sm:$0xff]
    %v2327 = vld [vmem:[#allocation14 + $0x178] sm:$0xff]
    %v2328 = vld [vmem:[#allocation14 + $0x180] sm:$0xff]
    %v2329 = vld [vmem:[#allocation14 + $0x188] sm:$0xff]
    %v2330 = vld [vmem:[#allocation14 + $0x190] sm:$0xff]
    %v2331 = vld [vmem:[#allocation14 + $0x198] sm:$0xff]
    %v2332 = vld [vmem:[#allocation14 + $0x1a0] sm:$0xff]
    %v2333 = vld [vmem:[#allocation14 + $0x1a8] sm:$0xff]
    %v2334 = vld [vmem:[#allocation14 + $0x1b0] sm:$0xff]
    %v2335 = vld [vmem:[#allocation14 + $0x1b8] sm:$0xff]
    %v2336 = vld [vmem:[#allocation14 + $0x1c0] sm:$0xff]
    %v2337 = vld [vmem:[#allocation14 + $0x1c8] sm:$0xff]
    %v2338 = vld [vmem:[#allocation14 + $0x1d0] sm:$0xff]
    %v2339 = vld [vmem:[#allocation14 + $0x1d8] sm:$0xff]
    %v2340 = vld [vmem:[#allocation14 + $0x1e0] sm:$0xff]
    %v2341 = vld [vmem:[#allocation14 + $0x1e8] sm:$0xff]
    %v2342 = vld [vmem:[#allocation14 + $0x1f0] sm:$0xff]
    %v2343 = vld [vmem:[#allocation14 + $0x1f8] sm:$0xff]
    %v2344 = vld [vmem:[#allocation14 + $0x200] sm:$0xff]
    %v2345 = vld [vmem:[#allocation14 + $0x208] sm:$0xff]
    %v2346 = vld [vmem:[#allocation14 + $0x210] sm:$0xff]
    %v2347 = vld [vmem:[#allocation14 + $0x218] sm:$0xff]
    %v2348 = vld [vmem:[#allocation14 + $0x220] sm:$0xff]
    %v2349 = vld [vmem:[#allocation14 + $0x228] sm:$0xff]
    %v2350 = vld [vmem:[#allocation14 + $0x230] sm:$0xff]
    %v2351 = vld [vmem:[#allocation14 + $0x238] sm:$0xff]
    %v2352 = vld [vmem:[#allocation14 + $0x240] sm:$0xff]
    %v2353 = vld [vmem:[#allocation14 + $0x248] sm:$0xff]
    %v2354 = vld [vmem:[#allocation14 + $0x250] sm:$0xff]
    %v2355 = vld [vmem:[#allocation14 + $0x258] sm:$0xff]
    %v2356 = vld [vmem:[#allocation14 + $0x260] sm:$0xff]
    %v2357 = vld [vmem:[#allocation14 + $0x268] sm:$0xff]
    %v2358 = vld [vmem:[#allocation14 + $0x270] sm:$0xff]
    %v2359 = vld [vmem:[#allocation14 + $0x278] sm:$0xff]
    %v2360 = vld [vmem:[#allocation14 + $0x280] sm:$0xff]
    %v2361 = vld [vmem:[#allocation14 + $0x288] sm:$0xff]
    %v2362 = vld [vmem:[#allocation14 + $0x290] sm:$0xff]
    %v2363 = vld [vmem:[#allocation14 + $0x298] sm:$0xff]
    %v2364 = vld [vmem:[#allocation14 + $0x2a0] sm:$0xff]
    %v2365 = vld [vmem:[#allocation14 + $0x2a8] sm:$0xff]
    %v2366 = vld [vmem:[#allocation14 + $0x2b0] sm:$0xff]
    %v2367 = vld [vmem:[#allocation14 + $0x2b8] sm:$0xff]
    %v2368 = vld [vmem:[#allocation14 + $0x2c0] sm:$0xff]
    %v2369 = vld [vmem:[#allocation14 + $0x2c8] sm:$0xff]
    %v2370 = vld [vmem:[#allocation14 + $0x2d0] sm:$0xff]
    %v2371 = vld [vmem:[#allocation14 + $0x2d8] sm:$0xff]
    %v2372 = vld [vmem:[#allocation14 + $0x2e0] sm:$0xff]
    %v2373 = vld [vmem:[#allocation14 + $0x2e8] sm:$0xff]
    %v2374 = vld [vmem:[#allocation14 + $0x2f0] sm:$0xff]
    %v2375 = vld [vmem:[#allocation14 + $0x2f8] sm:$0xff]
    %v2376 = vld [vmem:[#allocation14 + $0x300] sm:$0xff]
    %v2377 = vld [vmem:[#allocation14 + $0x308] sm:$0xff]
    %v2378 = vld [vmem:[#allocation14 + $0x310] sm:$0xff]
    %v2379 = vld [vmem:[#allocation14 + $0x318] sm:$0xff]
    %v2380 = vld [vmem:[#allocation14 + $0x320] sm:$0xff]
    %v2381 = vld [vmem:[#allocation14 + $0x328] sm:$0xff]
    %v2382 = vld [vmem:[#allocation14 + $0x330] sm:$0xff]
    %v2383 = vld [vmem:[#allocation14 + $0x338] sm:$0xff]
    %v2384 = vld [vmem:[#allocation14 + $0x340] sm:$0xff]
    %v2385 = vld [vmem:[#allocation14 + $0x348] sm:$0xff]
    %v2386 = vld [vmem:[#allocation14 + $0x350] sm:$0xff]
    %v2387 = vld [vmem:[#allocation14 + $0x358] sm:$0xff]
    %v2388 = vld [vmem:[#allocation14 + $0x360] sm:$0xff]
    %v2389 = vld [vmem:[#allocation14 + $0x368] sm:$0xff]
    %v2390 = vld [vmem:[#allocation14 + $0x370] sm:$0xff]
    %v2391 = vld [vmem:[#allocation14 + $0x378] sm:$0xff]
    %v2392 = vld [vmem:[#allocation14 + $0x380] sm:$0xff]
    %v2393 = vld [vmem:[#allocation14 + $0x388] sm:$0xff]
    %v2394 = vld [vmem:[#allocation14 + $0x390] sm:$0xff]
    %v2395 = vld [vmem:[#allocation14 + $0x398] sm:$0xff]
    %v2396 = vld [vmem:[#allocation14 + $0x3a0] sm:$0xff]
    %v2397 = vld [vmem:[#allocation14 + $0x3a8] sm:$0xff]
    %v2398 = vld [vmem:[#allocation14 + $0x3b0] sm:$0xff]
    %v2399 = vld [vmem:[#allocation14 + $0x3b8] sm:$0xff]
    %v2400 = vld [vmem:[#allocation14 + $0x3c0] sm:$0xff]
    %v2401 = vld [vmem:[#allocation14 + $0x3c8] sm:$0xff]
    %v2402 = vld [vmem:[#allocation14 + $0x3d0] sm:$0xff]
    %v2403 = vld [vmem:[#allocation14 + $0x3d8] sm:$0xff]
    %v2404 = vld [vmem:[#allocation14 + $0x3e0] sm:$0xff]
    %v2405 = vld [vmem:[#allocation14 + $0x3e8] sm:$0xff]
    %v2406 = vld [vmem:[#allocation14 + $0x3f0] sm:$0xff]
    %v2407 = vld [vmem:[#allocation14 + $0x3f8] sm:$0xff]
    %v2408 = vld [vmem:[#allocation14 + $0x400] sm:$0xff]
    %v2409 = vld [vmem:[#allocation14 + $0x408] sm:$0xff]
    %v2410 = vld [vmem:[#allocation14 + $0x410] sm:$0xff]
    %v2411 = vld [vmem:[#allocation14 + $0x418] sm:$0xff]
    %v2412 = vld [vmem:[#allocation14 + $0x420] sm:$0xff]
    %v2413 = vld [vmem:[#allocation14 + $0x428] sm:$0xff]
    %v2414 = vld [vmem:[#allocation14 + $0x430] sm:$0xff]
    %v2415 = vld [vmem:[#allocation14 + $0x438] sm:$0xff]
    %v2416 = vld [vmem:[#allocation14 + $0x440] sm:$0xff]
    %v2417 = vld [vmem:[#allocation14 + $0x448] sm:$0xff]
    %v2418 = vld [vmem:[#allocation14 + $0x450] sm:$0xff]
    %v2419 = vld [vmem:[#allocation14 + $0x458] sm:$0xff]
    %v2420 = vld [vmem:[#allocation14 + $0x460] sm:$0xff]
    %v2421 = vld [vmem:[#allocation14 + $0x468] sm:$0xff]
    %v2422 = vld [vmem:[#allocation14 + $0x470] sm:$0xff]
    %v2423 = vld [vmem:[#allocation14 + $0x478] sm:$0xff]
    %v2424 = vld [vmem:[#allocation14 + $0x480] sm:$0xff]
    %v2425 = vld [vmem:[#allocation14 + $0x488] sm:$0xff]
    %v2426 = vld [vmem:[#allocation14 + $0x490] sm:$0xff]
    %v2427 = vld [vmem:[#allocation14 + $0x498] sm:$0xff]
    %v2428 = vld [vmem:[#allocation14 + $0x4a0] sm:$0xff]
    %v2429 = vld [vmem:[#allocation14 + $0x4a8] sm:$0xff]
    %v2430 = vld [vmem:[#allocation14 + $0x4b0] sm:$0xff]
    %v2431 = vld [vmem:[#allocation14 + $0x4b8] sm:$0xff]
    %v2432 = vld [vmem:[#allocation14 + $0x4c0] sm:$0xff]
    %v2433 = vld [vmem:[#allocation14 + $0x4c8] sm:$0xff]
    %v2434 = vld [vmem:[#allocation14 + $0x4d0] sm:$0xff]
    %v2435 = vld [vmem:[#allocation14 + $0x4d8] sm:$0xff]
    %v2436 = vld [vmem:[#allocation14 + $0x4e0] sm:$0xff]
    %v2437 = vld [vmem:[#allocation14 + $0x4e8] sm:$0xff]
    %v2438 = vld [vmem:[#allocation14 + $0x4f0] sm:$0xff]
    %v2439 = vld [vmem:[#allocation14 + $0x4f8] sm:$0xff]
    %v2440 = vld [vmem:[#allocation14 + $0x500] sm:$0xff]
    %v2441 = vld [vmem:[#allocation14 + $0x508] sm:$0xff]
    %v2442 = vld [vmem:[#allocation14 + $0x510] sm:$0xff]
    %v2443 = vld [vmem:[#allocation14 + $0x518] sm:$0xff]
    %v2444 = vld [vmem:[#allocation14 + $0x520] sm:$0xff]
    %v2445 = vld [vmem:[#allocation14 + $0x528] sm:$0xff]
    %v2446 = vld [vmem:[#allocation14 + $0x530] sm:$0xff]
    %v2447 = vld [vmem:[#allocation14 + $0x538] sm:$0xff]
    %v2448 = vld [vmem:[#allocation14 + $0x540] sm:$0xff]
    %v2449 = vld [vmem:[#allocation14 + $0x548] sm:$0xff]
    %v2450 = vld [vmem:[#allocation14 + $0x550] sm:$0xff]
    %v2451 = vld [vmem:[#allocation14 + $0x558] sm:$0xff]
    %v2452 = vld [vmem:[#allocation14 + $0x560] sm:$0xff]
    %v2453 = vld [vmem:[#allocation14 + $0x568] sm:$0xff]
    %v2454 = vld [vmem:[#allocation14 + $0x570] sm:$0xff]
    %v2455 = vld [vmem:[#allocation14 + $0x578] sm:$0xff]
    %v2456 = vld [vmem:[#allocation14 + $0x580] sm:$0xff]
    %v2457 = vld [vmem:[#allocation14 + $0x588] sm:$0xff]
    %v2458 = vld [vmem:[#allocation14 + $0x590] sm:$0xff]
    %v2459 = vld [vmem:[#allocation14 + $0x598] sm:$0xff]
    %v2460 = vld [vmem:[#allocation14 + $0x5a0] sm:$0xff]
    %v2461 = vld [vmem:[#allocation14 + $0x5a8] sm:$0xff]
    %v2462 = vld [vmem:[#allocation14 + $0x5b0] sm:$0xff]
    %v2463 = vld [vmem:[#allocation14 + $0x5b8] sm:$0xff]
    %v2464 = vld [vmem:[#allocation14 + $0x5c0] sm:$0xff]
    %v2465 = vld [vmem:[#allocation14 + $0x5c8] sm:$0xff]
    %v2466 = vld [vmem:[#allocation14 + $0x5d0] sm:$0xff]
    %v2467 = vld [vmem:[#allocation14 + $0x5d8] sm:$0xff]
    %v2468 = vld [vmem:[#allocation14 + $0x5e0] sm:$0xff]
    %v2469 = vld [vmem:[#allocation14 + $0x5e8] sm:$0xff]
    %v2470 = vld [vmem:[#allocation14 + $0x5f0] sm:$0xff]
    %v2471 = vld [vmem:[#allocation14 + $0x5f8] sm:$0xff]
    %v2472 = vld [vmem:[#allocation14 + $0x600] sm:$0xff]
    %v2473 = vld [vmem:[#allocation14 + $0x608] sm:$0xff]
    %v2474 = vld [vmem:[#allocation14 + $0x610] sm:$0xff]
    %v2475 = vld [vmem:[#allocation14 + $0x618] sm:$0xff]
    %v2476 = vld [vmem:[#allocation14 + $0x620] sm:$0xff]
    %v2477 = vld [vmem:[#allocation14 + $0x628] sm:$0xff]
    %v2478 = vld [vmem:[#allocation14 + $0x630] sm:$0xff]
    %v2479 = vld [vmem:[#allocation14 + $0x638] sm:$0xff]
    %v2480 = vld [vmem:[#allocation14 + $0x640] sm:$0xff]
    %v2481 = vld [vmem:[#allocation14 + $0x648] sm:$0xff]
    %v2482 = vld [vmem:[#allocation14 + $0x650] sm:$0xff]
    %v2483 = vld [vmem:[#allocation14 + $0x658] sm:$0xff]
    %v2484 = vld [vmem:[#allocation14 + $0x660] sm:$0xff]
    %v2485 = vld [vmem:[#allocation14 + $0x668] sm:$0xff]
    %v2486 = vld [vmem:[#allocation14 + $0x670] sm:$0xff]
    %v2487 = vld [vmem:[#allocation14 + $0x678] sm:$0xff]
    %v2488 = vld [vmem:[#allocation14 + $0x680] sm:$0xff]
    %v2489 = vld [vmem:[#allocation14 + $0x688] sm:$0xff]
    %v2490 = vld [vmem:[#allocation14 + $0x690] sm:$0xff]
    %v2491 = vld [vmem:[#allocation14 + $0x698] sm:$0xff]
    %v2492 = vld [vmem:[#allocation14 + $0x6a0] sm:$0xff]
    %v2493 = vld [vmem:[#allocation14 + $0x6a8] sm:$0xff]
    %v2494 = vld [vmem:[#allocation14 + $0x6b0] sm:$0xff]
    %v2495 = vld [vmem:[#allocation14 + $0x6b8] sm:$0xff]
    %v2496 = vld [vmem:[#allocation14 + $0x6c0] sm:$0xff]
    %v2497 = vld [vmem:[#allocation14 + $0x6c8] sm:$0xff]
    %v2498 = vld [vmem:[#allocation14 + $0x6d0] sm:$0xff]
    %v2499 = vld [vmem:[#allocation14 + $0x6d8] sm:$0xff]
    %v2500 = vld [vmem:[#allocation14 + $0x6e0] sm:$0xff]
    %v2501 = vld [vmem:[#allocation14 + $0x6e8] sm:$0xff]
    %v2502 = vld [vmem:[#allocation14 + $0x6f0] sm:$0xff]
    %v2503 = vld [vmem:[#allocation14 + $0x6f8] sm:$0xff]
    %v2504 = vld [vmem:[#allocation14 + $0x700] sm:$0xff]
    %v2505 = vld [vmem:[#allocation14 + $0x708] sm:$0xff]
    %v2506 = vld [vmem:[#allocation14 + $0x710] sm:$0xff]
    %v2507 = vld [vmem:[#allocation14 + $0x718] sm:$0xff]
    %v2508 = vld [vmem:[#allocation14 + $0x720] sm:$0xff]
    %v2509 = vld [vmem:[#allocation14 + $0x728] sm:$0xff]
    %v2510 = vld [vmem:[#allocation14 + $0x730] sm:$0xff]
    %v2511 = vld [vmem:[#allocation14 + $0x738] sm:$0xff]
    %v2512 = vld [vmem:[#allocation14 + $0x740] sm:$0xff]
    %v2513 = vld [vmem:[#allocation14 + $0x748] sm:$0xff]
    %v2514 = vld [vmem:[#allocation14 + $0x750] sm:$0xff]
    %v2515 = vld [vmem:[#allocation14 + $0x758] sm:$0xff]
    %v2516 = vld [vmem:[#allocation14 + $0x760] sm:$0xff]
    %v2517 = vld [vmem:[#allocation14 + $0x768] sm:$0xff]
    %v2518 = vld [vmem:[#allocation14 + $0x770] sm:$0xff]
    %v2519 = vld [vmem:[#allocation14 + $0x778] sm:$0xff]
    %v2520 = vld [vmem:[#allocation14 + $0x780] sm:$0xff]
    %v2521 = vld [vmem:[#allocation14 + $0x788] sm:$0xff]
    %v2522 = vld [vmem:[#allocation14 + $0x790] sm:$0xff]
    %v2523 = vld [vmem:[#allocation14 + $0x798] sm:$0xff]
    %v2524 = vld [vmem:[#allocation14 + $0x7a0] sm:$0xff]
    %v2525 = vld [vmem:[#allocation14 + $0x7a8] sm:$0xff]
    %v2526 = vld [vmem:[#allocation14 + $0x7b0] sm:$0xff]
    %v2527 = vld [vmem:[#allocation14 + $0x7b8] sm:$0xff]
    %v2528 = vld [vmem:[#allocation14 + $0x7c0] sm:$0xff]
    %v2529 = vld [vmem:[#allocation14 + $0x7c8] sm:$0xff]
    %v2530 = vld [vmem:[#allocation14 + $0x7d0] sm:$0xff]
    %v2531 = vld [vmem:[#allocation14 + $0x7d8] sm:$0xff]
    %v2532 = vld [vmem:[#allocation14 + $0x7e0] sm:$0xff]
    %v2533 = vld [vmem:[#allocation14 + $0x7e8] sm:$0xff]
    %v2534 = vld [vmem:[#allocation14 + $0x7f0] sm:$0xff]
    %v2535 = vld [vmem:[#allocation14 + $0x7f8] sm:$0xff]
    %v2536 = vld [vmem:[#allocation16] sm:$0xf]
    %v2538 = vlaneseq
    %v2539 = vshrl.u32 %v2538, 7
    %v2540 = vsub.s32 0, %v2539
    %v2541 = vrot.slane %v2536, %v2540
    %v2542 = vlaneseq
    %v2543 = vshrl.u32 %v2542, 7
    %v2544 = vsub.s32 1, %v2543
    %v2545 = vrot.slane %v2536, %v2544
    %v2546 = vlaneseq
    %v2547 = vshrl.u32 %v2546, 7
    %v2548 = vsub.s32 2, %v2547
    %v2549 = vrot.slane %v2536, %v2548
    %v2550 = vlaneseq
    %v2551 = vshrl.u32 %v2550, 7
    %v2552 = vsub.s32 3, %v2551
    %v2553 = vrot.slane %v2536, %v2552
    %2558 = vmatprep.subr.mxu0 %v2281
    %2559 = vmatpush1.msra.mxu0 %v2280
    %2560 = vmatprep.subr.mxu0 %v2285
    %2561 = vmatpush1.msra.mxu0 %v2284
    %2562 = vmatprep.subr.mxu0 %v2289
    %2563 = vmatpush1.msra.mxu0 %v2288
    %2564 = vmatprep.subr.mxu0 %v2293
    %2565 = vmatpush1.msra.mxu0 %v2292
    %2566 = vmatprep.subr.mxu0 %v2297
    %2567 = vmatpush1.msra.mxu0 %v2296
    %2568 = vmatprep.subr.mxu0 %v2301
    %2569 = vmatpush1.msra.mxu0 %v2300
    %2570 = vmatprep.subr.mxu0 %v2305
    %2571 = vmatpush1.msra.mxu0 %v2304
    %2572 = vmatprep.subr.mxu0 %v2309
    %2573 = vmatpush1.msra.mxu0 %v2308
    %2574 = vmatprep.subr.mxu0 %v2313
    %2575 = vmatpush1.msra.mxu0 %v2312
    %2576 = vmatprep.subr.mxu0 %v2317
    %2577 = vmatpush1.msra.mxu0 %v2316
    %2578 = vmatprep.subr.mxu0 %v2321
    %2579 = vmatpush1.msra.mxu0 %v2320
    %2580 = vmatprep.subr.mxu0 %v2325
    %2581 = vmatpush1.msra.mxu0 %v2324
    %2582 = vmatprep.subr.mxu0 %v2329
    %2583 = vmatpush1.msra.mxu0 %v2328
    %2584 = vmatprep.subr.mxu0 %v2333
    %2585 = vmatpush1.msra.mxu0 %v2332
    %2586 = vmatprep.subr.mxu0 %v2337
    %2587 = vmatpush1.msra.mxu0 %v2336
    %2588 = vmatprep.subr.mxu0 %v2341
    %2589 = vmatpush1.msra.mxu0 %v2340
    %2590 = vmatprep.subr.mxu0 %v2345
    %2591 = vmatpush1.msra.mxu0 %v2344
    %2592 = vmatprep.subr.mxu0 %v2349
    %2593 = vmatpush1.msra.mxu0 %v2348
    %2594 = vmatprep.subr.mxu0 %v2353
    %2595 = vmatpush1.msra.mxu0 %v2352
    %2596 = vmatprep.subr.mxu0 %v2357
    %2597 = vmatpush1.msra.mxu0 %v2356
    %2598 = vmatprep.subr.mxu0 %v2361
    %2599 = vmatpush1.msra.mxu0 %v2360
    %2600 = vmatprep.subr.mxu0 %v2365
    %2601 = vmatpush1.msra.mxu0 %v2364
    %2602 = vmatprep.subr.mxu0 %v2369
    %2603 = vmatpush1.msra.mxu0 %v2368
    %2604 = vmatprep.subr.mxu0 %v2373
    %2605 = vmatpush1.msra.mxu0 %v2372
    %2606 = vmatprep.subr.mxu0 %v2377
    %2607 = vmatpush1.msra.mxu0 %v2376
    %2608 = vmatprep.subr.mxu0 %v2381
    %2609 = vmatpush1.msra.mxu0 %v2380
    %2610 = vmatprep.subr.mxu0 %v2385
    %2611 = vmatpush1.msra.mxu0 %v2384
    %2612 = vmatprep.subr.mxu0 %v2389
    %2613 = vmatpush1.msra.mxu0 %v2388
    %2614 = vmatprep.subr.mxu0 %v2393
    %2615 = vmatpush1.msra.mxu0 %v2392
    %2616 = vmatprep.subr.mxu0 %v2397
    %2617 = vmatpush1.msra.mxu0 %v2396
    %2618 = vmatprep.subr.mxu0 %v2401
    %2619 = vmatpush1.msra.mxu0 %v2400
    %2620 = vmatprep.subr.mxu0 %v2405
    %2621 = vmatpush1.msra.mxu0 %v2404
    %2622 = vmatprep.mubr.f32.mxu0 %v2277
    %2623 = vmatmul.mubr.f32.gmra.mrb[0].mxu0 %v2276
    %v2624 = vpop.f32.mrb[0].mxu0
    %v2625 = vadd.f32 %v2541, %v2624
    %v2626 = vpop.f32.mrb[0].mxu0
    %v2627 = vadd.f32 %v2545, %v2626
    %2628 = vdwg.mxu0
    %2629 = vmatprep.subr.mxu0 %v2409
    %2630 = vmatpush1.msra.mxu0 %v2408
    %2631 = vmatprep.subr.mxu0 %v2413
    %2632 = vmatpush1.msra.mxu0 %v2412
    %2633 = vmatprep.subr.mxu0 %v2417
    %2634 = vmatpush1.msra.mxu0 %v2416
    %2635 = vmatprep.subr.mxu0 %v2421
    %2636 = vmatpush1.msra.mxu0 %v2420
    %2637 = vmatprep.subr.mxu0 %v2425
    %2638 = vmatpush1.msra.mxu0 %v2424
    %2639 = vmatprep.subr.mxu0 %v2429
    %2640 = vmatpush1.msra.mxu0 %v2428
    %2641 = vmatprep.subr.mxu0 %v2433
    %2642 = vmatpush1.msra.mxu0 %v2432
    %2643 = vmatprep.subr.mxu0 %v2437
    %2644 = vmatpush1.msra.mxu0 %v2436
    %2645 = vmatprep.subr.mxu0 %v2441
    %2646 = vmatpush1.msra.mxu0 %v2440
    %2647 = vmatprep.subr.mxu0 %v2445
    %2648 = vmatpush1.msra.mxu0 %v2444
    %2649 = vmatprep.subr.mxu0 %v2449
    %2650 = vmatpush1.msra.mxu0 %v2448
    %2651 = vmatprep.subr.mxu0 %v2453
    %2652 = vmatpush1.msra.mxu0 %v2452
    %2653 = vmatprep.subr.mxu0 %v2457
    %2654 = vmatpush1.msra.mxu0 %v2456
    %2655 = vmatprep.subr.mxu0 %v2461
    %2656 = vmatpush1.msra.mxu0 %v2460
    %2657 = vmatprep.subr.mxu0 %v2465
    %2658 = vmatpush1.msra.mxu0 %v2464
    %2659 = vmatprep.subr.mxu0 %v2469
    %2660 = vmatpush1.msra.mxu0 %v2468
    %2661 = vmatprep.subr.mxu0 %v2473
    %2662 = vmatpush1.msra.mxu0 %v2472
    %2663 = vmatprep.subr.mxu0 %v2477
    %2664 = vmatpush1.msra.mxu0 %v2476
    %2665 = vmatprep.subr.mxu0 %v2481
    %2666 = vmatpush1.msra.mxu0 %v2480
    %2667 = vmatprep.subr.mxu0 %v2485
    %2668 = vmatpush1.msra.mxu0 %v2484
    %2669 = vmatprep.subr.mxu0 %v2489
    %2670 = vmatpush1.msra.mxu0 %v2488
    %2671 = vmatprep.subr.mxu0 %v2493
    %2672 = vmatpush1.msra.mxu0 %v2492
    %2673 = vmatprep.subr.mxu0 %v2497
    %2674 = vmatpush1.msra.mxu0 %v2496
    %2675 = vmatprep.subr.mxu0 %v2501
    %2676 = vmatpush1.msra.mxu0 %v2500
    %2677 = vmatprep.subr.mxu0 %v2505
    %2678 = vmatpush1.msra.mxu0 %v2504
    %2679 = vmatprep.subr.mxu0 %v2509
    %2680 = vmatpush1.msra.mxu0 %v2508
    %2681 = vmatprep.subr.mxu0 %v2513
    %2682 = vmatpush1.msra.mxu0 %v2512
    %2683 = vmatprep.subr.mxu0 %v2517
    %2684 = vmatpush1.msra.mxu0 %v2516
    %2685 = vmatprep.subr.mxu0 %v2521
    %2686 = vmatpush1.msra.mxu0 %v2520
    %2687 = vmatprep.subr.mxu0 %v2525
    %2688 = vmatpush1.msra.mxu0 %v2524
    %2689 = vmatprep.subr.mxu0 %v2529
    %2690 = vmatpush1.msra.mxu0 %v2528
    %2691 = vmatprep.subr.mxu0 %v2533
    %2692 = vmatpush1.msra.mxu0 %v2532
    %2693 = vmatprep.mubr.f32.mxu0 %v2279
    %2694 = vmatmul.mubr.f32.gmra.mrb[0].mxu0 %v2278
    %v2695 = vpop.f32.mrb[0].mxu0
    %v2696 = vadd.f32 %v2625, %v2695
    %v2697 = vpop.f32.mrb[0].mxu0
    %v2698 = vadd.f32 %v2627, %v2697
    %2699 = vdwg.mxu0
    %2700 = vmatprep.subr.mxu0 %v2283
    %2701 = vmatpush1.msra.mxu0 %v2282
    %2702 = vmatprep.subr.mxu0 %v2287
    %2703 = vmatpush1.msra.mxu0 %v2286
    %2704 = vmatprep.subr.mxu0 %v2291
    %2705 = vmatpush1.msra.mxu0 %v2290
    %2706 = vmatprep.subr.mxu0 %v2295
    %2707 = vmatpush1.msra.mxu0 %v2294
    %2708 = vmatprep.subr.mxu0 %v2299
    %2709 = vmatpush1.msra.mxu0 %v2298
    %2710 = vmatprep.subr.mxu0 %v2303
    %2711 = vmatpush1.msra.mxu0 %v2302
    %2712 = vmatprep.subr.mxu0 %v2307
    %2713 = vmatpush1.msra.mxu0 %v2306
    %2714 = vmatprep.subr.mxu0 %v2311
    %2715 = vmatpush1.msra.mxu0 %v2310
    %2716 = vmatprep.subr.mxu0 %v2315
    %2717 = vmatpush1.msra.mxu0 %v2314
    %2718 = vmatprep.subr.mxu0 %v2319
    %2719 = vmatpush1.msra.mxu0 %v2318
    %2720 = vmatprep.subr.mxu0 %v2323
    %2721 = vmatpush1.msra.mxu0 %v2322
    %2722 = vmatprep.subr.mxu0 %v2327
    %2723 = vmatpush1.msra.mxu0 %v2326
    %2724 = vmatprep.subr.mxu0 %v2331
    %2725 = vmatpush1.msra.mxu0 %v2330
    %2726 = vmatprep.subr.mxu0 %v2335
    %2727 = vmatpush1.msra.mxu0 %v2334
    %2728 = vmatprep.subr.mxu0 %v2339
    %2729 = vmatpush1.msra.mxu0 %v2338
    %2730 = vmatprep.subr.mxu0 %v2343
    %2731 = vmatpush1.msra.mxu0 %v2342
    %2732 = vmatprep.subr.mxu0 %v2347
    %2733 = vmatpush1.msra.mxu0 %v2346
    %2734 = vmatprep.subr.mxu0 %v2351
    %2735 = vmatpush1.msra.mxu0 %v2350
    %2736 = vmatprep.subr.mxu0 %v2355
    %2737 = vmatpush1.msra.mxu0 %v2354
    %2738 = vmatprep.subr.mxu0 %v2359
    %2739 = vmatpush1.msra.mxu0 %v2358
    %2740 = vmatprep.subr.mxu0 %v2363
    %2741 = vmatpush1.msra.mxu0 %v2362
    %2742 = vmatprep.subr.mxu0 %v2367
    %2743 = vmatpush1.msra.mxu0 %v2366
    %2744 = vmatprep.subr.mxu0 %v2371
    %2745 = vmatpush1.msra.mxu0 %v2370
    %2746 = vmatprep.subr.mxu0 %v2375
    %2747 = vmatpush1.msra.mxu0 %v2374
    %2748 = vmatprep.subr.mxu0 %v2379
    %2749 = vmatpush1.msra.mxu0 %v2378
    %2750 = vmatprep.subr.mxu0 %v2383
    %2751 = vmatpush1.msra.mxu0 %v2382
    %2752 = vmatprep.subr.mxu0 %v2387
    %2753 = vmatpush1.msra.mxu0 %v2386
    %2754 = vmatprep.subr.mxu0 %v2391
    %2755 = vmatpush1.msra.mxu0 %v2390
    %2756 = vmatprep.subr.mxu0 %v2395
    %2757 = vmatpush1.msra.mxu0 %v2394
    %2758 = vmatprep.subr.mxu0 %v2399
    %2759 = vmatpush1.msra.mxu0 %v2398
    %2760 = vmatprep.subr.mxu0 %v2403
    %2761 = vmatpush1.msra.mxu0 %v2402
    %2762 = vmatprep.subr.mxu0 %v2407
    %2763 = vmatpush1.msra.mxu0 %v2406
    %2764 = vmatprep.mubr.f32.mxu0 %v2277
    %2765 = vmatmul.mubr.f32.gmra.mrb[0].mxu0 %v2276
    %v2766 = vpop.f32.mrb[0].mxu0
    %v2767 = vadd.f32 %v2549, %v2766
    %v2768 = vpop.f32.mrb[0].mxu0
    %v2769 = vadd.f32 %v2553, %v2768
    %2770 = vdwg.mxu0
    %2771 = vmatprep.subr.mxu0 %v2411
    %2772 = vmatpush1.msra.mxu0 %v2410
    %2773 = vmatprep.subr.mxu0 %v2415
    %2774 = vmatpush1.msra.mxu0 %v2414
    %2775 = vmatprep.subr.mxu0 %v2419
    %2776 = vmatpush1.msra.mxu0 %v2418
    %2777 = vmatprep.subr.mxu0 %v2423
    %2778 = vmatpush1.msra.mxu0 %v2422
    %2779 = vmatprep.subr.mxu0 %v2427
    %2780 = vmatpush1.msra.mxu0 %v2426
    %2781 = vmatprep.subr.mxu0 %v2431
    %2782 = vmatpush1.msra.mxu0 %v2430
    %2783 = vmatprep.subr.mxu0 %v2435
    %2784 = vmatpush1.msra.mxu0 %v2434
    %2785 = vmatprep.subr.mxu0 %v2439
    %2786 = vmatpush1.msra.mxu0 %v2438
    %2787 = vmatprep.subr.mxu0 %v2443
    %2788 = vmatpush1.msra.mxu0 %v2442
    %2789 = vmatprep.subr.mxu0 %v2447
    %2790 = vmatpush1.msra.mxu0 %v2446
    %2791 = vmatprep.subr.mxu0 %v2451
    %2792 = vmatpush1.msra.mxu0 %v2450
    %2793 = vmatprep.subr.mxu0 %v2455
    %2794 = vmatpush1.msra.mxu0 %v2454
    %2795 = vmatprep.subr.mxu0 %v2459
    %2796 = vmatpush1.msra.mxu0 %v2458
    %2797 = vmatprep.subr.mxu0 %v2463
    %2798 = vmatpush1.msra.mxu0 %v2462
    %2799 = vmatprep.subr.mxu0 %v2467
    %2800 = vmatpush1.msra.mxu0 %v2466
    %2801 = vmatprep.subr.mxu0 %v2471
    %2802 = vmatpush1.msra.mxu0 %v2470
    %2803 = vmatprep.subr.mxu0 %v2475
    %2804 = vmatpush1.msra.mxu0 %v2474
    %2805 = vmatprep.subr.mxu0 %v2479
    %2806 = vmatpush1.msra.mxu0 %v2478
    %2807 = vmatprep.subr.mxu0 %v2483
    %2808 = vmatpush1.msra.mxu0 %v2482
    %2809 = vmatprep.subr.mxu0 %v2487
    %2810 = vmatpush1.msra.mxu0 %v2486
    %2811 = vmatprep.subr.mxu0 %v2491
    %2812 = vmatpush1.msra.mxu0 %v2490
    %2813 = vmatprep.subr.mxu0 %v2495
    %2814 = vmatpush1.msra.mxu0 %v2494
    %2815 = vmatprep.subr.mxu0 %v2499
    %2816 = vmatpush1.msra.mxu0 %v2498
    %2817 = vmatprep.subr.mxu0 %v2503
    %2818 = vmatpush1.msra.mxu0 %v2502
    %2819 = vmatprep.subr.mxu0 %v2507
    %2820 = vmatpush1.msra.mxu0 %v2506
    %2821 = vmatprep.subr.mxu0 %v2511
    %2822 = vmatpush1.msra.mxu0 %v2510
    %2823 = vmatprep.subr.mxu0 %v2515
    %2824 = vmatpush1.msra.mxu0 %v2514
    %2825 = vmatprep.subr.mxu0 %v2519
    %2826 = vmatpush1.msra.mxu0 %v2518
    %2827 = vmatprep.subr.mxu0 %v2523
    %2828 = vmatpush1.msra.mxu0 %v2522
    %2829 = vmatprep.subr.mxu0 %v2527
    %2830 = vmatpush1.msra.mxu0 %v2526
    %2831 = vmatprep.subr.mxu0 %v2531
    %2832 = vmatpush1.msra.mxu0 %v2530
    %2833 = vmatprep.subr.mxu0 %v2535
    %2834 = vmatpush1.msra.mxu0 %v2534
    %2835 = vmatprep.mubr.f32.mxu0 %v2279
    %2836 = vmatmul.mubr.f32.gmra.mrb[0].mxu0 %v2278
    %v2837 = vpop.f32.mrb[0].mxu0
    %v2838 = vadd.f32 %v2767, %v2837
    %v2839 = vpop.f32.mrb[0].mxu0
    %v2840 = vadd.f32 %v2769, %v2839
    %2841 = vdwg.mxu0
    %v2842 = vmax.f32 %v2696, 0.0
    %v2843 = vmax.f32 %v2698, 0.0
    %v2844 = vmax.f32 %v2838, 0.0
    %v2845 = vmax.f32 %v2840, 0.0
    %v2846 = vld [vmem:[#allocation17] sm:$0xff]
    %v2847 = vld [vmem:[#allocation17 + $0x8] sm:$0xff]
    %v2848 = vld [vmem:[#allocation17 + $0x40] sm:$0xff]
    %v2849 = vld [vmem:[#allocation17 + $0x48] sm:$0xff]
    %v2850 = vld [vmem:[#allocation17 + $0x80] sm:$0xff]
    %v2851 = vld [vmem:[#allocation17 + $0x88] sm:$0xff]
    %v2852 = vld [vmem:[#allocation17 + $0xc0] sm:$0xff]
    %v2853 = vld [vmem:[#allocation17 + $0xc8] sm:$0xff]
    %v2854 = vld [vmem:[#allocation17 + $0x100] sm:$0xff]
    %v2855 = vld [vmem:[#allocation17 + $0x108] sm:$0xff]
    %v2856 = vld [vmem:[#allocation17 + $0x140] sm:$0xff]
    %v2857 = vld [vmem:[#allocation17 + $0x148] sm:$0xff]
    %v2858 = vld [vmem:[#allocation17 + $0x180] sm:$0xff]
    %v2859 = vld [vmem:[#allocation17 + $0x188] sm:$0xff]
    %v2860 = vld [vmem:[#allocation17 + $0x1c0] sm:$0xff]
    %v2861 = vld [vmem:[#allocation17 + $0x1c8] sm:$0xff]
    %v2862 = vld [vmem:[#allocation17 + $0x200] sm:$0xff]
    %v2863 = vld [vmem:[#allocation17 + $0x208] sm:$0xff]
    %v2864 = vld [vmem:[#allocation17 + $0x240] sm:$0xff]
    %v2865 = vld [vmem:[#allocation17 + $0x248] sm:$0xff]
    %v2866 = vld [vmem:[#allocation17 + $0x280] sm:$0xff]
    %v2867 = vld [vmem:[#allocation17 + $0x288] sm:$0xff]
    %v2868 = vld [vmem:[#allocation17 + $0x2c0] sm:$0xff]
    %v2869 = vld [vmem:[#allocation17 + $0x2c8] sm:$0xff]
    %v2870 = vld [vmem:[#allocation17 + $0x300] sm:$0xff]
    %v2871 = vld [vmem:[#allocation17 + $0x308] sm:$0xff]
    %v2872 = vld [vmem:[#allocation17 + $0x340] sm:$0xff]
    %v2873 = vld [vmem:[#allocation17 + $0x348] sm:$0xff]
    %v2874 = vld [vmem:[#allocation17 + $0x380] sm:$0xff]
    %v2875 = vld [vmem:[#allocation17 + $0x388] sm:$0xff]
    %v2876 = vld [vmem:[#allocation17 + $0x3c0] sm:$0xff]
    %v2877 = vld [vmem:[#allocation17 + $0x3c8] sm:$0xff]
    %v2878 = vld [vmem:[#allocation17 + $0x400] sm:$0xff]
    %v2879 = vld [vmem:[#allocation17 + $0x408] sm:$0xff]
    %v2880 = vld [vmem:[#allocation17 + $0x440] sm:$0xff]
    %v2881 = vld [vmem:[#allocation17 + $0x448] sm:$0xff]
    %v2882 = vld [vmem:[#allocation17 + $0x480] sm:$0xff]
    %v2883 = vld [vmem:[#allocation17 + $0x488] sm:$0xff]
    %v2884 = vld [vmem:[#allocation17 + $0x4c0] sm:$0xff]
    %v2885 = vld [vmem:[#allocation17 + $0x4c8] sm:$0xff]
    %v2886 = vld [vmem:[#allocation17 + $0x500] sm:$0xff]
    %v2887 = vld [vmem:[#allocation17 + $0x508] sm:$0xff]
    %v2888 = vld [vmem:[#allocation17 + $0x540] sm:$0xff]
    %v2889 = vld [vmem:[#allocation17 + $0x548] sm:$0xff]
    %v2890 = vld [vmem:[#allocation17 + $0x580] sm:$0xff]
    %v2891 = vld [vmem:[#allocation17 + $0x588] sm:$0xff]
    %v2892 = vld [vmem:[#allocation17 + $0x5c0] sm:$0xff]
    %v2893 = vld [vmem:[#allocation17 + $0x5c8] sm:$0xff]
    %v2894 = vld [vmem:[#allocation17 + $0x600] sm:$0xff]
    %v2895 = vld [vmem:[#allocation17 + $0x608] sm:$0xff]
    %v2896 = vld [vmem:[#allocation17 + $0x640] sm:$0xff]
    %v2897 = vld [vmem:[#allocation17 + $0x648] sm:$0xff]
    %v2898 = vld [vmem:[#allocation17 + $0x680] sm:$0xff]
    %v2899 = vld [vmem:[#allocation17 + $0x688] sm:$0xff]
    %v2900 = vld [vmem:[#allocation17 + $0x6c0] sm:$0xff]
    %v2901 = vld [vmem:[#allocation17 + $0x6c8] sm:$0xff]
    %v2902 = vld [vmem:[#allocation17 + $0x700] sm:$0xff]
    %v2903 = vld [vmem:[#allocation17 + $0x708] sm:$0xff]
    %v2904 = vld [vmem:[#allocation17 + $0x740] sm:$0xff]
    %v2905 = vld [vmem:[#allocation17 + $0x748] sm:$0xff]
    %v2906 = vld [vmem:[#allocation17 + $0x780] sm:$0xff]
    %v2907 = vld [vmem:[#allocation17 + $0x788] sm:$0xff]
    %v2908 = vld [vmem:[#allocation17 + $0x7c0] sm:$0xff]
    %v2909 = vld [vmem:[#allocation17 + $0x7c8] sm:$0xff]
    %v2910 = vld [vmem:[#allocation17 + $0x800] sm:$0xff]
    %v2911 = vld [vmem:[#allocation17 + $0x808] sm:$0xff]
    %v2912 = vld [vmem:[#allocation17 + $0x840] sm:$0xff]
    %v2913 = vld [vmem:[#allocation17 + $0x848] sm:$0xff]
    %v2914 = vld [vmem:[#allocation17 + $0x880] sm:$0xff]
    %v2915 = vld [vmem:[#allocation17 + $0x888] sm:$0xff]
    %v2916 = vld [vmem:[#allocation17 + $0x8c0] sm:$0xff]
    %v2917 = vld [vmem:[#allocation17 + $0x8c8] sm:$0xff]
    %v2918 = vld [vmem:[#allocation17 + $0x900] sm:$0xff]
    %v2919 = vld [vmem:[#allocation17 + $0x908] sm:$0xff]
    %v2920 = vld [vmem:[#allocation17 + $0x940] sm:$0xff]
    %v2921 = vld [vmem:[#allocation17 + $0x948] sm:$0xff]
    %v2922 = vld [vmem:[#allocation17 + $0x980] sm:$0xff]
    %v2923 = vld [vmem:[#allocation17 + $0x988] sm:$0xff]
    %v2924 = vld [vmem:[#allocation17 + $0x9c0] sm:$0xff]
    %v2925 = vld [vmem:[#allocation17 + $0x9c8] sm:$0xff]
    %v2926 = vld [vmem:[#allocation17 + $0xa00] sm:$0xff]
    %v2927 = vld [vmem:[#allocation17 + $0xa08] sm:$0xff]
    %v2928 = vld [vmem:[#allocation17 + $0xa40] sm:$0xff]
    %v2929 = vld [vmem:[#allocation17 + $0xa48] sm:$0xff]
    %v2930 = vld [vmem:[#allocation17 + $0xa80] sm:$0xff]
    %v2931 = vld [vmem:[#allocation17 + $0xa88] sm:$0xff]
    %v2932 = vld [vmem:[#allocation17 + $0xac0] sm:$0xff]
    %v2933 = vld [vmem:[#allocation17 + $0xac8] sm:$0xff]
    %v2934 = vld [vmem:[#allocation17 + $0xb00] sm:$0xff]
    %v2935 = vld [vmem:[#allocation17 + $0xb08] sm:$0xff]
    %v2936 = vld [vmem:[#allocation17 + $0xb40] sm:$0xff]
    %v2937 = vld [vmem:[#allocation17 + $0xb48] sm:$0xff]
    %v2938 = vld [vmem:[#allocation17 + $0xb80] sm:$0xff]
    %v2939 = vld [vmem:[#allocation17 + $0xb88] sm:$0xff]
    %v2940 = vld [vmem:[#allocation17 + $0xbc0] sm:$0xff]
    %v2941 = vld [vmem:[#allocation17 + $0xbc8] sm:$0xff]
    %v2942 = vld [vmem:[#allocation17 + $0xc00] sm:$0xff]
    %v2943 = vld [vmem:[#allocation17 + $0xc08] sm:$0xff]
    %v2944 = vld [vmem:[#allocation17 + $0xc40] sm:$0xff]
    %v2945 = vld [vmem:[#allocation17 + $0xc48] sm:$0xff]
    %v2946 = vld [vmem:[#allocation17 + $0xc80] sm:$0xff]
    %v2947 = vld [vmem:[#allocation17 + $0xc88] sm:$0xff]
    %v2948 = vld [vmem:[#allocation17 + $0xcc0] sm:$0xff]
    %v2949 = vld [vmem:[#allocation17 + $0xcc8] sm:$0xff]
    %v2950 = vld [vmem:[#allocation17 + $0xd00] sm:$0xff]
    %v2951 = vld [vmem:[#allocation17 + $0xd08] sm:$0xff]
    %v2952 = vld [vmem:[#allocation17 + $0xd40] sm:$0xff]
    %v2953 = vld [vmem:[#allocation17 + $0xd48] sm:$0xff]
    %v2954 = vld [vmem:[#allocation17 + $0xd80] sm:$0xff]
    %v2955 = vld [vmem:[#allocation17 + $0xd88] sm:$0xff]
    %v2956 = vld [vmem:[#allocation17 + $0xdc0] sm:$0xff]
    %v2957 = vld [vmem:[#allocation17 + $0xdc8] sm:$0xff]
    %v2958 = vld [vmem:[#allocation17 + $0xe00] sm:$0xff]
    %v2959 = vld [vmem:[#allocation17 + $0xe08] sm:$0xff]
    %v2960 = vld [vmem:[#allocation17 + $0xe40] sm:$0xff]
    %v2961 = vld [vmem:[#allocation17 + $0xe48] sm:$0xff]
    %v2962 = vld [vmem:[#allocation17 + $0xe80] sm:$0xff]
    %v2963 = vld [vmem:[#allocation17 + $0xe88] sm:$0xff]
    %v2964 = vld [vmem:[#allocation17 + $0xec0] sm:$0xff]
    %v2965 = vld [vmem:[#allocation17 + $0xec8] sm:$0xff]
    %v2966 = vld [vmem:[#allocation17 + $0xf00] sm:$0xff]
    %v2967 = vld [vmem:[#allocation17 + $0xf08] sm:$0xff]
    %v2968 = vld [vmem:[#allocation17 + $0xf40] sm:$0xff]
    %v2969 = vld [vmem:[#allocation17 + $0xf48] sm:$0xff]
    %v2970 = vld [vmem:[#allocation17 + $0xf80] sm:$0xff]
    %v2971 = vld [vmem:[#allocation17 + $0xf88] sm:$0xff]
    %v2972 = vld [vmem:[#allocation17 + $0xfc0] sm:$0xff]
    %v2973 = vld [vmem:[#allocation17 + $0xfc8] sm:$0xff]
    %v2974 = vld [vmem:[#allocation19] sm:$0x3]
    %v2976 = vlaneseq
    %v2977 = vshrl.u32 %v2976, 7
    %v2978 = vsub.s32 0, %v2977
    %v2979 = vrot.slane %v2974, %v2978
    %v2980 = vlaneseq
    %v2981 = vshrl.u32 %v2980, 7
    %v2982 = vsub.s32 1, %v2981
    %v2983 = vrot.slane %v2974, %v2982
    %2986 = vmatprep.subr.mxu0 %v2847
    %2987 = vmatpush1.msra.mxu0 %v2846
    %2988 = vmatprep.subr.mxu0 %v2849
    %2989 = vmatpush1.msra.mxu0 %v2848
    %2990 = vmatprep.subr.mxu0 %v2851
    %2991 = vmatpush1.msra.mxu0 %v2850
    %2992 = vmatprep.subr.mxu0 %v2853
    %2993 = vmatpush1.msra.mxu0 %v2852
    %2994 = vmatprep.subr.mxu0 %v2855
    %2995 = vmatpush1.msra.mxu0 %v2854
    %2996 = vmatprep.subr.mxu0 %v2857
    %2997 = vmatpush1.msra.mxu0 %v2856
    %2998 = vmatprep.subr.mxu0 %v2859
    %2999 = vmatpush1.msra.mxu0 %v2858
    %3000 = vmatprep.subr.mxu0 %v2861
    %3001 = vmatpush1.msra.mxu0 %v2860
    %3002 = vmatprep.subr.mxu0 %v2863
    %3003 = vmatpush1.msra.mxu0 %v2862
    %3004 = vmatprep.subr.mxu0 %v2865
    %3005 = vmatpush1.msra.mxu0 %v2864
    %3006 = vmatprep.subr.mxu0 %v2867
    %3007 = vmatpush1.msra.mxu0 %v2866
    %3008 = vmatprep.subr.mxu0 %v2869
    %3009 = vmatpush1.msra.mxu0 %v2868
    %3010 = vmatprep.subr.mxu0 %v2871
    %3011 = vmatpush1.msra.mxu0 %v2870
    %3012 = vmatprep.subr.mxu0 %v2873
    %3013 = vmatpush1.msra.mxu0 %v2872
    %3014 = vmatprep.subr.mxu0 %v2875
    %3015 = vmatpush1.msra.mxu0 %v2874
    %3016 = vmatprep.subr.mxu0 %v2877
    %3017 = vmatpush1.msra.mxu0 %v2876
    %3018 = vmatprep.subr.mxu0 %v2879
    %3019 = vmatpush1.msra.mxu0 %v2878
    %3020 = vmatprep.subr.mxu0 %v2881
    %3021 = vmatpush1.msra.mxu0 %v2880
    %3022 = vmatprep.subr.mxu0 %v2883
    %3023 = vmatpush1.msra.mxu0 %v2882
    %3024 = vmatprep.subr.mxu0 %v2885
    %3025 = vmatpush1.msra.mxu0 %v2884
    %3026 = vmatprep.subr.mxu0 %v2887
    %3027 = vmatpush1.msra.mxu0 %v2886
    %3028 = vmatprep.subr.mxu0 %v2889
    %3029 = vmatpush1.msra.mxu0 %v2888
    %3030 = vmatprep.subr.mxu0 %v2891
    %3031 = vmatpush1.msra.mxu0 %v2890
    %3032 = vmatprep.subr.mxu0 %v2893
    %3033 = vmatpush1.msra.mxu0 %v2892
    %3034 = vmatprep.subr.mxu0 %v2895
    %3035 = vmatpush1.msra.mxu0 %v2894
    %3036 = vmatprep.subr.mxu0 %v2897
    %3037 = vmatpush1.msra.mxu0 %v2896
    %3038 = vmatprep.subr.mxu0 %v2899
    %3039 = vmatpush1.msra.mxu0 %v2898
    %3040 = vmatprep.subr.mxu0 %v2901
    %3041 = vmatpush1.msra.mxu0 %v2900
    %3042 = vmatprep.subr.mxu0 %v2903
    %3043 = vmatpush1.msra.mxu0 %v2902
    %3044 = vmatprep.subr.mxu0 %v2905
    %3045 = vmatpush1.msra.mxu0 %v2904
    %3046 = vmatprep.subr.mxu0 %v2907
    %3047 = vmatpush1.msra.mxu0 %v2906
    %3048 = vmatprep.subr.mxu0 %v2909
    %3049 = vmatpush1.msra.mxu0 %v2908
    %3050 = vmatprep.mubr.f32.mxu0 %v2843
    %3051 = vmatmul.mubr.f32.gmra.mrb[0].mxu0 %v2842
    %v3052 = vpop.f32.mrb[0].mxu0
    %v3053 = vadd.f32 %v2979, %v3052
    %v3054 = vpop.f32.mrb[0].mxu0
    %v3055 = vadd.f32 %v2983, %v3054
    %3056 = vdwg.mxu0
    %3057 = vmatprep.subr.mxu0 %v2911
    %3058 = vmatpush1.msra.mxu0 %v2910
    %3059 = vmatprep.subr.mxu0 %v2913
    %3060 = vmatpush1.msra.mxu0 %v2912
    %3061 = vmatprep.subr.mxu0 %v2915
    %3062 = vmatpush1.msra.mxu0 %v2914
    %3063 = vmatprep.subr.mxu0 %v2917
    %3064 = vmatpush1.msra.mxu0 %v2916
    %3065 = vmatprep.subr.mxu0 %v2919
    %3066 = vmatpush1.msra.mxu0 %v2918
    %3067 = vmatprep.subr.mxu0 %v2921
    %3068 = vmatpush1.msra.mxu0 %v2920
    %3069 = vmatprep.subr.mxu0 %v2923
    %3070 = vmatpush1.msra.mxu0 %v2922
    %3071 = vmatprep.subr.mxu0 %v2925
    %3072 = vmatpush1.msra.mxu0 %v2924
    %3073 = vmatprep.subr.mxu0 %v2927
    %3074 = vmatpush1.msra.mxu0 %v2926
    %3075 = vmatprep.subr.mxu0 %v2929
    %3076 = vmatpush1.msra.mxu0 %v2928
    %3077 = vmatprep.subr.mxu0 %v2931
    %3078 = vmatpush1.msra.mxu0 %v2930
    %3079 = vmatprep.subr.mxu0 %v2933
    %3080 = vmatpush1.msra.mxu0 %v2932
    %3081 = vmatprep.subr.mxu0 %v2935
    %3082 = vmatpush1.msra.mxu0 %v2934
    %3083 = vmatprep.subr.mxu0 %v2937
    %3084 = vmatpush1.msra.mxu0 %v2936
    %3085 = vmatprep.subr.mxu0 %v2939
    %3086 = vmatpush1.msra.mxu0 %v2938
    %3087 = vmatprep.subr.mxu0 %v2941
    %3088 = vmatpush1.msra.mxu0 %v2940
    %3089 = vmatprep.subr.mxu0 %v2943
    %3090 = vmatpush1.msra.mxu0 %v2942
    %3091 = vmatprep.subr.mxu0 %v2945
    %3092 = vmatpush1.msra.mxu0 %v2944
    %3093 = vmatprep.subr.mxu0 %v2947
    %3094 = vmatpush1.msra.mxu0 %v2946
    %3095 = vmatprep.subr.mxu0 %v2949
    %3096 = vmatpush1.msra.mxu0 %v2948
    %3097 = vmatprep.subr.mxu0 %v2951
    %3098 = vmatpush1.msra.mxu0 %v2950
    %3099 = vmatprep.subr.mxu0 %v2953
    %3100 = vmatpush1.msra.mxu0 %v2952
    %3101 = vmatprep.subr.mxu0 %v2955
    %3102 = vmatpush1.msra.mxu0 %v2954
    %3103 = vmatprep.subr.mxu0 %v2957
    %3104 = vmatpush1.msra.mxu0 %v2956
    %3105 = vmatprep.subr.mxu0 %v2959
    %3106 = vmatpush1.msra.mxu0 %v2958
    %3107 = vmatprep.subr.mxu0 %v2961
    %3108 = vmatpush1.msra.mxu0 %v2960
    %3109 = vmatprep.subr.mxu0 %v2963
    %3110 = vmatpush1.msra.mxu0 %v2962
    %3111 = vmatprep.subr.mxu0 %v2965
    %3112 = vmatpush1.msra.mxu0 %v2964
    %3113 = vmatprep.subr.mxu0 %v2967
    %3114 = vmatpush1.msra.mxu0 %v2966
    %3115 = vmatprep.subr.mxu0 %v2969
    %3116 = vmatpush1.msra.mxu0 %v2968
    %3117 = vmatprep.subr.mxu0 %v2971
    %3118 = vmatpush1.msra.mxu0 %v2970
    %3119 = vmatprep.subr.mxu0 %v2973
    %3120 = vmatpush1.msra.mxu0 %v2972
    %3121 = vmatprep.mubr.f32.mxu0 %v2845
    %3122 = vmatmul.mubr.f32.gmra.mrb[0].mxu0 %v2844
    %v3123 = vpop.f32.mrb[0].mxu0
    %v3124 = vadd.f32 %v3053, %v3123
    %v3125 = vpop.f32.mrb[0].mxu0
    %v3126 = vadd.f32 %v3055, %v3125
    %3127 = vdwg.mxu0
    %v3128 = vmax.f32 %v3124, 0.0
    %v3129 = vmax.f32 %v3126, 0.0
    %v3130 = vld [vmem:[#allocation17 + $0x10] sm:$0xff]
    %v3131 = vld [vmem:[#allocation17 + $0x18] sm:$0xff]
    %v3132 = vld [vmem:[#allocation17 + $0x50] sm:$0xff]
    %v3133 = vld [vmem:[#allocation17 + $0x58] sm:$0xff]
    %v3134 = vld [vmem:[#allocation17 + $0x90] sm:$0xff]
    %v3135 = vld [vmem:[#allocation17 + $0x98] sm:$0xff]
    %v3136 = vld [vmem:[#allocation17 + $0xd0] sm:$0xff]
    %v3137 = vld [vmem:[#allocation17 + $0xd8] sm:$0xff]
    %v3138 = vld [vmem:[#allocation17 + $0x110] sm:$0xff]
    %v3139 = vld [vmem:[#allocation17 + $0x118] sm:$0xff]
    %v3140 = vld [vmem:[#allocation17 + $0x150] sm:$0xff]
    %v3141 = vld [vmem:[#allocation17 + $0x158] sm:$0xff]
    %v3142 = vld [vmem:[#allocation17 + $0x190] sm:$0xff]
    %v3143 = vld [vmem:[#allocation17 + $0x198] sm:$0xff]
    %v3144 = vld [vmem:[#allocation17 + $0x1d0] sm:$0xff]
    %v3145 = vld [vmem:[#allocation17 + $0x1d8] sm:$0xff]
    %v3146 = vld [vmem:[#allocation17 + $0x210] sm:$0xff]
    %v3147 = vld [vmem:[#allocation17 + $0x218] sm:$0xff]
    %v3148 = vld [vmem:[#allocation17 + $0x250] sm:$0xff]
    %v3149 = vld [vmem:[#allocation17 + $0x258] sm:$0xff]
    %v3150 = vld [vmem:[#allocation17 + $0x290] sm:$0xff]
    %v3151 = vld [vmem:[#allocation17 + $0x298] sm:$0xff]
    %v3152 = vld [vmem:[#allocation17 + $0x2d0] sm:$0xff]
    %v3153 = vld [vmem:[#allocation17 + $0x2d8] sm:$0xff]
    %v3154 = vld [vmem:[#allocation17 + $0x310] sm:$0xff]
    %v3155 = vld [vmem:[#allocation17 + $0x318] sm:$0xff]
    %v3156 = vld [vmem:[#allocation17 + $0x350] sm:$0xff]
    %v3157 = vld [vmem:[#allocation17 + $0x358] sm:$0xff]
    %v3158 = vld [vmem:[#allocation17 + $0x390] sm:$0xff]
    %v3159 = vld [vmem:[#allocation17 + $0x398] sm:$0xff]
    %v3160 = vld [vmem:[#allocation17 + $0x3d0] sm:$0xff]
    %v3161 = vld [vmem:[#allocation17 + $0x3d8] sm:$0xff]
    %v3162 = vld [vmem:[#allocation17 + $0x410] sm:$0xff]
    %v3163 = vld [vmem:[#allocation17 + $0x418] sm:$0xff]
    %v3164 = vld [vmem:[#allocation17 + $0x450] sm:$0xff]
    %v3165 = vld [vmem:[#allocation17 + $0x458] sm:$0xff]
    %v3166 = vld [vmem:[#allocation17 + $0x490] sm:$0xff]
    %v3167 = vld [vmem:[#allocation17 + $0x498] sm:$0xff]
    %v3168 = vld [vmem:[#allocation17 + $0x4d0] sm:$0xff]
    %v3169 = vld [vmem:[#allocation17 + $0x4d8] sm:$0xff]
    %v3170 = vld [vmem:[#allocation17 + $0x510] sm:$0xff]
    %v3171 = vld [vmem:[#allocation17 + $0x518] sm:$0xff]
    %v3172 = vld [vmem:[#allocation17 + $0x550] sm:$0xff]
    %v3173 = vld [vmem:[#allocation17 + $0x558] sm:$0xff]
    %v3174 = vld [vmem:[#allocation17 + $0x590] sm:$0xff]
    %v3175 = vld [vmem:[#allocation17 + $0x598] sm:$0xff]
    %v3176 = vld [vmem:[#allocation17 + $0x5d0] sm:$0xff]
    %v3177 = vld [vmem:[#allocation17 + $0x5d8] sm:$0xff]
    %v3178 = vld [vmem:[#allocation17 + $0x610] sm:$0xff]
    %v3179 = vld [vmem:[#allocation17 + $0x618] sm:$0xff]
    %v3180 = vld [vmem:[#allocation17 + $0x650] sm:$0xff]
    %v3181 = vld [vmem:[#allocation17 + $0x658] sm:$0xff]
    %v3182 = vld [vmem:[#allocation17 + $0x690] sm:$0xff]
    %v3183 = vld [vmem:[#allocation17 + $0x698] sm:$0xff]
    %v3184 = vld [vmem:[#allocation17 + $0x6d0] sm:$0xff]
    %v3185 = vld [vmem:[#allocation17 + $0x6d8] sm:$0xff]
    %v3186 = vld [vmem:[#allocation17 + $0x710] sm:$0xff]
    %v3187 = vld [vmem:[#allocation17 + $0x718] sm:$0xff]
    %v3188 = vld [vmem:[#allocation17 + $0x750] sm:$0xff]
    %v3189 = vld [vmem:[#allocation17 + $0x758] sm:$0xff]
    %v3190 = vld [vmem:[#allocation17 + $0x790] sm:$0xff]
    %v3191 = vld [vmem:[#allocation17 + $0x798] sm:$0xff]
    %v3192 = vld [vmem:[#allocation17 + $0x7d0] sm:$0xff]
    %v3193 = vld [vmem:[#allocation17 + $0x7d8] sm:$0xff]
    %v3194 = vld [vmem:[#allocation17 + $0x810] sm:$0xff]
    %v3195 = vld [vmem:[#allocation17 + $0x818] sm:$0xff]
    %v3196 = vld [vmem:[#allocation17 + $0x850] sm:$0xff]
    %v3197 = vld [vmem:[#allocation17 + $0x858] sm:$0xff]
    %v3198 = vld [vmem:[#allocation17 + $0x890] sm:$0xff]
    %v3199 = vld [vmem:[#allocation17 + $0x898] sm:$0xff]
    %v3200 = vld [vmem:[#allocation17 + $0x8d0] sm:$0xff]
    %v3201 = vld [vmem:[#allocation17 + $0x8d8] sm:$0xff]
    %v3202 = vld [vmem:[#allocation17 + $0x910] sm:$0xff]
    %v3203 = vld [vmem:[#allocation17 + $0x918] sm:$0xff]
    %v3204 = vld [vmem:[#allocation17 + $0x950] sm:$0xff]
    %v3205 = vld [vmem:[#allocation17 + $0x958] sm:$0xff]
    %v3206 = vld [vmem:[#allocation17 + $0x990] sm:$0xff]
    %v3207 = vld [vmem:[#allocation17 + $0x998] sm:$0xff]
    %v3208 = vld [vmem:[#allocation17 + $0x9d0] sm:$0xff]
    %v3209 = vld [vmem:[#allocation17 + $0x9d8] sm:$0xff]
    %v3210 = vld [vmem:[#allocation17 + $0xa10] sm:$0xff]
    %v3211 = vld [vmem:[#allocation17 + $0xa18] sm:$0xff]
    %v3212 = vld [vmem:[#allocation17 + $0xa50] sm:$0xff]
    %v3213 = vld [vmem:[#allocation17 + $0xa58] sm:$0xff]
    %v3214 = vld [vmem:[#allocation17 + $0xa90] sm:$0xff]
    %v3215 = vld [vmem:[#allocation17 + $0xa98] sm:$0xff]
    %v3216 = vld [vmem:[#allocation17 + $0xad0] sm:$0xff]
    %v3217 = vld [vmem:[#allocation17 + $0xad8] sm:$0xff]
    %v3218 = vld [vmem:[#allocation17 + $0xb10] sm:$0xff]
    %v3219 = vld [vmem:[#allocation17 + $0xb18] sm:$0xff]
    %v3220 = vld [vmem:[#allocation17 + $0xb50] sm:$0xff]
    %v3221 = vld [vmem:[#allocation17 + $0xb58] sm:$0xff]
    %v3222 = vld [vmem:[#allocation17 + $0xb90] sm:$0xff]
    %v3223 = vld [vmem:[#allocation17 + $0xb98] sm:$0xff]
    %v3224 = vld [vmem:[#allocation17 + $0xbd0] sm:$0xff]
    %v3225 = vld [vmem:[#allocation17 + $0xbd8] sm:$0xff]
    %v3226 = vld [vmem:[#allocation17 + $0xc10] sm:$0xff]
    %v3227 = vld [vmem:[#allocation17 + $0xc18] sm:$0xff]
    %v3228 = vld [vmem:[#allocation17 + $0xc50] sm:$0xff]
    %v3229 = vld [vmem:[#allocation17 + $0xc58] sm:$0xff]
    %v3230 = vld [vmem:[#allocation17 + $0xc90] sm:$0xff]
    %v3231 = vld [vmem:[#allocation17 + $0xc98] sm:$0xff]
    %v3232 = vld [vmem:[#allocation17 + $0xcd0] sm:$0xff]
    %v3233 = vld [vmem:[#allocation17 + $0xcd8] sm:$0xff]
    %v3234 = vld [vmem:[#allocation17 + $0xd10] sm:$0xff]
    %v3235 = vld [vmem:[#allocation17 + $0xd18] sm:$0xff]
    %v3236 = vld [vmem:[#allocation17 + $0xd50] sm:$0xff]
    %v3237 = vld [vmem:[#allocation17 + $0xd58] sm:$0xff]
    %v3238 = vld [vmem:[#allocation17 + $0xd90] sm:$0xff]
    %v3239 = vld [vmem:[#allocation17 + $0xd98] sm:$0xff]
    %v3240 = vld [vmem:[#allocation17 + $0xdd0] sm:$0xff]
    %v3241 = vld [vmem:[#allocation17 + $0xdd8] sm:$0xff]
    %v3242 = vld [vmem:[#allocation17 + $0xe10] sm:$0xff]
    %v3243 = vld [vmem:[#allocation17 + $0xe18] sm:$0xff]
    %v3244 = vld [vmem:[#allocation17 + $0xe50] sm:$0xff]
    %v3245 = vld [vmem:[#allocation17 + $0xe58] sm:$0xff]
    %v3246 = vld [vmem:[#allocation17 + $0xe90] sm:$0xff]
    %v3247 = vld [vmem:[#allocation17 + $0xe98] sm:$0xff]
    %v3248 = vld [vmem:[#allocation17 + $0xed0] sm:$0xff]
    %v3249 = vld [vmem:[#allocation17 + $0xed8] sm:$0xff]
    %v3250 = vld [vmem:[#allocation17 + $0xf10] sm:$0xff]
    %v3251 = vld [vmem:[#allocation17 + $0xf18] sm:$0xff]
    %v3252 = vld [vmem:[#allocation17 + $0xf50] sm:$0xff]
    %v3253 = vld [vmem:[#allocation17 + $0xf58] sm:$0xff]
    %v3254 = vld [vmem:[#allocation17 + $0xf90] sm:$0xff]
    %v3255 = vld [vmem:[#allocation17 + $0xf98] sm:$0xff]
    %v3256 = vld [vmem:[#allocation17 + $0xfd0] sm:$0xff]
    %v3257 = vld [vmem:[#allocation17 + $0xfd8] sm:$0xff]
    %v3258 = vld [vmem:[#allocation19 + $0x2] sm:$0x3]
    %v3260 = vlaneseq
    %v3261 = vshrl.u32 %v3260, 7
    %v3262 = vsub.s32 0, %v3261
    %v3263 = vrot.slane %v3258, %v3262
    %v3264 = vlaneseq
    %v3265 = vshrl.u32 %v3264, 7
    %v3266 = vsub.s32 1, %v3265
    %v3267 = vrot.slane %v3258, %v3266
    %3270 = vmatprep.subr.mxu0 %v3131
    %3271 = vmatpush1.msra.mxu0 %v3130
    %3272 = vmatprep.subr.mxu0 %v3133
    %3273 = vmatpush1.msra.mxu0 %v3132
    %3274 = vmatprep.subr.mxu0 %v3135
    %3275 = vmatpush1.msra.mxu0 %v3134
    %3276 = vmatprep.subr.mxu0 %v3137
    %3277 = vmatpush1.msra.mxu0 %v3136
    %3278 = vmatprep.subr.mxu0 %v3139
    %3279 = vmatpush1.msra.mxu0 %v3138
    %3280 = vmatprep.subr.mxu0 %v3141
    %3281 = vmatpush1.msra.mxu0 %v3140
    %3282 = vmatprep.subr.mxu0 %v3143
    %3283 = vmatpush1.msra.mxu0 %v3142
    %3284 = vmatprep.subr.mxu0 %v3145
    %3285 = vmatpush1.msra.mxu0 %v3144
    %3286 = vmatprep.subr.mxu0 %v3147
    %3287 = vmatpush1.msra.mxu0 %v3146
    %3288 = vmatprep.subr.mxu0 %v3149
    %3289 = vmatpush1.msra.mxu0 %v3148
    %3290 = vmatprep.subr.mxu0 %v3151
    %3291 = vmatpush1.msra.mxu0 %v3150
    %3292 = vmatprep.subr.mxu0 %v3153
    %3293 = vmatpush1.msra.mxu0 %v3152
    %3294 = vmatprep.subr.mxu0 %v3155
    %3295 = vmatpush1.msra.mxu0 %v3154
    %3296 = vmatprep.subr.mxu0 %v3157
    %3297 = vmatpush1.msra.mxu0 %v3156
    %3298 = vmatprep.subr.mxu0 %v3159
    %3299 = vmatpush1.msra.mxu0 %v3158
    %3300 = vmatprep.subr.mxu0 %v3161
    %3301 = vmatpush1.msra.mxu0 %v3160
    %3302 = vmatprep.subr.mxu0 %v3163
    %3303 = vmatpush1.msra.mxu0 %v3162
    %3304 = vmatprep.subr.mxu0 %v3165
    %3305 = vmatpush1.msra.mxu0 %v3164
    %3306 = vmatprep.subr.mxu0 %v3167
    %3307 = vmatpush1.msra.mxu0 %v3166
    %3308 = vmatprep.subr.mxu0 %v3169
    %3309 = vmatpush1.msra.mxu0 %v3168
    %3310 = vmatprep.subr.mxu0 %v3171
    %3311 = vmatpush1.msra.mxu0 %v3170
    %3312 = vmatprep.subr.mxu0 %v3173
    %3313 = vmatpush1.msra.mxu0 %v3172
    %3314 = vmatprep.subr.mxu0 %v3175
    %3315 = vmatpush1.msra.mxu0 %v3174
    %3316 = vmatprep.subr.mxu0 %v3177
    %3317 = vmatpush1.msra.mxu0 %v3176
    %3318 = vmatprep.subr.mxu0 %v3179
    %3319 = vmatpush1.msra.mxu0 %v3178
    %3320 = vmatprep.subr.mxu0 %v3181
    %3321 = vmatpush1.msra.mxu0 %v3180
    %3322 = vmatprep.subr.mxu0 %v3183
    %3323 = vmatpush1.msra.mxu0 %v3182
    %3324 = vmatprep.subr.mxu0 %v3185
    %3325 = vmatpush1.msra.mxu0 %v3184
    %3326 = vmatprep.subr.mxu0 %v3187
    %3327 = vmatpush1.msra.mxu0 %v3186
    %3328 = vmatprep.subr.mxu0 %v3189
    %3329 = vmatpush1.msra.mxu0 %v3188
    %3330 = vmatprep.subr.mxu0 %v3191
    %3331 = vmatpush1.msra.mxu0 %v3190
    %3332 = vmatprep.subr.mxu0 %v3193
    %3333 = vmatpush1.msra.mxu0 %v3192
    %3334 = vmatprep.mubr.f32.mxu0 %v2843
    %3335 = vmatmul.mubr.f32.gmra.mrb[0].mxu0 %v2842
    %v3336 = vpop.f32.mrb[0].mxu0
    %v3337 = vadd.f32 %v3263, %v3336
    %v3338 = vpop.f32.mrb[0].mxu0
    %v3339 = vadd.f32 %v3267, %v3338
    %3340 = vdwg.mxu0
    %3341 = vmatprep.subr.mxu0 %v3195
    %3342 = vmatpush1.msra.mxu0 %v3194
    %3343 = vmatprep.subr.mxu0 %v3197
    %3344 = vmatpush1.msra.mxu0 %v3196
    %3345 = vmatprep.subr.mxu0 %v3199
    %3346 = vmatpush1.msra.mxu0 %v3198
    %3347 = vmatprep.subr.mxu0 %v3201
    %3348 = vmatpush1.msra.mxu0 %v3200
    %3349 = vmatprep.subr.mxu0 %v3203
    %3350 = vmatpush1.msra.mxu0 %v3202
    %3351 = vmatprep.subr.mxu0 %v3205
    %3352 = vmatpush1.msra.mxu0 %v3204
    %3353 = vmatprep.subr.mxu0 %v3207
    %3354 = vmatpush1.msra.mxu0 %v3206
    %3355 = vmatprep.subr.mxu0 %v3209
    %3356 = vmatpush1.msra.mxu0 %v3208
    %3357 = vmatprep.subr.mxu0 %v3211
    %3358 = vmatpush1.msra.mxu0 %v3210
    %3359 = vmatprep.subr.mxu0 %v3213
    %3360 = vmatpush1.msra.mxu0 %v3212
    %3361 = vmatprep.subr.mxu0 %v3215
    %3362 = vmatpush1.msra.mxu0 %v3214
    %3363 = vmatprep.subr.mxu0 %v3217
    %3364 = vmatpush1.msra.mxu0 %v3216
    %3365 = vmatprep.subr.mxu0 %v3219
    %3366 = vmatpush1.msra.mxu0 %v3218
    %3367 = vmatprep.subr.mxu0 %v3221
    %3368 = vmatpush1.msra.mxu0 %v3220
    %3369 = vmatprep.subr.mxu0 %v3223
    %3370 = vmatpush1.msra.mxu0 %v3222
    %3371 = vmatprep.subr.mxu0 %v3225
    %3372 = vmatpush1.msra.mxu0 %v3224
    %3373 = vmatprep.subr.mxu0 %v3227
    %3374 = vmatpush1.msra.mxu0 %v3226
    %3375 = vmatprep.subr.mxu0 %v3229
    %3376 = vmatpush1.msra.mxu0 %v3228
    %3377 = vmatprep.subr.mxu0 %v3231
    %3378 = vmatpush1.msra.mxu0 %v3230
    %3379 = vmatprep.subr.mxu0 %v3233
    %3380 = vmatpush1.msra.mxu0 %v3232
    %3381 = vmatprep.subr.mxu0 %v3235
    %3382 = vmatpush1.msra.mxu0 %v3234
    %3383 = vmatprep.subr.mxu0 %v3237
    %3384 = vmatpush1.msra.mxu0 %v3236
    %3385 = vmatprep.subr.mxu0 %v3239
    %3386 = vmatpush1.msra.mxu0 %v3238
    %3387 = vmatprep.subr.mxu0 %v3241
    %3388 = vmatpush1.msra.mxu0 %v3240
    %3389 = vmatprep.subr.mxu0 %v3243
    %3390 = vmatpush1.msra.mxu0 %v3242
    %3391 = vmatprep.subr.mxu0 %v3245
    %3392 = vmatpush1.msra.mxu0 %v3244
    %3393 = vmatprep.subr.mxu0 %v3247
    %3394 = vmatpush1.msra.mxu0 %v3246
    %3395 = vmatprep.subr.mxu0 %v3249
    %3396 = vmatpush1.msra.mxu0 %v3248
    %3397 = vmatprep.subr.mxu0 %v3251
    %3398 = vmatpush1.msra.mxu0 %v3250
    %3399 = vmatprep.subr.mxu0 %v3253
    %3400 = vmatpush1.msra.mxu0 %v3252
    %3401 = vmatprep.subr.mxu0 %v3255
    %3402 = vmatpush1.msra.mxu0 %v3254
    %3403 = vmatprep.subr.mxu0 %v3257
    %3404 = vmatpush1.msra.mxu0 %v3256
    %3405 = vmatprep.mubr.f32.mxu0 %v2845
    %3406 = vmatmul.mubr.f32.gmra.mrb[0].mxu0 %v2844
    %v3407 = vpop.f32.mrb[0].mxu0
    %v3408 = vadd.f32 %v3337, %v3407
    %v3409 = vpop.f32.mrb[0].mxu0
    %v3410 = vadd.f32 %v3339, %v3409
    %3411 = vdwg.mxu0
    %v3412 = vmax.f32 %v3408, 0.0
    %v3413 = vmax.f32 %v3410, 0.0
    %v3414 = vmax.f32 %v3128, %v3412
    %v3415 = vmax.f32 %v3129, %v3413
    %v3416 = vld [vmem:[#allocation17 + $0x20] sm:$0xff]
    %v3417 = vld [vmem:[#allocation17 + $0x28] sm:$0xff]
    %v3418 = vld [vmem:[#allocation17 + $0x60] sm:$0xff]
    %v3419 = vld [vmem:[#allocation17 + $0x68] sm:$0xff]
    %v3420 = vld [vmem:[#allocation17 + $0xa0] sm:$0xff]
    %v3421 = vld [vmem:[#allocation17 + $0xa8] sm:$0xff]
    %v3422 = vld [vmem:[#allocation17 + $0xe0] sm:$0xff]
    %v3423 = vld [vmem:[#allocation17 + $0xe8] sm:$0xff]
    %v3424 = vld [vmem:[#allocation17 + $0x120] sm:$0xff]
    %v3425 = vld [vmem:[#allocation17 + $0x128] sm:$0xff]
    %v3426 = vld [vmem:[#allocation17 + $0x160] sm:$0xff]
    %v3427 = vld [vmem:[#allocation17 + $0x168] sm:$0xff]
    %v3428 = vld [vmem:[#allocation17 + $0x1a0] sm:$0xff]
    %v3429 = vld [vmem:[#allocation17 + $0x1a8] sm:$0xff]
    %v3430 = vld [vmem:[#allocation17 + $0x1e0] sm:$0xff]
    %v3431 = vld [vmem:[#allocation17 + $0x1e8] sm:$0xff]
    %v3432 = vld [vmem:[#allocation17 + $0x220] sm:$0xff]
    %v3433 = vld [vmem:[#allocation17 + $0x228] sm:$0xff]
    %v3434 = vld [vmem:[#allocation17 + $0x260] sm:$0xff]
    %v3435 = vld [vmem:[#allocation17 + $0x268] sm:$0xff]
    %v3436 = vld [vmem:[#allocation17 + $0x2a0] sm:$0xff]
    %v3437 = vld [vmem:[#allocation17 + $0x2a8] sm:$0xff]
    %v3438 = vld [vmem:[#allocation17 + $0x2e0] sm:$0xff]
    %v3439 = vld [vmem:[#allocation17 + $0x2e8] sm:$0xff]
    %v3440 = vld [vmem:[#allocation17 + $0x320] sm:$0xff]
    %v3441 = vld [vmem:[#allocation17 + $0x328] sm:$0xff]
    %v3442 = vld [vmem:[#allocation17 + $0x360] sm:$0xff]
    %v3443 = vld [vmem:[#allocation17 + $0x368] sm:$0xff]
    %v3444 = vld [vmem:[#allocation17 + $0x3a0] sm:$0xff]
    %v3445 = vld [vmem:[#allocation17 + $0x3a8] sm:$0xff]
    %v3446 = vld [vmem:[#allocation17 + $0x3e0] sm:$0xff]
    %v3447 = vld [vmem:[#allocation17 + $0x3e8] sm:$0xff]
    %v3448 = vld [vmem:[#allocation17 + $0x420] sm:$0xff]
    %v3449 = vld [vmem:[#allocation17 + $0x428] sm:$0xff]
    %v3450 = vld [vmem:[#allocation17 + $0x460] sm:$0xff]
    %v3451 = vld [vmem:[#allocation17 + $0x468] sm:$0xff]
    %v3452 = vld [vmem:[#allocation17 + $0x4a0] sm:$0xff]
    %v3453 = vld [vmem:[#allocation17 + $0x4a8] sm:$0xff]
    %v3454 = vld [vmem:[#allocation17 + $0x4e0] sm:$0xff]
    %v3455 = vld [vmem:[#allocation17 + $0x4e8] sm:$0xff]
    %v3456 = vld [vmem:[#allocation17 + $0x520] sm:$0xff]
    %v3457 = vld [vmem:[#allocation17 + $0x528] sm:$0xff]
    %v3458 = vld [vmem:[#allocation17 + $0x560] sm:$0xff]
    %v3459 = vld [vmem:[#allocation17 + $0x568] sm:$0xff]
    %v3460 = vld [vmem:[#allocation17 + $0x5a0] sm:$0xff]
    %v3461 = vld [vmem:[#allocation17 + $0x5a8] sm:$0xff]
    %v3462 = vld [vmem:[#allocation17 + $0x5e0] sm:$0xff]
    %v3463 = vld [vmem:[#allocation17 + $0x5e8] sm:$0xff]
    %v3464 = vld [vmem:[#allocation17 + $0x620] sm:$0xff]
    %v3465 = vld [vmem:[#allocation17 + $0x628] sm:$0xff]
    %v3466 = vld [vmem:[#allocation17 + $0x660] sm:$0xff]
    %v3467 = vld [vmem:[#allocation17 + $0x668] sm:$0xff]
    %v3468 = vld [vmem:[#allocation17 + $0x6a0] sm:$0xff]
    %v3469 = vld [vmem:[#allocation17 + $0x6a8] sm:$0xff]
    %v3470 = vld [vmem:[#allocation17 + $0x6e0] sm:$0xff]
    %v3471 = vld [vmem:[#allocation17 + $0x6e8] sm:$0xff]
    %v3472 = vld [vmem:[#allocation17 + $0x720] sm:$0xff]
    %v3473 = vld [vmem:[#allocation17 + $0x728] sm:$0xff]
    %v3474 = vld [vmem:[#allocation17 + $0x760] sm:$0xff]
    %v3475 = vld [vmem:[#allocation17 + $0x768] sm:$0xff]
    %v3476 = vld [vmem:[#allocation17 + $0x7a0] sm:$0xff]
    %v3477 = vld [vmem:[#allocation17 + $0x7a8] sm:$0xff]
    %v3478 = vld [vmem:[#allocation17 + $0x7e0] sm:$0xff]
    %v3479 = vld [vmem:[#allocation17 + $0x7e8] sm:$0xff]
    %v3480 = vld [vmem:[#allocation17 + $0x820] sm:$0xff]
    %v3481 = vld [vmem:[#allocation17 + $0x828] sm:$0xff]
    %v3482 = vld [vmem:[#allocation17 + $0x860] sm:$0xff]
    %v3483 = vld [vmem:[#allocation17 + $0x868] sm:$0xff]
    %v3484 = vld [vmem:[#allocation17 + $0x8a0] sm:$0xff]
    %v3485 = vld [vmem:[#allocation17 + $0x8a8] sm:$0xff]
    %v3486 = vld [vmem:[#allocation17 + $0x8e0] sm:$0xff]
    %v3487 = vld [vmem:[#allocation17 + $0x8e8] sm:$0xff]
    %v3488 = vld [vmem:[#allocation17 + $0x920] sm:$0xff]
    %v3489 = vld [vmem:[#allocation17 + $0x928] sm:$0xff]
    %v3490 = vld [vmem:[#allocation17 + $0x960] sm:$0xff]
    %v3491 = vld [vmem:[#allocation17 + $0x968] sm:$0xff]
    %v3492 = vld [vmem:[#allocation17 + $0x9a0] sm:$0xff]
    %v3493 = vld [vmem:[#allocation17 + $0x9a8] sm:$0xff]
    %v3494 = vld [vmem:[#allocation17 + $0x9e0] sm:$0xff]
    %v3495 = vld [vmem:[#allocation17 + $0x9e8] sm:$0xff]
    %v3496 = vld [vmem:[#allocation17 + $0xa20] sm:$0xff]
    %v3497 = vld [vmem:[#allocation17 + $0xa28] sm:$0xff]
    %v3498 = vld [vmem:[#allocation17 + $0xa60] sm:$0xff]
    %v3499 = vld [vmem:[#allocation17 + $0xa68] sm:$0xff]
    %v3500 = vld [vmem:[#allocation17 + $0xaa0] sm:$0xff]
    %v3501 = vld [vmem:[#allocation17 + $0xaa8] sm:$0xff]
    %v3502 = vld [vmem:[#allocation17 + $0xae0] sm:$0xff]
    %v3503 = vld [vmem:[#allocation17 + $0xae8] sm:$0xff]
    %v3504 = vld [vmem:[#allocation17 + $0xb20] sm:$0xff]
    %v3505 = vld [vmem:[#allocation17 + $0xb28] sm:$0xff]
    %v3506 = vld [vmem:[#allocation17 + $0xb60] sm:$0xff]
    %v3507 = vld [vmem:[#allocation17 + $0xb68] sm:$0xff]
    %v3508 = vld [vmem:[#allocation17 + $0xba0] sm:$0xff]
    %v3509 = vld [vmem:[#allocation17 + $0xba8] sm:$0xff]
    %v3510 = vld [vmem:[#allocation17 + $0xbe0] sm:$0xff]
    %v3511 = vld [vmem:[#allocation17 + $0xbe8] sm:$0xff]
    %v3512 = vld [vmem:[#allocation17 + $0xc20] sm:$0xff]
    %v3513 = vld [vmem:[#allocation17 + $0xc28] sm:$0xff]
    %v3514 = vld [vmem:[#allocation17 + $0xc60] sm:$0xff]
    %v3515 = vld [vmem:[#allocation17 + $0xc68] sm:$0xff]
    %v3516 = vld [vmem:[#allocation17 + $0xca0] sm:$0xff]
    %v3517 = vld [vmem:[#allocation17 + $0xca8] sm:$0xff]
    %v3518 = vld [vmem:[#allocation17 + $0xce0] sm:$0xff]
    %v3519 = vld [vmem:[#allocation17 + $0xce8] sm:$0xff]
    %v3520 = vld [vmem:[#allocation17 + $0xd20] sm:$0xff]
    %v3521 = vld [vmem:[#allocation17 + $0xd28] sm:$0xff]
    %v3522 = vld [vmem:[#allocation17 + $0xd60] sm:$0xff]
    %v3523 = vld [vmem:[#allocation17 + $0xd68] sm:$0xff]
    %v3524 = vld [vmem:[#allocation17 + $0xda0] sm:$0xff]
    %v3525 = vld [vmem:[#allocation17 + $0xda8] sm:$0xff]
    %v3526 = vld [vmem:[#allocation17 + $0xde0] sm:$0xff]
    %v3527 = vld [vmem:[#allocation17 + $0xde8] sm:$0xff]
    %v3528 = vld [vmem:[#allocation17 + $0xe20] sm:$0xff]
    %v3529 = vld [vmem:[#allocation17 + $0xe28] sm:$0xff]
    %v3530 = vld [vmem:[#allocation17 + $0xe60] sm:$0xff]
    %v3531 = vld [vmem:[#allocation17 + $0xe68] sm:$0xff]
    %v3532 = vld [vmem:[#allocation17 + $0xea0] sm:$0xff]
    %v3533 = vld [vmem:[#allocation17 + $0xea8] sm:$0xff]
    %v3534 = vld [vmem:[#allocation17 + $0xee0] sm:$0xff]
    %v3535 = vld [vmem:[#allocation17 + $0xee8] sm:$0xff]
    %v3536 = vld [vmem:[#allocation17 + $0xf20] sm:$0xff]
    %v3537 = vld [vmem:[#allocation17 + $0xf28] sm:$0xff]
    %v3538 = vld [vmem:[#allocation17 + $0xf60] sm:$0xff]
    %v3539 = vld [vmem:[#allocation17 + $0xf68] sm:$0xff]
    %v3540 = vld [vmem:[#allocation17 + $0xfa0] sm:$0xff]
    %v3541 = vld [vmem:[#allocation17 + $0xfa8] sm:$0xff]
    %v3542 = vld [vmem:[#allocation17 + $0xfe0] sm:$0xff]
    %v3543 = vld [vmem:[#allocation17 + $0xfe8] sm:$0xff]
    %v3544 = vld [vmem:[#allocation19 + $0x4] sm:$0x3]
    %v3546 = vlaneseq
    %v3547 = vshrl.u32 %v3546, 7
    %v3548 = vsub.s32 0, %v3547
    %v3549 = vrot.slane %v3544, %v3548
    %v3550 = vlaneseq
    %v3551 = vshrl.u32 %v3550, 7
    %v3552 = vsub.s32 1, %v3551
    %v3553 = vrot.slane %v3544, %v3552
    %3556 = vmatprep.subr.mxu0 %v3417
    %3557 = vmatpush1.msra.mxu0 %v3416
    %3558 = vmatprep.subr.mxu0 %v3419
    %3559 = vmatpush1.msra.mxu0 %v3418
    %3560 = vmatprep.subr.mxu0 %v3421
    %3561 = vmatpush1.msra.mxu0 %v3420
    %3562 = vmatprep.subr.mxu0 %v3423
    %3563 = vmatpush1.msra.mxu0 %v3422
    %3564 = vmatprep.subr.mxu0 %v3425
    %3565 = vmatpush1.msra.mxu0 %v3424
    %3566 = vmatprep.subr.mxu0 %v3427
    %3567 = vmatpush1.msra.mxu0 %v3426
    %3568 = vmatprep.subr.mxu0 %v3429
    %3569 = vmatpush1.msra.mxu0 %v3428
    %3570 = vmatprep.subr.mxu0 %v3431
    %3571 = vmatpush1.msra.mxu0 %v3430
    %3572 = vmatprep.subr.mxu0 %v3433
    %3573 = vmatpush1.msra.mxu0 %v3432
    %3574 = vmatprep.subr.mxu0 %v3435
    %3575 = vmatpush1.msra.mxu0 %v3434
    %3576 = vmatprep.subr.mxu0 %v3437
    %3577 = vmatpush1.msra.mxu0 %v3436
    %3578 = vmatprep.subr.mxu0 %v3439
    %3579 = vmatpush1.msra.mxu0 %v3438
    %3580 = vmatprep.subr.mxu0 %v3441
    %3581 = vmatpush1.msra.mxu0 %v3440
    %3582 = vmatprep.subr.mxu0 %v3443
    %3583 = vmatpush1.msra.mxu0 %v3442
    %3584 = vmatprep.subr.mxu0 %v3445
    %3585 = vmatpush1.msra.mxu0 %v3444
    %3586 = vmatprep.subr.mxu0 %v3447
    %3587 = vmatpush1.msra.mxu0 %v3446
    %3588 = vmatprep.subr.mxu0 %v3449
    %3589 = vmatpush1.msra.mxu0 %v3448
    %3590 = vmatprep.subr.mxu0 %v3451
    %3591 = vmatpush1.msra.mxu0 %v3450
    %3592 = vmatprep.subr.mxu0 %v3453
    %3593 = vmatpush1.msra.mxu0 %v3452
    %3594 = vmatprep.subr.mxu0 %v3455
    %3595 = vmatpush1.msra.mxu0 %v3454
    %3596 = vmatprep.subr.mxu0 %v3457
    %3597 = vmatpush1.msra.mxu0 %v3456
    %3598 = vmatprep.subr.mxu0 %v3459
    %3599 = vmatpush1.msra.mxu0 %v3458
    %3600 = vmatprep.subr.mxu0 %v3461
    %3601 = vmatpush1.msra.mxu0 %v3460
    %3602 = vmatprep.subr.mxu0 %v3463
    %3603 = vmatpush1.msra.mxu0 %v3462
    %3604 = vmatprep.subr.mxu0 %v3465
    %3605 = vmatpush1.msra.mxu0 %v3464
    %3606 = vmatprep.subr.mxu0 %v3467
    %3607 = vmatpush1.msra.mxu0 %v3466
    %3608 = vmatprep.subr.mxu0 %v3469
    %3609 = vmatpush1.msra.mxu0 %v3468
    %3610 = vmatprep.subr.mxu0 %v3471
    %3611 = vmatpush1.msra.mxu0 %v3470
    %3612 = vmatprep.subr.mxu0 %v3473
    %3613 = vmatpush1.msra.mxu0 %v3472
    %3614 = vmatprep.subr.mxu0 %v3475
    %3615 = vmatpush1.msra.mxu0 %v3474
    %3616 = vmatprep.subr.mxu0 %v3477
    %3617 = vmatpush1.msra.mxu0 %v3476
    %3618 = vmatprep.subr.mxu0 %v3479
    %3619 = vmatpush1.msra.mxu0 %v3478
    %3620 = vmatprep.mubr.f32.mxu0 %v2843
    %3621 = vmatmul.mubr.f32.gmra.mrb[0].mxu0 %v2842
    %v3622 = vpop.f32.mrb[0].mxu0
    %v3623 = vadd.f32 %v3549, %v3622
    %v3624 = vpop.f32.mrb[0].mxu0
    %v3625 = vadd.f32 %v3553, %v3624
    %3626 = vdwg.mxu0
    %3627 = vmatprep.subr.mxu0 %v3481
    %3628 = vmatpush1.msra.mxu0 %v3480
    %3629 = vmatprep.subr.mxu0 %v3483
    %3630 = vmatpush1.msra.mxu0 %v3482
    %3631 = vmatprep.subr.mxu0 %v3485
    %3632 = vmatpush1.msra.mxu0 %v3484
    %3633 = vmatprep.subr.mxu0 %v3487
    %3634 = vmatpush1.msra.mxu0 %v3486
    %3635 = vmatprep.subr.mxu0 %v3489
    %3636 = vmatpush1.msra.mxu0 %v3488
    %3637 = vmatprep.subr.mxu0 %v3491
    %3638 = vmatpush1.msra.mxu0 %v3490
    %3639 = vmatprep.subr.mxu0 %v3493
    %3640 = vmatpush1.msra.mxu0 %v3492
    %3641 = vmatprep.subr.mxu0 %v3495
    %3642 = vmatpush1.msra.mxu0 %v3494
    %3643 = vmatprep.subr.mxu0 %v3497
    %3644 = vmatpush1.msra.mxu0 %v3496
    %3645 = vmatprep.subr.mxu0 %v3499
    %3646 = vmatpush1.msra.mxu0 %v3498
    %3647 = vmatprep.subr.mxu0 %v3501
    %3648 = vmatpush1.msra.mxu0 %v3500
    %3649 = vmatprep.subr.mxu0 %v3503
    %3650 = vmatpush1.msra.mxu0 %v3502
    %3651 = vmatprep.subr.mxu0 %v3505
    %3652 = vmatpush1.msra.mxu0 %v3504
    %3653 = vmatprep.subr.mxu0 %v3507
    %3654 = vmatpush1.msra.mxu0 %v3506
    %3655 = vmatprep.subr.mxu0 %v3509
    %3656 = vmatpush1.msra.mxu0 %v3508
    %3657 = vmatprep.subr.mxu0 %v3511
    %3658 = vmatpush1.msra.mxu0 %v3510
    %3659 = vmatprep.subr.mxu0 %v3513
    %3660 = vmatpush1.msra.mxu0 %v3512
    %3661 = vmatprep.subr.mxu0 %v3515
    %3662 = vmatpush1.msra.mxu0 %v3514
    %3663 = vmatprep.subr.mxu0 %v3517
    %3664 = vmatpush1.msra.mxu0 %v3516
    %3665 = vmatprep.subr.mxu0 %v3519
    %3666 = vmatpush1.msra.mxu0 %v3518
    %3667 = vmatprep.subr.mxu0 %v3521
    %3668 = vmatpush1.msra.mxu0 %v3520
    %3669 = vmatprep.subr.mxu0 %v3523
    %3670 = vmatpush1.msra.mxu0 %v3522
    %3671 = vmatprep.subr.mxu0 %v3525
    %3672 = vmatpush1.msra.mxu0 %v3524
    %3673 = vmatprep.subr.mxu0 %v3527
    %3674 = vmatpush1.msra.mxu0 %v3526
    %3675 = vmatprep.subr.mxu0 %v3529
    %3676 = vmatpush1.msra.mxu0 %v3528
    %3677 = vmatprep.subr.mxu0 %v3531
    %3678 = vmatpush1.msra.mxu0 %v3530
    %3679 = vmatprep.subr.mxu0 %v3533
    %3680 = vmatpush1.msra.mxu0 %v3532
    %3681 = vmatprep.subr.mxu0 %v3535
    %3682 = vmatpush1.msra.mxu0 %v3534
    %3683 = vmatprep.subr.mxu0 %v3537
    %3684 = vmatpush1.msra.mxu0 %v3536
    %3685 = vmatprep.subr.mxu0 %v3539
    %3686 = vmatpush1.msra.mxu0 %v3538
    %3687 = vmatprep.subr.mxu0 %v3541
    %3688 = vmatpush1.msra.mxu0 %v3540
    %3689 = vmatprep.subr.mxu0 %v3543
    %3690 = vmatpush1.msra.mxu0 %v3542
    %3691 = vmatprep.mubr.f32.mxu0 %v2845
    %3692 = vmatmul.mubr.f32.gmra.mrb[0].mxu0 %v2844
    %v3693 = vpop.f32.mrb[0].mxu0
    %v3694 = vadd.f32 %v3623, %v3693
    %v3695 = vpop.f32.mrb[0].mxu0
    %v3696 = vadd.f32 %v3625, %v3695
    %3697 = vdwg.mxu0
    %v3698 = vmax.f32 %v3694, 0.0
    %v3699 = vmax.f32 %v3696, 0.0
    %v3700 = vmax.f32 %v3414, %v3698
    %v3701 = vmax.f32 %v3415, %v3699
    %v3702 = vld [vmem:[#allocation17 + $0x30] sm:$0xff]
    %v3703 = vld [vmem:[#allocation17 + $0x38] sm:$0xff]
    %v3704 = vld [vmem:[#allocation17 + $0x70] sm:$0xff]
    %v3705 = vld [vmem:[#allocation17 + $0x78] sm:$0xff]
    %v3706 = vld [vmem:[#allocation17 + $0xb0] sm:$0xff]
    %v3707 = vld [vmem:[#allocation17 + $0xb8] sm:$0xff]
    %v3708 = vld [vmem:[#allocation17 + $0xf0] sm:$0xff]
    %v3709 = vld [vmem:[#allocation17 + $0xf8] sm:$0xff]
    %v3710 = vld [vmem:[#allocation17 + $0x130] sm:$0xff]
    %v3711 = vld [vmem:[#allocation17 + $0x138] sm:$0xff]
    %v3712 = vld [vmem:[#allocation17 + $0x170] sm:$0xff]
    %v3713 = vld [vmem:[#allocation17 + $0x178] sm:$0xff]
    %v3714 = vld [vmem:[#allocation17 + $0x1b0] sm:$0xff]
    %v3715 = vld [vmem:[#allocation17 + $0x1b8] sm:$0xff]
    %v3716 = vld [vmem:[#allocation17 + $0x1f0] sm:$0xff]
    %v3717 = vld [vmem:[#allocation17 + $0x1f8] sm:$0xff]
    %v3718 = vld [vmem:[#allocation17 + $0x230] sm:$0xff]
    %v3719 = vld [vmem:[#allocation17 + $0x238] sm:$0xff]
    %v3720 = vld [vmem:[#allocation17 + $0x270] sm:$0xff]
    %v3721 = vld [vmem:[#allocation17 + $0x278] sm:$0xff]
    %v3722 = vld [vmem:[#allocation17 + $0x2b0] sm:$0xff]
    %v3723 = vld [vmem:[#allocation17 + $0x2b8] sm:$0xff]
    %v3724 = vld [vmem:[#allocation17 + $0x2f0] sm:$0xff]
    %v3725 = vld [vmem:[#allocation17 + $0x2f8] sm:$0xff]
    %v3726 = vld [vmem:[#allocation17 + $0x330] sm:$0xff]
    %v3727 = vld [vmem:[#allocation17 + $0x338] sm:$0xff]
    %v3728 = vld [vmem:[#allocation17 + $0x370] sm:$0xff]
    %v3729 = vld [vmem:[#allocation17 + $0x378] sm:$0xff]
    %v3730 = vld [vmem:[#allocation17 + $0x3b0] sm:$0xff]
    %v3731 = vld [vmem:[#allocation17 + $0x3b8] sm:$0xff]
    %v3732 = vld [vmem:[#allocation17 + $0x3f0] sm:$0xff]
    %v3733 = vld [vmem:[#allocation17 + $0x3f8] sm:$0xff]
    %v3734 = vld [vmem:[#allocation17 + $0x430] sm:$0xff]
    %v3735 = vld [vmem:[#allocation17 + $0x438] sm:$0xff]
    %v3736 = vld [vmem:[#allocation17 + $0x470] sm:$0xff]
    %v3737 = vld [vmem:[#allocation17 + $0x478] sm:$0xff]
    %v3738 = vld [vmem:[#allocation17 + $0x4b0] sm:$0xff]
    %v3739 = vld [vmem:[#allocation17 + $0x4b8] sm:$0xff]
    %v3740 = vld [vmem:[#allocation17 + $0x4f0] sm:$0xff]
    %v3741 = vld [vmem:[#allocation17 + $0x4f8] sm:$0xff]
    %v3742 = vld [vmem:[#allocation17 + $0x530] sm:$0xff]
    %v3743 = vld [vmem:[#allocation17 + $0x538] sm:$0xff]
    %v3744 = vld [vmem:[#allocation17 + $0x570] sm:$0xff]
    %v3745 = vld [vmem:[#allocation17 + $0x578] sm:$0xff]
    %v3746 = vld [vmem:[#allocation17 + $0x5b0] sm:$0xff]
    %v3747 = vld [vmem:[#allocation17 + $0x5b8] sm:$0xff]
    %v3748 = vld [vmem:[#allocation17 + $0x5f0] sm:$0xff]
    %v3749 = vld [vmem:[#allocation17 + $0x5f8] sm:$0xff]
    %v3750 = vld [vmem:[#allocation17 + $0x630] sm:$0xff]
    %v3751 = vld [vmem:[#allocation17 + $0x638] sm:$0xff]
    %v3752 = vld [vmem:[#allocation17 + $0x670] sm:$0xff]
    %v3753 = vld [vmem:[#allocation17 + $0x678] sm:$0xff]
    %v3754 = vld [vmem:[#allocation17 + $0x6b0] sm:$0xff]
    %v3755 = vld [vmem:[#allocation17 + $0x6b8] sm:$0xff]
    %v3756 = vld [vmem:[#allocation17 + $0x6f0] sm:$0xff]
    %v3757 = vld [vmem:[#allocation17 + $0x6f8] sm:$0xff]
    %v3758 = vld [vmem:[#allocation17 + $0x730] sm:$0xff]
    %v3759 = vld [vmem:[#allocation17 + $0x738] sm:$0xff]
    %v3760 = vld [vmem:[#allocation17 + $0x770] sm:$0xff]
    %v3761 = vld [vmem:[#allocation17 + $0x778] sm:$0xff]
    %v3762 = vld [vmem:[#allocation17 + $0x7b0] sm:$0xff]
    %v3763 = vld [vmem:[#allocation17 + $0x7b8] sm:$0xff]
    %v3764 = vld [vmem:[#allocation17 + $0x7f0] sm:$0xff]
    %v3765 = vld [vmem:[#allocation17 + $0x7f8] sm:$0xff]
    %v3766 = vld [vmem:[#allocation17 + $0x830] sm:$0xff]
    %v3767 = vld [vmem:[#allocation17 + $0x838] sm:$0xff]
    %v3768 = vld [vmem:[#allocation17 + $0x870] sm:$0xff]
    %v3769 = vld [vmem:[#allocation17 + $0x878] sm:$0xff]
    %v3770 = vld [vmem:[#allocation17 + $0x8b0] sm:$0xff]
    %v3771 = vld [vmem:[#allocation17 + $0x8b8] sm:$0xff]
    %v3772 = vld [vmem:[#allocation17 + $0x8f0] sm:$0xff]
    %v3773 = vld [vmem:[#allocation17 + $0x8f8] sm:$0xff]
    %v3774 = vld [vmem:[#allocation17 + $0x930] sm:$0xff]
    %v3775 = vld [vmem:[#allocation17 + $0x938] sm:$0xff]
    %v3776 = vld [vmem:[#allocation17 + $0x970] sm:$0xff]
    %v3777 = vld [vmem:[#allocation17 + $0x978] sm:$0xff]
    %v3778 = vld [vmem:[#allocation17 + $0x9b0] sm:$0xff]
    %v3779 = vld [vmem:[#allocation17 + $0x9b8] sm:$0xff]
    %v3780 = vld [vmem:[#allocation17 + $0x9f0] sm:$0xff]
    %v3781 = vld [vmem:[#allocation17 + $0x9f8] sm:$0xff]
    %v3782 = vld [vmem:[#allocation17 + $0xa30] sm:$0xff]
    %v3783 = vld [vmem:[#allocation17 + $0xa38] sm:$0xff]
    %v3784 = vld [vmem:[#allocation17 + $0xa70] sm:$0xff]
    %v3785 = vld [vmem:[#allocation17 + $0xa78] sm:$0xff]
    %v3786 = vld [vmem:[#allocation17 + $0xab0] sm:$0xff]
    %v3787 = vld [vmem:[#allocation17 + $0xab8] sm:$0xff]
    %v3788 = vld [vmem:[#allocation17 + $0xaf0] sm:$0xff]
    %v3789 = vld [vmem:[#allocation17 + $0xaf8] sm:$0xff]
    %v3790 = vld [vmem:[#allocation17 + $0xb30] sm:$0xff]
    %v3791 = vld [vmem:[#allocation17 + $0xb38] sm:$0xff]
    %v3792 = vld [vmem:[#allocation17 + $0xb70] sm:$0xff]
    %v3793 = vld [vmem:[#allocation17 + $0xb78] sm:$0xff]
    %v3794 = vld [vmem:[#allocation17 + $0xbb0] sm:$0xff]
    %v3795 = vld [vmem:[#allocation17 + $0xbb8] sm:$0xff]
    %v3796 = vld [vmem:[#allocation17 + $0xbf0] sm:$0xff]
    %v3797 = vld [vmem:[#allocation17 + $0xbf8] sm:$0xff]
    %v3798 = vld [vmem:[#allocation17 + $0xc30] sm:$0xff]
    %v3799 = vld [vmem:[#allocation17 + $0xc38] sm:$0xff]
    %v3800 = vld [vmem:[#allocation17 + $0xc70] sm:$0xff]
    %v3801 = vld [vmem:[#allocation17 + $0xc78] sm:$0xff]
    %v3802 = vld [vmem:[#allocation17 + $0xcb0] sm:$0xff]
    %v3803 = vld [vmem:[#allocation17 + $0xcb8] sm:$0xff]
    %v3804 = vld [vmem:[#allocation17 + $0xcf0] sm:$0xff]
    %v3805 = vld [vmem:[#allocation17 + $0xcf8] sm:$0xff]
    %v3806 = vld [vmem:[#allocation17 + $0xd30] sm:$0xff]
    %v3807 = vld [vmem:[#allocation17 + $0xd38] sm:$0xff]
    %v3808 = vld [vmem:[#allocation17 + $0xd70] sm:$0xff]
    %v3809 = vld [vmem:[#allocation17 + $0xd78] sm:$0xff]
    %v3810 = vld [vmem:[#allocation17 + $0xdb0] sm:$0xff]
    %v3811 = vld [vmem:[#allocation17 + $0xdb8] sm:$0xff]
    %v3812 = vld [vmem:[#allocation17 + $0xdf0] sm:$0xff]
    %v3813 = vld [vmem:[#allocation17 + $0xdf8] sm:$0xff]
    %v3814 = vld [vmem:[#allocation17 + $0xe30] sm:$0xff]
    %v3815 = vld [vmem:[#allocation17 + $0xe38] sm:$0xff]
    %v3816 = vld [vmem:[#allocation17 + $0xe70] sm:$0xff]
    %v3817 = vld [vmem:[#allocation17 + $0xe78] sm:$0xff]
    %v3818 = vld [vmem:[#allocation17 + $0xeb0] sm:$0xff]
    %v3819 = vld [vmem:[#allocation17 + $0xeb8] sm:$0xff]
    %v3820 = vld [vmem:[#allocation17 + $0xef0] sm:$0xff]
    %v3821 = vld [vmem:[#allocation17 + $0xef8] sm:$0xff]
    %v3822 = vld [vmem:[#allocation17 + $0xf30] sm:$0xff]
    %v3823 = vld [vmem:[#allocation17 + $0xf38] sm:$0xff]
    %v3824 = vld [vmem:[#allocation17 + $0xf70] sm:$0xff]
    %v3825 = vld [vmem:[#allocation17 + $0xf78] sm:$0xff]
    %v3826 = vld [vmem:[#allocation17 + $0xfb0] sm:$0xff]
    %v3827 = vld [vmem:[#allocation17 + $0xfb8] sm:$0xff]
    %v3828 = vld [vmem:[#allocation17 + $0xff0] sm:$0xff]
    %v3829 = vld [vmem:[#allocation17 + $0xff8] sm:$0xff]
    %v3830 = vld [vmem:[#allocation19 + $0x6] sm:$0x3]
    %v3832 = vlaneseq
    %v3833 = vshrl.u32 %v3832, 7
    %v3834 = vsub.s32 0, %v3833
    %v3835 = vrot.slane %v3830, %v3834
    %v3836 = vlaneseq
    %v3837 = vshrl.u32 %v3836, 7
    %v3838 = vsub.s32 1, %v3837
    %v3839 = vrot.slane %v3830, %v3838
    %3842 = vmatprep.subr.mxu0 %v3703
    %3843 = vmatpush1.msra.mxu0 %v3702
    %3844 = vmatprep.subr.mxu0 %v3705
    %3845 = vmatpush1.msra.mxu0 %v3704
    %3846 = vmatprep.subr.mxu0 %v3707
    %3847 = vmatpush1.msra.mxu0 %v3706
    %3848 = vmatprep.subr.mxu0 %v3709
    %3849 = vmatpush1.msra.mxu0 %v3708
    %3850 = vmatprep.subr.mxu0 %v3711
    %3851 = vmatpush1.msra.mxu0 %v3710
    %3852 = vmatprep.subr.mxu0 %v3713
    %3853 = vmatpush1.msra.mxu0 %v3712
    %3854 = vmatprep.subr.mxu0 %v3715
    %3855 = vmatpush1.msra.mxu0 %v3714
    %3856 = vmatprep.subr.mxu0 %v3717
    %3857 = vmatpush1.msra.mxu0 %v3716
    %3858 = vmatprep.subr.mxu0 %v3719
    %3859 = vmatpush1.msra.mxu0 %v3718
    %3860 = vmatprep.subr.mxu0 %v3721
    %3861 = vmatpush1.msra.mxu0 %v3720
    %3862 = vmatprep.subr.mxu0 %v3723
    %3863 = vmatpush1.msra.mxu0 %v3722
    %3864 = vmatprep.subr.mxu0 %v3725
    %3865 = vmatpush1.msra.mxu0 %v3724
    %3866 = vmatprep.subr.mxu0 %v3727
    %3867 = vmatpush1.msra.mxu0 %v3726
    %3868 = vmatprep.subr.mxu0 %v3729
    %3869 = vmatpush1.msra.mxu0 %v3728
    %3870 = vmatprep.subr.mxu0 %v3731
    %3871 = vmatpush1.msra.mxu0 %v3730
    %3872 = vmatprep.subr.mxu0 %v3733
    %3873 = vmatpush1.msra.mxu0 %v3732
    %3874 = vmatprep.subr.mxu0 %v3735
    %3875 = vmatpush1.msra.mxu0 %v3734
    %3876 = vmatprep.subr.mxu0 %v3737
    %3877 = vmatpush1.msra.mxu0 %v3736
    %3878 = vmatprep.subr.mxu0 %v3739
    %3879 = vmatpush1.msra.mxu0 %v3738
    %3880 = vmatprep.subr.mxu0 %v3741
    %3881 = vmatpush1.msra.mxu0 %v3740
    %3882 = vmatprep.subr.mxu0 %v3743
    %3883 = vmatpush1.msra.mxu0 %v3742
    %3884 = vmatprep.subr.mxu0 %v3745
    %3885 = vmatpush1.msra.mxu0 %v3744
    %3886 = vmatprep.subr.mxu0 %v3747
    %3887 = vmatpush1.msra.mxu0 %v3746
    %3888 = vmatprep.subr.mxu0 %v3749
    %3889 = vmatpush1.msra.mxu0 %v3748
    %3890 = vmatprep.subr.mxu0 %v3751
    %3891 = vmatpush1.msra.mxu0 %v3750
    %3892 = vmatprep.subr.mxu0 %v3753
    %3893 = vmatpush1.msra.mxu0 %v3752
    %3894 = vmatprep.subr.mxu0 %v3755
    %3895 = vmatpush1.msra.mxu0 %v3754
    %3896 = vmatprep.subr.mxu0 %v3757
    %3897 = vmatpush1.msra.mxu0 %v3756
    %3898 = vmatprep.subr.mxu0 %v3759
    %3899 = vmatpush1.msra.mxu0 %v3758
    %3900 = vmatprep.subr.mxu0 %v3761
    %3901 = vmatpush1.msra.mxu0 %v3760
    %3902 = vmatprep.subr.mxu0 %v3763
    %3903 = vmatpush1.msra.mxu0 %v3762
    %3904 = vmatprep.subr.mxu0 %v3765
    %3905 = vmatpush1.msra.mxu0 %v3764
    %3906 = vmatprep.mubr.f32.mxu0 %v2843
    %3907 = vmatmul.mubr.f32.gmra.mrb[0].mxu0 %v2842
    %v3908 = vpop.f32.mrb[0].mxu0
    %v3909 = vadd.f32 %v3835, %v3908
    %v3910 = vpop.f32.mrb[0].mxu0
    %v3911 = vadd.f32 %v3839, %v3910
    %3912 = vdwg.mxu0
    %3913 = vmatprep.subr.mxu0 %v3767
    %3914 = vmatpush1.msra.mxu0 %v3766
    %3915 = vmatprep.subr.mxu0 %v3769
    %3916 = vmatpush1.msra.mxu0 %v3768
    %3917 = vmatprep.subr.mxu0 %v3771
    %3918 = vmatpush1.msra.mxu0 %v3770
    %3919 = vmatprep.subr.mxu0 %v3773
    %3920 = vmatpush1.msra.mxu0 %v3772
    %3921 = vmatprep.subr.mxu0 %v3775
    %3922 = vmatpush1.msra.mxu0 %v3774
    %3923 = vmatprep.subr.mxu0 %v3777
    %3924 = vmatpush1.msra.mxu0 %v3776
    %3925 = vmatprep.subr.mxu0 %v3779
    %3926 = vmatpush1.msra.mxu0 %v3778
    %3927 = vmatprep.subr.mxu0 %v3781
    %3928 = vmatpush1.msra.mxu0 %v3780
    %3929 = vmatprep.subr.mxu0 %v3783
    %3930 = vmatpush1.msra.mxu0 %v3782
    %3931 = vmatprep.subr.mxu0 %v3785
    %3932 = vmatpush1.msra.mxu0 %v3784
    %3933 = vmatprep.subr.mxu0 %v3787
    %3934 = vmatpush1.msra.mxu0 %v3786
    %3935 = vmatprep.subr.mxu0 %v3789
    %3936 = vmatpush1.msra.mxu0 %v3788
    %3937 = vmatprep.subr.mxu0 %v3791
    %3938 = vmatpush1.msra.mxu0 %v3790
    %3939 = vmatprep.subr.mxu0 %v3793
    %3940 = vmatpush1.msra.mxu0 %v3792
    %3941 = vmatprep.subr.mxu0 %v3795
    %3942 = vmatpush1.msra.mxu0 %v3794
    %3943 = vmatprep.subr.mxu0 %v3797
    %3944 = vmatpush1.msra.mxu0 %v3796
    %3945 = vmatprep.subr.mxu0 %v3799
    %3946 = vmatpush1.msra.mxu0 %v3798
    %3947 = vmatprep.subr.mxu0 %v3801
    %3948 = vmatpush1.msra.mxu0 %v3800
    %3949 = vmatprep.subr.mxu0 %v3803
    %3950 = vmatpush1.msra.mxu0 %v3802
    %3951 = vmatprep.subr.mxu0 %v3805
    %3952 = vmatpush1.msra.mxu0 %v3804
    %3953 = vmatprep.subr.mxu0 %v3807
    %3954 = vmatpush1.msra.mxu0 %v3806
    %3955 = vmatprep.subr.mxu0 %v3809
    %3956 = vmatpush1.msra.mxu0 %v3808
    %3957 = vmatprep.subr.mxu0 %v3811
    %3958 = vmatpush1.msra.mxu0 %v3810
    %3959 = vmatprep.subr.mxu0 %v3813
    %3960 = vmatpush1.msra.mxu0 %v3812
    %3961 = vmatprep.subr.mxu0 %v3815
    %3962 = vmatpush1.msra.mxu0 %v3814
    %3963 = vmatprep.subr.mxu0 %v3817
    %3964 = vmatpush1.msra.mxu0 %v3816
    %3965 = vmatprep.subr.mxu0 %v3819
    %3966 = vmatpush1.msra.mxu0 %v3818
    %3967 = vmatprep.subr.mxu0 %v3821
    %3968 = vmatpush1.msra.mxu0 %v3820
    %3969 = vmatprep.subr.mxu0 %v3823
    %3970 = vmatpush1.msra.mxu0 %v3822
    %3971 = vmatprep.subr.mxu0 %v3825
    %3972 = vmatpush1.msra.mxu0 %v3824
    %3973 = vmatprep.subr.mxu0 %v3827
    %3974 = vmatpush1.msra.mxu0 %v3826
    %3975 = vmatprep.subr.mxu0 %v3829
    %3976 = vmatpush1.msra.mxu0 %v3828
    %3977 = vmatprep.mubr.f32.mxu0 %v2845
    %3978 = vmatmul.mubr.f32.gmra.mrb[0].mxu0 %v2844
    %v3979 = vpop.f32.mrb[0].mxu0
    %v3980 = vadd.f32 %v3909, %v3979
    %v3981 = vpop.f32.mrb[0].mxu0
    %v3982 = vadd.f32 %v3911, %v3981
    %3983 = vdwg.mxu0
    %v3984 = vmax.f32 %v3980, 0.0
    %v3985 = vmax.f32 %v3982, 0.0
    %v3986 = vmax.f32 %v3700, %v3984
    %v3987 = vmax.f32 %v3701, %v3985
    %v3988 = vld [vmem:[#allocation20] sm:$0xff]
    %v3989 = vld [vmem:[#allocation20 + $0x8] sm:$0xff]
    %v3990 = vld [vmem:[#allocation20 + $0x10] sm:$0xff]
    %v3991 = vld [vmem:[#allocation20 + $0x18] sm:$0xff]
    %v3992 = vld [vmem:[#allocation20 + $0x20] sm:$0xff]
    %v3993 = vld [vmem:[#allocation20 + $0x28] sm:$0xff]
    %v3994 = vld [vmem:[#allocation20 + $0x30] sm:$0xff]
    %v3995 = vld [vmem:[#allocation20 + $0x38] sm:$0xff]
    %v3996 = vld [vmem:[#allocation20 + $0x40] sm:$0xff]
    %v3997 = vld [vmem:[#allocation20 + $0x48] sm:$0xff]
    %v3998 = vld [vmem:[#allocation20 + $0x50] sm:$0xff]
    %v3999 = vld [vmem:[#allocation20 + $0x58] sm:$0xff]
    %v4000 = vld [vmem:[#allocation20 + $0x60] sm:$0xff]
    %v4001 = vld [vmem:[#allocation20 + $0x68] sm:$0xff]
    %v4002 = vld [vmem:[#allocation20 + $0x70] sm:$0xff]
    %v4003 = vld [vmem:[#allocation20 + $0x78] sm:$0xff]
    %v4004 = vld [vmem:[#allocation20 + $0x80] sm:$0xff]
    %v4005 = vld [vmem:[#allocation20 + $0x88] sm:$0xff]
    %v4006 = vld [vmem:[#allocation20 + $0x90] sm:$0xff]
    %v4007 = vld [vmem:[#allocation20 + $0x98] sm:$0xff]
    %v4008 = vld [vmem:[#allocation20 + $0xa0] sm:$0xff]
    %v4009 = vld [vmem:[#allocation20 + $0xa8] sm:$0xff]
    %v4010 = vld [vmem:[#allocation20 + $0xb0] sm:$0xff]
    %v4011 = vld [vmem:[#allocation20 + $0xb8] sm:$0xff]
    %v4012 = vld [vmem:[#allocation20 + $0xc0] sm:$0xff]
    %v4013 = vld [vmem:[#allocation20 + $0xc8] sm:$0xff]
    %v4014 = vld [vmem:[#allocation20 + $0xd0] sm:$0xff]
    %v4015 = vld [vmem:[#allocation20 + $0xd8] sm:$0xff]
    %v4016 = vld [vmem:[#allocation20 + $0xe0] sm:$0xff]
    %v4017 = vld [vmem:[#allocation20 + $0xe8] sm:$0xff]
    %v4018 = vld [vmem:[#allocation20 + $0xf0] sm:$0xff]
    %v4019 = vld [vmem:[#allocation20 + $0xf8] sm:$0xff]
    %v4020 = vld [vmem:[#allocation22] sm:$0x1]
    %v4022 = vlaneseq
    %v4023 = vshrl.u32 %v4022, 7
    %v4024 = vsub.s32 0, %v4023
    %v4025 = vrot.slane %v4020, %v4024
    %4027 = vmatprep.subr.mxu0 0.0
    %4028 = vmatpush1.msra.mxu0 %v3988
    %4029 = vmatprep.subr.mxu0 0.0
    %4030 = vmatpush1.msra.mxu0 %v3989
    %4031 = vmatprep.subr.mxu0 0.0
    %4032 = vmatpush1.msra.mxu0 %v3990
    %4033 = vmatprep.subr.mxu0 0.0
    %4034 = vmatpush1.msra.mxu0 %v3991
    %4035 = vmatprep.subr.mxu0 0.0
    %4036 = vmatpush1.msra.mxu0 %v3992
    %4037 = vmatprep.subr.mxu0 0.0
    %4038 = vmatpush1.msra.mxu0 %v3993
    %4039 = vmatprep.subr.mxu0 0.0
    %4040 = vmatpush1.msra.mxu0 %v3994
    %4041 = vmatprep.subr.mxu0 0.0
    %4042 = vmatpush1.msra.mxu0 %v3995
    %4043 = vmatprep.subr.mxu0 0.0
    %4044 = vmatpush1.msra.mxu0 %v3996
    %4045 = vmatprep.subr.mxu0 0.0
    %4046 = vmatpush1.msra.mxu0 %v3997
    %4047 = vmatprep.subr.mxu0 0.0
    %4048 = vmatpush1.msra.mxu0 %v3998
    %4049 = vmatprep.subr.mxu0 0.0
    %4050 = vmatpush1.msra.mxu0 %v3999
    %4051 = vmatprep.subr.mxu0 0.0
    %4052 = vmatpush1.msra.mxu0 %v4000
    %4053 = vmatprep.subr.mxu0 0.0
    %4054 = vmatpush1.msra.mxu0 %v4001
    %4055 = vmatprep.subr.mxu0 0.0
    %4056 = vmatpush1.msra.mxu0 %v4002
    %4057 = vmatprep.subr.mxu0 0.0
    %4058 = vmatpush1.msra.mxu0 %v4003
    %4059 = vmatprep.subr.mxu0 0.0
    %4060 = vmatpush1.msra.mxu0 %v4004
    %4061 = vmatprep.subr.mxu0 0.0
    %4062 = vmatpush1.msra.mxu0 %v4005
    %4063 = vmatprep.subr.mxu0 0.0
    %4064 = vmatpush1.msra.mxu0 %v4006
    %4065 = vmatprep.subr.mxu0 0.0
    %4066 = vmatpush1.msra.mxu0 %v4007
    %4067 = vmatprep.subr.mxu0 0.0
    %4068 = vmatpush1.msra.mxu0 %v4008
    %4069 = vmatprep.subr.mxu0 0.0
    %4070 = vmatpush1.msra.mxu0 %v4009
    %4071 = vmatprep.subr.mxu0 0.0
    %4072 = vmatpush1.msra.mxu0 %v4010
    %4073 = vmatprep.subr.mxu0 0.0
    %4074 = vmatpush1.msra.mxu0 %v4011
    %4075 = vmatprep.subr.mxu0 0.0
    %4076 = vmatpush1.msra.mxu0 %v4012
    %4077 = vmatprep.subr.mxu0 0.0
    %4078 = vmatpush1.msra.mxu0 %v4013
    %4079 = vmatprep.subr.mxu0 0.0
    %4080 = vmatpush1.msra.mxu0 %v4014
    %4081 = vmatprep.subr.mxu0 0.0
    %4082 = vmatpush1.msra.mxu0 %v4015
    %4083 = vmatprep.subr.mxu0 0.0
    %4084 = vmatpush1.msra.mxu0 %v4016
    %4085 = vmatprep.subr.mxu0 0.0
    %4086 = vmatpush1.msra.mxu0 %v4017
    %4087 = vmatprep.subr.mxu0 0.0
    %4088 = vmatpush1.msra.mxu0 %v4018
    %4089 = vmatprep.subr.mxu0 0.0
    %4090 = vmatpush1.msra.mxu0 %v4019
    %4091 = vmatprep.mubr.f32.mxu0 %v3987
    %4092 = vmatmul.mubr.f32.gmra.mrb[0].mxu0 %v3986
    %v4093 = vpop.f32.mrb[0].mxu0
    %v4094 = vadd.f32 %v4025, %v4093
    %v4095 = vpop.f32.mrb[0].mxu0
    %4096 = vdwg.mxu0
    %4097 = vst [vmem:[#allocation23] sm:$0xff] %v4094
    // Predicated region
    $region106: #{tpu_custom_call.1} parent=1 // pred_check
      _
    $region107: #{tpu_custom_call.1} parent=1 // pred_check_branch
      %4099 = sbr.rel (0) target = $region109
    $region108: #{tpu_custom_call.1} parent=1 // pred_region
      %s4101 = ssub.s32 128, 128
      %4102 = vsyncadd [#allocation4], %s4101
      %s4104 = sshll.u32 [#allocation23], 4
      %s4105 = int_to_ptr.vmem [resolvable:$true] %s4104
      %4107 = dma.vmem_to_hbm [thread:$0]  %s4105, 128, %s13, [#allocation4]
    $region109: #{tpu_custom_call.1} parent=1 // pred_fallthru
      _
    // Predicated region
    $region110: #{tpu_custom_call.1} parent=1 // pred_check
      _
    $region111: #{tpu_custom_call.1} parent=1 // pred_check_branch
      %4109 = sbr.rel (0) target = $region113
    $region112: #{tpu_custom_call.1} parent=1 // pred_region
      %4110 = dma.done [#allocation4], 128
    $region113: #{tpu_custom_call.1} parent=1 // pred_fallthru
      _
    %4111 = vsyncpa [#allocation3], 1
    %4112 = vsyncpa [#allocation6], 1
    %4113 = vsyncpa [#allocation9], 1
    %4114 = vsyncpa [#allocation12], 1
    %4115 = vsyncpa [#allocation15], 1
    %4116 = vsyncpa [#allocation18], 1
    %4117 = vsyncpa [#allocation21], 1
    %4118 = vsyncpa [#allocation4], 1

</llo_original>
